<compile_context>
chip_gen: v5e
topology: v5e:2x2
jax: 0.10.0
libtpu: 0.0.40
codegen_flags: <defaults>
</compile_context>

<pallas_src>
import math

import jax
import jax.numpy as jnp
import numpy as np
from jax import lax
from jax.experimental import pallas as pl
from jax.experimental.pallas import tpu as pltpu

# ---------------- static hyper-parameters (module __init__ args) -------------
B = 2
T = 32                    # sequence length
CHANNELS = 16
HALF = CHANNELS // 2
HIDDEN = 64               # hidden_channels
FILTER = 128              # filter_channels
N_HEADS = 2
HEAD_DIM = HIDDEN // N_HEADS
N_LAYERS = 2
KERNEL_SIZE = 3
WINDOW = 4                # attentions.Encoder default window_size
REL = 2 * WINDOW + 1
EPS = 1e-5

_CONST_NAMES = ("band_big", "rep_a", "rep_r", "shift_mats")
_WEIGHT_NAMES = ("pre_w", "pre_b", "wq", "bq", "wk", "bk", "wv", "bv",
                 "wo", "bo", "erk_t", "erv", "ln1g", "ln1b",
                 "fw1", "fb1", "fw2", "fb2", "ln2g", "ln2b",
                 "post_w", "post_b")
_PARAM_NAMES = _CONST_NAMES + _WEIGHT_NAMES


# ---------------- shared math helpers (used inside the kernel) ---------------
def _mm(a, b):
    return jnp.dot(a, b, preferred_element_type=jnp.float32)


def _mm_nt(a, b):  # a:(M,K) b:(N,K) -> (M,N)   (q @ k^T without explicit transpose)
    return lax.dot_general(a, b, (((1,), (1,)), ((), ())),
                           preferred_element_type=jnp.float32)


def _layer_norm(x, g, b):
    mu = jnp.mean(x, axis=-1, keepdims=True)
    xc = x - mu
    var = jnp.mean(xc * xc, axis=-1, keepdims=True)
    return xc * lax.rsqrt(var + EPS) * g + b


def make_rel_constants():
    """Host-side constants (hoisted out of the kernel entirely).

      band_big[i, r*T + j] = 1  iff  j - i == r - WINDOW    (banded scatter/gather)
      rep_a[j', r*T + j]   = 1  iff  j == j'                (lane replication of attn)
      rep_r[r', r*T + j]   = 1  iff  r == r'                (per-diagonal selection)
      shift_mats[kk]       = row-shift matrix for FFN conv tap kk (same padding)
    """
    i = np.arange(T)
    c = np.arange(REL * T)
    j = c % T
    r = c // T
    band_big = (j[None, :] - i[:, None] == r[None, :] - WINDOW).astype(np.float32)
    rep_a = (j[None, :] == i[:, None]).astype(np.float32)
    rep_r = (r[None, :] == np.arange(REL)[:, None]).astype(np.float32)
    pad_l = (KERNEL_SIZE - 1) // 2
    shift_mats = np.stack(
        [(i[None, :] - i[:, None] == kk - pad_l).astype(np.float32)
         for kk in range(KERNEL_SIZE)], axis=0)
    return {"band_big": jnp.asarray(band_big),
            "rep_a": jnp.asarray(rep_a),
            "rep_r": jnp.asarray(rep_r),
            "shift_mats": jnp.asarray(shift_mats)}


def _coupling_forward(x0, x1, mcol, mrow, p, *, in_kernel):
    """Per-sample forward.  x0,x1:(T,HALF)  mcol:(T,1)  mrow:(1,T).

    `p` maps parameter/constant names to VMEM refs (kernel) or jnp arrays
    (reference); per-layer values are indexed lazily so only the current
    layer's weights need to be live at any point.
    """
    inv_sqrt_dk = 1.0 / math.sqrt(HEAD_DIM)
    pad_l = (KERNEL_SIZE - 1) // 2

    def recip(v):
        return pl.reciprocal(v, approx=True) if in_kernel else 1.0 / v

    def softmax(s):
        mx = jnp.max(s, axis=-1, keepdims=True)
        e = jnp.exp(s - mx)
        return e * recip(jnp.sum(e, axis=-1, keepdims=True))

    # ---- per-sample constants, hoisted out of the layer loop ----
    # additive attention-mask bias (0 where attendable, -1e4 where masked);
    # equal to torch's masked_fill for every query row with >=1 valid key (and
    # fully-masked rows never reach the output — they are re-masked later).
    mask_bias = (mcol * mrow - 1.0) * 1e4              # (T, T)
    band_big = p["band_big"][...]                      # (T, REL*T)
    rep_a = p["rep_a"][...]                            # (T, REL*T)
    rep_r = p["rep_r"][...]                            # (REL, REL*T)
    shift_taps = [None if kk == pad_l else p["shift_mats"][kk]
                  for kk in range(KERNEL_SIZE)]        # (T, T) each (or identity)

    def conv_cat(xv):                                  # (T, KERNEL_SIZE * C)
        parts = []
        for kk in range(KERNEL_SIZE):
            if shift_taps[kk] is None:
                parts.append(xv)
            else:  # row shift via hoisted shift matrix on the (idle) MXU
                parts.append(_mm(shift_taps[kk], xv))
        return jnp.concatenate(parts, axis=-1)

    # pre (1x1 conv) * mask; Encoder entry mask is idempotent (mask in {0,1})
    h = (_mm(x0, p["pre_w"][...]) + p["pre_b"][...]) * mcol

    for l in range(N_LAYERS):
        # ---- lazily read this layer's weights ----
        erv_l = p["erv"][l]                            # (REL, HEAD_DIM)
        erk_rep = _mm(p["erk_t"][l], rep_r)            # (HEAD_DIM, REL*T)

        # ---- MultiHeadAttention with shared relative-position embeddings ----
        q_all = _mm(h, p["wq"][l]) + p["bq"][l]
        k_all = _mm(h, p["wk"][l]) + p["bk"][l]
        v_all = _mm(h, p["wv"][l]) + p["bv"][l]

        head_outs = []
        for hd in range(N_HEADS):
            lo, hi = hd * HEAD_DIM, (hd + 1) * HEAD_DIM
            q = q_all[:, lo:hi] * inv_sqrt_dk
            k = k_all[:, lo:hi]
            v = v_all[:, lo:hi]
            # banded relative-key logits scattered onto |i-j|<=W (two matmuls)
            rel_sc = _mm_nt(_mm(q, erk_rep) * band_big, rep_a)       # (T, T)
            attn = softmax(_mm_nt(q, k) + rel_sc + mask_bias)
            out = _mm(attn, v)                                       # (T, HEAD_DIM)
            # banded relative-value contribution: W:(T,REL), then one matmul
            w_rel = lax.dot_general(_mm(attn, rep_a) * band_big, rep_r,
                                    (((1,), (1,)), ((), ())),
                                    preferred_element_type=jnp.float32)
            out = out + _mm(w_rel, erv_l)
            head_outs.append(out)
        y = _mm(jnp.concatenate(head_outs, axis=-1), p["wo"][l]) + p["bo"][l]
        h = _layer_norm(h + y, p["ln1g"][l], p["ln1b"][l])

        # ---- FFN: conv1d(k, same) -> relu -> conv1d(k, same), masked ----
        u = jnp.maximum(_mm(conv_cat(h * mcol), p["fw1"][l]) + p["fb1"][l], 0.0)
        u = u * mcol
        y = (_mm(conv_cat(u), p["fw2"][l]) + p["fb2"][l]) * mcol
        h = _layer_norm(h + y, p["ln2g"][l], p["ln2b"][l])

    h = h * mcol
    # post (1x1 conv) + mask, then affine coupling
    stats = (_mm(h, p["post_w"][...]) + p["post_b"][...]) * mcol
    m = stats[:, :HALF]
    logs = stats[:, HALF:]
    x1_new = m + x1 * jnp.exp(logs) * mcol
    x_out = jnp.concatenate([x0, x1_new], axis=-1)      # (T, CHANNELS)
    logdet = jnp.sum(logs, keepdims=True)               # (1, 1)
    return x_out, logdet


# ------------------------------- Pallas kernel --------------------------------
def _coupling_kernel(x0_ref, x1_ref, mcol_ref, mrow_ref, *refs):
    n = len(_PARAM_NAMES)
    p = dict(zip(_PARAM_NAMES, refs[:n]))              # refs, read lazily
    xout_ref, logdet_ref = refs[n:]
    x_out, logdet = _coupling_forward(
        x0_ref[0], x1_ref[0], mcol_ref[0], mrow_ref[0], p, in_kernel=True)
    xout_ref[0] = x_out
    logdet_ref[0] = logdet


def _rep_spec(shape):
    n = len(shape)
    return pl.BlockSpec(shape, lambda b, _n=n: (0,) * _n)


def _batch_spec(tail):
    n = len(tail)
    return pl.BlockSpec((1,) + tail, lambda b, _n=n: (b,) + (0,) * _n)


def transformer_coupling_forward(x, x_mask, params):
    """x: (B, C, T) (PyTorch NCW), x_mask: (B, 1, T). Returns (x_out (B,C,T), logdet (B,))."""
    b_, c_, t_ = x.shape
    x_cl = jnp.transpose(x, (0, 2, 1))            # (B, T, C)
    x0 = x_cl[:, :, :HALF]
    x1 = x_cl[:, :, HALF:]
    mcol = jnp.transpose(x_mask, (0, 2, 1))       # (B, T, 1)
    mrow = x_mask                                 # (B, 1, T)

    full = dict(params)
    full.update(make_rel_constants())
    plist = [full[k] for k in _PARAM_NAMES]

    in_arrays = [x0, x1, mcol, mrow] + plist
    in_specs = [_batch_spec((t_, HALF)), _batch_spec((t_, HALF)),
                _batch_spec((t_, 1)), _batch_spec((1, t_))]
    in_specs += [_rep_spec(a.shape) for a in plist]

    out_shape = (jax.ShapeDtypeStruct((b_, t_, c_), jnp.float32),
                 jax.ShapeDtypeStruct((b_, 1, 1), jnp.float32))
    out_specs = (_batch_spec((t_, c_)), _batch_spec((1, 1)))

    x_out_cl, logdet = pl.pallas_call(
        _coupling_kernel,
        grid=(b_,),
        in_specs=in_specs,
        out_specs=out_specs,
        out_shape=out_shape,
        compiler_params=pltpu.CompilerParams(
            dimension_semantics=("parallel",)),        # batch is independent
    )(*in_arrays)

    return jnp.transpose(x_out_cl, (0, 2, 1)), logdet.reshape(b_)


# -------------------------- deterministic parameters --------------------------
def init_params(key):
    ks = jax.random.split(key, 16)

    def nrm(k, shape, scale):
        return (scale * jax.random.normal(k, shape)).astype(jnp.float32)

    p = {}
    # pre / post 1x1 convs (stored as (in, out) == torch weight[:,:,0].T)
    p["pre_w"] = nrm(ks[0], (HALF, HIDDEN), 1.0 / math.sqrt(HALF))
    p["pre_b"] = nrm(ks[1], (1, HIDDEN), 0.01)
    # NOTE: the PyTorch module zero-inits `post`; we use small random weights so
    # the affine-coupling path (m, logs) is actually exercised.
    p["post_w"] = nrm(ks[2], (HIDDEN, 2 * HALF), 0.01)
    p["post_b"] = nrm(ks[3], (1, 2 * HALF), 0.01)
    # attention projections, stacked over layers, stored as (in, out)
    p["wq"] = nrm(ks[4], (N_LAYERS, HIDDEN, HIDDEN), 1.0 / math.sqrt(HIDDEN))
    p["wk"] = nrm(ks[5], (N_LAYERS, HIDDEN, HIDDEN), 1.0 / math.sqrt(HIDDEN))
    p["wv"] = nrm(ks[6], (N_LAYERS, HIDDEN, HIDDEN), 1.0 / math.sqrt(HIDDEN))
    p["wo"] = nrm(ks[7], (N_LAYERS, HIDDEN, HIDDEN), 1.0 / math.sqrt(HIDDEN))
    p["bq"] = nrm(ks[8], (N_LAYERS, 1, HIDDEN), 0.01)
    p["bk"] = nrm(ks[9], (N_LAYERS, 1, HIDDEN), 0.01)
    p["bv"] = nrm(ks[10], (N_LAYERS, 1, HIDDEN), 0.01)
    p["bo"] = nrm(ks[11], (N_LAYERS, 1, HIDDEN), 0.01)
    # shared relative-position embeddings (heads_share=True):
    #   erk stored pre-transposed (HEAD_DIM, 2W+1) so the kernel does q @ erk_t
    p["erk_t"] = nrm(ks[12], (N_LAYERS, HEAD_DIM, REL), HEAD_DIM ** -0.5)
    p["erv"] = nrm(ks[13], (N_LAYERS, REL, HEAD_DIM), HEAD_DIM ** -0.5)
    # layer norms
    p["ln1g"] = jnp.ones((N_LAYERS, 1, HIDDEN), jnp.float32)
    p["ln1b"] = jnp.zeros((N_LAYERS, 1, HIDDEN), jnp.float32)
    p["ln2g"] = jnp.ones((N_LAYERS, 1, HIDDEN), jnp.float32)
    p["ln2b"] = jnp.zeros((N_LAYERS, 1, HIDDEN), jnp.float32)
    # FFN convs, packed tap-major so each conv is ONE (T, K*C) @ (K*C, F) matmul
    fw1 = nrm(ks[14], (N_LAYERS, KERNEL_SIZE, HIDDEN, FILTER),
              1.0 / math.sqrt(HIDDEN * KERNEL_SIZE))
    p["fw1"] = fw1.reshape(N_LAYERS, KERNEL_SIZE * HIDDEN, FILTER)
    p["fb1"] = jnp.zeros((N_LAYERS, 1, FILTER), jnp.float32)
    fw2 = nrm(ks[15], (N_LAYERS, KERNEL_SIZE, FILTER, HIDDEN),
              1.0 / math.sqrt(FILTER * KERNEL_SIZE))
    p["fw2"] = fw2.reshape(N_LAYERS, KERNEL_SIZE * FILTER, HIDDEN)
    p["fb2"] = jnp.zeros((N_LAYERS, 1, HIDDEN), jnp.float32)
    return p


# ---------------------------- pure-JAX reference ------------------------------
def reference_forward(x, x_mask, params):
    x_cl = jnp.transpose(x, (0, 2, 1))
    x0 = x_cl[:, :, :HALF]
    x1 = x_cl[:, :, HALF:]
    mcol = jnp.transpose(x_mask, (0, 2, 1))
    mrow = x_mask
    full = dict(params)
    full.update(make_rel_constants())
    outs, lds = [], []
    for b in range(x.shape[0]):
        xo, ld = _coupling_forward(x0[b], x1[b], mcol[b], mrow[b], full,
                                   in_kernel=False)
        outs.append(xo)
        lds.append(ld[0, 0])
    x_out = jnp.transpose(jnp.stack(outs, 0), (0, 2, 1))
    return x_out, jnp.stack(lds)


# ------------------------------------ main ------------------------------------
if __name__ == "__main__":
    key = jax.random.PRNGKey(0)
    kx, kp = jax.random.split(key)

    x = jax.random.normal(kx, (B, CHANNELS, T), dtype=jnp.float32)   # NCW like torch
    lengths = jnp.array([T, T - 9])
    t_idx = jnp.arange(T)
    x_mask = (t_idx[None, :] < lengths[:, None]).astype(jnp.float32)[:, None, :]  # (B,1,T)

    params = init_params(kp)

    fwd = jax.jit(transformer_coupling_forward)
    x_out, logdet = fwd(x, x_mask, params)
    jax.block_until_ready((x_out, logdet))

    # sanity-check against the (identical math) pure-JAX/XLA reference
    x_ref, ld_ref = jax.jit(reference_forward)(x, x_mask, params)
    np.testing.assert_allclose(np.asarray(x_out), np.asarray(x_ref),
                               rtol=3e-2, atol=3e-2)
    np.testing.assert_allclose(np.asarray(logdet), np.asarray(ld_ref),
                               rtol=3e-2, atol=3e-2)
    assert x_out.shape == (B, CHANNELS, T) and logdet.shape == (B,)

    print("KERNEL_OK")
</pallas_src>

<mosaic_0001>
module attributes {stable_mosaic.version = 11 : i64} {
  func.func @_coupling_kernel(%arg0: i32, %arg1: memref<1x32x8xf32, #tpu.memory_space<vmem>>, %arg2: memref<1x32x8xf32, #tpu.memory_space<vmem>>, %arg3: memref<1x32x1xf32, #tpu.memory_space<vmem>>, %arg4: memref<1x1x32xf32, #tpu.memory_space<vmem>>, %arg5: memref<32x288xf32, #tpu.memory_space<vmem>>, %arg6: memref<32x288xf32, #tpu.memory_space<vmem>>, %arg7: memref<9x288xf32, #tpu.memory_space<vmem>>, %arg8: memref<3x32x32xf32, #tpu.memory_space<vmem>>, %arg9: memref<8x64xf32, #tpu.memory_space<vmem>>, %arg10: memref<1x64xf32, #tpu.memory_space<vmem>>, %arg11: memref<2x64x64xf32, #tpu.memory_space<vmem>>, %arg12: memref<2x1x64xf32, #tpu.memory_space<vmem>>, %arg13: memref<2x64x64xf32, #tpu.memory_space<vmem>>, %arg14: memref<2x1x64xf32, #tpu.memory_space<vmem>>, %arg15: memref<2x64x64xf32, #tpu.memory_space<vmem>>, %arg16: memref<2x1x64xf32, #tpu.memory_space<vmem>>, %arg17: memref<2x64x64xf32, #tpu.memory_space<vmem>>, %arg18: memref<2x1x64xf32, #tpu.memory_space<vmem>>, %arg19: memref<2x32x9xf32, #tpu.memory_space<vmem>>, %arg20: memref<2x9x32xf32, #tpu.memory_space<vmem>>, %arg21: memref<2x1x64xf32, #tpu.memory_space<vmem>>, %arg22: memref<2x1x64xf32, #tpu.memory_space<vmem>>, %arg23: memref<2x192x128xf32, #tpu.memory_space<vmem>>, %arg24: memref<2x1x128xf32, #tpu.memory_space<vmem>>, %arg25: memref<2x384x64xf32, #tpu.memory_space<vmem>>, %arg26: memref<2x1x64xf32, #tpu.memory_space<vmem>>, %arg27: memref<2x1x64xf32, #tpu.memory_space<vmem>>, %arg28: memref<2x1x64xf32, #tpu.memory_space<vmem>>, %arg29: memref<64x16xf32, #tpu.memory_space<vmem>>, %arg30: memref<1x16xf32, #tpu.memory_space<vmem>>, %arg31: memref<1x32x16xf32, #tpu.memory_space<vmem>>, %arg32: memref<1x1x1xf32, #tpu.memory_space<vmem>>) attributes {dimension_semantics = [#tpu.dimension_semantics<parallel>], iteration_bounds = array<i64: 2>, scalar_prefetch = 0 : i64, scratch_operands = 0 : i64, tpu.core_type = #tpu.core_type<tc>, window_params = [{transform_indices = @transform_0, window_bounds = array<i64: 1, 32, 8>}, {transform_indices = @transform_1, window_bounds = array<i64: 1, 32, 8>}, {transform_indices = @transform_2, window_bounds = array<i64: 1, 32, 1>}, {transform_indices = @transform_3, window_bounds = array<i64: 1, 1, 32>}, {pipeline_mode = #tpu.pipeline_mode<synchronous>, transform_indices = @transform_4, window_bounds = array<i64: 32, 288>}, {pipeline_mode = #tpu.pipeline_mode<synchronous>, transform_indices = @transform_5, window_bounds = array<i64: 32, 288>}, {pipeline_mode = #tpu.pipeline_mode<synchronous>, transform_indices = @transform_6, window_bounds = array<i64: 9, 288>}, {pipeline_mode = #tpu.pipeline_mode<synchronous>, transform_indices = @transform_7, window_bounds = array<i64: 3, 32, 32>}, {pipeline_mode = #tpu.pipeline_mode<synchronous>, transform_indices = @transform_8, window_bounds = array<i64: 8, 64>}, {pipeline_mode = #tpu.pipeline_mode<synchronous>, transform_indices = @transform_9, window_bounds = array<i64: 1, 64>}, {pipeline_mode = #tpu.pipeline_mode<synchronous>, transform_indices = @transform_10, window_bounds = array<i64: 2, 64, 64>}, {pipeline_mode = #tpu.pipeline_mode<synchronous>, transform_indices = @transform_11, window_bounds = array<i64: 2, 1, 64>}, {pipeline_mode = #tpu.pipeline_mode<synchronous>, transform_indices = @transform_12, window_bounds = array<i64: 2, 64, 64>}, {pipeline_mode = #tpu.pipeline_mode<synchronous>, transform_indices = @transform_13, window_bounds = array<i64: 2, 1, 64>}, {pipeline_mode = #tpu.pipeline_mode<synchronous>, transform_indices = @transform_14, window_bounds = array<i64: 2, 64, 64>}, {pipeline_mode = #tpu.pipeline_mode<synchronous>, transform_indices = @transform_15, window_bounds = array<i64: 2, 1, 64>}, {pipeline_mode = #tpu.pipeline_mode<synchronous>, transform_indices = @transform_16, window_bounds = array<i64: 2, 64, 64>}, {pipeline_mode = #tpu.pipeline_mode<synchronous>, transform_indices = @transform_17, window_bounds = array<i64: 2, 1, 64>}, {pipeline_mode = #tpu.pipeline_mode<synchronous>, transform_indices = @transform_18, window_bounds = array<i64: 2, 32, 9>}, {pipeline_mode = #tpu.pipeline_mode<synchronous>, transform_indices = @transform_19, window_bounds = array<i64: 2, 9, 32>}, {pipeline_mode = #tpu.pipeline_mode<synchronous>, transform_indices = @transform_20, window_bounds = array<i64: 2, 1, 64>}, {pipeline_mode = #tpu.pipeline_mode<synchronous>, transform_indices = @transform_21, window_bounds = array<i64: 2, 1, 64>}, {pipeline_mode = #tpu.pipeline_mode<synchronous>, transform_indices = @transform_22, window_bounds = array<i64: 2, 192, 128>}, {pipeline_mode = #tpu.pipeline_mode<synchronous>, transform_indices = @transform_23, window_bounds = array<i64: 2, 1, 128>}, {pipeline_mode = #tpu.pipeline_mode<synchronous>, transform_indices = @transform_24, window_bounds = array<i64: 2, 384, 64>}, {pipeline_mode = #tpu.pipeline_mode<synchronous>, transform_indices = @transform_25, window_bounds = array<i64: 2, 1, 64>}, {pipeline_mode = #tpu.pipeline_mode<synchronous>, transform_indices = @transform_26, window_bounds = array<i64: 2, 1, 64>}, {pipeline_mode = #tpu.pipeline_mode<synchronous>, transform_indices = @transform_27, window_bounds = array<i64: 2, 1, 64>}, {pipeline_mode = #tpu.pipeline_mode<synchronous>, transform_indices = @transform_28, window_bounds = array<i64: 64, 16>}, {pipeline_mode = #tpu.pipeline_mode<synchronous>, transform_indices = @transform_29, window_bounds = array<i64: 1, 16>}, {transform_indices = @transform_30, window_bounds = array<i64: 1, 32, 16>}, {transform_indices = @transform_31, window_bounds = array<i64: 1, 1, 1>}]} {
    %c0 = arith.constant 0 : index
    %c0_0 = arith.constant 0 : index
    %c0_1 = arith.constant 0 : index
    %0 = vector.load %arg1[%c0, %c0_0, %c0_1] : memref<1x32x8xf32, #tpu.memory_space<vmem>>, vector<1x32x8xf32>
    %1 = vector.shape_cast %0 : vector<1x32x8xf32> to vector<32x8xf32>
    %c0_2 = arith.constant 0 : index
    %c0_3 = arith.constant 0 : index
    %c0_4 = arith.constant 0 : index
    %2 = vector.load %arg2[%c0_2, %c0_3, %c0_4] : memref<1x32x8xf32, #tpu.memory_space<vmem>>, vector<1x32x8xf32>
    %3 = vector.shape_cast %2 : vector<1x32x8xf32> to vector<32x8xf32>
    %c0_5 = arith.constant 0 : index
    %c0_6 = arith.constant 0 : index
    %c0_7 = arith.constant 0 : index
    %4 = vector.load %arg3[%c0_5, %c0_6, %c0_7] : memref<1x32x1xf32, #tpu.memory_space<vmem>>, vector<1x32x1xf32>
    %5 = vector.shape_cast %4 : vector<1x32x1xf32> to vector<32x1xf32>
    %c0_8 = arith.constant 0 : index
    %c0_9 = arith.constant 0 : index
    %c0_10 = arith.constant 0 : index
    %6 = vector.load %arg4[%c0_8, %c0_9, %c0_10] : memref<1x1x32xf32, #tpu.memory_space<vmem>>, vector<1x1x32xf32>
    %7 = vector.shape_cast %6 : vector<1x1x32xf32> to vector<1x32xf32>
    %8 = vector.broadcast %5 : vector<32x1xf32> to vector<32x32xf32>
    %9 = vector.broadcast %7 : vector<1x32xf32> to vector<32x32xf32>
    %10 = arith.mulf %8, %9 : vector<32x32xf32>
    %cst = arith.constant 1.000000e+00 : f32
    %11 = vector.broadcast %cst : f32 to vector<32x32xf32>
    %12 = arith.subf %10, %11 : vector<32x32xf32>
    %cst_11 = arith.constant 1.000000e+04 : f32
    %13 = vector.broadcast %cst_11 : f32 to vector<32x32xf32>
    %14 = arith.mulf %12, %13 : vector<32x32xf32>
    %c0_12 = arith.constant 0 : index
    %c0_13 = arith.constant 0 : index
    %15 = vector.load %arg5[%c0_12, %c0_13] : memref<32x288xf32, #tpu.memory_space<vmem>>, vector<32x288xf32>
    %c0_14 = arith.constant 0 : index
    %c0_15 = arith.constant 0 : index
    %16 = vector.load %arg6[%c0_14, %c0_15] : memref<32x288xf32, #tpu.memory_space<vmem>>, vector<32x288xf32>
    %c0_16 = arith.constant 0 : index
    %c0_17 = arith.constant 0 : index
    %17 = vector.load %arg7[%c0_16, %c0_17] : memref<9x288xf32, #tpu.memory_space<vmem>>, vector<9x288xf32>
    %c0_18 = arith.constant 0 : index
    %c0_19 = arith.constant 0 : index
    %c0_20 = arith.constant 0 : index
    %18 = vector.load %arg8[%c0_18, %c0_19, %c0_20] : memref<3x32x32xf32, #tpu.memory_space<vmem>>, vector<1x32x32xf32>
    %19 = vector.shape_cast %18 : vector<1x32x32xf32> to vector<32x32xf32>
    %c2 = arith.constant 2 : index
    %c0_21 = arith.constant 0 : index
    %c0_22 = arith.constant 0 : index
    %20 = vector.load %arg8[%c2, %c0_21, %c0_22] : memref<3x32x32xf32, #tpu.memory_space<vmem>>, vector<1x32x32xf32>
    %21 = vector.shape_cast %20 : vector<1x32x32xf32> to vector<32x32xf32>
    %c0_23 = arith.constant 0 : index
    %c0_24 = arith.constant 0 : index
    %22 = vector.load %arg9[%c0_23, %c0_24] : memref<8x64xf32, #tpu.memory_space<vmem>>, vector<8x64xf32>
    %cst_25 = arith.constant dense<0.000000e+00> : vector<32x64xf32>
    %23 = tpu.matmul %1, %22, %cst_25 {dimension_numbers = #tpu.dot_dimension_numbers<[1], [0], [0], [1], [0, 0, 1, 1], [], []>} : vector<32x8xf32>, vector<8x64xf32>, vector<32x64xf32> -> vector<32x64xf32>
    %c0_26 = arith.constant 0 : index
    %c0_27 = arith.constant 0 : index
    %24 = vector.load %arg10[%c0_26, %c0_27] : memref<1x64xf32, #tpu.memory_space<vmem>>, vector<1x64xf32>
    %25 = vector.broadcast %24 : vector<1x64xf32> to vector<32x64xf32>
    %26 = arith.addf %23, %25 : vector<32x64xf32>
    %27 = vector.broadcast %5 : vector<32x1xf32> to vector<32x64xf32>
    %28 = arith.mulf %26, %27 : vector<32x64xf32>
    %c0_28 = arith.constant 0 : index
    %c0_29 = arith.constant 0 : index
    %c0_30 = arith.constant 0 : index
    %29 = vector.load %arg20[%c0_28, %c0_29, %c0_30] : memref<2x9x32xf32, #tpu.memory_space<vmem>>, vector<1x9x32xf32>
    %30 = vector.shape_cast %29 : vector<1x9x32xf32> to vector<9x32xf32>
    %c0_31 = arith.constant 0 : index
    %c0_32 = arith.constant 0 : index
    %c0_33 = arith.constant 0 : index
    %31 = vector.load %arg19[%c0_31, %c0_32, %c0_33] : memref<2x32x9xf32, #tpu.memory_space<vmem>>, vector<1x32x9xf32>
    %32 = vector.shape_cast %31 : vector<1x32x9xf32> to vector<32x9xf32>
    %cst_34 = arith.constant dense<0.000000e+00> : vector<32x288xf32>
    %33 = tpu.matmul %32, %17, %cst_34 {dimension_numbers = #tpu.dot_dimension_numbers<[1], [0], [0], [1], [0, 0, 1, 1], [], []>} : vector<32x9xf32>, vector<9x288xf32>, vector<32x288xf32> -> vector<32x288xf32>
    %c0_35 = arith.constant 0 : index
    %c0_36 = arith.constant 0 : index
    %c0_37 = arith.constant 0 : index
    %34 = vector.load %arg11[%c0_35, %c0_36, %c0_37] : memref<2x64x64xf32, #tpu.memory_space<vmem>>, vector<1x64x64xf32>
    %35 = vector.shape_cast %34 : vector<1x64x64xf32> to vector<64x64xf32>
    %cst_38 = arith.constant dense<0.000000e+00> : vector<32x64xf32>
    %36 = tpu.matmul %28, %35, %cst_38 {dimension_numbers = #tpu.dot_dimension_numbers<[1], [0], [0], [1], [0, 0, 1, 1], [], []>} : vector<32x64xf32>, vector<64x64xf32>, vector<32x64xf32> -> vector<32x64xf32>
    %c0_39 = arith.constant 0 : index
    %c0_40 = arith.constant 0 : index
    %c0_41 = arith.constant 0 : index
    %37 = vector.load %arg12[%c0_39, %c0_40, %c0_41] : memref<2x1x64xf32, #tpu.memory_space<vmem>>, vector<1x1x64xf32>
    %38 = vector.shape_cast %37 : vector<1x1x64xf32> to vector<1x64xf32>
    %39 = vector.broadcast %38 : vector<1x64xf32> to vector<32x64xf32>
    %40 = arith.addf %36, %39 : vector<32x64xf32>
    %c0_42 = arith.constant 0 : index
    %c0_43 = arith.constant 0 : index
    %c0_44 = arith.constant 0 : index
    %41 = vector.load %arg13[%c0_42, %c0_43, %c0_44] : memref<2x64x64xf32, #tpu.memory_space<vmem>>, vector<1x64x64xf32>
    %42 = vector.shape_cast %41 : vector<1x64x64xf32> to vector<64x64xf32>
    %cst_45 = arith.constant dense<0.000000e+00> : vector<32x64xf32>
    %43 = tpu.matmul %28, %42, %cst_45 {dimension_numbers = #tpu.dot_dimension_numbers<[1], [0], [0], [1], [0, 0, 1, 1], [], []>} : vector<32x64xf32>, vector<64x64xf32>, vector<32x64xf32> -> vector<32x64xf32>
    %c0_46 = arith.constant 0 : index
    %c0_47 = arith.constant 0 : index
    %c0_48 = arith.constant 0 : index
    %44 = vector.load %arg14[%c0_46, %c0_47, %c0_48] : memref<2x1x64xf32, #tpu.memory_space<vmem>>, vector<1x1x64xf32>
    %45 = vector.shape_cast %44 : vector<1x1x64xf32> to vector<1x64xf32>
    %46 = vector.broadcast %45 : vector<1x64xf32> to vector<32x64xf32>
    %47 = arith.addf %43, %46 : vector<32x64xf32>
    %c0_49 = arith.constant 0 : index
    %c0_50 = arith.constant 0 : index
    %c0_51 = arith.constant 0 : index
    %48 = vector.load %arg15[%c0_49, %c0_50, %c0_51] : memref<2x64x64xf32, #tpu.memory_space<vmem>>, vector<1x64x64xf32>
    %49 = vector.shape_cast %48 : vector<1x64x64xf32> to vector<64x64xf32>
    %cst_52 = arith.constant dense<0.000000e+00> : vector<32x64xf32>
    %50 = tpu.matmul %28, %49, %cst_52 {dimension_numbers = #tpu.dot_dimension_numbers<[1], [0], [0], [1], [0, 0, 1, 1], [], []>} : vector<32x64xf32>, vector<64x64xf32>, vector<32x64xf32> -> vector<32x64xf32>
    %c0_53 = arith.constant 0 : index
    %c0_54 = arith.constant 0 : index
    %c0_55 = arith.constant 0 : index
    %51 = vector.load %arg16[%c0_53, %c0_54, %c0_55] : memref<2x1x64xf32, #tpu.memory_space<vmem>>, vector<1x1x64xf32>
    %52 = vector.shape_cast %51 : vector<1x1x64xf32> to vector<1x64xf32>
    %53 = vector.broadcast %52 : vector<1x64xf32> to vector<32x64xf32>
    %54 = arith.addf %50, %53 : vector<32x64xf32>
    %55 = vector.extract_strided_slice %40 {offsets = [0, 0], sizes = [32, 32], strides = [1, 1]} : vector<32x64xf32> to vector<32x32xf32>
    %cst_56 = arith.constant 0.176776692 : f32
    %56 = vector.broadcast %cst_56 : f32 to vector<32x32xf32>
    %57 = arith.mulf %55, %56 : vector<32x32xf32>
    %58 = vector.extract_strided_slice %47 {offsets = [0, 0], sizes = [32, 32], strides = [1, 1]} : vector<32x64xf32> to vector<32x32xf32>
    %59 = vector.extract_strided_slice %54 {offsets = [0, 0], sizes = [32, 32], strides = [1, 1]} : vector<32x64xf32> to vector<32x32xf32>
    %cst_57 = arith.constant dense<0.000000e+00> : vector<32x288xf32>
    %60 = tpu.matmul %57, %33, %cst_57 {dimension_numbers = #tpu.dot_dimension_numbers<[1], [0], [0], [1], [0, 0, 1, 1], [], []>} : vector<32x32xf32>, vector<32x288xf32>, vector<32x288xf32> -> vector<32x288xf32>
    %61 = arith.mulf %60, %15 : vector<32x288xf32>
    %cst_58 = arith.constant dense<0.000000e+00> : vector<32x32xf32>
    %62 = tpu.matmul %61, %16, %cst_58 {dimension_numbers = #tpu.dot_dimension_numbers<[1], [1], [0], [0], [0, 0, 1, 0], [], []>} : vector<32x288xf32>, vector<32x288xf32>, vector<32x32xf32> -> vector<32x32xf32>
    %cst_59 = arith.constant dense<0.000000e+00> : vector<32x32xf32>
    %63 = tpu.matmul %57, %58, %cst_59 {dimension_numbers = #tpu.dot_dimension_numbers<[1], [1], [0], [0], [0, 0, 1, 0], [], []>} : vector<32x32xf32>, vector<32x32xf32>, vector<32x32xf32> -> vector<32x32xf32>
    %64 = arith.addf %63, %62 : vector<32x32xf32>
    %65 = arith.addf %64, %14 : vector<32x32xf32>
    %cst_60 = arith.constant dense<0xFF800000> : vector<32xf32>
    %66 = vector.multi_reduction <maximumf>, %65, %cst_60 [1] : vector<32x32xf32> to vector<32xf32>
    %67 = vector.shape_cast %66 : vector<32xf32> to vector<32x1xf32>
    %68 = vector.broadcast %67 : vector<32x1xf32> to vector<32x32xf32>
    %69 = arith.subf %65, %68 : vector<32x32xf32>
    %70 = math.exp %69 : vector<32x32xf32>
    %cst_61 = arith.constant dense<0.000000e+00> : vector<32xf32>
    %71 = vector.multi_reduction <add>, %70, %cst_61 [1] : vector<32x32xf32> to vector<32xf32>
    %72 = vector.shape_cast %71 : vector<32xf32> to vector<32x1xf32>
    %73 = tpu.reciprocal %72 {approx = true} : vector<32x1xf32> -> vector<32x1xf32>
    %74 = vector.broadcast %73 : vector<32x1xf32> to vector<32x32xf32>
    %75 = arith.mulf %70, %74 : vector<32x32xf32>
    %cst_62 = arith.constant dense<0.000000e+00> : vector<32x32xf32>
    %76 = tpu.matmul %75, %59, %cst_62 {dimension_numbers = #tpu.dot_dimension_numbers<[1], [0], [0], [1], [0, 0, 1, 1], [], []>} : vector<32x32xf32>, vector<32x32xf32>, vector<32x32xf32> -> vector<32x32xf32>
    %cst_63 = arith.constant dense<0.000000e+00> : vector<32x288xf32>
    %77 = tpu.matmul %75, %16, %cst_63 {dimension_numbers = #tpu.dot_dimension_numbers<[1], [0], [0], [1], [0, 0, 1, 1], [], []>} : vector<32x32xf32>, vector<32x288xf32>, vector<32x288xf32> -> vector<32x288xf32>
    %78 = arith.mulf %77, %15 : vector<32x288xf32>
    %cst_64 = arith.constant dense<0.000000e+00> : vector<32x9xf32>
    %79 = tpu.matmul %78, %17, %cst_64 {dimension_numbers = #tpu.dot_dimension_numbers<[1], [1], [0], [0], [0, 0, 1, 0], [], []>} : vector<32x288xf32>, vector<9x288xf32>, vector<32x9xf32> -> vector<32x9xf32>
    %cst_65 = arith.constant dense<0.000000e+00> : vector<32x32xf32>
    %80 = tpu.matmul %79, %30, %cst_65 {dimension_numbers = #tpu.dot_dimension_numbers<[1], [0], [0], [1], [0, 0, 1, 1], [], []>} : vector<32x9xf32>, vector<9x32xf32>, vector<32x32xf32> -> vector<32x32xf32>
    %81 = arith.addf %76, %80 : vector<32x32xf32>
    %82 = vector.extract_strided_slice %40 {offsets = [0, 32], sizes = [32, 32], strides = [1, 1]} : vector<32x64xf32> to vector<32x32xf32>
    %cst_66 = arith.constant 0.176776692 : f32
    %83 = vector.broadcast %cst_66 : f32 to vector<32x32xf32>
    %84 = arith.mulf %82, %83 : vector<32x32xf32>
    %85 = vector.extract_strided_slice %47 {offsets = [0, 32], sizes = [32, 32], strides = [1, 1]} : vector<32x64xf32> to vector<32x32xf32>
    %86 = vector.extract_strided_slice %54 {offsets = [0, 32], sizes = [32, 32], strides = [1, 1]} : vector<32x64xf32> to vector<32x32xf32>
    %cst_67 = arith.constant dense<0.000000e+00> : vector<32x288xf32>
    %87 = tpu.matmul %84, %33, %cst_67 {dimension_numbers = #tpu.dot_dimension_numbers<[1], [0], [0], [1], [0, 0, 1, 1], [], []>} : vector<32x32xf32>, vector<32x288xf32>, vector<32x288xf32> -> vector<32x288xf32>
    %88 = arith.mulf %87, %15 : vector<32x288xf32>
    %cst_68 = arith.constant dense<0.000000e+00> : vector<32x32xf32>
    %89 = tpu.matmul %88, %16, %cst_68 {dimension_numbers = #tpu.dot_dimension_numbers<[1], [1], [0], [0], [0, 0, 1, 0], [], []>} : vector<32x288xf32>, vector<32x288xf32>, vector<32x32xf32> -> vector<32x32xf32>
    %cst_69 = arith.constant dense<0.000000e+00> : vector<32x32xf32>
    %90 = tpu.matmul %84, %85, %cst_69 {dimension_numbers = #tpu.dot_dimension_numbers<[1], [1], [0], [0], [0, 0, 1, 0], [], []>} : vector<32x32xf32>, vector<32x32xf32>, vector<32x32xf32> -> vector<32x32xf32>
    %91 = arith.addf %90, %89 : vector<32x32xf32>
    %92 = arith.addf %91, %14 : vector<32x32xf32>
    %cst_70 = arith.constant dense<0xFF800000> : vector<32xf32>
    %93 = vector.multi_reduction <maximumf>, %92, %cst_70 [1] : vector<32x32xf32> to vector<32xf32>
    %94 = vector.shape_cast %93 : vector<32xf32> to vector<32x1xf32>
    %95 = vector.broadcast %94 : vector<32x1xf32> to vector<32x32xf32>
    %96 = arith.subf %92, %95 : vector<32x32xf32>
    %97 = math.exp %96 : vector<32x32xf32>
    %cst_71 = arith.constant dense<0.000000e+00> : vector<32xf32>
    %98 = vector.multi_reduction <add>, %97, %cst_71 [1] : vector<32x32xf32> to vector<32xf32>
    %99 = vector.shape_cast %98 : vector<32xf32> to vector<32x1xf32>
    %100 = tpu.reciprocal %99 {approx = true} : vector<32x1xf32> -> vector<32x1xf32>
    %101 = vector.broadcast %100 : vector<32x1xf32> to vector<32x32xf32>
    %102 = arith.mulf %97, %101 : vector<32x32xf32>
    %cst_72 = arith.constant dense<0.000000e+00> : vector<32x32xf32>
    %103 = tpu.matmul %102, %86, %cst_72 {dimension_numbers = #tpu.dot_dimension_numbers<[1], [0], [0], [1], [0, 0, 1, 1], [], []>} : vector<32x32xf32>, vector<32x32xf32>, vector<32x32xf32> -> vector<32x32xf32>
    %cst_73 = arith.constant dense<0.000000e+00> : vector<32x288xf32>
    %104 = tpu.matmul %102, %16, %cst_73 {dimension_numbers = #tpu.dot_dimension_numbers<[1], [0], [0], [1], [0, 0, 1, 1], [], []>} : vector<32x32xf32>, vector<32x288xf32>, vector<32x288xf32> -> vector<32x288xf32>
    %105 = arith.mulf %104, %15 : vector<32x288xf32>
    %cst_74 = arith.constant dense<0.000000e+00> : vector<32x9xf32>
    %106 = tpu.matmul %105, %17, %cst_74 {dimension_numbers = #tpu.dot_dimension_numbers<[1], [1], [0], [0], [0, 0, 1, 0], [], []>} : vector<32x288xf32>, vector<9x288xf32>, vector<32x9xf32> -> vector<32x9xf32>
    %cst_75 = arith.constant dense<0.000000e+00> : vector<32x32xf32>
    %107 = tpu.matmul %106, %30, %cst_75 {dimension_numbers = #tpu.dot_dimension_numbers<[1], [0], [0], [1], [0, 0, 1, 1], [], []>} : vector<32x9xf32>, vector<9x32xf32>, vector<32x32xf32> -> vector<32x32xf32>
    %108 = arith.addf %103, %107 : vector<32x32xf32>
    %109 = tpu.concatenate %81, %108 in 1 : vector<32x32xf32>, vector<32x32xf32> -> vector<32x64xf32>
    %c0_76 = arith.constant 0 : index
    %c0_77 = arith.constant 0 : index
    %c0_78 = arith.constant 0 : index
    %110 = vector.load %arg17[%c0_76, %c0_77, %c0_78] : memref<2x64x64xf32, #tpu.memory_space<vmem>>, vector<1x64x64xf32>
    %111 = vector.shape_cast %110 : vector<1x64x64xf32> to vector<64x64xf32>
    %cst_79 = arith.constant dense<0.000000e+00> : vector<32x64xf32>
    %112 = tpu.matmul %109, %111, %cst_79 {dimension_numbers = #tpu.dot_dimension_numbers<[1], [0], [0], [1], [0, 0, 1, 1], [], []>} : vector<32x64xf32>, vector<64x64xf32>, vector<32x64xf32> -> vector<32x64xf32>
    %c0_80 = arith.constant 0 : index
    %c0_81 = arith.constant 0 : index
    %c0_82 = arith.constant 0 : index
    %113 = vector.load %arg18[%c0_80, %c0_81, %c0_82] : memref<2x1x64xf32, #tpu.memory_space<vmem>>, vector<1x1x64xf32>
    %114 = vector.shape_cast %113 : vector<1x1x64xf32> to vector<1x64xf32>
    %115 = vector.broadcast %114 : vector<1x64xf32> to vector<32x64xf32>
    %116 = arith.addf %112, %115 : vector<32x64xf32>
    %117 = arith.addf %28, %116 : vector<32x64xf32>
    %c0_83 = arith.constant 0 : index
    %c0_84 = arith.constant 0 : index
    %c0_85 = arith.constant 0 : index
    %118 = vector.load %arg21[%c0_83, %c0_84, %c0_85] : memref<2x1x64xf32, #tpu.memory_space<vmem>>, vector<1x1x64xf32>
    %119 = vector.shape_cast %118 : vector<1x1x64xf32> to vector<1x64xf32>
    %c0_86 = arith.constant 0 : index
    %c0_87 = arith.constant 0 : index
    %c0_88 = arith.constant 0 : index
    %120 = vector.load %arg22[%c0_86, %c0_87, %c0_88] : memref<2x1x64xf32, #tpu.memory_space<vmem>>, vector<1x1x64xf32>
    %121 = vector.shape_cast %120 : vector<1x1x64xf32> to vector<1x64xf32>
    %cst_89 = arith.constant dense<0.000000e+00> : vector<32xf32>
    %122 = vector.multi_reduction <add>, %117, %cst_89 [1] : vector<32x64xf32> to vector<32xf32>
    %123 = vector.shape_cast %122 : vector<32xf32> to vector<32x1xf32>
    %cst_90 = arith.constant 6.400000e+01 : f32
    %124 = vector.broadcast %cst_90 : f32 to vector<32x1xf32>
    %125 = arith.divf %123, %124 : vector<32x1xf32>
    %126 = vector.broadcast %125 : vector<32x1xf32> to vector<32x64xf32>
    %127 = arith.subf %117, %126 : vector<32x64xf32>
    %128 = arith.mulf %127, %127 : vector<32x64xf32>
    %cst_91 = arith.constant dense<0.000000e+00> : vector<32xf32>
    %129 = vector.multi_reduction <add>, %128, %cst_91 [1] : vector<32x64xf32> to vector<32xf32>
    %130 = vector.shape_cast %129 : vector<32xf32> to vector<32x1xf32>
    %cst_92 = arith.constant 6.400000e+01 : f32
    %131 = vector.broadcast %cst_92 : f32 to vector<32x1xf32>
    %132 = arith.divf %130, %131 : vector<32x1xf32>
    %cst_93 = arith.constant 9.99999974E-6 : f32
    %133 = vector.broadcast %cst_93 : f32 to vector<32x1xf32>
    %134 = arith.addf %132, %133 : vector<32x1xf32>
    %135 = math.rsqrt %134 : vector<32x1xf32>
    %136 = vector.broadcast %135 : vector<32x1xf32> to vector<32x64xf32>
    %137 = arith.mulf %127, %136 : vector<32x64xf32>
    %138 = vector.broadcast %119 : vector<1x64xf32> to vector<32x64xf32>
    %139 = arith.mulf %137, %138 : vector<32x64xf32>
    %140 = vector.broadcast %121 : vector<1x64xf32> to vector<32x64xf32>
    %141 = arith.addf %139, %140 : vector<32x64xf32>
    %142 = vector.broadcast %5 : vector<32x1xf32> to vector<32x64xf32>
    %143 = arith.mulf %141, %142 : vector<32x64xf32>
    %cst_94 = arith.constant dense<0.000000e+00> : vector<32x64xf32>
    %144 = tpu.matmul %19, %143, %cst_94 {dimension_numbers = #tpu.dot_dimension_numbers<[1], [0], [0], [1], [0, 0, 1, 1], [], []>} : vector<32x32xf32>, vector<32x64xf32>, vector<32x64xf32> -> vector<32x64xf32>
    %cst_95 = arith.constant dense<0.000000e+00> : vector<32x64xf32>
    %145 = tpu.matmul %21, %143, %cst_95 {dimension_numbers = #tpu.dot_dimension_numbers<[1], [0], [0], [1], [0, 0, 1, 1], [], []>} : vector<32x32xf32>, vector<32x64xf32>, vector<32x64xf32> -> vector<32x64xf32>
    %146 = tpu.concatenate %144, %143, %145 in 1 : vector<32x64xf32>, vector<32x64xf32>, vector<32x64xf32> -> vector<32x192xf32>
    %c0_96 = arith.constant 0 : index
    %c0_97 = arith.constant 0 : index
    %c0_98 = arith.constant 0 : index
    %147 = vector.load %arg23[%c0_96, %c0_97, %c0_98] : memref<2x192x128xf32, #tpu.memory_space<vmem>>, vector<1x192x128xf32>
    %148 = vector.shape_cast %147 : vector<1x192x128xf32> to vector<192x128xf32>
    %cst_99 = arith.constant dense<0.000000e+00> : vector<32x128xf32>
    %149 = tpu.matmul %146, %148, %cst_99 {dimension_numbers = #tpu.dot_dimension_numbers<[1], [0], [0], [1], [0, 0, 1, 1], [], []>} : vector<32x192xf32>, vector<192x128xf32>, vector<32x128xf32> -> vector<32x128xf32>
    %c0_100 = arith.constant 0 : index
    %c0_101 = arith.constant 0 : index
    %c0_102 = arith.constant 0 : index
    %150 = vector.load %arg24[%c0_100, %c0_101, %c0_102] : memref<2x1x128xf32, #tpu.memory_space<vmem>>, vector<1x1x128xf32>
    %151 = vector.shape_cast %150 : vector<1x1x128xf32> to vector<1x128xf32>
    %152 = vector.broadcast %151 : vector<1x128xf32> to vector<32x128xf32>
    %153 = arith.addf %149, %152 : vector<32x128xf32>
    %cst_103 = arith.constant 0.000000e+00 : f32
    %154 = vector.broadcast %cst_103 : f32 to vector<32x128xf32>
    %155 = arith.maximumf %153, %154 : vector<32x128xf32>
    %156 = vector.broadcast %5 : vector<32x1xf32> to vector<32x128xf32>
    %157 = arith.mulf %155, %156 : vector<32x128xf32>
    %cst_104 = arith.constant dense<0.000000e+00> : vector<32x128xf32>
    %158 = tpu.matmul %19, %157, %cst_104 {dimension_numbers = #tpu.dot_dimension_numbers<[1], [0], [0], [1], [0, 0, 1, 1], [], []>} : vector<32x32xf32>, vector<32x128xf32>, vector<32x128xf32> -> vector<32x128xf32>
    %cst_105 = arith.constant dense<0.000000e+00> : vector<32x128xf32>
    %159 = tpu.matmul %21, %157, %cst_105 {dimension_numbers = #tpu.dot_dimension_numbers<[1], [0], [0], [1], [0, 0, 1, 1], [], []>} : vector<32x32xf32>, vector<32x128xf32>, vector<32x128xf32> -> vector<32x128xf32>
    %160 = tpu.concatenate %158, %157, %159 in 1 : vector<32x128xf32>, vector<32x128xf32>, vector<32x128xf32> -> vector<32x384xf32>
    %c0_106 = arith.constant 0 : index
    %c0_107 = arith.constant 0 : index
    %c0_108 = arith.constant 0 : index
    %161 = vector.load %arg25[%c0_106, %c0_107, %c0_108] : memref<2x384x64xf32, #tpu.memory_space<vmem>>, vector<1x384x64xf32>
    %162 = vector.shape_cast %161 : vector<1x384x64xf32> to vector<384x64xf32>
    %cst_109 = arith.constant dense<0.000000e+00> : vector<32x64xf32>
    %163 = tpu.matmul %160, %162, %cst_109 {dimension_numbers = #tpu.dot_dimension_numbers<[1], [0], [0], [1], [0, 0, 1, 1], [], []>} : vector<32x384xf32>, vector<384x64xf32>, vector<32x64xf32> -> vector<32x64xf32>
    %c0_110 = arith.constant 0 : index
    %c0_111 = arith.constant 0 : index
    %c0_112 = arith.constant 0 : index
    %164 = vector.load %arg26[%c0_110, %c0_111, %c0_112] : memref<2x1x64xf32, #tpu.memory_space<vmem>>, vector<1x1x64xf32>
    %165 = vector.shape_cast %164 : vector<1x1x64xf32> to vector<1x64xf32>
    %166 = vector.broadcast %165 : vector<1x64xf32> to vector<32x64xf32>
    %167 = arith.addf %163, %166 : vector<32x64xf32>
    %168 = vector.broadcast %5 : vector<32x1xf32> to vector<32x64xf32>
    %169 = arith.mulf %167, %168 : vector<32x64xf32>
    %170 = arith.addf %141, %169 : vector<32x64xf32>
    %c0_113 = arith.constant 0 : index
    %c0_114 = arith.constant 0 : index
    %c0_115 = arith.constant 0 : index
    %171 = vector.load %arg27[%c0_113, %c0_114, %c0_115] : memref<2x1x64xf32, #tpu.memory_space<vmem>>, vector<1x1x64xf32>
    %172 = vector.shape_cast %171 : vector<1x1x64xf32> to vector<1x64xf32>
    %c0_116 = arith.constant 0 : index
    %c0_117 = arith.constant 0 : index
    %c0_118 = arith.constant 0 : index
    %173 = vector.load %arg28[%c0_116, %c0_117, %c0_118] : memref<2x1x64xf32, #tpu.memory_space<vmem>>, vector<1x1x64xf32>
    %174 = vector.shape_cast %173 : vector<1x1x64xf32> to vector<1x64xf32>
    %cst_119 = arith.constant dense<0.000000e+00> : vector<32xf32>
    %175 = vector.multi_reduction <add>, %170, %cst_119 [1] : vector<32x64xf32> to vector<32xf32>
    %176 = vector.shape_cast %175 : vector<32xf32> to vector<32x1xf32>
    %cst_120 = arith.constant 6.400000e+01 : f32
    %177 = vector.broadcast %cst_120 : f32 to vector<32x1xf32>
    %178 = arith.divf %176, %177 : vector<32x1xf32>
    %179 = vector.broadcast %178 : vector<32x1xf32> to vector<32x64xf32>
    %180 = arith.subf %170, %179 : vector<32x64xf32>
    %181 = arith.mulf %180, %180 : vector<32x64xf32>
    %cst_121 = arith.constant dense<0.000000e+00> : vector<32xf32>
    %182 = vector.multi_reduction <add>, %181, %cst_121 [1] : vector<32x64xf32> to vector<32xf32>
    %183 = vector.shape_cast %182 : vector<32xf32> to vector<32x1xf32>
    %cst_122 = arith.constant 6.400000e+01 : f32
    %184 = vector.broadcast %cst_122 : f32 to vector<32x1xf32>
    %185 = arith.divf %183, %184 : vector<32x1xf32>
    %cst_123 = arith.constant 9.99999974E-6 : f32
    %186 = vector.broadcast %cst_123 : f32 to vector<32x1xf32>
    %187 = arith.addf %185, %186 : vector<32x1xf32>
    %188 = math.rsqrt %187 : vector<32x1xf32>
    %189 = vector.broadcast %188 : vector<32x1xf32> to vector<32x64xf32>
    %190 = arith.mulf %180, %189 : vector<32x64xf32>
    %191 = vector.broadcast %172 : vector<1x64xf32> to vector<32x64xf32>
    %192 = arith.mulf %190, %191 : vector<32x64xf32>
    %193 = vector.broadcast %174 : vector<1x64xf32> to vector<32x64xf32>
    %194 = arith.addf %192, %193 : vector<32x64xf32>
    %c1 = arith.constant 1 : index
    %c0_124 = arith.constant 0 : index
    %c0_125 = arith.constant 0 : index
    %195 = vector.load %arg20[%c1, %c0_124, %c0_125] : memref<2x9x32xf32, #tpu.memory_space<vmem>>, vector<1x9x32xf32>
    %196 = vector.shape_cast %195 : vector<1x9x32xf32> to vector<9x32xf32>
    %c1_126 = arith.constant 1 : index
    %c0_127 = arith.constant 0 : index
    %c0_128 = arith.constant 0 : index
    %197 = vector.load %arg19[%c1_126, %c0_127, %c0_128] : memref<2x32x9xf32, #tpu.memory_space<vmem>>, vector<1x32x9xf32>
    %198 = vector.shape_cast %197 : vector<1x32x9xf32> to vector<32x9xf32>
    %cst_129 = arith.constant dense<0.000000e+00> : vector<32x288xf32>
    %199 = tpu.matmul %198, %17, %cst_129 {dimension_numbers = #tpu.dot_dimension_numbers<[1], [0], [0], [1], [0, 0, 1, 1], [], []>} : vector<32x9xf32>, vector<9x288xf32>, vector<32x288xf32> -> vector<32x288xf32>
    %c1_130 = arith.constant 1 : index
    %c0_131 = arith.constant 0 : index
    %c0_132 = arith.constant 0 : index
    %200 = vector.load %arg11[%c1_130, %c0_131, %c0_132] : memref<2x64x64xf32, #tpu.memory_space<vmem>>, vector<1x64x64xf32>
    %201 = vector.shape_cast %200 : vector<1x64x64xf32> to vector<64x64xf32>
    %cst_133 = arith.constant dense<0.000000e+00> : vector<32x64xf32>
    %202 = tpu.matmul %194, %201, %cst_133 {dimension_numbers = #tpu.dot_dimension_numbers<[1], [0], [0], [1], [0, 0, 1, 1], [], []>} : vector<32x64xf32>, vector<64x64xf32>, vector<32x64xf32> -> vector<32x64xf32>
    %c1_134 = arith.constant 1 : index
    %c0_135 = arith.constant 0 : index
    %c0_136 = arith.constant 0 : index
    %203 = vector.load %arg12[%c1_134, %c0_135, %c0_136] : memref<2x1x64xf32, #tpu.memory_space<vmem>>, vector<1x1x64xf32>
    %204 = vector.shape_cast %203 : vector<1x1x64xf32> to vector<1x64xf32>
    %205 = vector.broadcast %204 : vector<1x64xf32> to vector<32x64xf32>
    %206 = arith.addf %202, %205 : vector<32x64xf32>
    %c1_137 = arith.constant 1 : index
    %c0_138 = arith.constant 0 : index
    %c0_139 = arith.constant 0 : index
    %207 = vector.load %arg13[%c1_137, %c0_138, %c0_139] : memref<2x64x64xf32, #tpu.memory_space<vmem>>, vector<1x64x64xf32>
    %208 = vector.shape_cast %207 : vector<1x64x64xf32> to vector<64x64xf32>
    %cst_140 = arith.constant dense<0.000000e+00> : vector<32x64xf32>
    %209 = tpu.matmul %194, %208, %cst_140 {dimension_numbers = #tpu.dot_dimension_numbers<[1], [0], [0], [1], [0, 0, 1, 1], [], []>} : vector<32x64xf32>, vector<64x64xf32>, vector<32x64xf32> -> vector<32x64xf32>
    %c1_141 = arith.constant 1 : index
    %c0_142 = arith.constant 0 : index
    %c0_143 = arith.constant 0 : index
    %210 = vector.load %arg14[%c1_141, %c0_142, %c0_143] : memref<2x1x64xf32, #tpu.memory_space<vmem>>, vector<1x1x64xf32>
    %211 = vector.shape_cast %210 : vector<1x1x64xf32> to vector<1x64xf32>
    %212 = vector.broadcast %211 : vector<1x64xf32> to vector<32x64xf32>
    %213 = arith.addf %209, %212 : vector<32x64xf32>
    %c1_144 = arith.constant 1 : index
    %c0_145 = arith.constant 0 : index
    %c0_146 = arith.constant 0 : index
    %214 = vector.load %arg15[%c1_144, %c0_145, %c0_146] : memref<2x64x64xf32, #tpu.memory_space<vmem>>, vector<1x64x64xf32>
    %215 = vector.shape_cast %214 : vector<1x64x64xf32> to vector<64x64xf32>
    %cst_147 = arith.constant dense<0.000000e+00> : vector<32x64xf32>
    %216 = tpu.matmul %194, %215, %cst_147 {dimension_numbers = #tpu.dot_dimension_numbers<[1], [0], [0], [1], [0, 0, 1, 1], [], []>} : vector<32x64xf32>, vector<64x64xf32>, vector<32x64xf32> -> vector<32x64xf32>
    %c1_148 = arith.constant 1 : index
    %c0_149 = arith.constant 0 : index
    %c0_150 = arith.constant 0 : index
    %217 = vector.load %arg16[%c1_148, %c0_149, %c0_150] : memref<2x1x64xf32, #tpu.memory_space<vmem>>, vector<1x1x64xf32>
    %218 = vector.shape_cast %217 : vector<1x1x64xf32> to vector<1x64xf32>
    %219 = vector.broadcast %218 : vector<1x64xf32> to vector<32x64xf32>
    %220 = arith.addf %216, %219 : vector<32x64xf32>
    %221 = vector.extract_strided_slice %206 {offsets = [0, 0], sizes = [32, 32], strides = [1, 1]} : vector<32x64xf32> to vector<32x32xf32>
    %cst_151 = arith.constant 0.176776692 : f32
    %222 = vector.broadcast %cst_151 : f32 to vector<32x32xf32>
    %223 = arith.mulf %221, %222 : vector<32x32xf32>
    %224 = vector.extract_strided_slice %213 {offsets = [0, 0], sizes = [32, 32], strides = [1, 1]} : vector<32x64xf32> to vector<32x32xf32>
    %225 = vector.extract_strided_slice %220 {offsets = [0, 0], sizes = [32, 32], strides = [1, 1]} : vector<32x64xf32> to vector<32x32xf32>
    %cst_152 = arith.constant dense<0.000000e+00> : vector<32x288xf32>
    %226 = tpu.matmul %223, %199, %cst_152 {dimension_numbers = #tpu.dot_dimension_numbers<[1], [0], [0], [1], [0, 0, 1, 1], [], []>} : vector<32x32xf32>, vector<32x288xf32>, vector<32x288xf32> -> vector<32x288xf32>
    %227 = arith.mulf %226, %15 : vector<32x288xf32>
    %cst_153 = arith.constant dense<0.000000e+00> : vector<32x32xf32>
    %228 = tpu.matmul %227, %16, %cst_153 {dimension_numbers = #tpu.dot_dimension_numbers<[1], [1], [0], [0], [0, 0, 1, 0], [], []>} : vector<32x288xf32>, vector<32x288xf32>, vector<32x32xf32> -> vector<32x32xf32>
    %cst_154 = arith.constant dense<0.000000e+00> : vector<32x32xf32>
    %229 = tpu.matmul %223, %224, %cst_154 {dimension_numbers = #tpu.dot_dimension_numbers<[1], [1], [0], [0], [0, 0, 1, 0], [], []>} : vector<32x32xf32>, vector<32x32xf32>, vector<32x32xf32> -> vector<32x32xf32>
    %230 = arith.addf %229, %228 : vector<32x32xf32>
    %231 = arith.addf %230, %14 : vector<32x32xf32>
    %cst_155 = arith.constant dense<0xFF800000> : vector<32xf32>
    %232 = vector.multi_reduction <maximumf>, %231, %cst_155 [1] : vector<32x32xf32> to vector<32xf32>
    %233 = vector.shape_cast %232 : vector<32xf32> to vector<32x1xf32>
    %234 = vector.broadcast %233 : vector<32x1xf32> to vector<32x32xf32>
    %235 = arith.subf %231, %234 : vector<32x32xf32>
    %236 = math.exp %235 : vector<32x32xf32>
    %cst_156 = arith.constant dense<0.000000e+00> : vector<32xf32>
    %237 = vector.multi_reduction <add>, %236, %cst_156 [1] : vector<32x32xf32> to vector<32xf32>
    %238 = vector.shape_cast %237 : vector<32xf32> to vector<32x1xf32>
    %239 = tpu.reciprocal %238 {approx = true} : vector<32x1xf32> -> vector<32x1xf32>
    %240 = vector.broadcast %239 : vector<32x1xf32> to vector<32x32xf32>
    %241 = arith.mulf %236, %240 : vector<32x32xf32>
    %cst_157 = arith.constant dense<0.000000e+00> : vector<32x32xf32>
    %242 = tpu.matmul %241, %225, %cst_157 {dimension_numbers = #tpu.dot_dimension_numbers<[1], [0], [0], [1], [0, 0, 1, 1], [], []>} : vector<32x32xf32>, vector<32x32xf32>, vector<32x32xf32> -> vector<32x32xf32>
    %cst_158 = arith.constant dense<0.000000e+00> : vector<32x288xf32>
    %243 = tpu.matmul %241, %16, %cst_158 {dimension_numbers = #tpu.dot_dimension_numbers<[1], [0], [0], [1], [0, 0, 1, 1], [], []>} : vector<32x32xf32>, vector<32x288xf32>, vector<32x288xf32> -> vector<32x288xf32>
    %244 = arith.mulf %243, %15 : vector<32x288xf32>
    %cst_159 = arith.constant dense<0.000000e+00> : vector<32x9xf32>
    %245 = tpu.matmul %244, %17, %cst_159 {dimension_numbers = #tpu.dot_dimension_numbers<[1], [1], [0], [0], [0, 0, 1, 0], [], []>} : vector<32x288xf32>, vector<9x288xf32>, vector<32x9xf32> -> vector<32x9xf32>
    %cst_160 = arith.constant dense<0.000000e+00> : vector<32x32xf32>
    %246 = tpu.matmul %245, %196, %cst_160 {dimension_numbers = #tpu.dot_dimension_numbers<[1], [0], [0], [1], [0, 0, 1, 1], [], []>} : vector<32x9xf32>, vector<9x32xf32>, vector<32x32xf32> -> vector<32x32xf32>
    %247 = arith.addf %242, %246 : vector<32x32xf32>
    %248 = vector.extract_strided_slice %206 {offsets = [0, 32], sizes = [32, 32], strides = [1, 1]} : vector<32x64xf32> to vector<32x32xf32>
    %cst_161 = arith.constant 0.176776692 : f32
    %249 = vector.broadcast %cst_161 : f32 to vector<32x32xf32>
    %250 = arith.mulf %248, %249 : vector<32x32xf32>
    %251 = vector.extract_strided_slice %213 {offsets = [0, 32], sizes = [32, 32], strides = [1, 1]} : vector<32x64xf32> to vector<32x32xf32>
    %252 = vector.extract_strided_slice %220 {offsets = [0, 32], sizes = [32, 32], strides = [1, 1]} : vector<32x64xf32> to vector<32x32xf32>
    %cst_162 = arith.constant dense<0.000000e+00> : vector<32x288xf32>
    %253 = tpu.matmul %250, %199, %cst_162 {dimension_numbers = #tpu.dot_dimension_numbers<[1], [0], [0], [1], [0, 0, 1, 1], [], []>} : vector<32x32xf32>, vector<32x288xf32>, vector<32x288xf32> -> vector<32x288xf32>
    %254 = arith.mulf %253, %15 : vector<32x288xf32>
    %cst_163 = arith.constant dense<0.000000e+00> : vector<32x32xf32>
    %255 = tpu.matmul %254, %16, %cst_163 {dimension_numbers = #tpu.dot_dimension_numbers<[1], [1], [0], [0], [0, 0, 1, 0], [], []>} : vector<32x288xf32>, vector<32x288xf32>, vector<32x32xf32> -> vector<32x32xf32>
    %cst_164 = arith.constant dense<0.000000e+00> : vector<32x32xf32>
    %256 = tpu.matmul %250, %251, %cst_164 {dimension_numbers = #tpu.dot_dimension_numbers<[1], [1], [0], [0], [0, 0, 1, 0], [], []>} : vector<32x32xf32>, vector<32x32xf32>, vector<32x32xf32> -> vector<32x32xf32>
    %257 = arith.addf %256, %255 : vector<32x32xf32>
    %258 = arith.addf %257, %14 : vector<32x32xf32>
    %cst_165 = arith.constant dense<0xFF800000> : vector<32xf32>
    %259 = vector.multi_reduction <maximumf>, %258, %cst_165 [1] : vector<32x32xf32> to vector<32xf32>
    %260 = vector.shape_cast %259 : vector<32xf32> to vector<32x1xf32>
    %261 = vector.broadcast %260 : vector<32x1xf32> to vector<32x32xf32>
    %262 = arith.subf %258, %261 : vector<32x32xf32>
    %263 = math.exp %262 : vector<32x32xf32>
    %cst_166 = arith.constant dense<0.000000e+00> : vector<32xf32>
    %264 = vector.multi_reduction <add>, %263, %cst_166 [1] : vector<32x32xf32> to vector<32xf32>
    %265 = vector.shape_cast %264 : vector<32xf32> to vector<32x1xf32>
    %266 = tpu.reciprocal %265 {approx = true} : vector<32x1xf32> -> vector<32x1xf32>
    %267 = vector.broadcast %266 : vector<32x1xf32> to vector<32x32xf32>
    %268 = arith.mulf %263, %267 : vector<32x32xf32>
    %cst_167 = arith.constant dense<0.000000e+00> : vector<32x32xf32>
    %269 = tpu.matmul %268, %252, %cst_167 {dimension_numbers = #tpu.dot_dimension_numbers<[1], [0], [0], [1], [0, 0, 1, 1], [], []>} : vector<32x32xf32>, vector<32x32xf32>, vector<32x32xf32> -> vector<32x32xf32>
    %cst_168 = arith.constant dense<0.000000e+00> : vector<32x288xf32>
    %270 = tpu.matmul %268, %16, %cst_168 {dimension_numbers = #tpu.dot_dimension_numbers<[1], [0], [0], [1], [0, 0, 1, 1], [], []>} : vector<32x32xf32>, vector<32x288xf32>, vector<32x288xf32> -> vector<32x288xf32>
    %271 = arith.mulf %270, %15 : vector<32x288xf32>
    %cst_169 = arith.constant dense<0.000000e+00> : vector<32x9xf32>
    %272 = tpu.matmul %271, %17, %cst_169 {dimension_numbers = #tpu.dot_dimension_numbers<[1], [1], [0], [0], [0, 0, 1, 0], [], []>} : vector<32x288xf32>, vector<9x288xf32>, vector<32x9xf32> -> vector<32x9xf32>
    %cst_170 = arith.constant dense<0.000000e+00> : vector<32x32xf32>
    %273 = tpu.matmul %272, %196, %cst_170 {dimension_numbers = #tpu.dot_dimension_numbers<[1], [0], [0], [1], [0, 0, 1, 1], [], []>} : vector<32x9xf32>, vector<9x32xf32>, vector<32x32xf32> -> vector<32x32xf32>
    %274 = arith.addf %269, %273 : vector<32x32xf32>
    %275 = tpu.concatenate %247, %274 in 1 : vector<32x32xf32>, vector<32x32xf32> -> vector<32x64xf32>
    %c1_171 = arith.constant 1 : index
    %c0_172 = arith.constant 0 : index
    %c0_173 = arith.constant 0 : index
    %276 = vector.load %arg17[%c1_171, %c0_172, %c0_173] : memref<2x64x64xf32, #tpu.memory_space<vmem>>, vector<1x64x64xf32>
    %277 = vector.shape_cast %276 : vector<1x64x64xf32> to vector<64x64xf32>
    %cst_174 = arith.constant dense<0.000000e+00> : vector<32x64xf32>
    %278 = tpu.matmul %275, %277, %cst_174 {dimension_numbers = #tpu.dot_dimension_numbers<[1], [0], [0], [1], [0, 0, 1, 1], [], []>} : vector<32x64xf32>, vector<64x64xf32>, vector<32x64xf32> -> vector<32x64xf32>
    %c1_175 = arith.constant 1 : index
    %c0_176 = arith.constant 0 : index
    %c0_177 = arith.constant 0 : index
    %279 = vector.load %arg18[%c1_175, %c0_176, %c0_177] : memref<2x1x64xf32, #tpu.memory_space<vmem>>, vector<1x1x64xf32>
    %280 = vector.shape_cast %279 : vector<1x1x64xf32> to vector<1x64xf32>
    %281 = vector.broadcast %280 : vector<1x64xf32> to vector<32x64xf32>
    %282 = arith.addf %278, %281 : vector<32x64xf32>
    %283 = arith.addf %194, %282 : vector<32x64xf32>
    %c1_178 = arith.constant 1 : index
    %c0_179 = arith.constant 0 : index
    %c0_180 = arith.constant 0 : index
    %284 = vector.load %arg21[%c1_178, %c0_179, %c0_180] : memref<2x1x64xf32, #tpu.memory_space<vmem>>, vector<1x1x64xf32>
    %285 = vector.shape_cast %284 : vector<1x1x64xf32> to vector<1x64xf32>
    %c1_181 = arith.constant 1 : index
    %c0_182 = arith.constant 0 : index
    %c0_183 = arith.constant 0 : index
    %286 = vector.load %arg22[%c1_181, %c0_182, %c0_183] : memref<2x1x64xf32, #tpu.memory_space<vmem>>, vector<1x1x64xf32>
    %287 = vector.shape_cast %286 : vector<1x1x64xf32> to vector<1x64xf32>
    %cst_184 = arith.constant dense<0.000000e+00> : vector<32xf32>
    %288 = vector.multi_reduction <add>, %283, %cst_184 [1] : vector<32x64xf32> to vector<32xf32>
    %289 = vector.shape_cast %288 : vector<32xf32> to vector<32x1xf32>
    %cst_185 = arith.constant 6.400000e+01 : f32
    %290 = vector.broadcast %cst_185 : f32 to vector<32x1xf32>
    %291 = arith.divf %289, %290 : vector<32x1xf32>
    %292 = vector.broadcast %291 : vector<32x1xf32> to vector<32x64xf32>
    %293 = arith.subf %283, %292 : vector<32x64xf32>
    %294 = arith.mulf %293, %293 : vector<32x64xf32>
    %cst_186 = arith.constant dense<0.000000e+00> : vector<32xf32>
    %295 = vector.multi_reduction <add>, %294, %cst_186 [1] : vector<32x64xf32> to vector<32xf32>
    %296 = vector.shape_cast %295 : vector<32xf32> to vector<32x1xf32>
    %cst_187 = arith.constant 6.400000e+01 : f32
    %297 = vector.broadcast %cst_187 : f32 to vector<32x1xf32>
    %298 = arith.divf %296, %297 : vector<32x1xf32>
    %cst_188 = arith.constant 9.99999974E-6 : f32
    %299 = vector.broadcast %cst_188 : f32 to vector<32x1xf32>
    %300 = arith.addf %298, %299 : vector<32x1xf32>
    %301 = math.rsqrt %300 : vector<32x1xf32>
    %302 = vector.broadcast %301 : vector<32x1xf32> to vector<32x64xf32>
    %303 = arith.mulf %293, %302 : vector<32x64xf32>
    %304 = vector.broadcast %285 : vector<1x64xf32> to vector<32x64xf32>
    %305 = arith.mulf %303, %304 : vector<32x64xf32>
    %306 = vector.broadcast %287 : vector<1x64xf32> to vector<32x64xf32>
    %307 = arith.addf %305, %306 : vector<32x64xf32>
    %308 = vector.broadcast %5 : vector<32x1xf32> to vector<32x64xf32>
    %309 = arith.mulf %307, %308 : vector<32x64xf32>
    %cst_189 = arith.constant dense<0.000000e+00> : vector<32x64xf32>
    %310 = tpu.matmul %19, %309, %cst_189 {dimension_numbers = #tpu.dot_dimension_numbers<[1], [0], [0], [1], [0, 0, 1, 1], [], []>} : vector<32x32xf32>, vector<32x64xf32>, vector<32x64xf32> -> vector<32x64xf32>
    %cst_190 = arith.constant dense<0.000000e+00> : vector<32x64xf32>
    %311 = tpu.matmul %21, %309, %cst_190 {dimension_numbers = #tpu.dot_dimension_numbers<[1], [0], [0], [1], [0, 0, 1, 1], [], []>} : vector<32x32xf32>, vector<32x64xf32>, vector<32x64xf32> -> vector<32x64xf32>
    %312 = tpu.concatenate %310, %309, %311 in 1 : vector<32x64xf32>, vector<32x64xf32>, vector<32x64xf32> -> vector<32x192xf32>
    %c1_191 = arith.constant 1 : index
    %c0_192 = arith.constant 0 : index
    %c0_193 = arith.constant 0 : index
    %313 = vector.load %arg23[%c1_191, %c0_192, %c0_193] : memref<2x192x128xf32, #tpu.memory_space<vmem>>, vector<1x192x128xf32>
    %314 = vector.shape_cast %313 : vector<1x192x128xf32> to vector<192x128xf32>
    %cst_194 = arith.constant dense<0.000000e+00> : vector<32x128xf32>
    %315 = tpu.matmul %312, %314, %cst_194 {dimension_numbers = #tpu.dot_dimension_numbers<[1], [0], [0], [1], [0, 0, 1, 1], [], []>} : vector<32x192xf32>, vector<192x128xf32>, vector<32x128xf32> -> vector<32x128xf32>
    %c1_195 = arith.constant 1 : index
    %c0_196 = arith.constant 0 : index
    %c0_197 = arith.constant 0 : index
    %316 = vector.load %arg24[%c1_195, %c0_196, %c0_197] : memref<2x1x128xf32, #tpu.memory_space<vmem>>, vector<1x1x128xf32>
    %317 = vector.shape_cast %316 : vector<1x1x128xf32> to vector<1x128xf32>
    %318 = vector.broadcast %317 : vector<1x128xf32> to vector<32x128xf32>
    %319 = arith.addf %315, %318 : vector<32x128xf32>
    %cst_198 = arith.constant 0.000000e+00 : f32
    %320 = vector.broadcast %cst_198 : f32 to vector<32x128xf32>
    %321 = arith.maximumf %319, %320 : vector<32x128xf32>
    %322 = vector.broadcast %5 : vector<32x1xf32> to vector<32x128xf32>
    %323 = arith.mulf %321, %322 : vector<32x128xf32>
    %cst_199 = arith.constant dense<0.000000e+00> : vector<32x128xf32>
    %324 = tpu.matmul %19, %323, %cst_199 {dimension_numbers = #tpu.dot_dimension_numbers<[1], [0], [0], [1], [0, 0, 1, 1], [], []>} : vector<32x32xf32>, vector<32x128xf32>, vector<32x128xf32> -> vector<32x128xf32>
    %cst_200 = arith.constant dense<0.000000e+00> : vector<32x128xf32>
    %325 = tpu.matmul %21, %323, %cst_200 {dimension_numbers = #tpu.dot_dimension_numbers<[1], [0], [0], [1], [0, 0, 1, 1], [], []>} : vector<32x32xf32>, vector<32x128xf32>, vector<32x128xf32> -> vector<32x128xf32>
    %326 = tpu.concatenate %324, %323, %325 in 1 : vector<32x128xf32>, vector<32x128xf32>, vector<32x128xf32> -> vector<32x384xf32>
    %c1_201 = arith.constant 1 : index
    %c0_202 = arith.constant 0 : index
    %c0_203 = arith.constant 0 : index
    %327 = vector.load %arg25[%c1_201, %c0_202, %c0_203] : memref<2x384x64xf32, #tpu.memory_space<vmem>>, vector<1x384x64xf32>
    %328 = vector.shape_cast %327 : vector<1x384x64xf32> to vector<384x64xf32>
    %cst_204 = arith.constant dense<0.000000e+00> : vector<32x64xf32>
    %329 = tpu.matmul %326, %328, %cst_204 {dimension_numbers = #tpu.dot_dimension_numbers<[1], [0], [0], [1], [0, 0, 1, 1], [], []>} : vector<32x384xf32>, vector<384x64xf32>, vector<32x64xf32> -> vector<32x64xf32>
    %c1_205 = arith.constant 1 : index
    %c0_206 = arith.constant 0 : index
    %c0_207 = arith.constant 0 : index
    %330 = vector.load %arg26[%c1_205, %c0_206, %c0_207] : memref<2x1x64xf32, #tpu.memory_space<vmem>>, vector<1x1x64xf32>
    %331 = vector.shape_cast %330 : vector<1x1x64xf32> to vector<1x64xf32>
    %332 = vector.broadcast %331 : vector<1x64xf32> to vector<32x64xf32>
    %333 = arith.addf %329, %332 : vector<32x64xf32>
    %334 = vector.broadcast %5 : vector<32x1xf32> to vector<32x64xf32>
    %335 = arith.mulf %333, %334 : vector<32x64xf32>
    %336 = arith.addf %307, %335 : vector<32x64xf32>
    %c1_208 = arith.constant 1 : index
    %c0_209 = arith.constant 0 : index
    %c0_210 = arith.constant 0 : index
    %337 = vector.load %arg27[%c1_208, %c0_209, %c0_210] : memref<2x1x64xf32, #tpu.memory_space<vmem>>, vector<1x1x64xf32>
    %338 = vector.shape_cast %337 : vector<1x1x64xf32> to vector<1x64xf32>
    %c1_211 = arith.constant 1 : index
    %c0_212 = arith.constant 0 : index
    %c0_213 = arith.constant 0 : index
    %339 = vector.load %arg28[%c1_211, %c0_212, %c0_213] : memref<2x1x64xf32, #tpu.memory_space<vmem>>, vector<1x1x64xf32>
    %340 = vector.shape_cast %339 : vector<1x1x64xf32> to vector<1x64xf32>
    %cst_214 = arith.constant dense<0.000000e+00> : vector<32xf32>
    %341 = vector.multi_reduction <add>, %336, %cst_214 [1] : vector<32x64xf32> to vector<32xf32>
    %342 = vector.shape_cast %341 : vector<32xf32> to vector<32x1xf32>
    %cst_215 = arith.constant 6.400000e+01 : f32
    %343 = vector.broadcast %cst_215 : f32 to vector<32x1xf32>
    %344 = arith.divf %342, %343 : vector<32x1xf32>
    %345 = vector.broadcast %344 : vector<32x1xf32> to vector<32x64xf32>
    %346 = arith.subf %336, %345 : vector<32x64xf32>
    %347 = arith.mulf %346, %346 : vector<32x64xf32>
    %cst_216 = arith.constant dense<0.000000e+00> : vector<32xf32>
    %348 = vector.multi_reduction <add>, %347, %cst_216 [1] : vector<32x64xf32> to vector<32xf32>
    %349 = vector.shape_cast %348 : vector<32xf32> to vector<32x1xf32>
    %cst_217 = arith.constant 6.400000e+01 : f32
    %350 = vector.broadcast %cst_217 : f32 to vector<32x1xf32>
    %351 = arith.divf %349, %350 : vector<32x1xf32>
    %cst_218 = arith.constant 9.99999974E-6 : f32
    %352 = vector.broadcast %cst_218 : f32 to vector<32x1xf32>
    %353 = arith.addf %351, %352 : vector<32x1xf32>
    %354 = math.rsqrt %353 : vector<32x1xf32>
    %355 = vector.broadcast %354 : vector<32x1xf32> to vector<32x64xf32>
    %356 = arith.mulf %346, %355 : vector<32x64xf32>
    %357 = vector.broadcast %338 : vector<1x64xf32> to vector<32x64xf32>
    %358 = arith.mulf %356, %357 : vector<32x64xf32>
    %359 = vector.broadcast %340 : vector<1x64xf32> to vector<32x64xf32>
    %360 = arith.addf %358, %359 : vector<32x64xf32>
    %361 = vector.broadcast %5 : vector<32x1xf32> to vector<32x64xf32>
    %362 = arith.mulf %360, %361 : vector<32x64xf32>
    %c0_219 = arith.constant 0 : index
    %c0_220 = arith.constant 0 : index
    %363 = vector.load %arg29[%c0_219, %c0_220] : memref<64x16xf32, #tpu.memory_space<vmem>>, vector<64x16xf32>
    %cst_221 = arith.constant dense<0.000000e+00> : vector<32x16xf32>
    %364 = tpu.matmul %362, %363, %cst_221 {dimension_numbers = #tpu.dot_dimension_numbers<[1], [0], [0], [1], [0, 0, 1, 1], [], []>} : vector<32x64xf32>, vector<64x16xf32>, vector<32x16xf32> -> vector<32x16xf32>
    %c0_222 = arith.constant 0 : index
    %c0_223 = arith.constant 0 : index
    %365 = vector.load %arg30[%c0_222, %c0_223] : memref<1x16xf32, #tpu.memory_space<vmem>>, vector<1x16xf32>
    %366 = vector.broadcast %365 : vector<1x16xf32> to vector<32x16xf32>
    %367 = arith.addf %364, %366 : vector<32x16xf32>
    %368 = vector.broadcast %5 : vector<32x1xf32> to vector<32x16xf32>
    %369 = arith.mulf %367, %368 : vector<32x16xf32>
    %370 = vector.extract_strided_slice %369 {offsets = [0, 0], sizes = [32, 8], strides = [1, 1]} : vector<32x16xf32> to vector<32x8xf32>
    %371 = vector.extract_strided_slice %369 {offsets = [0, 8], sizes = [32, 8], strides = [1, 1]} : vector<32x16xf32> to vector<32x8xf32>
    %372 = math.exp %371 : vector<32x8xf32>
    %373 = arith.mulf %3, %372 : vector<32x8xf32>
    %374 = vector.broadcast %5 : vector<32x1xf32> to vector<32x8xf32>
    %375 = arith.mulf %373, %374 : vector<32x8xf32>
    %376 = arith.addf %370, %375 : vector<32x8xf32>
    %377 = tpu.concatenate %1, %376 in 1 : vector<32x8xf32>, vector<32x8xf32> -> vector<32x16xf32>
    %378 = vector.shape_cast %371 : vector<32x8xf32> to vector<1x32x8xf32>
    %cst_224 = arith.constant dense<0.000000e+00> : vector<1xf32>
    %379 = vector.multi_reduction <add>, %378, %cst_224 [1, 2] : vector<1x32x8xf32> to vector<1xf32>
    %380 = vector.shape_cast %379 : vector<1xf32> to vector<1x1x1xf32>
    %381 = vector.extract %380[0, 0, 0] : f32 from vector<1x1x1xf32>
    %382 = vector.broadcast %381 : f32 to vector<1x1xf32>
    %c0_225 = arith.constant 0 : index
    %c0_226 = arith.constant 0 : index
    %c0_227 = arith.constant 0 : index
    %383 = vector.load %arg31[%c0_225, %c0_226, %c0_227] : memref<1x32x16xf32, #tpu.memory_space<vmem>>, vector<1x32x16xf32>
    %384 = vector.shape_cast %383 : vector<1x32x16xf32> to vector<32x16xf32>
    %385 = vector.shape_cast %377 : vector<32x16xf32> to vector<1x32x16xf32>
    tpu.vector_store %arg31[%c0_225, %c0_226, %c0_227], %385 {strides = array<i32>} : memref<1x32x16xf32, #tpu.memory_space<vmem>>, vector<1x32x16xf32>,
    %c0_228 = arith.constant 0 : index
    %c0_229 = arith.constant 0 : index
    %c0_230 = arith.constant 0 : index
    %386 = vector.load %arg32[%c0_228, %c0_229, %c0_230] : memref<1x1x1xf32, #tpu.memory_space<vmem>>, vector<1x1x1xf32>
    %387 = vector.shape_cast %386 : vector<1x1x1xf32> to vector<1x1xf32>
    %388 = vector.shape_cast %382 : vector<1x1xf32> to vector<1x1x1xf32>
    tpu.vector_store %arg32[%c0_228, %c0_229, %c0_230], %388 {strides = array<i32>} : memref<1x1x1xf32, #tpu.memory_space<vmem>>, vector<1x1x1xf32>,
    return
  }
  func.func @transform_0(%arg0: i32) -> (i32, i32, i32) {
    %c0_i32 = arith.constant 0 : i32
    %c0_i32_0 = arith.constant 0 : i32
    %c0_i32_1 = arith.constant 0 : i32
    return %arg0, %c0_i32, %c0_i32_0 : i32, i32, i32
  }
  func.func @transform_1(%arg0: i32) -> (i32, i32, i32) {
    %c0_i32 = arith.constant 0 : i32
    %c0_i32_0 = arith.constant 0 : i32
    %c0_i32_1 = arith.constant 0 : i32
    return %arg0, %c0_i32, %c0_i32_0 : i32, i32, i32
  }
  func.func @transform_2(%arg0: i32) -> (i32, i32, i32) {
    %c0_i32 = arith.constant 0 : i32
    %c0_i32_0 = arith.constant 0 : i32
    %c0_i32_1 = arith.constant 0 : i32
    return %arg0, %c0_i32, %c0_i32_0 : i32, i32, i32
  }
  func.func @transform_3(%arg0: i32) -> (i32, i32, i32) {
    %c0_i32 = arith.constant 0 : i32
    %c0_i32_0 = arith.constant 0 : i32
    %c0_i32_1 = arith.constant 0 : i32
    return %arg0, %c0_i32, %c0_i32_0 : i32, i32, i32
  }
  func.func @transform_4(%arg0: i32) -> (i32, i32) {
    %c0_i32 = arith.constant 0 : i32
    %c0_i32_0 = arith.constant 0 : i32
    %c0_i32_1 = arith.constant 0 : i32
    return %c0_i32, %c0_i32_0 : i32, i32
  }
  func.func @transform_5(%arg0: i32) -> (i32, i32) {
    %c0_i32 = arith.constant 0 : i32
    %c0_i32_0 = arith.constant 0 : i32
    %c0_i32_1 = arith.constant 0 : i32
    return %c0_i32, %c0_i32_0 : i32, i32
  }
  func.func @transform_6(%arg0: i32) -> (i32, i32) {
    %c0_i32 = arith.constant 0 : i32
    %c0_i32_0 = arith.constant 0 : i32
    %c0_i32_1 = arith.constant 0 : i32
    return %c0_i32, %c0_i32_0 : i32, i32
  }
  func.func @transform_7(%arg0: i32) -> (i32, i32, i32) {
    %c0_i32 = arith.constant 0 : i32
    %c0_i32_0 = arith.constant 0 : i32
    %c0_i32_1 = arith.constant 0 : i32
    %c0_i32_2 = arith.constant 0 : i32
    return %c0_i32, %c0_i32_0, %c0_i32_1 : i32, i32, i32
  }
  func.func @transform_8(%arg0: i32) -> (i32, i32) {
    %c0_i32 = arith.constant 0 : i32
    %c0_i32_0 = arith.constant 0 : i32
    %c0_i32_1 = arith.constant 0 : i32
    return %c0_i32, %c0_i32_0 : i32, i32
  }
  func.func @transform_9(%arg0: i32) -> (i32, i32) {
    %c0_i32 = arith.constant 0 : i32
    %c0_i32_0 = arith.constant 0 : i32
    %c0_i32_1 = arith.constant 0 : i32
    return %c0_i32, %c0_i32_0 : i32, i32
  }
  func.func @transform_10(%arg0: i32) -> (i32, i32, i32) {
    %c0_i32 = arith.constant 0 : i32
    %c0_i32_0 = arith.constant 0 : i32
    %c0_i32_1 = arith.constant 0 : i32
    %c0_i32_2 = arith.constant 0 : i32
    return %c0_i32, %c0_i32_0, %c0_i32_1 : i32, i32, i32
  }
  func.func @transform_11(%arg0: i32) -> (i32, i32, i32) {
    %c0_i32 = arith.constant 0 : i32
    %c0_i32_0 = arith.constant 0 : i32
    %c0_i32_1 = arith.constant 0 : i32
    %c0_i32_2 = arith.constant 0 : i32
    return %c0_i32, %c0_i32_0, %c0_i32_1 : i32, i32, i32
  }
  func.func @transform_12(%arg0: i32) -> (i32, i32, i32) {
    %c0_i32 = arith.constant 0 : i32
    %c0_i32_0 = arith.constant 0 : i32
    %c0_i32_1 = arith.constant 0 : i32
    %c0_i32_2 = arith.constant 0 : i32
    return %c0_i32, %c0_i32_0, %c0_i32_1 : i32, i32, i32
  }
  func.func @transform_13(%arg0: i32) -> (i32, i32, i32) {
    %c0_i32 = arith.constant 0 : i32
    %c0_i32_0 = arith.constant 0 : i32
    %c0_i32_1 = arith.constant 0 : i32
    %c0_i32_2 = arith.constant 0 : i32
    return %c0_i32, %c0_i32_0, %c0_i32_1 : i32, i32, i32
  }
  func.func @transform_14(%arg0: i32) -> (i32, i32, i32) {
    %c0_i32 = arith.constant 0 : i32
    %c0_i32_0 = arith.constant 0 : i32
    %c0_i32_1 = arith.constant 0 : i32
    %c0_i32_2 = arith.constant 0 : i32
    return %c0_i32, %c0_i32_0, %c0_i32_1 : i32, i32, i32
  }
  func.func @transform_15(%arg0: i32) -> (i32, i32, i32) {
    %c0_i32 = arith.constant 0 : i32
    %c0_i32_0 = arith.constant 0 : i32
    %c0_i32_1 = arith.constant 0 : i32
    %c0_i32_2 = arith.constant 0 : i32
    return %c0_i32, %c0_i32_0, %c0_i32_1 : i32, i32, i32
  }
  func.func @transform_16(%arg0: i32) -> (i32, i32, i32) {
    %c0_i32 = arith.constant 0 : i32
    %c0_i32_0 = arith.constant 0 : i32
    %c0_i32_1 = arith.constant 0 : i32
    %c0_i32_2 = arith.constant 0 : i32
    return %c0_i32, %c0_i32_0, %c0_i32_1 : i32, i32, i32
  }
  func.func @transform_17(%arg0: i32) -> (i32, i32, i32) {
    %c0_i32 = arith.constant 0 : i32
    %c0_i32_0 = arith.constant 0 : i32
    %c0_i32_1 = arith.constant 0 : i32
    %c0_i32_2 = arith.constant 0 : i32
    return %c0_i32, %c0_i32_0, %c0_i32_1 : i32, i32, i32
  }
  func.func @transform_18(%arg0: i32) -> (i32, i32, i32) {
    %c0_i32 = arith.constant 0 : i32
    %c0_i32_0 = arith.constant 0 : i32
    %c0_i32_1 = arith.constant 0 : i32
    %c0_i32_2 = arith.constant 0 : i32
    return %c0_i32, %c0_i32_0, %c0_i32_1 : i32, i32, i32
  }
  func.func @transform_19(%arg0: i32) -> (i32, i32, i32) {
    %c0_i32 = arith.constant 0 : i32
    %c0_i32_0 = arith.constant 0 : i32
    %c0_i32_1 = arith.constant 0 : i32
    %c0_i32_2 = arith.constant 0 : i32
    return %c0_i32, %c0_i32_0, %c0_i32_1 : i32, i32, i32
  }
  func.func @transform_20(%arg0: i32) -> (i32, i32, i32) {
    %c0_i32 = arith.constant 0 : i32
    %c0_i32_0 = arith.constant 0 : i32
    %c0_i32_1 = arith.constant 0 : i32
    %c0_i32_2 = arith.constant 0 : i32
    return %c0_i32, %c0_i32_0, %c0_i32_1 : i32, i32, i32
  }
  func.func @transform_21(%arg0: i32) -> (i32, i32, i32) {
    %c0_i32 = arith.constant 0 : i32
    %c0_i32_0 = arith.constant 0 : i32
    %c0_i32_1 = arith.constant 0 : i32
    %c0_i32_2 = arith.constant 0 : i32
    return %c0_i32, %c0_i32_0, %c0_i32_1 : i32, i32, i32
  }
  func.func @transform_22(%arg0: i32) -> (i32, i32, i32) {
    %c0_i32 = arith.constant 0 : i32
    %c0_i32_0 = arith.constant 0 : i32
    %c0_i32_1 = arith.constant 0 : i32
    %c0_i32_2 = arith.constant 0 : i32
    return %c0_i32, %c0_i32_0, %c0_i32_1 : i32, i32, i32
  }
  func.func @transform_23(%arg0: i32) -> (i32, i32, i32) {
    %c0_i32 = arith.constant 0 : i32
    %c0_i32_0 = arith.constant 0 : i32
    %c0_i32_1 = arith.constant 0 : i32
    %c0_i32_2 = arith.constant 0 : i32
    return %c0_i32, %c0_i32_0, %c0_i32_1 : i32, i32, i32
  }
  func.func @transform_24(%arg0: i32) -> (i32, i32, i32) {
    %c0_i32 = arith.constant 0 : i32
    %c0_i32_0 = arith.constant 0 : i32
    %c0_i32_1 = arith.constant 0 : i32
    %c0_i32_2 = arith.constant 0 : i32
    return %c0_i32, %c0_i32_0, %c0_i32_1 : i32, i32, i32
  }
  func.func @transform_25(%arg0: i32) -> (i32, i32, i32) {
    %c0_i32 = arith.constant 0 : i32
    %c0_i32_0 = arith.constant 0 : i32
    %c0_i32_1 = arith.constant 0 : i32
    %c0_i32_2 = arith.constant 0 : i32
    return %c0_i32, %c0_i32_0, %c0_i32_1 : i32, i32, i32
  }
  func.func @transform_26(%arg0: i32) -> (i32, i32, i32) {
    %c0_i32 = arith.constant 0 : i32
    %c0_i32_0 = arith.constant 0 : i32
    %c0_i32_1 = arith.constant 0 : i32
    %c0_i32_2 = arith.constant 0 : i32
    return %c0_i32, %c0_i32_0, %c0_i32_1 : i32, i32, i32
  }
  func.func @transform_27(%arg0: i32) -> (i32, i32, i32) {
    %c0_i32 = arith.constant 0 : i32
    %c0_i32_0 = arith.constant 0 : i32
    %c0_i32_1 = arith.constant 0 : i32
    %c0_i32_2 = arith.constant 0 : i32
    return %c0_i32, %c0_i32_0, %c0_i32_1 : i32, i32, i32
  }
  func.func @transform_28(%arg0: i32) -> (i32, i32) {
    %c0_i32 = arith.constant 0 : i32
    %c0_i32_0 = arith.constant 0 : i32
    %c0_i32_1 = arith.constant 0 : i32
    return %c0_i32, %c0_i32_0 : i32, i32
  }
  func.func @transform_29(%arg0: i32) -> (i32, i32) {
    %c0_i32 = arith.constant 0 : i32
    %c0_i32_0 = arith.constant 0 : i32
    %c0_i32_1 = arith.constant 0 : i32
    return %c0_i32, %c0_i32_0 : i32, i32
  }
  func.func @transform_30(%arg0: i32) -> (i32, i32, i32) {
    %c0_i32 = arith.constant 0 : i32
    %c0_i32_0 = arith.constant 0 : i32
    %c0_i32_1 = arith.constant 0 : i32
    return %arg0, %c0_i32, %c0_i32_0 : i32, i32, i32
  }
  func.func @transform_31(%arg0: i32) -> (i32, i32, i32) {
    %c0_i32 = arith.constant 0 : i32
    %c0_i32_0 = arith.constant 0 : i32
    %c0_i32_1 = arith.constant 0 : i32
    return %arg0, %c0_i32, %c0_i32_0 : i32, i32, i32
  }
}

</mosaic_0001>

<llo_original>
// kernel: transformer_coupling_forward.1
$region0: #{transformer_coupling_forward.1}
  #allocation0 [shape = 'u32[]', space=smem, size = 0x4, offset = 0x4, fixed_abs, tag = 'smem constant byte address 0x4 - core index']
  #allocation1 [shape = 'u32[72,128]{1,0:T(1,128)}', space=vmem, size = 0x9000, scoped, tag = 'internal scratch']
  %s0 = inlined_call_operand.smem [shape: u32[32], index: -1, kind: input, shape index: {}]
  %s1 = sld [smem:[%s0]]
  %s2 = scalar_lea.smem %s0, 1
  %s3 = sld [smem:[%s2]]
  %s4 = scalar_lea.smem %s0, 2
  %s5 = sld [smem:[%s4]]
  %s6 = scalar_lea.smem %s0, 3
  %s7 = sld [smem:[%s6]]
  %s8 = scalar_lea.smem %s0, 4
  %s9 = sld [smem:[%s8]]
  %s10 = scalar_lea.smem %s0, 5
  %s11 = sld [smem:[%s10]]
  %s12 = scalar_lea.smem %s0, 6
  %s13 = sld [smem:[%s12]]
  %s14 = scalar_lea.smem %s0, 7
  %s15 = sld [smem:[%s14]]
  %s16 = scalar_lea.smem %s0, 8
  %s17 = sld [smem:[%s16]]
  %s18 = scalar_lea.smem %s0, 9
  %s19 = sld [smem:[%s18]]
  %s20 = scalar_lea.smem %s0, 10
  %s21 = sld [smem:[%s20]]
  %s22 = scalar_lea.smem %s0, 11
  %s23 = sld [smem:[%s22]]
  %s24 = scalar_lea.smem %s0, 12
  %s25 = sld [smem:[%s24]]
  %s26 = scalar_lea.smem %s0, 13
  %s27 = sld [smem:[%s26]]
  %s28 = scalar_lea.smem %s0, 14
  %s29 = sld [smem:[%s28]]
  %s30 = scalar_lea.smem %s0, 15
  %s31 = sld [smem:[%s30]]
  %s32 = scalar_lea.smem %s0, 16
  %s33 = sld [smem:[%s32]]
  %s34 = scalar_lea.smem %s0, 17
  %s35 = sld [smem:[%s34]]
  %s36 = scalar_lea.smem %s0, 18
  %s37 = sld [smem:[%s36]]
  %s38 = scalar_lea.smem %s0, 19
  %s39 = sld [smem:[%s38]]
  %s40 = scalar_lea.smem %s0, 20
  %s41 = sld [smem:[%s40]]
  %s42 = scalar_lea.smem %s0, 21
  %s43 = sld [smem:[%s42]]
  %s44 = scalar_lea.smem %s0, 22
  %s45 = sld [smem:[%s44]]
  %s46 = scalar_lea.smem %s0, 23
  %s47 = sld [smem:[%s46]]
  %s48 = scalar_lea.smem %s0, 24
  %s49 = sld [smem:[%s48]]
  %s50 = scalar_lea.smem %s0, 25
  %s51 = sld [smem:[%s50]]
  %s52 = scalar_lea.smem %s0, 26
  %s53 = sld [smem:[%s52]]
  %s54 = scalar_lea.smem %s0, 27
  %s55 = sld [smem:[%s54]]
  %s56 = scalar_lea.smem %s0, 28
  %s57 = sld [smem:[%s56]]
  %s58 = scalar_lea.smem %s0, 29
  %s59 = sld [smem:[%s58]]
  %s60 = scalar_lea.smem %s0, 30
  %s61 = sld [smem:[%s60]]
  %s62 = scalar_lea.smem %s0, 31
  %s63 = sld [smem:[%s62]]
  %64 = xla_tuple %s61, %s63
  %s65 = sld [smem:[#allocation0]]
  $region161: #{transformer_coupling_forward.1} parent=0
    _
  %s67 = ssub.s32 1, %s65
  %s68 = scalar_select 0, %s67, %s65
  loop: start=0, step=1, limit=4
  $region2: #{transformer_coupling_forward.1} parent=0 // loop_pre_header
    _
  $region3: #{transformer_coupling_forward.1} parent=0 // loop_header
    %s70 = sphi 0, %s74
    %p71 = scmp.ge.s32.totalorder %s70, 4
    %s80 = sphi 0, %s82
    %s83 = sphi 0, %s80
    %s84 = sphi 0, %s83
    %s100 = sphi 0, %s84
    %s106 = sphi 0, %s108
    %s109 = sphi 0, %s106
    %s110 = sphi 0, %s109
    %s126 = sphi 0, %s110
    %s132 = sphi 0, %s134
    %s135 = sphi 0, %s132
    %s136 = sphi 0, %s135
    %s152 = sphi 0, %s136
    %s158 = sphi 0, %s160
    %s161 = sphi 0, %s158
    %s162 = sphi 0, %s161
    %s178 = sphi 0, %s162
    %s182 = sphi 0, %s182
    %s184 = sphi 0, %s182
    %s185 = sphi 0, %s184
    %s199 = sphi 0, %s185
    %s203 = sphi 0, %s203
    %s205 = sphi 0, %s203
    %s206 = sphi 0, %s205
    %s220 = sphi 0, %s206
    %s224 = sphi 0, %s224
    %s226 = sphi 0, %s224
    %s227 = sphi 0, %s226
    %s241 = sphi 0, %s227
    %s245 = sphi 0, %s245
    %s247 = sphi 0, %s245
    %s248 = sphi 0, %s247
    %s262 = sphi 0, %s248
    %s266 = sphi 0, %s266
    %s268 = sphi 0, %s266
    %s269 = sphi 0, %s268
    %s283 = sphi 0, %s269
    %s287 = sphi 0, %s287
    %s289 = sphi 0, %s287
    %s290 = sphi 0, %s289
    %s304 = sphi 0, %s290
    %s308 = sphi 0, %s308
    %s310 = sphi 0, %s308
    %s311 = sphi 0, %s310
    %s325 = sphi 0, %s311
    %s329 = sphi 0, %s329
    %s331 = sphi 0, %s329
    %s332 = sphi 0, %s331
    %s346 = sphi 0, %s332
    %s350 = sphi 0, %s350
    %s352 = sphi 0, %s350
    %s353 = sphi 0, %s352
    %s367 = sphi 0, %s353
    %s371 = sphi 0, %s371
    %s373 = sphi 0, %s371
    %s374 = sphi 0, %s373
    %s388 = sphi 0, %s374
    %s392 = sphi 0, %s392
    %s394 = sphi 0, %s392
    %s395 = sphi 0, %s394
    %s409 = sphi 0, %s395
    %s413 = sphi 0, %s413
    %s415 = sphi 0, %s413
    %s416 = sphi 0, %s415
    %s430 = sphi 0, %s416
    %s434 = sphi 0, %s434
    %s436 = sphi 0, %s434
    %s437 = sphi 0, %s436
    %s451 = sphi 0, %s437
    %s455 = sphi 0, %s455
    %s457 = sphi 0, %s455
    %s458 = sphi 0, %s457
    %s472 = sphi 0, %s458
    %s476 = sphi 0, %s476
    %s478 = sphi 0, %s476
    %s479 = sphi 0, %s478
    %s493 = sphi 0, %s479
    %s497 = sphi 0, %s497
    %s499 = sphi 0, %s497
    %s500 = sphi 0, %s499
    %s514 = sphi 0, %s500
    %s518 = sphi 0, %s518
    %s520 = sphi 0, %s518
    %s521 = sphi 0, %s520
    %s535 = sphi 0, %s521
    %s539 = sphi 0, %s539
    %s541 = sphi 0, %s539
    %s542 = sphi 0, %s541
    %s556 = sphi 0, %s542
    %s560 = sphi 0, %s560
    %s562 = sphi 0, %s560
    %s563 = sphi 0, %s562
    %s577 = sphi 0, %s563
    %s581 = sphi 0, %s581
    %s583 = sphi 0, %s581
    %s584 = sphi 0, %s583
    %s598 = sphi 0, %s584
    %s602 = sphi 0, %s602
    %s604 = sphi 0, %s602
    %s605 = sphi 0, %s604
    %s619 = sphi 0, %s605
    %s623 = sphi 0, %s623
    %s625 = sphi 0, %s623
    %s626 = sphi 0, %s625
    %s640 = sphi 0, %s626
    %s644 = sphi 0, %s644
    %s646 = sphi 0, %s644
    %s647 = sphi 0, %s646
    %s661 = sphi 0, %s647
    %s665 = sphi 0, %s665
    %s667 = sphi 0, %s665
    %s668 = sphi 0, %s667
    %s682 = sphi 0, %s668
    %s686 = sphi 0, %s686
    %s688 = sphi 0, %s686
    %s689 = sphi 0, %s688
    %s703 = sphi 0, %s689
    %s707 = sphi 0, %s707
    %s709 = sphi 0, %s707
    %s710 = sphi 0, %s709
    %s724 = sphi 0, %s710
    %s730 = sphi 0, %s732
    %s733 = sphi 0, %s730
    %s734 = sphi 0, %s733
    %s750 = sphi 0, %s734
    %s756 = sphi 0, %s758
    %s759 = sphi 0, %s756
    %s760 = sphi 0, %s759
    %s776 = sphi 0, %s760
  $region4: #{transformer_coupling_forward.1} parent=0 // loop_header_branch
    %73 = sbr.rel (%p71) target = $region8
  $region5: #{transformer_coupling_forward.1} parent=0 // loop_body
    %s75 = ssub.s32 %s70, 1
    %s76 = ssub.s32 %s70, 2
    %s77 = sadd.s32 %s70, 1
    %s78 = ssub.s32 %s70, %s77
    %p79 = scmp.eq.s32.totalorder %s78, 0
    %s81 = sadd.s32 %s80, 1
    %s82 = scalar_select %p79, %s80, %s81
    %p85 = pneg %p79
    %p86 = scmp.eq.s32.totalorder %s70, 1
    %p87 = por %p85, %p86
    %p88 = scmp.ne.s32.totalorder %s80, %s83
    %p89 = scmp.eq.s32.totalorder %s70, 0
    %p90 = por %p88, %p89
    %p91 = scmp.ne.s32.totalorder %s80, %s83
    %p92 = scmp.eq.s32.totalorder %s75, 1
    %p93 = por %p91, %p92
    %p94 = scmp.ne.s32.totalorder %s83, %s84
    %p95 = scmp.eq.s32.totalorder %s75, 0
    %p96 = por %p94, %p95
    %p97 = scmp.ne.s32.totalorder %s83, %s84
    %p98 = scmp.eq.s32.totalorder %s76, 1
    %p99 = por %p97, %p98
    %p101 = scmp.ne.s32.totalorder %s84, %s100
    %p102 = scmp.eq.s32.totalorder %s76, 0
    %p103 = por %p101, %p102
    %s104 = ssub.s32 %s70, %s77
    %p105 = scmp.eq.s32.totalorder %s104, 0
    %s107 = sadd.s32 %s106, 1
    %s108 = scalar_select %p105, %s106, %s107
    %p111 = pneg %p105
    %p112 = scmp.eq.s32.totalorder %s70, 1
    %p113 = por %p111, %p112
    %p114 = scmp.ne.s32.totalorder %s106, %s109
    %p115 = scmp.eq.s32.totalorder %s70, 0
    %p116 = por %p114, %p115
    %p117 = scmp.ne.s32.totalorder %s106, %s109
    %p118 = scmp.eq.s32.totalorder %s75, 1
    %p119 = por %p117, %p118
    %p120 = scmp.ne.s32.totalorder %s109, %s110
    %p121 = scmp.eq.s32.totalorder %s75, 0
    %p122 = por %p120, %p121
    %p123 = scmp.ne.s32.totalorder %s109, %s110
    %p124 = scmp.eq.s32.totalorder %s76, 1
    %p125 = por %p123, %p124
    %p127 = scmp.ne.s32.totalorder %s110, %s126
    %p128 = scmp.eq.s32.totalorder %s76, 0
    %p129 = por %p127, %p128
    %s130 = ssub.s32 %s70, %s77
    %p131 = scmp.eq.s32.totalorder %s130, 0
    %s133 = sadd.s32 %s132, 1
    %s134 = scalar_select %p131, %s132, %s133
    %p137 = pneg %p131
    %p138 = scmp.eq.s32.totalorder %s70, 1
    %p139 = por %p137, %p138
    %p140 = scmp.ne.s32.totalorder %s132, %s135
    %p141 = scmp.eq.s32.totalorder %s70, 0
    %p142 = por %p140, %p141
    %p143 = scmp.ne.s32.totalorder %s132, %s135
    %p144 = scmp.eq.s32.totalorder %s75, 1
    %p145 = por %p143, %p144
    %p146 = scmp.ne.s32.totalorder %s135, %s136
    %p147 = scmp.eq.s32.totalorder %s75, 0
    %p148 = por %p146, %p147
    %p149 = scmp.ne.s32.totalorder %s135, %s136
    %p150 = scmp.eq.s32.totalorder %s76, 1
    %p151 = por %p149, %p150
    %p153 = scmp.ne.s32.totalorder %s136, %s152
    %p154 = scmp.eq.s32.totalorder %s76, 0
    %p155 = por %p153, %p154
    %s156 = ssub.s32 %s70, %s77
    %p157 = scmp.eq.s32.totalorder %s156, 0
    %s159 = sadd.s32 %s158, 1
    %s160 = scalar_select %p157, %s158, %s159
    %p163 = pneg %p157
    %p164 = scmp.eq.s32.totalorder %s70, 1
    %p165 = por %p163, %p164
    %p166 = scmp.ne.s32.totalorder %s158, %s161
    %p167 = scmp.eq.s32.totalorder %s70, 0
    %p168 = por %p166, %p167
    %p169 = scmp.ne.s32.totalorder %s158, %s161
    %p170 = scmp.eq.s32.totalorder %s75, 1
    %p171 = por %p169, %p170
    %p172 = scmp.ne.s32.totalorder %s161, %s162
    %p173 = scmp.eq.s32.totalorder %s75, 0
    %p174 = por %p172, %p173
    %p175 = scmp.ne.s32.totalorder %s161, %s162
    %p176 = scmp.eq.s32.totalorder %s76, 1
    %p177 = por %p175, %p176
    %p179 = scmp.ne.s32.totalorder %s162, %s178
    %p180 = scmp.eq.s32.totalorder %s76, 0
    %p181 = por %p179, %p180
    %s183 = sadd.s32 %s182, 1
    %p186 = scmp.eq.s32.totalorder %s70, 1
    %p187 = scmp.ne.s32.totalorder %s182, %s184
    %p188 = scmp.eq.s32.totalorder %s70, 0
    %p189 = por %p187, %p188
    %p190 = scmp.ne.s32.totalorder %s182, %s184
    %p191 = scmp.eq.s32.totalorder %s75, 1
    %p192 = por %p190, %p191
    %p193 = scmp.ne.s32.totalorder %s184, %s185
    %p194 = scmp.eq.s32.totalorder %s75, 0
    %p195 = por %p193, %p194
    %p196 = scmp.ne.s32.totalorder %s184, %s185
    %p197 = scmp.eq.s32.totalorder %s76, 1
    %p198 = por %p196, %p197
    %p200 = scmp.ne.s32.totalorder %s185, %s199
    %p201 = scmp.eq.s32.totalorder %s76, 0
    %p202 = por %p200, %p201
    %s204 = sadd.s32 %s203, 1
    %p207 = scmp.eq.s32.totalorder %s70, 1
    %p208 = scmp.ne.s32.totalorder %s203, %s205
    %p209 = scmp.eq.s32.totalorder %s70, 0
    %p210 = por %p208, %p209
    %p211 = scmp.ne.s32.totalorder %s203, %s205
    %p212 = scmp.eq.s32.totalorder %s75, 1
    %p213 = por %p211, %p212
    %p214 = scmp.ne.s32.totalorder %s205, %s206
    %p215 = scmp.eq.s32.totalorder %s75, 0
    %p216 = por %p214, %p215
    %p217 = scmp.ne.s32.totalorder %s205, %s206
    %p218 = scmp.eq.s32.totalorder %s76, 1
    %p219 = por %p217, %p218
    %p221 = scmp.ne.s32.totalorder %s206, %s220
    %p222 = scmp.eq.s32.totalorder %s76, 0
    %p223 = por %p221, %p222
    %s225 = sadd.s32 %s224, 1
    %p228 = scmp.eq.s32.totalorder %s70, 1
    %p229 = scmp.ne.s32.totalorder %s224, %s226
    %p230 = scmp.eq.s32.totalorder %s70, 0
    %p231 = por %p229, %p230
    %p232 = scmp.ne.s32.totalorder %s224, %s226
    %p233 = scmp.eq.s32.totalorder %s75, 1
    %p234 = por %p232, %p233
    %p235 = scmp.ne.s32.totalorder %s226, %s227
    %p236 = scmp.eq.s32.totalorder %s75, 0
    %p237 = por %p235, %p236
    %p238 = scmp.ne.s32.totalorder %s226, %s227
    %p239 = scmp.eq.s32.totalorder %s76, 1
    %p240 = por %p238, %p239
    %p242 = scmp.ne.s32.totalorder %s227, %s241
    %p243 = scmp.eq.s32.totalorder %s76, 0
    %p244 = por %p242, %p243
    %s246 = sadd.s32 %s245, 1
    %p249 = scmp.eq.s32.totalorder %s70, 1
    %p250 = scmp.ne.s32.totalorder %s245, %s247
    %p251 = scmp.eq.s32.totalorder %s70, 0
    %p252 = por %p250, %p251
    %p253 = scmp.ne.s32.totalorder %s245, %s247
    %p254 = scmp.eq.s32.totalorder %s75, 1
    %p255 = por %p253, %p254
    %p256 = scmp.ne.s32.totalorder %s247, %s248
    %p257 = scmp.eq.s32.totalorder %s75, 0
    %p258 = por %p256, %p257
    %p259 = scmp.ne.s32.totalorder %s247, %s248
    %p260 = scmp.eq.s32.totalorder %s76, 1
    %p261 = por %p259, %p260
    %p263 = scmp.ne.s32.totalorder %s248, %s262
    %p264 = scmp.eq.s32.totalorder %s76, 0
    %p265 = por %p263, %p264
    %s267 = sadd.s32 %s266, 1
    %p270 = scmp.eq.s32.totalorder %s70, 1
    %p271 = scmp.ne.s32.totalorder %s266, %s268
    %p272 = scmp.eq.s32.totalorder %s70, 0
    %p273 = por %p271, %p272
    %p274 = scmp.ne.s32.totalorder %s266, %s268
    %p275 = scmp.eq.s32.totalorder %s75, 1
    %p276 = por %p274, %p275
    %p277 = scmp.ne.s32.totalorder %s268, %s269
    %p278 = scmp.eq.s32.totalorder %s75, 0
    %p279 = por %p277, %p278
    %p280 = scmp.ne.s32.totalorder %s268, %s269
    %p281 = scmp.eq.s32.totalorder %s76, 1
    %p282 = por %p280, %p281
    %p284 = scmp.ne.s32.totalorder %s269, %s283
    %p285 = scmp.eq.s32.totalorder %s76, 0
    %p286 = por %p284, %p285
    %s288 = sadd.s32 %s287, 1
    %p291 = scmp.eq.s32.totalorder %s70, 1
    %p292 = scmp.ne.s32.totalorder %s287, %s289
    %p293 = scmp.eq.s32.totalorder %s70, 0
    %p294 = por %p292, %p293
    %p295 = scmp.ne.s32.totalorder %s287, %s289
    %p296 = scmp.eq.s32.totalorder %s75, 1
    %p297 = por %p295, %p296
    %p298 = scmp.ne.s32.totalorder %s289, %s290
    %p299 = scmp.eq.s32.totalorder %s75, 0
    %p300 = por %p298, %p299
    %p301 = scmp.ne.s32.totalorder %s289, %s290
    %p302 = scmp.eq.s32.totalorder %s76, 1
    %p303 = por %p301, %p302
    %p305 = scmp.ne.s32.totalorder %s290, %s304
    %p306 = scmp.eq.s32.totalorder %s76, 0
    %p307 = por %p305, %p306
    %s309 = sadd.s32 %s308, 1
    %p312 = scmp.eq.s32.totalorder %s70, 1
    %p313 = scmp.ne.s32.totalorder %s308, %s310
    %p314 = scmp.eq.s32.totalorder %s70, 0
    %p315 = por %p313, %p314
    %p316 = scmp.ne.s32.totalorder %s308, %s310
    %p317 = scmp.eq.s32.totalorder %s75, 1
    %p318 = por %p316, %p317
    %p319 = scmp.ne.s32.totalorder %s310, %s311
    %p320 = scmp.eq.s32.totalorder %s75, 0
    %p321 = por %p319, %p320
    %p322 = scmp.ne.s32.totalorder %s310, %s311
    %p323 = scmp.eq.s32.totalorder %s76, 1
    %p324 = por %p322, %p323
    %p326 = scmp.ne.s32.totalorder %s311, %s325
    %p327 = scmp.eq.s32.totalorder %s76, 0
    %p328 = por %p326, %p327
    %s330 = sadd.s32 %s329, 1
    %p333 = scmp.eq.s32.totalorder %s70, 1
    %p334 = scmp.ne.s32.totalorder %s329, %s331
    %p335 = scmp.eq.s32.totalorder %s70, 0
    %p336 = por %p334, %p335
    %p337 = scmp.ne.s32.totalorder %s329, %s331
    %p338 = scmp.eq.s32.totalorder %s75, 1
    %p339 = por %p337, %p338
    %p340 = scmp.ne.s32.totalorder %s331, %s332
    %p341 = scmp.eq.s32.totalorder %s75, 0
    %p342 = por %p340, %p341
    %p343 = scmp.ne.s32.totalorder %s331, %s332
    %p344 = scmp.eq.s32.totalorder %s76, 1
    %p345 = por %p343, %p344
    %p347 = scmp.ne.s32.totalorder %s332, %s346
    %p348 = scmp.eq.s32.totalorder %s76, 0
    %p349 = por %p347, %p348
    %s351 = sadd.s32 %s350, 1
    %p354 = scmp.eq.s32.totalorder %s70, 1
    %p355 = scmp.ne.s32.totalorder %s350, %s352
    %p356 = scmp.eq.s32.totalorder %s70, 0
    %p357 = por %p355, %p356
    %p358 = scmp.ne.s32.totalorder %s350, %s352
    %p359 = scmp.eq.s32.totalorder %s75, 1
    %p360 = por %p358, %p359
    %p361 = scmp.ne.s32.totalorder %s352, %s353
    %p362 = scmp.eq.s32.totalorder %s75, 0
    %p363 = por %p361, %p362
    %p364 = scmp.ne.s32.totalorder %s352, %s353
    %p365 = scmp.eq.s32.totalorder %s76, 1
    %p366 = por %p364, %p365
    %p368 = scmp.ne.s32.totalorder %s353, %s367
    %p369 = scmp.eq.s32.totalorder %s76, 0
    %p370 = por %p368, %p369
    %s372 = sadd.s32 %s371, 1
    %p375 = scmp.eq.s32.totalorder %s70, 1
    %p376 = scmp.ne.s32.totalorder %s371, %s373
    %p377 = scmp.eq.s32.totalorder %s70, 0
    %p378 = por %p376, %p377
    %p379 = scmp.ne.s32.totalorder %s371, %s373
    %p380 = scmp.eq.s32.totalorder %s75, 1
    %p381 = por %p379, %p380
    %p382 = scmp.ne.s32.totalorder %s373, %s374
    %p383 = scmp.eq.s32.totalorder %s75, 0
    %p384 = por %p382, %p383
    %p385 = scmp.ne.s32.totalorder %s373, %s374
    %p386 = scmp.eq.s32.totalorder %s76, 1
    %p387 = por %p385, %p386
    %p389 = scmp.ne.s32.totalorder %s374, %s388
    %p390 = scmp.eq.s32.totalorder %s76, 0
    %p391 = por %p389, %p390
    %s393 = sadd.s32 %s392, 1
    %p396 = scmp.eq.s32.totalorder %s70, 1
    %p397 = scmp.ne.s32.totalorder %s392, %s394
    %p398 = scmp.eq.s32.totalorder %s70, 0
    %p399 = por %p397, %p398
    %p400 = scmp.ne.s32.totalorder %s392, %s394
    %p401 = scmp.eq.s32.totalorder %s75, 1
    %p402 = por %p400, %p401
    %p403 = scmp.ne.s32.totalorder %s394, %s395
    %p404 = scmp.eq.s32.totalorder %s75, 0
    %p405 = por %p403, %p404
    %p406 = scmp.ne.s32.totalorder %s394, %s395
    %p407 = scmp.eq.s32.totalorder %s76, 1
    %p408 = por %p406, %p407
    %p410 = scmp.ne.s32.totalorder %s395, %s409
    %p411 = scmp.eq.s32.totalorder %s76, 0
    %p412 = por %p410, %p411
    %s414 = sadd.s32 %s413, 1
    %p417 = scmp.eq.s32.totalorder %s70, 1
    %p418 = scmp.ne.s32.totalorder %s413, %s415
    %p419 = scmp.eq.s32.totalorder %s70, 0
    %p420 = por %p418, %p419
    %p421 = scmp.ne.s32.totalorder %s413, %s415
    %p422 = scmp.eq.s32.totalorder %s75, 1
    %p423 = por %p421, %p422
    %p424 = scmp.ne.s32.totalorder %s415, %s416
    %p425 = scmp.eq.s32.totalorder %s75, 0
    %p426 = por %p424, %p425
    %p427 = scmp.ne.s32.totalorder %s415, %s416
    %p428 = scmp.eq.s32.totalorder %s76, 1
    %p429 = por %p427, %p428
    %p431 = scmp.ne.s32.totalorder %s416, %s430
    %p432 = scmp.eq.s32.totalorder %s76, 0
    %p433 = por %p431, %p432
    %s435 = sadd.s32 %s434, 1
    %p438 = scmp.eq.s32.totalorder %s70, 1
    %p439 = scmp.ne.s32.totalorder %s434, %s436
    %p440 = scmp.eq.s32.totalorder %s70, 0
    %p441 = por %p439, %p440
    %p442 = scmp.ne.s32.totalorder %s434, %s436
    %p443 = scmp.eq.s32.totalorder %s75, 1
    %p444 = por %p442, %p443
    %p445 = scmp.ne.s32.totalorder %s436, %s437
    %p446 = scmp.eq.s32.totalorder %s75, 0
    %p447 = por %p445, %p446
    %p448 = scmp.ne.s32.totalorder %s436, %s437
    %p449 = scmp.eq.s32.totalorder %s76, 1
    %p450 = por %p448, %p449
    %p452 = scmp.ne.s32.totalorder %s437, %s451
    %p453 = scmp.eq.s32.totalorder %s76, 0
    %p454 = por %p452, %p453
    %s456 = sadd.s32 %s455, 1
    %p459 = scmp.eq.s32.totalorder %s70, 1
    %p460 = scmp.ne.s32.totalorder %s455, %s457
    %p461 = scmp.eq.s32.totalorder %s70, 0
    %p462 = por %p460, %p461
    %p463 = scmp.ne.s32.totalorder %s455, %s457
    %p464 = scmp.eq.s32.totalorder %s75, 1
    %p465 = por %p463, %p464
    %p466 = scmp.ne.s32.totalorder %s457, %s458
    %p467 = scmp.eq.s32.totalorder %s75, 0
    %p468 = por %p466, %p467
    %p469 = scmp.ne.s32.totalorder %s457, %s458
    %p470 = scmp.eq.s32.totalorder %s76, 1
    %p471 = por %p469, %p470
    %p473 = scmp.ne.s32.totalorder %s458, %s472
    %p474 = scmp.eq.s32.totalorder %s76, 0
    %p475 = por %p473, %p474
    %s477 = sadd.s32 %s476, 1
    %p480 = scmp.eq.s32.totalorder %s70, 1
    %p481 = scmp.ne.s32.totalorder %s476, %s478
    %p482 = scmp.eq.s32.totalorder %s70, 0
    %p483 = por %p481, %p482
    %p484 = scmp.ne.s32.totalorder %s476, %s478
    %p485 = scmp.eq.s32.totalorder %s75, 1
    %p486 = por %p484, %p485
    %p487 = scmp.ne.s32.totalorder %s478, %s479
    %p488 = scmp.eq.s32.totalorder %s75, 0
    %p489 = por %p487, %p488
    %p490 = scmp.ne.s32.totalorder %s478, %s479
    %p491 = scmp.eq.s32.totalorder %s76, 1
    %p492 = por %p490, %p491
    %p494 = scmp.ne.s32.totalorder %s479, %s493
    %p495 = scmp.eq.s32.totalorder %s76, 0
    %p496 = por %p494, %p495
    %s498 = sadd.s32 %s497, 1
    %p501 = scmp.eq.s32.totalorder %s70, 1
    %p502 = scmp.ne.s32.totalorder %s497, %s499
    %p503 = scmp.eq.s32.totalorder %s70, 0
    %p504 = por %p502, %p503
    %p505 = scmp.ne.s32.totalorder %s497, %s499
    %p506 = scmp.eq.s32.totalorder %s75, 1
    %p507 = por %p505, %p506
    %p508 = scmp.ne.s32.totalorder %s499, %s500
    %p509 = scmp.eq.s32.totalorder %s75, 0
    %p510 = por %p508, %p509
    %p511 = scmp.ne.s32.totalorder %s499, %s500
    %p512 = scmp.eq.s32.totalorder %s76, 1
    %p513 = por %p511, %p512
    %p515 = scmp.ne.s32.totalorder %s500, %s514
    %p516 = scmp.eq.s32.totalorder %s76, 0
    %p517 = por %p515, %p516
    %s519 = sadd.s32 %s518, 1
    %p522 = scmp.eq.s32.totalorder %s70, 1
    %p523 = scmp.ne.s32.totalorder %s518, %s520
    %p524 = scmp.eq.s32.totalorder %s70, 0
    %p525 = por %p523, %p524
    %p526 = scmp.ne.s32.totalorder %s518, %s520
    %p527 = scmp.eq.s32.totalorder %s75, 1
    %p528 = por %p526, %p527
    %p529 = scmp.ne.s32.totalorder %s520, %s521
    %p530 = scmp.eq.s32.totalorder %s75, 0
    %p531 = por %p529, %p530
    %p532 = scmp.ne.s32.totalorder %s520, %s521
    %p533 = scmp.eq.s32.totalorder %s76, 1
    %p534 = por %p532, %p533
    %p536 = scmp.ne.s32.totalorder %s521, %s535
    %p537 = scmp.eq.s32.totalorder %s76, 0
    %p538 = por %p536, %p537
    %s540 = sadd.s32 %s539, 1
    %p543 = scmp.eq.s32.totalorder %s70, 1
    %p544 = scmp.ne.s32.totalorder %s539, %s541
    %p545 = scmp.eq.s32.totalorder %s70, 0
    %p546 = por %p544, %p545
    %p547 = scmp.ne.s32.totalorder %s539, %s541
    %p548 = scmp.eq.s32.totalorder %s75, 1
    %p549 = por %p547, %p548
    %p550 = scmp.ne.s32.totalorder %s541, %s542
    %p551 = scmp.eq.s32.totalorder %s75, 0
    %p552 = por %p550, %p551
    %p553 = scmp.ne.s32.totalorder %s541, %s542
    %p554 = scmp.eq.s32.totalorder %s76, 1
    %p555 = por %p553, %p554
    %p557 = scmp.ne.s32.totalorder %s542, %s556
    %p558 = scmp.eq.s32.totalorder %s76, 0
    %p559 = por %p557, %p558
    %s561 = sadd.s32 %s560, 1
    %p564 = scmp.eq.s32.totalorder %s70, 1
    %p565 = scmp.ne.s32.totalorder %s560, %s562
    %p566 = scmp.eq.s32.totalorder %s70, 0
    %p567 = por %p565, %p566
    %p568 = scmp.ne.s32.totalorder %s560, %s562
    %p569 = scmp.eq.s32.totalorder %s75, 1
    %p570 = por %p568, %p569
    %p571 = scmp.ne.s32.totalorder %s562, %s563
    %p572 = scmp.eq.s32.totalorder %s75, 0
    %p573 = por %p571, %p572
    %p574 = scmp.ne.s32.totalorder %s562, %s563
    %p575 = scmp.eq.s32.totalorder %s76, 1
    %p576 = por %p574, %p575
    %p578 = scmp.ne.s32.totalorder %s563, %s577
    %p579 = scmp.eq.s32.totalorder %s76, 0
    %p580 = por %p578, %p579
    %s582 = sadd.s32 %s581, 1
    %p585 = scmp.eq.s32.totalorder %s70, 1
    %p586 = scmp.ne.s32.totalorder %s581, %s583
    %p587 = scmp.eq.s32.totalorder %s70, 0
    %p588 = por %p586, %p587
    %p589 = scmp.ne.s32.totalorder %s581, %s583
    %p590 = scmp.eq.s32.totalorder %s75, 1
    %p591 = por %p589, %p590
    %p592 = scmp.ne.s32.totalorder %s583, %s584
    %p593 = scmp.eq.s32.totalorder %s75, 0
    %p594 = por %p592, %p593
    %p595 = scmp.ne.s32.totalorder %s583, %s584
    %p596 = scmp.eq.s32.totalorder %s76, 1
    %p597 = por %p595, %p596
    %p599 = scmp.ne.s32.totalorder %s584, %s598
    %p600 = scmp.eq.s32.totalorder %s76, 0
    %p601 = por %p599, %p600
    %s603 = sadd.s32 %s602, 1
    %p606 = scmp.eq.s32.totalorder %s70, 1
    %p607 = scmp.ne.s32.totalorder %s602, %s604
    %p608 = scmp.eq.s32.totalorder %s70, 0
    %p609 = por %p607, %p608
    %p610 = scmp.ne.s32.totalorder %s602, %s604
    %p611 = scmp.eq.s32.totalorder %s75, 1
    %p612 = por %p610, %p611
    %p613 = scmp.ne.s32.totalorder %s604, %s605
    %p614 = scmp.eq.s32.totalorder %s75, 0
    %p615 = por %p613, %p614
    %p616 = scmp.ne.s32.totalorder %s604, %s605
    %p617 = scmp.eq.s32.totalorder %s76, 1
    %p618 = por %p616, %p617
    %p620 = scmp.ne.s32.totalorder %s605, %s619
    %p621 = scmp.eq.s32.totalorder %s76, 0
    %p622 = por %p620, %p621
    %s624 = sadd.s32 %s623, 1
    %p627 = scmp.eq.s32.totalorder %s70, 1
    %p628 = scmp.ne.s32.totalorder %s623, %s625
    %p629 = scmp.eq.s32.totalorder %s70, 0
    %p630 = por %p628, %p629
    %p631 = scmp.ne.s32.totalorder %s623, %s625
    %p632 = scmp.eq.s32.totalorder %s75, 1
    %p633 = por %p631, %p632
    %p634 = scmp.ne.s32.totalorder %s625, %s626
    %p635 = scmp.eq.s32.totalorder %s75, 0
    %p636 = por %p634, %p635
    %p637 = scmp.ne.s32.totalorder %s625, %s626
    %p638 = scmp.eq.s32.totalorder %s76, 1
    %p639 = por %p637, %p638
    %p641 = scmp.ne.s32.totalorder %s626, %s640
    %p642 = scmp.eq.s32.totalorder %s76, 0
    %p643 = por %p641, %p642
    %s645 = sadd.s32 %s644, 1
    %p648 = scmp.eq.s32.totalorder %s70, 1
    %p649 = scmp.ne.s32.totalorder %s644, %s646
    %p650 = scmp.eq.s32.totalorder %s70, 0
    %p651 = por %p649, %p650
    %p652 = scmp.ne.s32.totalorder %s644, %s646
    %p653 = scmp.eq.s32.totalorder %s75, 1
    %p654 = por %p652, %p653
    %p655 = scmp.ne.s32.totalorder %s646, %s647
    %p656 = scmp.eq.s32.totalorder %s75, 0
    %p657 = por %p655, %p656
    %p658 = scmp.ne.s32.totalorder %s646, %s647
    %p659 = scmp.eq.s32.totalorder %s76, 1
    %p660 = por %p658, %p659
    %p662 = scmp.ne.s32.totalorder %s647, %s661
    %p663 = scmp.eq.s32.totalorder %s76, 0
    %p664 = por %p662, %p663
    %s666 = sadd.s32 %s665, 1
    %p669 = scmp.eq.s32.totalorder %s70, 1
    %p670 = scmp.ne.s32.totalorder %s665, %s667
    %p671 = scmp.eq.s32.totalorder %s70, 0
    %p672 = por %p670, %p671
    %p673 = scmp.ne.s32.totalorder %s665, %s667
    %p674 = scmp.eq.s32.totalorder %s75, 1
    %p675 = por %p673, %p674
    %p676 = scmp.ne.s32.totalorder %s667, %s668
    %p677 = scmp.eq.s32.totalorder %s75, 0
    %p678 = por %p676, %p677
    %p679 = scmp.ne.s32.totalorder %s667, %s668
    %p680 = scmp.eq.s32.totalorder %s76, 1
    %p681 = por %p679, %p680
    %p683 = scmp.ne.s32.totalorder %s668, %s682
    %p684 = scmp.eq.s32.totalorder %s76, 0
    %p685 = por %p683, %p684
    %s687 = sadd.s32 %s686, 1
    %p690 = scmp.eq.s32.totalorder %s70, 1
    %p691 = scmp.ne.s32.totalorder %s686, %s688
    %p692 = scmp.eq.s32.totalorder %s70, 0
    %p693 = por %p691, %p692
    %p694 = scmp.ne.s32.totalorder %s686, %s688
    %p695 = scmp.eq.s32.totalorder %s75, 1
    %p696 = por %p694, %p695
    %p697 = scmp.ne.s32.totalorder %s688, %s689
    %p698 = scmp.eq.s32.totalorder %s75, 0
    %p699 = por %p697, %p698
    %p700 = scmp.ne.s32.totalorder %s688, %s689
    %p701 = scmp.eq.s32.totalorder %s76, 1
    %p702 = por %p700, %p701
    %p704 = scmp.ne.s32.totalorder %s689, %s703
    %p705 = scmp.eq.s32.totalorder %s76, 0
    %p706 = por %p704, %p705
    %s708 = sadd.s32 %s707, 1
    %p711 = scmp.eq.s32.totalorder %s70, 1
    %p712 = scmp.ne.s32.totalorder %s707, %s709
    %p713 = scmp.eq.s32.totalorder %s70, 0
    %p714 = por %p712, %p713
    %p715 = scmp.ne.s32.totalorder %s707, %s709
    %p716 = scmp.eq.s32.totalorder %s75, 1
    %p717 = por %p715, %p716
    %p718 = scmp.ne.s32.totalorder %s709, %s710
    %p719 = scmp.eq.s32.totalorder %s75, 0
    %p720 = por %p718, %p719
    %p721 = scmp.ne.s32.totalorder %s709, %s710
    %p722 = scmp.eq.s32.totalorder %s76, 1
    %p723 = por %p721, %p722
    %p725 = scmp.ne.s32.totalorder %s710, %s724
    %p726 = scmp.eq.s32.totalorder %s76, 0
    %p727 = por %p725, %p726
    %s728 = ssub.s32 %s70, %s77
    %p729 = scmp.eq.s32.totalorder %s728, 0
    %s731 = sadd.s32 %s730, 1
    %s732 = scalar_select %p729, %s730, %s731
    %p735 = pneg %p729
    %p736 = scmp.eq.s32.totalorder %s70, 1
    %p737 = por %p735, %p736
    %p738 = scmp.ne.s32.totalorder %s730, %s733
    %p739 = scmp.eq.s32.totalorder %s70, 0
    %p740 = por %p738, %p739
    %p741 = scmp.ne.s32.totalorder %s730, %s733
    %p742 = scmp.eq.s32.totalorder %s75, 1
    %p743 = por %p741, %p742
    %p744 = scmp.ne.s32.totalorder %s733, %s734
    %p745 = scmp.eq.s32.totalorder %s75, 0
    %p746 = por %p744, %p745
    %p747 = scmp.ne.s32.totalorder %s733, %s734
    %p748 = scmp.eq.s32.totalorder %s76, 1
    %p749 = por %p747, %p748
    %p751 = scmp.ne.s32.totalorder %s734, %s750
    %p752 = scmp.eq.s32.totalorder %s76, 0
    %p753 = por %p751, %p752
    %s754 = ssub.s32 %s70, %s77
    %p755 = scmp.eq.s32.totalorder %s754, 0
    %s757 = sadd.s32 %s756, 1
    %s758 = scalar_select %p755, %s756, %s757
    %p761 = pneg %p755
    %p762 = scmp.eq.s32.totalorder %s70, 1
    %p763 = por %p761, %p762
    %p764 = scmp.ne.s32.totalorder %s756, %s759
    %p765 = scmp.eq.s32.totalorder %s70, 0
    %p766 = por %p764, %p765
    %p767 = scmp.ne.s32.totalorder %s756, %s759
    %p768 = scmp.eq.s32.totalorder %s75, 1
    %p769 = por %p767, %p768
    %p770 = scmp.ne.s32.totalorder %s759, %s760
    %p771 = scmp.eq.s32.totalorder %s75, 0
    %p772 = por %p770, %p771
    %p773 = scmp.ne.s32.totalorder %s759, %s760
    %p774 = scmp.eq.s32.totalorder %s76, 1
    %p775 = por %p773, %p774
    %p777 = scmp.ne.s32.totalorder %s760, %s776
    %p778 = scmp.eq.s32.totalorder %s76, 0
    %p779 = por %p777, %p778
    %p780 = scmp.le.s32.totalorder 1, %s70
    %p781 = scmp.lt.s32.totalorder %s70, 3
    %p782 = pnand %p780, %p781
    %p783 = pneg %p782
    // Predicated region
    $region9: #{transformer_coupling_forward.1} parent=5 // pred_check
      _
    $region10: #{transformer_coupling_forward.1} parent=5 // pred_check_branch
      %785 = sbr.rel (%p782) target = $region12
    $region11: #{transformer_coupling_forward.1} parent=5 // pred_region
      %s786 = ssub.s32 %s70, 1
      // Predicated region
      $region13: #{transformer_coupling_forward.1} parent=11 // pred_check
        %p787 = pneg %p195
      $region14: #{transformer_coupling_forward.1} parent=11 // pred_check_branch
        %789 = sbr.rel (%p787) target = $region16
      $region15: #{transformer_coupling_forward.1} parent=11 // pred_region
        _
      $region16: #{transformer_coupling_forward.1} parent=11 // pred_fallthru
        _
      // Predicated region
      $region17: #{transformer_coupling_forward.1} parent=11 // pred_check
        %p790 = pneg %p216
      $region18: #{transformer_coupling_forward.1} parent=11 // pred_check_branch
        %792 = sbr.rel (%p790) target = $region20
      $region19: #{transformer_coupling_forward.1} parent=11 // pred_region
        _
      $region20: #{transformer_coupling_forward.1} parent=11 // pred_fallthru
        _
      // Predicated region
      $region21: #{transformer_coupling_forward.1} parent=11 // pred_check
        %p793 = pneg %p237
      $region22: #{transformer_coupling_forward.1} parent=11 // pred_check_branch
        %795 = sbr.rel (%p793) target = $region24
      $region23: #{transformer_coupling_forward.1} parent=11 // pred_region
        _
      $region24: #{transformer_coupling_forward.1} parent=11 // pred_fallthru
        _
      // Predicated region
      $region25: #{transformer_coupling_forward.1} parent=11 // pred_check
        %p796 = pneg %p258
      $region26: #{transformer_coupling_forward.1} parent=11 // pred_check_branch
        %798 = sbr.rel (%p796) target = $region28
      $region27: #{transformer_coupling_forward.1} parent=11 // pred_region
        _
      $region28: #{transformer_coupling_forward.1} parent=11 // pred_fallthru
        _
      // Predicated region
      $region29: #{transformer_coupling_forward.1} parent=11 // pred_check
        %p799 = pneg %p279
      $region30: #{transformer_coupling_forward.1} parent=11 // pred_check_branch
        %801 = sbr.rel (%p799) target = $region32
      $region31: #{transformer_coupling_forward.1} parent=11 // pred_region
        _
      $region32: #{transformer_coupling_forward.1} parent=11 // pred_fallthru
        _
      // Predicated region
      $region33: #{transformer_coupling_forward.1} parent=11 // pred_check
        %p802 = pneg %p300
      $region34: #{transformer_coupling_forward.1} parent=11 // pred_check_branch
        %804 = sbr.rel (%p802) target = $region36
      $region35: #{transformer_coupling_forward.1} parent=11 // pred_region
        _
      $region36: #{transformer_coupling_forward.1} parent=11 // pred_fallthru
        _
      // Predicated region
      $region37: #{transformer_coupling_forward.1} parent=11 // pred_check
        %p805 = pneg %p321
      $region38: #{transformer_coupling_forward.1} parent=11 // pred_check_branch
        %807 = sbr.rel (%p805) target = $region40
      $region39: #{transformer_coupling_forward.1} parent=11 // pred_region
        _
      $region40: #{transformer_coupling_forward.1} parent=11 // pred_fallthru
        _
      // Predicated region
      $region41: #{transformer_coupling_forward.1} parent=11 // pred_check
        %p808 = pneg %p342
      $region42: #{transformer_coupling_forward.1} parent=11 // pred_check_branch
        %810 = sbr.rel (%p808) target = $region44
      $region43: #{transformer_coupling_forward.1} parent=11 // pred_region
        _
      $region44: #{transformer_coupling_forward.1} parent=11 // pred_fallthru
        _
      // Predicated region
      $region45: #{transformer_coupling_forward.1} parent=11 // pred_check
        %p811 = pneg %p363
      $region46: #{transformer_coupling_forward.1} parent=11 // pred_check_branch
        %813 = sbr.rel (%p811) target = $region48
      $region47: #{transformer_coupling_forward.1} parent=11 // pred_region
        _
      $region48: #{transformer_coupling_forward.1} parent=11 // pred_fallthru
        _
      // Predicated region
      $region49: #{transformer_coupling_forward.1} parent=11 // pred_check
        %p814 = pneg %p384
      $region50: #{transformer_coupling_forward.1} parent=11 // pred_check_branch
        %816 = sbr.rel (%p814) target = $region52
      $region51: #{transformer_coupling_forward.1} parent=11 // pred_region
        _
      $region52: #{transformer_coupling_forward.1} parent=11 // pred_fallthru
        _
      // Predicated region
      $region53: #{transformer_coupling_forward.1} parent=11 // pred_check
        %p817 = pneg %p405
      $region54: #{transformer_coupling_forward.1} parent=11 // pred_check_branch
        %819 = sbr.rel (%p817) target = $region56
      $region55: #{transformer_coupling_forward.1} parent=11 // pred_region
        _
      $region56: #{transformer_coupling_forward.1} parent=11 // pred_fallthru
        _
      // Predicated region
      $region57: #{transformer_coupling_forward.1} parent=11 // pred_check
        %p820 = pneg %p426
      $region58: #{transformer_coupling_forward.1} parent=11 // pred_check_branch
        %822 = sbr.rel (%p820) target = $region60
      $region59: #{transformer_coupling_forward.1} parent=11 // pred_region
        _
      $region60: #{transformer_coupling_forward.1} parent=11 // pred_fallthru
        _
      // Predicated region
      $region61: #{transformer_coupling_forward.1} parent=11 // pred_check
        %p823 = pneg %p447
      $region62: #{transformer_coupling_forward.1} parent=11 // pred_check_branch
        %825 = sbr.rel (%p823) target = $region64
      $region63: #{transformer_coupling_forward.1} parent=11 // pred_region
        _
      $region64: #{transformer_coupling_forward.1} parent=11 // pred_fallthru
        _
      // Predicated region
      $region65: #{transformer_coupling_forward.1} parent=11 // pred_check
        %p826 = pneg %p468
      $region66: #{transformer_coupling_forward.1} parent=11 // pred_check_branch
        %828 = sbr.rel (%p826) target = $region68
      $region67: #{transformer_coupling_forward.1} parent=11 // pred_region
        _
      $region68: #{transformer_coupling_forward.1} parent=11 // pred_fallthru
        _
      // Predicated region
      $region69: #{transformer_coupling_forward.1} parent=11 // pred_check
        %p829 = pneg %p489
      $region70: #{transformer_coupling_forward.1} parent=11 // pred_check_branch
        %831 = sbr.rel (%p829) target = $region72
      $region71: #{transformer_coupling_forward.1} parent=11 // pred_region
        _
      $region72: #{transformer_coupling_forward.1} parent=11 // pred_fallthru
        _
      // Predicated region
      $region73: #{transformer_coupling_forward.1} parent=11 // pred_check
        %p832 = pneg %p510
      $region74: #{transformer_coupling_forward.1} parent=11 // pred_check_branch
        %834 = sbr.rel (%p832) target = $region76
      $region75: #{transformer_coupling_forward.1} parent=11 // pred_region
        _
      $region76: #{transformer_coupling_forward.1} parent=11 // pred_fallthru
        _
      // Predicated region
      $region77: #{transformer_coupling_forward.1} parent=11 // pred_check
        %p835 = pneg %p531
      $region78: #{transformer_coupling_forward.1} parent=11 // pred_check_branch
        %837 = sbr.rel (%p835) target = $region80
      $region79: #{transformer_coupling_forward.1} parent=11 // pred_region
        _
      $region80: #{transformer_coupling_forward.1} parent=11 // pred_fallthru
        _
      // Predicated region
      $region81: #{transformer_coupling_forward.1} parent=11 // pred_check
        %p838 = pneg %p552
      $region82: #{transformer_coupling_forward.1} parent=11 // pred_check_branch
        %840 = sbr.rel (%p838) target = $region84
      $region83: #{transformer_coupling_forward.1} parent=11 // pred_region
        _
      $region84: #{transformer_coupling_forward.1} parent=11 // pred_fallthru
        _
      // Predicated region
      $region85: #{transformer_coupling_forward.1} parent=11 // pred_check
        %p841 = pneg %p573
      $region86: #{transformer_coupling_forward.1} parent=11 // pred_check_branch
        %843 = sbr.rel (%p841) target = $region88
      $region87: #{transformer_coupling_forward.1} parent=11 // pred_region
        _
      $region88: #{transformer_coupling_forward.1} parent=11 // pred_fallthru
        _
      // Predicated region
      $region89: #{transformer_coupling_forward.1} parent=11 // pred_check
        %p844 = pneg %p594
      $region90: #{transformer_coupling_forward.1} parent=11 // pred_check_branch
        %846 = sbr.rel (%p844) target = $region92
      $region91: #{transformer_coupling_forward.1} parent=11 // pred_region
        _
      $region92: #{transformer_coupling_forward.1} parent=11 // pred_fallthru
        _
      // Predicated region
      $region93: #{transformer_coupling_forward.1} parent=11 // pred_check
        %p847 = pneg %p615
      $region94: #{transformer_coupling_forward.1} parent=11 // pred_check_branch
        %849 = sbr.rel (%p847) target = $region96
      $region95: #{transformer_coupling_forward.1} parent=11 // pred_region
        _
      $region96: #{transformer_coupling_forward.1} parent=11 // pred_fallthru
        _
      // Predicated region
      $region97: #{transformer_coupling_forward.1} parent=11 // pred_check
        %p850 = pneg %p636
      $region98: #{transformer_coupling_forward.1} parent=11 // pred_check_branch
        %852 = sbr.rel (%p850) target = $region100
      $region99: #{transformer_coupling_forward.1} parent=11 // pred_region
        _
      $region100: #{transformer_coupling_forward.1} parent=11 // pred_fallthru
        _
      // Predicated region
      $region101: #{transformer_coupling_forward.1} parent=11 // pred_check
        %p853 = pneg %p657
      $region102: #{transformer_coupling_forward.1} parent=11 // pred_check_branch
        %855 = sbr.rel (%p853) target = $region104
      $region103: #{transformer_coupling_forward.1} parent=11 // pred_region
        _
      $region104: #{transformer_coupling_forward.1} parent=11 // pred_fallthru
        _
      // Predicated region
      $region105: #{transformer_coupling_forward.1} parent=11 // pred_check
        %p856 = pneg %p678
      $region106: #{transformer_coupling_forward.1} parent=11 // pred_check_branch
        %858 = sbr.rel (%p856) target = $region108
      $region107: #{transformer_coupling_forward.1} parent=11 // pred_region
        _
      $region108: #{transformer_coupling_forward.1} parent=11 // pred_fallthru
        _
      // Predicated region
      $region109: #{transformer_coupling_forward.1} parent=11 // pred_check
        %p859 = pneg %p699
      $region110: #{transformer_coupling_forward.1} parent=11 // pred_check_branch
        %861 = sbr.rel (%p859) target = $region112
      $region111: #{transformer_coupling_forward.1} parent=11 // pred_region
        _
      $region112: #{transformer_coupling_forward.1} parent=11 // pred_fallthru
        _
      // Predicated region
      $region113: #{transformer_coupling_forward.1} parent=11 // pred_check
        %p862 = pneg %p720
      $region114: #{transformer_coupling_forward.1} parent=11 // pred_check_branch
        %864 = sbr.rel (%p862) target = $region116
      $region115: #{transformer_coupling_forward.1} parent=11 // pred_region
        _
      $region116: #{transformer_coupling_forward.1} parent=11 // pred_fallthru
        _
    $region12: #{transformer_coupling_forward.1} parent=5 // pred_fallthru
      _
    %p865 = scmp.lt.s32.totalorder %s70, 2
    // Predicated region
    $region117: #{transformer_coupling_forward.1} parent=5 // pred_check
      %p866 = pneg %p865
    $region118: #{transformer_coupling_forward.1} parent=5 // pred_check_branch
      %868 = sbr.rel (%p866) target = $region120
    $region119: #{transformer_coupling_forward.1} parent=5 // pred_region
      // Predicated region
      $region121: #{transformer_coupling_forward.1} parent=119 // pred_check
        %p869 = pneg %p90
      $region122: #{transformer_coupling_forward.1} parent=119 // pred_check_branch
        %871 = sbr.rel (%p869) target = $region124
      $region123: #{transformer_coupling_forward.1} parent=119 // pred_region
        %p872 = scmp.lt.s32.totalorder %s70, 1
        %s873 = scalar_select %p872, %s70, 1
        %s874 = smul.addr %s873, 4
        %s875 = smul.addr %s874, 8
        %s876 = scalar_lea.vmem %s1, %s875
      $region124: #{transformer_coupling_forward.1} parent=119 // pred_fallthru
        _
      // Predicated region
      $region125: #{transformer_coupling_forward.1} parent=119 // pred_check
        %p877 = pneg %p116
      $region126: #{transformer_coupling_forward.1} parent=119 // pred_check_branch
        %879 = sbr.rel (%p877) target = $region128
      $region127: #{transformer_coupling_forward.1} parent=119 // pred_region
        %p880 = scmp.lt.s32.totalorder %s70, 1
        %s881 = scalar_select %p880, %s70, 1
        %s882 = smul.addr %s881, 4
        %s883 = smul.addr %s882, 8
        %s884 = scalar_lea.vmem %s3, %s883
      $region128: #{transformer_coupling_forward.1} parent=119 // pred_fallthru
        _
      // Predicated region
      $region129: #{transformer_coupling_forward.1} parent=119 // pred_check
        %p885 = pneg %p142
      $region130: #{transformer_coupling_forward.1} parent=119 // pred_check_branch
        %887 = sbr.rel (%p885) target = $region132
      $region131: #{transformer_coupling_forward.1} parent=119 // pred_region
        %p888 = scmp.lt.s32.totalorder %s70, 1
        %s889 = scalar_select %p888, %s70, 1
        %s890 = smul.addr %s889, 4
        %s891 = smul.addr %s890, 8
        %s892 = scalar_lea.vmem %s5, %s891
      $region132: #{transformer_coupling_forward.1} parent=119 // pred_fallthru
        _
      // Predicated region
      $region133: #{transformer_coupling_forward.1} parent=119 // pred_check
        %p893 = pneg %p168
      $region134: #{transformer_coupling_forward.1} parent=119 // pred_check_branch
        %895 = sbr.rel (%p893) target = $region136
      $region135: #{transformer_coupling_forward.1} parent=119 // pred_region
        %p896 = scmp.lt.s32.totalorder %s70, 1
        %s897 = scalar_select %p896, %s70, 1
        %s898 = scalar_lea.vmem %s7, %s897
      $region136: #{transformer_coupling_forward.1} parent=119 // pred_fallthru
        _
    $region120: #{transformer_coupling_forward.1} parent=5 // pred_fallthru
      _
    %p899 = scmp.le.s32.totalorder 1, %s70
    %p900 = scmp.lt.s32.totalorder %s70, 3
    %p901 = pnand %p899, %p900
    %p902 = pneg %p901
    // Predicated region
    $region137: #{transformer_coupling_forward.1} parent=5 // pred_check
      _
    $region138: #{transformer_coupling_forward.1} parent=5 // pred_check_branch
      %904 = sbr.rel (%p901) target = $region140
    $region139: #{transformer_coupling_forward.1} parent=5 // pred_region
      %s905 = ssub.s32 %s70, 1
      %p906 = scmp.lt.s32.totalorder %s75, 1
      %s907 = scalar_select %p906, %s75, 1
      %s908 = smul.addr %s907, 4
      %s909 = smul.addr %s908, 8
      %s910 = scalar_lea.vmem %s1, %s909
      %p911 = pneg %p96
      %p912 = pneg %p93
      %p913 = scmp.lt.s32.totalorder %s75, 1
      %s914 = scalar_select %p913, %s75, 1
      %s915 = smul.addr %s914, 4
      %s916 = smul.addr %s915, 8
      %s917 = scalar_lea.vmem %s3, %s916
      %p918 = pneg %p122
      %p919 = pneg %p119
      %p920 = scmp.lt.s32.totalorder %s75, 1
      %s921 = scalar_select %p920, %s75, 1
      %s922 = smul.addr %s921, 4
      %s923 = smul.addr %s922, 8
      %s924 = scalar_lea.vmem %s5, %s923
      %p925 = pneg %p148
      %p926 = pneg %p145
      %p927 = scmp.lt.s32.totalorder %s75, 1
      %s928 = scalar_select %p927, %s75, 1
      %s929 = scalar_lea.vmem %s7, %s928
      %p930 = pneg %p174
      %p931 = pneg %p171
      %p932 = pneg %p195
      %p933 = pneg %p192
      %p934 = pneg %p216
      %p935 = pneg %p213
      %p936 = pneg %p237
      %p937 = pneg %p234
      %p938 = pneg %p258
      %p939 = pneg %p255
      %p940 = pneg %p279
      %p941 = pneg %p276
      %p942 = pneg %p300
      %p943 = pneg %p297
      %p944 = pneg %p321
      %p945 = pneg %p318
      %p946 = pneg %p342
      %p947 = pneg %p339
      %p948 = pneg %p363
      %p949 = pneg %p360
      %p950 = pneg %p384
      %p951 = pneg %p381
      %p952 = pneg %p405
      %p953 = pneg %p402
      %p954 = pneg %p426
      %p955 = pneg %p423
      %p956 = pneg %p447
      %p957 = pneg %p444
      %p958 = pneg %p468
      %p959 = pneg %p465
      %p960 = pneg %p489
      %p961 = pneg %p486
      %p962 = pneg %p510
      %p963 = pneg %p507
      %p964 = pneg %p531
      %p965 = pneg %p528
      %p966 = pneg %p552
      %p967 = pneg %p549
      %p968 = pneg %p573
      %p969 = pneg %p570
      %p970 = pneg %p594
      %p971 = pneg %p591
      %p972 = pneg %p615
      %p973 = pneg %p612
      %p974 = pneg %p636
      %p975 = pneg %p633
      %p976 = pneg %p657
      %p977 = pneg %p654
      %p978 = pneg %p678
      %p979 = pneg %p675
      %p980 = pneg %p699
      %p981 = pneg %p696
      %p982 = pneg %p720
      %p983 = pneg %p717
      %p984 = pneg %p746
      %p985 = pneg %p743
      %p986 = scmp.lt.s32.totalorder %s75, 1
      %s987 = scalar_select %p986, %s75, 1
      %s988 = smul.addr %s987, 4
      %s989 = smul.addr %s988, 8
      %s990 = scalar_lea.vmem %s61, %s989
      %p991 = pneg %p772
      %p992 = pneg %p769
      %p993 = scmp.lt.s32.totalorder %s75, 1
      %s994 = scalar_select %p993, %s75, 1
      %s995 = scalar_lea.vmem %s63, %s994
      %p996 = scmp.lt.s32.totalorder %s75, 1
      %s997 = scalar_select %p996, %s75, 1
      %s998 = smul.addr %s997, 4
      %s999 = smul.addr %s998, 8
      %s1000 = scalar_lea.vmem %s1, %s999
      %p1001 = scmp.lt.s32.totalorder %s75, 1
      %s1002 = scalar_select %p1001, %s75, 1
      %s1003 = smul.addr %s1002, 4
      %s1004 = smul.addr %s1003, 8
      %s1005 = scalar_lea.vmem %s3, %s1004
      %p1006 = scmp.lt.s32.totalorder %s75, 1
      %s1007 = scalar_select %p1006, %s75, 1
      %s1008 = smul.addr %s1007, 4
      %s1009 = smul.addr %s1008, 8
      %s1010 = scalar_lea.vmem %s5, %s1009
      %p1011 = scmp.lt.s32.totalorder %s75, 1
      %s1012 = scalar_select %p1011, %s75, 1
      %s1013 = scalar_lea.vmem %s7, %s1012
      %p1014 = scmp.lt.s32.totalorder %s75, 1
      %s1015 = scalar_select %p1014, %s75, 1
      %s1016 = smul.addr %s1015, 4
      %s1017 = smul.addr %s1016, 8
      %s1018 = scalar_lea.vmem %s61, %s1017
      %p1019 = scmp.lt.s32.totalorder %s75, 1
      %s1020 = scalar_select %p1019, %s75, 1
      %s1021 = scalar_lea.vmem %s63, %s1020
      %v1022 = vld [vmem:[%s1000] sm:$0xff]
      %v1023 = vld [vmem:[%s1000 + $0x8] sm:$0xff]
      %v1024 = vld [vmem:[%s1000 + $0x10] sm:$0xff]
      %v1025 = vld [vmem:[%s1000 + $0x18] sm:$0xff]
      %v1026 = vld [vmem:[%s1005] sm:$0xff]
      %v1027 = vld [vmem:[%s1005 + $0x8] sm:$0xff]
      %v1028 = vld [vmem:[%s1005 + $0x10] sm:$0xff]
      %v1029 = vld [vmem:[%s1005 + $0x18] sm:$0xff]
      %v1030 = vld [vmem:[%s1010] sm:$0xff]
      %v1031 = vld [vmem:[%s1010 + $0x8] sm:$0xff]
      %v1032 = vld [vmem:[%s1010 + $0x10] sm:$0xff]
      %v1033 = vld [vmem:[%s1010 + $0x18] sm:$0xff]
      %v1034 = vld [vmem:[%s1013] sm:$0x1]
      %1036 = vset.pattern.permute.xlu0 0
      %1037 = vperm.xlu0 %1036, %v1030
      %v1038 = vpop.permute.xlu0 %1037
      %1041 = vset.pattern.permute.xlu0 0
      %1042 = vperm.xlu0 %1041, %v1031
      %v1043 = vpop.permute.xlu0 %1042
      %1046 = vset.pattern.permute.xlu0 0
      %1047 = vperm.xlu0 %1046, %v1032
      %v1048 = vpop.permute.xlu0 %1047
      %1051 = vset.pattern.permute.xlu0 0
      %1052 = vperm.xlu0 %1051, %v1033
      %v1053 = vpop.permute.xlu0 %1052
      %v1056 = vperm.slane %v1034, 0
      %v1058 = vmul.f32 %v1038, %v1056
      %v1059 = vmul.f32 %v1043, %v1056
      %v1060 = vmul.f32 %v1048, %v1056
      %v1061 = vmul.f32 %v1053, %v1056
      %v1062 = vsub.f32 %v1058, 1.0
      %v1063 = vsub.f32 %v1059, 1.0
      %v1064 = vsub.f32 %v1060, 1.0
      %v1065 = vsub.f32 %v1061, 1.0
      %v1066 = vmul.f32 %v1062, 10000.0
      %v1067 = vmul.f32 %v1063, 10000.0
      %v1068 = vmul.f32 %v1064, 10000.0
      %v1069 = vmul.f32 %v1065, 10000.0
      %v1070 = vld [vmem:[%s9] sm:$0xff]
      %v1071 = vld [vmem:[%s9 + $0x8] sm:$0xff]
      %v1072 = vld [vmem:[%s9 + $0x10] sm:$0xff]
      %v1073 = vld [vmem:[%s9 + $0x18] sm:$0xff]
      %v1074 = vld [vmem:[%s9 + $0x20] sm:$0xff]
      %v1075 = vld [vmem:[%s9 + $0x28] sm:$0xff]
      %v1076 = vld [vmem:[%s9 + $0x30] sm:$0xff]
      %v1077 = vld [vmem:[%s9 + $0x38] sm:$0xff]
      %v1078 = vld [vmem:[%s9 + $0x40] sm:$0xff]
      %v1079 = vld [vmem:[%s9 + $0x48] sm:$0xff]
      %v1080 = vld [vmem:[%s9 + $0x50] sm:$0xff]
      %v1081 = vld [vmem:[%s9 + $0x58] sm:$0xff]
      %v1082 = vld [vmem:[%s11] sm:$0xff]
      %v1083 = vld [vmem:[%s11 + $0x8] sm:$0xff]
      %v1084 = vld [vmem:[%s11 + $0x10] sm:$0xff]
      %v1085 = vld [vmem:[%s11 + $0x18] sm:$0xff]
      %v1086 = vld [vmem:[%s11 + $0x20] sm:$0xff]
      %v1087 = vld [vmem:[%s11 + $0x28] sm:$0xff]
      %v1088 = vld [vmem:[%s11 + $0x30] sm:$0xff]
      %v1089 = vld [vmem:[%s11 + $0x38] sm:$0xff]
      %v1090 = vld [vmem:[%s11 + $0x40] sm:$0xff]
      %v1091 = vld [vmem:[%s11 + $0x48] sm:$0xff]
      %v1092 = vld [vmem:[%s11 + $0x50] sm:$0xff]
      %v1093 = vld [vmem:[%s11 + $0x58] sm:$0xff]
      %v1094 = vld [vmem:[%s13] sm:$0xff]
      %v1095 = vld [vmem:[%s13 + $0x8] sm:$0xff]
      %v1096 = vld [vmem:[%s13 + $0x10] sm:$0xff]
      %v1097 = vld [vmem:[%s13 + $0x18] sm:$0x1]
      %v1098 = vld [vmem:[%s13 + $0x20] sm:$0x1]
      %v1099 = vld [vmem:[%s13 + $0x28] sm:$0x1]
      %v1100 = vld [vmem:[%s15] sm:$0xff]
      %v1101 = vld [vmem:[%s15 + $0x8] sm:$0xff]
      %v1102 = vld [vmem:[%s15 + $0x10] sm:$0xff]
      %v1103 = vld [vmem:[%s15 + $0x18] sm:$0xff]
      %s1104 = scalar_lea.vmem %s15, 64
      %v1105 = vld [vmem:[%s1104] sm:$0xff]
      %v1106 = vld [vmem:[%s1104 + $0x8] sm:$0xff]
      %v1107 = vld [vmem:[%s1104 + $0x10] sm:$0xff]
      %v1108 = vld [vmem:[%s1104 + $0x18] sm:$0xff]
      %v1109 = vld [vmem:[%s17] sm:$0xff]
      %v1110 = vld [vmem:[%s19] sm:$0x1]
      %v1112 = vperm.slane %v1110, 0
      %vm1114 = vcmask 64512
      %v1116 = vsel %vm1114, %v1022, 0
      %v1119 = vsel %vm1114, %v1023, 0
      %v1122 = vsel %vm1114, %v1024, 0
      %v1125 = vsel %vm1114, %v1025, 0
      %1127 = vmatpush.msra.mxu0 0.0
      %1128 = vmatpush.msra.mxu0 0.0
      %1129 = vmatpush.msra.mxu0 0.0
      %1130 = vmatpush.msra.mxu0 0.0
      %1131 = vmatpush.msra.mxu0 0.0
      %1132 = vmatpush.msra.mxu0 0.0
      %1133 = vmatpush.msra.mxu0 0.0
      %1134 = vmatpush.msra.mxu0 0.0
      %1135 = vmatpush.msra.mxu0 0.0
      %1136 = vmatpush.msra.mxu0 0.0
      %1137 = vmatpush.msra.mxu0 0.0
      %1138 = vmatpush.msra.mxu0 0.0
      %1139 = vmatpush.msra.mxu0 0.0
      %1140 = vmatpush.msra.mxu0 0.0
      %1141 = vmatpush.msra.mxu0 0.0
      %1142 = vmatpush.msra.mxu0 %v1109
      %1143 = vmatmul.f32.gmra.mxu0 %v1116
      %v1144 = vpop.f32.mrf.mxu0
      %v1145 = vadd.f32 %v1112, %v1144
      %1146 = vmatmul.f32.gmra.mxu0 %v1119
      %v1147 = vpop.f32.mrf.mxu0
      %v1148 = vadd.f32 %v1112, %v1147
      %1149 = vmatmul.f32.gmra.mxu0 %v1122
      %v1150 = vpop.f32.mrf.mxu0
      %v1151 = vadd.f32 %v1112, %v1150
      %1152 = vmatmul.f32.gmra.mxu0 %v1125
      %v1153 = vpop.f32.mrf.mxu0
      %v1154 = vadd.f32 %v1112, %v1153
      %1155 = vdwg.mxu0
      %v1156 = vmul.f32 %v1145, %v1038
      %v1157 = vmul.f32 %v1148, %v1043
      %v1158 = vmul.f32 %v1151, %v1048
      %v1159 = vmul.f32 %v1154, %v1053
      %v1160 = vld [vmem:[%s39] sm:$0xff]
      %v1161 = vld [vmem:[%s39 + $0x8] sm:$0x1]
      %v1162 = vld [vmem:[%s37] sm:$0xff]
      %v1163 = vld [vmem:[%s37 + $0x8] sm:$0xff]
      %v1164 = vld [vmem:[%s37 + $0x10] sm:$0xff]
      %v1165 = vld [vmem:[%s37 + $0x18] sm:$0xff]
      %vm1166 = vcmask 72704
      %v1168 = vsel %vm1166, %v1162, 0
      %v1171 = vsel %vm1166, %v1163, 0
      %v1174 = vsel %vm1166, %v1164, 0
      %v1177 = vsel %vm1166, %v1165, 0
      %vm1179 = vcmask 1040384
      %v1181 = vsel %vm1179, %v1097, 0
      %v1184 = vsel %vm1179, %v1098, 0
      %v1187 = vsel %vm1179, %v1099, 0
      %1189 = vmatpush.msra.mxu0 0.0
      %1190 = vmatpush.msra.mxu0 0.0
      %1191 = vmatpush.msra.mxu0 0.0
      %1192 = vmatpush.msra.mxu0 0.0
      %1193 = vmatpush.msra.mxu0 0.0
      %1194 = vmatpush.msra.mxu0 0.0
      %1195 = vmatpush.msra.mxu0 0.0
      %1196 = vmatpush.msra.mxu0 0.0
      %1197 = vmatpush.msra.mxu0 0.0
      %1198 = vmatpush.msra.mxu0 0.0
      %1199 = vmatpush.msra.mxu0 0.0
      %1200 = vmatpush.msra.mxu0 0.0
      %1201 = vmatpush.msra.mxu0 0.0
      %1202 = vmatpush.msra.mxu0 0.0
      %1203 = vmatpush.msra.mxu0 %v1181
      %1204 = vmatpush.msra.mxu0 %v1094
      %1205 = vmatmul.f32.gmra.mxu0 %v1168
      %v1206 = vpop.f32.mrf.mxu0
      %v1207 = vadd.f32 0.0, %v1206
      %1208 = vmatmul.f32.gmra.mxu0 %v1171
      %v1209 = vpop.f32.mrf.mxu0
      %v1210 = vadd.f32 0.0, %v1209
      %1211 = vmatmul.f32.gmra.mxu0 %v1174
      %v1212 = vpop.f32.mrf.mxu0
      %v1213 = vadd.f32 0.0, %v1212
      %1214 = vmatmul.f32.gmra.mxu0 %v1177
      %v1215 = vpop.f32.mrf.mxu0
      %v1216 = vadd.f32 0.0, %v1215
      %1217 = vdwg.mxu0
      %1218 = vmatpush.msra.mxu0 0.0
      %1219 = vmatpush.msra.mxu0 0.0
      %1220 = vmatpush.msra.mxu0 0.0
      %1221 = vmatpush.msra.mxu0 0.0
      %1222 = vmatpush.msra.mxu0 0.0
      %1223 = vmatpush.msra.mxu0 0.0
      %1224 = vmatpush.msra.mxu0 0.0
      %1225 = vmatpush.msra.mxu0 0.0
      %1226 = vmatpush.msra.mxu0 0.0
      %1227 = vmatpush.msra.mxu0 0.0
      %1228 = vmatpush.msra.mxu0 0.0
      %1229 = vmatpush.msra.mxu0 0.0
      %1230 = vmatpush.msra.mxu0 0.0
      %1231 = vmatpush.msra.mxu0 0.0
      %1232 = vmatpush.msra.mxu0 %v1184
      %1233 = vmatpush.msra.mxu0 %v1095
      %1234 = vmatmul.f32.gmra.mxu0 %v1168
      %v1235 = vpop.f32.mrf.mxu0
      %v1236 = vadd.f32 0.0, %v1235
      %1237 = vmatmul.f32.gmra.mxu0 %v1171
      %v1238 = vpop.f32.mrf.mxu0
      %v1239 = vadd.f32 0.0, %v1238
      %1240 = vmatmul.f32.gmra.mxu0 %v1174
      %v1241 = vpop.f32.mrf.mxu0
      %v1242 = vadd.f32 0.0, %v1241
      %1243 = vmatmul.f32.gmra.mxu0 %v1177
      %v1244 = vpop.f32.mrf.mxu0
      %v1245 = vadd.f32 0.0, %v1244
      %1246 = vdwg.mxu0
      %1247 = vmatpush.msra.mxu0 0.0
      %1248 = vmatpush.msra.mxu0 0.0
      %1249 = vmatpush.msra.mxu0 0.0
      %1250 = vmatpush.msra.mxu0 0.0
      %1251 = vmatpush.msra.mxu0 0.0
      %1252 = vmatpush.msra.mxu0 0.0
      %1253 = vmatpush.msra.mxu0 0.0
      %1254 = vmatpush.msra.mxu0 0.0
      %1255 = vmatpush.msra.mxu0 0.0
      %1256 = vmatpush.msra.mxu0 0.0
      %1257 = vmatpush.msra.mxu0 0.0
      %1258 = vmatpush.msra.mxu0 0.0
      %1259 = vmatpush.msra.mxu0 0.0
      %1260 = vmatpush.msra.mxu0 0.0
      %1261 = vmatpush.msra.mxu0 %v1187
      %1262 = vmatpush.msra.mxu0 %v1096
      %1263 = vmatmul.f32.gmra.mxu0 %v1168
      %v1264 = vpop.f32.mrf.mxu0
      %v1265 = vadd.f32 0.0, %v1264
      %1266 = vmatmul.f32.gmra.mxu0 %v1171
      %v1267 = vpop.f32.mrf.mxu0
      %v1268 = vadd.f32 0.0, %v1267
      %1269 = vmatmul.f32.gmra.mxu0 %v1174
      %v1270 = vpop.f32.mrf.mxu0
      %v1271 = vadd.f32 0.0, %v1270
      %1272 = vmatmul.f32.gmra.mxu0 %v1177
      %v1273 = vpop.f32.mrf.mxu0
      %v1274 = vadd.f32 0.0, %v1273
      %1275 = vdwg.mxu0
      %v1276 = vld [vmem:[%s21] sm:$0xff]
      %v1277 = vld [vmem:[%s21 + $0x8] sm:$0xff]
      %v1278 = vld [vmem:[%s21 + $0x10] sm:$0xff]
      %v1279 = vld [vmem:[%s21 + $0x18] sm:$0xff]
      %v1280 = vld [vmem:[%s21 + $0x20] sm:$0xff]
      %v1281 = vld [vmem:[%s21 + $0x28] sm:$0xff]
      %v1282 = vld [vmem:[%s21 + $0x30] sm:$0xff]
      %v1283 = vld [vmem:[%s21 + $0x38] sm:$0xff]
      %v1284 = vld [vmem:[%s23] sm:$0x1]
      %v1286 = vperm.slane %v1284, 0
      %vm1288 = vcmask 523264
      %v1290 = vsel %vm1288, %v1156, 0
      %v1293 = vsel %vm1288, %v1157, 0
      %v1296 = vsel %vm1288, %v1158, 0
      %v1299 = vsel %vm1288, %v1159, 0
      %1301 = vmatpush.msra.mxu0 0.0
      %1302 = vmatpush.msra.mxu0 0.0
      %1303 = vmatpush.msra.mxu0 0.0
      %1304 = vmatpush.msra.mxu0 0.0
      %1305 = vmatpush.msra.mxu0 0.0
      %1306 = vmatpush.msra.mxu0 0.0
      %1307 = vmatpush.msra.mxu0 0.0
      %1308 = vmatpush.msra.mxu0 0.0
      %1309 = vmatpush.msra.mxu0 %v1283
      %1310 = vmatpush.msra.mxu0 %v1282
      %1311 = vmatpush.msra.mxu0 %v1281
      %1312 = vmatpush.msra.mxu0 %v1280
      %1313 = vmatpush.msra.mxu0 %v1279
      %1314 = vmatpush.msra.mxu0 %v1278
      %1315 = vmatpush.msra.mxu0 %v1277
      %1316 = vmatpush.msra.mxu0 %v1276
      %1317 = vmatmul.f32.gmra.mxu0 %v1290
      %v1318 = vpop.f32.mrf.mxu0
      %v1319 = vadd.f32 %v1286, %v1318
      %1320 = vmatmul.f32.gmra.mxu0 %v1293
      %v1321 = vpop.f32.mrf.mxu0
      %v1322 = vadd.f32 %v1286, %v1321
      %1323 = vmatmul.f32.gmra.mxu0 %v1296
      %v1324 = vpop.f32.mrf.mxu0
      %v1325 = vadd.f32 %v1286, %v1324
      %1326 = vmatmul.f32.gmra.mxu0 %v1299
      %v1327 = vpop.f32.mrf.mxu0
      %v1328 = vadd.f32 %v1286, %v1327
      %1329 = vdwg.mxu0
      %v1330 = vld [vmem:[%s25] sm:$0xff]
      %v1331 = vld [vmem:[%s25 + $0x8] sm:$0xff]
      %v1332 = vld [vmem:[%s25 + $0x10] sm:$0xff]
      %v1333 = vld [vmem:[%s25 + $0x18] sm:$0xff]
      %v1334 = vld [vmem:[%s25 + $0x20] sm:$0xff]
      %v1335 = vld [vmem:[%s25 + $0x28] sm:$0xff]
      %v1336 = vld [vmem:[%s25 + $0x30] sm:$0xff]
      %v1337 = vld [vmem:[%s25 + $0x38] sm:$0xff]
      %v1338 = vld [vmem:[%s27] sm:$0x1]
      %v1340 = vperm.slane %v1338, 0
      %1342 = vmatpush.msra.mxu0 0.0
      %1343 = vmatpush.msra.mxu0 0.0
      %1344 = vmatpush.msra.mxu0 0.0
      %1345 = vmatpush.msra.mxu0 0.0
      %1346 = vmatpush.msra.mxu0 0.0
      %1347 = vmatpush.msra.mxu0 0.0
      %1348 = vmatpush.msra.mxu0 0.0
      %1349 = vmatpush.msra.mxu0 0.0
      %1350 = vmatpush.msra.mxu0 %v1337
      %1351 = vmatpush.msra.mxu0 %v1336
      %1352 = vmatpush.msra.mxu0 %v1335
      %1353 = vmatpush.msra.mxu0 %v1334
      %1354 = vmatpush.msra.mxu0 %v1333
      %1355 = vmatpush.msra.mxu0 %v1332
      %1356 = vmatpush.msra.mxu0 %v1331
      %1357 = vmatpush.msra.mxu0 %v1330
      %1358 = vmatmul.f32.gmra.mxu0 %v1290
      %v1359 = vpop.f32.mrf.mxu0
      %v1360 = vadd.f32 %v1340, %v1359
      %1361 = vmatmul.f32.gmra.mxu0 %v1293
      %v1362 = vpop.f32.mrf.mxu0
      %v1363 = vadd.f32 %v1340, %v1362
      %1364 = vmatmul.f32.gmra.mxu0 %v1296
      %v1365 = vpop.f32.mrf.mxu0
      %v1366 = vadd.f32 %v1340, %v1365
      %1367 = vmatmul.f32.gmra.mxu0 %v1299
      %v1368 = vpop.f32.mrf.mxu0
      %v1369 = vadd.f32 %v1340, %v1368
      %1370 = vdwg.mxu0
      %v1371 = vld [vmem:[%s29] sm:$0xff]
      %v1372 = vld [vmem:[%s29 + $0x8] sm:$0xff]
      %v1373 = vld [vmem:[%s29 + $0x10] sm:$0xff]
      %v1374 = vld [vmem:[%s29 + $0x18] sm:$0xff]
      %v1375 = vld [vmem:[%s29 + $0x20] sm:$0xff]
      %v1376 = vld [vmem:[%s29 + $0x28] sm:$0xff]
      %v1377 = vld [vmem:[%s29 + $0x30] sm:$0xff]
      %v1378 = vld [vmem:[%s29 + $0x38] sm:$0xff]
      %v1379 = vld [vmem:[%s31] sm:$0x1]
      %v1381 = vperm.slane %v1379, 0
      %1383 = vmatpush.msra.mxu0 0.0
      %1384 = vmatpush.msra.mxu0 0.0
      %1385 = vmatpush.msra.mxu0 0.0
      %1386 = vmatpush.msra.mxu0 0.0
      %1387 = vmatpush.msra.mxu0 0.0
      %1388 = vmatpush.msra.mxu0 0.0
      %1389 = vmatpush.msra.mxu0 0.0
      %1390 = vmatpush.msra.mxu0 0.0
      %1391 = vmatpush.msra.mxu0 %v1378
      %1392 = vmatpush.msra.mxu0 %v1377
      %1393 = vmatpush.msra.mxu0 %v1376
      %1394 = vmatpush.msra.mxu0 %v1375
      %1395 = vmatpush.msra.mxu0 %v1374
      %1396 = vmatpush.msra.mxu0 %v1373
      %1397 = vmatpush.msra.mxu0 %v1372
      %1398 = vmatpush.msra.mxu0 %v1371
      %1399 = vmatmul.f32.gmra.mxu0 %v1290
      %v1400 = vpop.f32.mrf.mxu0
      %v1401 = vadd.f32 %v1381, %v1400
      %1402 = vmatmul.f32.gmra.mxu0 %v1293
      %v1403 = vpop.f32.mrf.mxu0
      %v1404 = vadd.f32 %v1381, %v1403
      %1405 = vmatmul.f32.gmra.mxu0 %v1296
      %v1406 = vpop.f32.mrf.mxu0
      %v1407 = vadd.f32 %v1381, %v1406
      %1408 = vmatmul.f32.gmra.mxu0 %v1299
      %v1409 = vpop.f32.mrf.mxu0
      %v1410 = vadd.f32 %v1381, %v1409
      %1411 = vdwg.mxu0
      %v1412 = vmul.f32 %v1319, 0.17677669
      %v1413 = vmul.f32 %v1322, 0.17677669
      %v1414 = vmul.f32 %v1325, 0.17677669
      %v1415 = vmul.f32 %v1328, 0.17677669
      %vm1416 = vcmask 261120
      %v1418 = vsel %vm1416, %v1412, 0
      %v1421 = vsel %vm1416, %v1413, 0
      %v1424 = vsel %vm1416, %v1414, 0
      %v1427 = vsel %vm1416, %v1415, 0
      %1429 = vmatpush.msra.mxu0 0.0
      %1430 = vmatpush.msra.mxu0 0.0
      %1431 = vmatpush.msra.mxu0 0.0
      %1432 = vmatpush.msra.mxu0 0.0
      %1433 = vmatpush.msra.mxu0 0.0
      %1434 = vmatpush.msra.mxu0 0.0
      %1435 = vmatpush.msra.mxu0 0.0
      %1436 = vmatpush.msra.mxu0 0.0
      %1437 = vmatpush.msra.mxu0 0.0
      %1438 = vmatpush.msra.mxu0 0.0
      %1439 = vmatpush.msra.mxu0 0.0
      %1440 = vmatpush.msra.mxu0 0.0
      %1441 = vmatpush.msra.mxu0 %v1216
      %1442 = vmatpush.msra.mxu0 %v1213
      %1443 = vmatpush.msra.mxu0 %v1210
      %1444 = vmatpush.msra.mxu0 %v1207
      %1445 = vmatmul.f32.gmra.mxu0 %v1418
      %v1446 = vpop.f32.mrf.mxu0
      %v1447 = vadd.f32 0.0, %v1446
      %1448 = vmatmul.f32.gmra.mxu0 %v1421
      %v1449 = vpop.f32.mrf.mxu0
      %v1450 = vadd.f32 0.0, %v1449
      %1451 = vmatmul.f32.gmra.mxu0 %v1424
      %v1452 = vpop.f32.mrf.mxu0
      %v1453 = vadd.f32 0.0, %v1452
      %1454 = vmatmul.f32.gmra.mxu0 %v1427
      %v1455 = vpop.f32.mrf.mxu0
      %v1456 = vadd.f32 0.0, %v1455
      %1457 = vdwg.mxu0
      %1458 = vmatpush.msra.mxu0 0.0
      %1459 = vmatpush.msra.mxu0 0.0
      %1460 = vmatpush.msra.mxu0 0.0
      %1461 = vmatpush.msra.mxu0 0.0
      %1462 = vmatpush.msra.mxu0 0.0
      %1463 = vmatpush.msra.mxu0 0.0
      %1464 = vmatpush.msra.mxu0 0.0
      %1465 = vmatpush.msra.mxu0 0.0
      %1466 = vmatpush.msra.mxu0 0.0
      %1467 = vmatpush.msra.mxu0 0.0
      %1468 = vmatpush.msra.mxu0 0.0
      %1469 = vmatpush.msra.mxu0 0.0
      %1470 = vmatpush.msra.mxu0 %v1245
      %1471 = vmatpush.msra.mxu0 %v1242
      %1472 = vmatpush.msra.mxu0 %v1239
      %1473 = vmatpush.msra.mxu0 %v1236
      %1474 = vmatmul.f32.gmra.mxu0 %v1418
      %v1475 = vpop.f32.mrf.mxu0
      %v1476 = vadd.f32 0.0, %v1475
      %1477 = vmatmul.f32.gmra.mxu0 %v1421
      %v1478 = vpop.f32.mrf.mxu0
      %v1479 = vadd.f32 0.0, %v1478
      %1480 = vmatmul.f32.gmra.mxu0 %v1424
      %v1481 = vpop.f32.mrf.mxu0
      %v1482 = vadd.f32 0.0, %v1481
      %1483 = vmatmul.f32.gmra.mxu0 %v1427
      %v1484 = vpop.f32.mrf.mxu0
      %v1485 = vadd.f32 0.0, %v1484
      %1486 = vdwg.mxu0
      %1487 = vmatpush.msra.mxu0 0.0
      %1488 = vmatpush.msra.mxu0 0.0
      %1489 = vmatpush.msra.mxu0 0.0
      %1490 = vmatpush.msra.mxu0 0.0
      %1491 = vmatpush.msra.mxu0 0.0
      %1492 = vmatpush.msra.mxu0 0.0
      %1493 = vmatpush.msra.mxu0 0.0
      %1494 = vmatpush.msra.mxu0 0.0
      %1495 = vmatpush.msra.mxu0 0.0
      %1496 = vmatpush.msra.mxu0 0.0
      %1497 = vmatpush.msra.mxu0 0.0
      %1498 = vmatpush.msra.mxu0 0.0
      %1499 = vmatpush.msra.mxu0 %v1274
      %1500 = vmatpush.msra.mxu0 %v1271
      %1501 = vmatpush.msra.mxu0 %v1268
      %1502 = vmatpush.msra.mxu0 %v1265
      %1503 = vmatmul.f32.gmra.mxu0 %v1418
      %v1504 = vpop.f32.mrf.mxu0
      %v1505 = vadd.f32 0.0, %v1504
      %1506 = vmatmul.f32.gmra.mxu0 %v1421
      %v1507 = vpop.f32.mrf.mxu0
      %v1508 = vadd.f32 0.0, %v1507
      %1509 = vmatmul.f32.gmra.mxu0 %v1424
      %v1510 = vpop.f32.mrf.mxu0
      %v1511 = vadd.f32 0.0, %v1510
      %1512 = vmatmul.f32.gmra.mxu0 %v1427
      %v1513 = vpop.f32.mrf.mxu0
      %v1514 = vadd.f32 0.0, %v1513
      %1515 = vdwg.mxu0
      %v1516 = vmul.f32 %v1447, %v1070
      %v1517 = vmul.f32 %v1476, %v1071
      %v1518 = vmul.f32 %v1505, %v1072
      %v1519 = vmul.f32 %v1450, %v1073
      %v1520 = vmul.f32 %v1479, %v1074
      %v1521 = vmul.f32 %v1508, %v1075
      %v1522 = vmul.f32 %v1453, %v1076
      %v1523 = vmul.f32 %v1482, %v1077
      %v1524 = vmul.f32 %v1511, %v1078
      %v1525 = vmul.f32 %v1456, %v1079
      %v1526 = vmul.f32 %v1485, %v1080
      %v1527 = vmul.f32 %v1514, %v1081
      %v1529 = vsel %vm1416, %v1518, 0
      %v1532 = vsel %vm1416, %v1521, 0
      %v1535 = vsel %vm1416, %v1524, 0
      %v1538 = vsel %vm1416, %v1527, 0
      %v1541 = vsel %vm1416, %v1084, 0
      %v1544 = vsel %vm1416, %v1087, 0
      %v1547 = vsel %vm1416, %v1090, 0
      %v1550 = vsel %vm1416, %v1093, 0
      %1552 = vmatpush.xpose.msra.mxu0 0.0
      %1553 = vmatpush.xpose.msra.mxu0 0.0
      %1554 = vmatpush.xpose.msra.mxu0 0.0
      %1555 = vmatpush.xpose.msra.mxu0 0.0
      %1556 = vmatpush.xpose.msra.mxu0 0.0
      %1557 = vmatpush.xpose.msra.mxu0 0.0
      %1558 = vmatpush.xpose.msra.mxu0 0.0
      %1559 = vmatpush.xpose.msra.mxu0 0.0
      %1560 = vmatpush.xpose.msra.mxu0 0.0
      %1561 = vmatpush.xpose.msra.mxu0 0.0
      %1562 = vmatpush.xpose.msra.mxu0 0.0
      %1563 = vmatpush.xpose.msra.mxu0 0.0
      %1564 = vmatpush.xpose.msra.mxu0 %v1091
      %1565 = vmatpush.xpose.msra.mxu0 %v1088
      %1566 = vmatpush.xpose.msra.mxu0 %v1085
      %1567 = vmatpush.xpose.msra.mxu0 %v1082
      %1568 = vmatmul.f32.gmra.mxu0 %v1516
      %v1569 = vpop.f32.mrf.mxu0
      %v1570 = vadd.f32 0.0, %v1569
      %1571 = vmatmul.f32.gmra.mxu0 %v1519
      %v1572 = vpop.f32.mrf.mxu0
      %v1573 = vadd.f32 0.0, %v1572
      %1574 = vmatmul.f32.gmra.mxu0 %v1522
      %v1575 = vpop.f32.mrf.mxu0
      %v1576 = vadd.f32 0.0, %v1575
      %1577 = vmatmul.f32.gmra.mxu0 %v1525
      %v1578 = vpop.f32.mrf.mxu0
      %v1579 = vadd.f32 0.0, %v1578
      %1580 = vdwg.mxu0
      %1581 = vmatpush.xpose.msra.mxu0 0.0
      %1582 = vmatpush.xpose.msra.mxu0 0.0
      %1583 = vmatpush.xpose.msra.mxu0 0.0
      %1584 = vmatpush.xpose.msra.mxu0 0.0
      %1585 = vmatpush.xpose.msra.mxu0 0.0
      %1586 = vmatpush.xpose.msra.mxu0 0.0
      %1587 = vmatpush.xpose.msra.mxu0 0.0
      %1588 = vmatpush.xpose.msra.mxu0 0.0
      %1589 = vmatpush.xpose.msra.mxu0 0.0
      %1590 = vmatpush.xpose.msra.mxu0 0.0
      %1591 = vmatpush.xpose.msra.mxu0 0.0
      %1592 = vmatpush.xpose.msra.mxu0 0.0
      %1593 = vmatpush.xpose.msra.mxu0 %v1092
      %1594 = vmatpush.xpose.msra.mxu0 %v1089
      %1595 = vmatpush.xpose.msra.mxu0 %v1086
      %1596 = vmatpush.xpose.msra.mxu0 %v1083
      %1597 = vmatmul.f32.gmra.mxu0 %v1517
      %v1598 = vpop.f32.mrf.mxu0
      %v1599 = vadd.f32 %v1570, %v1598
      %1600 = vmatmul.f32.gmra.mxu0 %v1520
      %v1601 = vpop.f32.mrf.mxu0
      %v1602 = vadd.f32 %v1573, %v1601
      %1603 = vmatmul.f32.gmra.mxu0 %v1523
      %v1604 = vpop.f32.mrf.mxu0
      %v1605 = vadd.f32 %v1576, %v1604
      %1606 = vmatmul.f32.gmra.mxu0 %v1526
      %v1607 = vpop.f32.mrf.mxu0
      %v1608 = vadd.f32 %v1579, %v1607
      %1609 = vdwg.mxu0
      %1610 = vmatpush.xpose.msra.mxu0 0.0
      %1611 = vmatpush.xpose.msra.mxu0 0.0
      %1612 = vmatpush.xpose.msra.mxu0 0.0
      %1613 = vmatpush.xpose.msra.mxu0 0.0
      %1614 = vmatpush.xpose.msra.mxu0 0.0
      %1615 = vmatpush.xpose.msra.mxu0 0.0
      %1616 = vmatpush.xpose.msra.mxu0 0.0
      %1617 = vmatpush.xpose.msra.mxu0 0.0
      %1618 = vmatpush.xpose.msra.mxu0 0.0
      %1619 = vmatpush.xpose.msra.mxu0 0.0
      %1620 = vmatpush.xpose.msra.mxu0 0.0
      %1621 = vmatpush.xpose.msra.mxu0 0.0
      %1622 = vmatpush.xpose.msra.mxu0 %v1550
      %1623 = vmatpush.xpose.msra.mxu0 %v1547
      %1624 = vmatpush.xpose.msra.mxu0 %v1544
      %1625 = vmatpush.xpose.msra.mxu0 %v1541
      %1626 = vmatmul.f32.gmra.mxu0 %v1529
      %v1627 = vpop.f32.mrf.mxu0
      %v1628 = vadd.f32 %v1599, %v1627
      %1629 = vmatmul.f32.gmra.mxu0 %v1532
      %v1630 = vpop.f32.mrf.mxu0
      %v1631 = vadd.f32 %v1602, %v1630
      %1632 = vmatmul.f32.gmra.mxu0 %v1535
      %v1633 = vpop.f32.mrf.mxu0
      %v1634 = vadd.f32 %v1605, %v1633
      %1635 = vmatmul.f32.gmra.mxu0 %v1538
      %v1636 = vpop.f32.mrf.mxu0
      %v1637 = vadd.f32 %v1608, %v1636
      %1638 = vdwg.mxu0
      %v1640 = vsel %vm1416, %v1360, 0
      %v1643 = vsel %vm1416, %v1363, 0
      %v1646 = vsel %vm1416, %v1366, 0
      %v1649 = vsel %vm1416, %v1369, 0
      %1651 = vmatpush.xpose.msra.mxu0 0.0
      %1652 = vmatpush.xpose.msra.mxu0 0.0
      %1653 = vmatpush.xpose.msra.mxu0 0.0
      %1654 = vmatpush.xpose.msra.mxu0 0.0
      %1655 = vmatpush.xpose.msra.mxu0 0.0
      %1656 = vmatpush.xpose.msra.mxu0 0.0
      %1657 = vmatpush.xpose.msra.mxu0 0.0
      %1658 = vmatpush.xpose.msra.mxu0 0.0
      %1659 = vmatpush.xpose.msra.mxu0 0.0
      %1660 = vmatpush.xpose.msra.mxu0 0.0
      %1661 = vmatpush.xpose.msra.mxu0 0.0
      %1662 = vmatpush.xpose.msra.mxu0 0.0
      %1663 = vmatpush.xpose.msra.mxu0 %v1649
      %1664 = vmatpush.xpose.msra.mxu0 %v1646
      %1665 = vmatpush.xpose.msra.mxu0 %v1643
      %1666 = vmatpush.xpose.msra.mxu0 %v1640
      %1667 = vmatmul.f32.gmra.mxu0 %v1418
      %v1668 = vpop.f32.mrf.mxu0
      %v1669 = vadd.f32 %v1628, %v1668
      %1670 = vmatmul.f32.gmra.mxu0 %v1421
      %v1671 = vpop.f32.mrf.mxu0
      %v1672 = vadd.f32 %v1631, %v1671
      %1673 = vmatmul.f32.gmra.mxu0 %v1424
      %v1674 = vpop.f32.mrf.mxu0
      %v1675 = vadd.f32 %v1634, %v1674
      %1676 = vmatmul.f32.gmra.mxu0 %v1427
      %v1677 = vpop.f32.mrf.mxu0
      %v1678 = vadd.f32 %v1637, %v1677
      %1679 = vdwg.mxu0
      %v1680 = vadd.f32 %v1669, %v1066
      %v1681 = vadd.f32 %v1672, %v1067
      %v1682 = vadd.f32 %v1675, %v1068
      %v1683 = vadd.f32 %v1678, %v1069
      %v1684 = vsel %vm1416, %v1680, -inf
      %1685 = vmax.xlane.f32.xlu0 %v1684
      %v1686 = vpop.xlane.xlu0 %1685
      %v1687 = vsel %vm1416, %v1681, -inf
      %1688 = vmax.xlane.f32.xlu0 %v1687
      %v1689 = vpop.xlane.xlu0 %1688
      %v1690 = vsel %vm1416, %v1682, -inf
      %1691 = vmax.xlane.f32.xlu0 %v1690
      %v1692 = vpop.xlane.xlu0 %1691
      %v1693 = vsel %vm1416, %v1683, -inf
      %1694 = vmax.xlane.f32.xlu0 %v1693
      %v1695 = vpop.xlane.xlu0 %1694
      %v1696 = vsub.f32 %v1680, %v1686
      %v1697 = vsub.f32 %v1681, %v1689
      %v1698 = vsub.f32 %v1682, %v1692
      %v1699 = vsub.f32 %v1683, %v1695
      %v1700 = vmul.f32 %v1696, 1.442695
      %v1701 = vpow.pop %v1700
      %v1702 = vmul.f32 %v1697, 1.442695
      %v1703 = vpow.pop %v1702
      %v1704 = vmul.f32 %v1698, 1.442695
      %v1705 = vpow.pop %v1704
      %v1706 = vmul.f32 %v1699, 1.442695
      %v1707 = vpow.pop %v1706
      %v1708 = vsel %vm1416, %v1701, 0.0
      %1709 = vadd.xlane.f32.xlu0 %v1708
      %v1710 = vpop.xlane.xlu0 %1709
      %v1711 = vsel %vm1416, %v1703, 0.0
      %1712 = vadd.xlane.f32.xlu0 %v1711
      %v1713 = vpop.xlane.xlu0 %1712
      %v1714 = vsel %vm1416, %v1705, 0.0
      %1715 = vadd.xlane.f32.xlu0 %v1714
      %v1716 = vpop.xlane.xlu0 %1715
      %v1717 = vsel %vm1416, %v1707, 0.0
      %1718 = vadd.xlane.f32.xlu0 %v1717
      %v1719 = vpop.xlane.xlu0 %1718
      %v1720 = vrcp.pop %v1710
      %v1721 = vrcp.pop %v1713
      %v1722 = vrcp.pop %v1716
      %v1723 = vrcp.pop %v1719
      %v1724 = vmul.f32 %v1701, %v1720
      %v1725 = vmul.f32 %v1703, %v1721
      %v1726 = vmul.f32 %v1705, %v1722
      %v1727 = vmul.f32 %v1707, %v1723
      %v1729 = vsel %vm1416, %v1724, 0
      %v1732 = vsel %vm1416, %v1725, 0
      %v1735 = vsel %vm1416, %v1726, 0
      %v1738 = vsel %vm1416, %v1727, 0
      %1740 = vmatpush.msra.mxu0 0.0
      %1741 = vmatpush.msra.mxu0 0.0
      %1742 = vmatpush.msra.mxu0 0.0
      %1743 = vmatpush.msra.mxu0 0.0
      %1744 = vmatpush.msra.mxu0 0.0
      %1745 = vmatpush.msra.mxu0 0.0
      %1746 = vmatpush.msra.mxu0 0.0
      %1747 = vmatpush.msra.mxu0 0.0
      %1748 = vmatpush.msra.mxu0 0.0
      %1749 = vmatpush.msra.mxu0 0.0
      %1750 = vmatpush.msra.mxu0 0.0
      %1751 = vmatpush.msra.mxu0 0.0
      %1752 = vmatpush.msra.mxu0 %v1091
      %1753 = vmatpush.msra.mxu0 %v1088
      %1754 = vmatpush.msra.mxu0 %v1085
      %1755 = vmatpush.msra.mxu0 %v1082
      %1756 = vmatmul.f32.gmra.mxu0 %v1729
      %v1757 = vpop.f32.mrf.mxu0
      %v1758 = vadd.f32 0.0, %v1757
      %1759 = vmatmul.f32.gmra.mxu0 %v1732
      %v1760 = vpop.f32.mrf.mxu0
      %v1761 = vadd.f32 0.0, %v1760
      %1762 = vmatmul.f32.gmra.mxu0 %v1735
      %v1763 = vpop.f32.mrf.mxu0
      %v1764 = vadd.f32 0.0, %v1763
      %1765 = vmatmul.f32.gmra.mxu0 %v1738
      %v1766 = vpop.f32.mrf.mxu0
      %v1767 = vadd.f32 0.0, %v1766
      %1768 = vdwg.mxu0
      %1769 = vmatpush.msra.mxu0 0.0
      %1770 = vmatpush.msra.mxu0 0.0
      %1771 = vmatpush.msra.mxu0 0.0
      %1772 = vmatpush.msra.mxu0 0.0
      %1773 = vmatpush.msra.mxu0 0.0
      %1774 = vmatpush.msra.mxu0 0.0
      %1775 = vmatpush.msra.mxu0 0.0
      %1776 = vmatpush.msra.mxu0 0.0
      %1777 = vmatpush.msra.mxu0 0.0
      %1778 = vmatpush.msra.mxu0 0.0
      %1779 = vmatpush.msra.mxu0 0.0
      %1780 = vmatpush.msra.mxu0 0.0
      %1781 = vmatpush.msra.mxu0 %v1092
      %1782 = vmatpush.msra.mxu0 %v1089
      %1783 = vmatpush.msra.mxu0 %v1086
      %1784 = vmatpush.msra.mxu0 %v1083
      %1785 = vmatmul.f32.gmra.mxu0 %v1729
      %v1786 = vpop.f32.mrf.mxu0
      %v1787 = vadd.f32 0.0, %v1786
      %1788 = vmatmul.f32.gmra.mxu0 %v1732
      %v1789 = vpop.f32.mrf.mxu0
      %v1790 = vadd.f32 0.0, %v1789
      %1791 = vmatmul.f32.gmra.mxu0 %v1735
      %v1792 = vpop.f32.mrf.mxu0
      %v1793 = vadd.f32 0.0, %v1792
      %1794 = vmatmul.f32.gmra.mxu0 %v1738
      %v1795 = vpop.f32.mrf.mxu0
      %v1796 = vadd.f32 0.0, %v1795
      %1797 = vdwg.mxu0
      %1798 = vmatpush.msra.mxu0 0.0
      %1799 = vmatpush.msra.mxu0 0.0
      %1800 = vmatpush.msra.mxu0 0.0
      %1801 = vmatpush.msra.mxu0 0.0
      %1802 = vmatpush.msra.mxu0 0.0
      %1803 = vmatpush.msra.mxu0 0.0
      %1804 = vmatpush.msra.mxu0 0.0
      %1805 = vmatpush.msra.mxu0 0.0
      %1806 = vmatpush.msra.mxu0 0.0
      %1807 = vmatpush.msra.mxu0 0.0
      %1808 = vmatpush.msra.mxu0 0.0
      %1809 = vmatpush.msra.mxu0 0.0
      %1810 = vmatpush.msra.mxu0 %v1093
      %1811 = vmatpush.msra.mxu0 %v1090
      %1812 = vmatpush.msra.mxu0 %v1087
      %1813 = vmatpush.msra.mxu0 %v1084
      %1814 = vmatmul.f32.gmra.mxu0 %v1729
      %v1815 = vpop.f32.mrf.mxu0
      %v1816 = vadd.f32 0.0, %v1815
      %1817 = vmatmul.f32.gmra.mxu0 %v1732
      %v1818 = vpop.f32.mrf.mxu0
      %v1819 = vadd.f32 0.0, %v1818
      %1820 = vmatmul.f32.gmra.mxu0 %v1735
      %v1821 = vpop.f32.mrf.mxu0
      %v1822 = vadd.f32 0.0, %v1821
      %1823 = vmatmul.f32.gmra.mxu0 %v1738
      %v1824 = vpop.f32.mrf.mxu0
      %v1825 = vadd.f32 0.0, %v1824
      %1826 = vdwg.mxu0
      %v1827 = vmul.f32 %v1758, %v1070
      %v1828 = vmul.f32 %v1787, %v1071
      %v1829 = vmul.f32 %v1816, %v1072
      %v1830 = vmul.f32 %v1761, %v1073
      %v1831 = vmul.f32 %v1790, %v1074
      %v1832 = vmul.f32 %v1819, %v1075
      %v1833 = vmul.f32 %v1764, %v1076
      %v1834 = vmul.f32 %v1793, %v1077
      %v1835 = vmul.f32 %v1822, %v1078
      %v1836 = vmul.f32 %v1767, %v1079
      %v1837 = vmul.f32 %v1796, %v1080
      %v1838 = vmul.f32 %v1825, %v1081
      %v1840 = vsel %vm1416, %v1829, 0
      %v1843 = vsel %vm1416, %v1832, 0
      %v1846 = vsel %vm1416, %v1835, 0
      %v1849 = vsel %vm1416, %v1838, 0
      %v1852 = vsel %vm1416, %v1096, 0
      %v1854 = vsel %vm1416, %v1099, 0
      %1856 = vmatpush.xpose.msra.mxu0 0.0
      %1857 = vmatpush.xpose.msra.mxu0 0.0
      %1858 = vmatpush.xpose.msra.mxu0 0.0
      %1859 = vmatpush.xpose.msra.mxu0 0.0
      %1860 = vmatpush.xpose.msra.mxu0 0.0
      %1861 = vmatpush.xpose.msra.mxu0 0.0
      %1862 = vmatpush.xpose.msra.mxu0 0.0
      %1863 = vmatpush.xpose.msra.mxu0 0.0
      %1864 = vmatpush.xpose.msra.mxu0 0.0
      %1865 = vmatpush.xpose.msra.mxu0 0.0
      %1866 = vmatpush.xpose.msra.mxu0 0.0
      %1867 = vmatpush.xpose.msra.mxu0 0.0
      %1868 = vmatpush.xpose.msra.mxu0 0.0
      %1869 = vmatpush.xpose.msra.mxu0 0.0
      %1870 = vmatpush.xpose.msra.mxu0 %v1097
      %1871 = vmatpush.xpose.msra.mxu0 %v1094
      %1872 = vmatmul.f32.gmra.mxu0 %v1827
      %v1873 = vpop.f32.mrf.mxu0
      %v1874 = vadd.f32 0.0, %v1873
      %1875 = vmatmul.f32.gmra.mxu0 %v1830
      %v1876 = vpop.f32.mrf.mxu0
      %v1877 = vadd.f32 0.0, %v1876
      %1878 = vmatmul.f32.gmra.mxu0 %v1833
      %v1879 = vpop.f32.mrf.mxu0
      %v1880 = vadd.f32 0.0, %v1879
      %1881 = vmatmul.f32.gmra.mxu0 %v1836
      %v1882 = vpop.f32.mrf.mxu0
      %v1883 = vadd.f32 0.0, %v1882
      %1884 = vdwg.mxu0
      %1885 = vmatpush.xpose.msra.mxu0 0.0
      %1886 = vmatpush.xpose.msra.mxu0 0.0
      %1887 = vmatpush.xpose.msra.mxu0 0.0
      %1888 = vmatpush.xpose.msra.mxu0 0.0
      %1889 = vmatpush.xpose.msra.mxu0 0.0
      %1890 = vmatpush.xpose.msra.mxu0 0.0
      %1891 = vmatpush.xpose.msra.mxu0 0.0
      %1892 = vmatpush.xpose.msra.mxu0 0.0
      %1893 = vmatpush.xpose.msra.mxu0 0.0
      %1894 = vmatpush.xpose.msra.mxu0 0.0
      %1895 = vmatpush.xpose.msra.mxu0 0.0
      %1896 = vmatpush.xpose.msra.mxu0 0.0
      %1897 = vmatpush.xpose.msra.mxu0 0.0
      %1898 = vmatpush.xpose.msra.mxu0 0.0
      %1899 = vmatpush.xpose.msra.mxu0 %v1098
      %1900 = vmatpush.xpose.msra.mxu0 %v1095
      %1901 = vmatmul.f32.gmra.mxu0 %v1828
      %v1902 = vpop.f32.mrf.mxu0
      %v1903 = vadd.f32 %v1874, %v1902
      %1904 = vmatmul.f32.gmra.mxu0 %v1831
      %v1905 = vpop.f32.mrf.mxu0
      %v1906 = vadd.f32 %v1877, %v1905
      %1907 = vmatmul.f32.gmra.mxu0 %v1834
      %v1908 = vpop.f32.mrf.mxu0
      %v1909 = vadd.f32 %v1880, %v1908
      %1910 = vmatmul.f32.gmra.mxu0 %v1837
      %v1911 = vpop.f32.mrf.mxu0
      %v1912 = vadd.f32 %v1883, %v1911
      %1913 = vdwg.mxu0
      %1914 = vmatpush.xpose.msra.mxu0 0.0
      %1915 = vmatpush.xpose.msra.mxu0 0.0
      %1916 = vmatpush.xpose.msra.mxu0 0.0
      %1917 = vmatpush.xpose.msra.mxu0 0.0
      %1918 = vmatpush.xpose.msra.mxu0 0.0
      %1919 = vmatpush.xpose.msra.mxu0 0.0
      %1920 = vmatpush.xpose.msra.mxu0 0.0
      %1921 = vmatpush.xpose.msra.mxu0 0.0
      %1922 = vmatpush.xpose.msra.mxu0 0.0
      %1923 = vmatpush.xpose.msra.mxu0 0.0
      %1924 = vmatpush.xpose.msra.mxu0 0.0
      %1925 = vmatpush.xpose.msra.mxu0 0.0
      %1926 = vmatpush.xpose.msra.mxu0 0.0
      %1927 = vmatpush.xpose.msra.mxu0 0.0
      %1928 = vmatpush.xpose.msra.mxu0 %v1854
      %1929 = vmatpush.xpose.msra.mxu0 %v1852
      %1930 = vmatmul.f32.gmra.mxu0 %v1840
      %v1931 = vpop.f32.mrf.mxu0
      %v1932 = vadd.f32 %v1903, %v1931
      %1933 = vmatmul.f32.gmra.mxu0 %v1843
      %v1934 = vpop.f32.mrf.mxu0
      %v1935 = vadd.f32 %v1906, %v1934
      %1936 = vmatmul.f32.gmra.mxu0 %v1846
      %v1937 = vpop.f32.mrf.mxu0
      %v1938 = vadd.f32 %v1909, %v1937
      %1939 = vmatmul.f32.gmra.mxu0 %v1849
      %v1940 = vpop.f32.mrf.mxu0
      %v1941 = vadd.f32 %v1912, %v1940
      %1942 = vdwg.mxu0
      %v1944 = vsel %vm1166, %v1932, 0
      %v1947 = vsel %vm1166, %v1935, 0
      %v1950 = vsel %vm1166, %v1938, 0
      %v1953 = vsel %vm1166, %v1941, 0
      %v1956 = vsel %vm1179, %v1161, 0
      %1958 = vmatpush.msra.mxu0 0.0
      %1959 = vmatpush.msra.mxu0 0.0
      %1960 = vmatpush.msra.mxu0 0.0
      %1961 = vmatpush.msra.mxu0 0.0
      %1962 = vmatpush.msra.mxu0 0.0
      %1963 = vmatpush.msra.mxu0 0.0
      %1964 = vmatpush.msra.mxu0 0.0
      %1965 = vmatpush.msra.mxu0 0.0
      %1966 = vmatpush.msra.mxu0 0.0
      %1967 = vmatpush.msra.mxu0 0.0
      %1968 = vmatpush.msra.mxu0 0.0
      %1969 = vmatpush.msra.mxu0 0.0
      %1970 = vmatpush.msra.mxu0 0.0
      %1971 = vmatpush.msra.mxu0 0.0
      %1972 = vmatpush.msra.mxu0 %v1956
      %1973 = vmatpush.msra.mxu0 %v1160
      %1974 = vmatmul.f32.gmra.mxu0 %v1944
      %v1975 = vpop.f32.mrf.mxu0
      %v1976 = vadd.f32 0.0, %v1975
      %1977 = vmatmul.f32.gmra.mxu0 %v1947
      %v1978 = vpop.f32.mrf.mxu0
      %v1979 = vadd.f32 0.0, %v1978
      %1980 = vmatmul.f32.gmra.mxu0 %v1950
      %v1981 = vpop.f32.mrf.mxu0
      %v1982 = vadd.f32 0.0, %v1981
      %1983 = vmatmul.f32.gmra.mxu0 %v1953
      %v1984 = vpop.f32.mrf.mxu0
      %v1985 = vadd.f32 0.0, %v1984
      %1986 = vdwg.mxu0
      %1987 = vmatpush.msra.mxu0 0.0
      %1988 = vmatpush.msra.mxu0 0.0
      %1989 = vmatpush.msra.mxu0 0.0
      %1990 = vmatpush.msra.mxu0 0.0
      %1991 = vmatpush.msra.mxu0 0.0
      %1992 = vmatpush.msra.mxu0 0.0
      %1993 = vmatpush.msra.mxu0 0.0
      %1994 = vmatpush.msra.mxu0 0.0
      %1995 = vmatpush.msra.mxu0 0.0
      %1996 = vmatpush.msra.mxu0 0.0
      %1997 = vmatpush.msra.mxu0 0.0
      %1998 = vmatpush.msra.mxu0 0.0
      %1999 = vmatpush.msra.mxu0 %v1410
      %2000 = vmatpush.msra.mxu0 %v1407
      %2001 = vmatpush.msra.mxu0 %v1404
      %2002 = vmatpush.msra.mxu0 %v1401
      %2003 = vmatmul.f32.gmra.mxu0 %v1729
      %v2004 = vpop.f32.mrf.mxu0
      %v2005 = vadd.f32 %v1976, %v2004
      %2006 = vmatmul.f32.gmra.mxu0 %v1732
      %v2007 = vpop.f32.mrf.mxu0
      %v2008 = vadd.f32 %v1979, %v2007
      %2009 = vmatmul.f32.gmra.mxu0 %v1735
      %v2010 = vpop.f32.mrf.mxu0
      %v2011 = vadd.f32 %v1982, %v2010
      %2012 = vmatmul.f32.gmra.mxu0 %v1738
      %v2013 = vpop.f32.mrf.mxu0
      %v2014 = vadd.f32 %v1985, %v2013
      %2015 = vdwg.mxu0
      %2016 = vrot.lane.b32.xlu0 %v1412, 96
      %v2017 = vpop.permute.xlu0 %2016
      %2018 = vrot.lane.b32.xlu0 %v1413, 96
      %v2019 = vpop.permute.xlu0 %2018
      %2020 = vrot.lane.b32.xlu0 %v1414, 96
      %v2021 = vpop.permute.xlu0 %2020
      %2022 = vrot.lane.b32.xlu0 %v1415, 96
      %v2023 = vpop.permute.xlu0 %2022
      %v2024 = vsel %vm1416, %v2017, 0
      %v2026 = vsel %vm1416, %v2019, 0
      %v2028 = vsel %vm1416, %v2021, 0
      %v2030 = vsel %vm1416, %v2023, 0
      %2032 = vmatpush.msra.mxu0 0.0
      %2033 = vmatpush.msra.mxu0 0.0
      %2034 = vmatpush.msra.mxu0 0.0
      %2035 = vmatpush.msra.mxu0 0.0
      %2036 = vmatpush.msra.mxu0 0.0
      %2037 = vmatpush.msra.mxu0 0.0
      %2038 = vmatpush.msra.mxu0 0.0
      %2039 = vmatpush.msra.mxu0 0.0
      %2040 = vmatpush.msra.mxu0 0.0
      %2041 = vmatpush.msra.mxu0 0.0
      %2042 = vmatpush.msra.mxu0 0.0
      %2043 = vmatpush.msra.mxu0 0.0
      %2044 = vmatpush.msra.mxu0 %v1216
      %2045 = vmatpush.msra.mxu0 %v1213
      %2046 = vmatpush.msra.mxu0 %v1210
      %2047 = vmatpush.msra.mxu0 %v1207
      %2048 = vmatmul.f32.gmra.mxu0 %v2024
      %v2049 = vpop.f32.mrf.mxu0
      %v2050 = vadd.f32 0.0, %v2049
      %2051 = vmatmul.f32.gmra.mxu0 %v2026
      %v2052 = vpop.f32.mrf.mxu0
      %v2053 = vadd.f32 0.0, %v2052
      %2054 = vmatmul.f32.gmra.mxu0 %v2028
      %v2055 = vpop.f32.mrf.mxu0
      %v2056 = vadd.f32 0.0, %v2055
      %2057 = vmatmul.f32.gmra.mxu0 %v2030
      %v2058 = vpop.f32.mrf.mxu0
      %v2059 = vadd.f32 0.0, %v2058
      %2060 = vdwg.mxu0
      %2061 = vmatpush.msra.mxu0 0.0
      %2062 = vmatpush.msra.mxu0 0.0
      %2063 = vmatpush.msra.mxu0 0.0
      %2064 = vmatpush.msra.mxu0 0.0
      %2065 = vmatpush.msra.mxu0 0.0
      %2066 = vmatpush.msra.mxu0 0.0
      %2067 = vmatpush.msra.mxu0 0.0
      %2068 = vmatpush.msra.mxu0 0.0
      %2069 = vmatpush.msra.mxu0 0.0
      %2070 = vmatpush.msra.mxu0 0.0
      %2071 = vmatpush.msra.mxu0 0.0
      %2072 = vmatpush.msra.mxu0 0.0
      %2073 = vmatpush.msra.mxu0 %v1245
      %2074 = vmatpush.msra.mxu0 %v1242
      %2075 = vmatpush.msra.mxu0 %v1239
      %2076 = vmatpush.msra.mxu0 %v1236
      %2077 = vmatmul.f32.gmra.mxu0 %v2024
      %v2078 = vpop.f32.mrf.mxu0
      %v2079 = vadd.f32 0.0, %v2078
      %2080 = vmatmul.f32.gmra.mxu0 %v2026
      %v2081 = vpop.f32.mrf.mxu0
      %v2082 = vadd.f32 0.0, %v2081
      %2083 = vmatmul.f32.gmra.mxu0 %v2028
      %v2084 = vpop.f32.mrf.mxu0
      %v2085 = vadd.f32 0.0, %v2084
      %2086 = vmatmul.f32.gmra.mxu0 %v2030
      %v2087 = vpop.f32.mrf.mxu0
      %v2088 = vadd.f32 0.0, %v2087
      %2089 = vdwg.mxu0
      %2090 = vmatpush.msra.mxu0 0.0
      %2091 = vmatpush.msra.mxu0 0.0
      %2092 = vmatpush.msra.mxu0 0.0
      %2093 = vmatpush.msra.mxu0 0.0
      %2094 = vmatpush.msra.mxu0 0.0
      %2095 = vmatpush.msra.mxu0 0.0
      %2096 = vmatpush.msra.mxu0 0.0
      %2097 = vmatpush.msra.mxu0 0.0
      %2098 = vmatpush.msra.mxu0 0.0
      %2099 = vmatpush.msra.mxu0 0.0
      %2100 = vmatpush.msra.mxu0 0.0
      %2101 = vmatpush.msra.mxu0 0.0
      %2102 = vmatpush.msra.mxu0 %v1274
      %2103 = vmatpush.msra.mxu0 %v1271
      %2104 = vmatpush.msra.mxu0 %v1268
      %2105 = vmatpush.msra.mxu0 %v1265
      %2106 = vmatmul.f32.gmra.mxu0 %v2024
      %v2107 = vpop.f32.mrf.mxu0
      %v2108 = vadd.f32 0.0, %v2107
      %2109 = vmatmul.f32.gmra.mxu0 %v2026
      %v2110 = vpop.f32.mrf.mxu0
      %v2111 = vadd.f32 0.0, %v2110
      %2112 = vmatmul.f32.gmra.mxu0 %v2028
      %v2113 = vpop.f32.mrf.mxu0
      %v2114 = vadd.f32 0.0, %v2113
      %2115 = vmatmul.f32.gmra.mxu0 %v2030
      %v2116 = vpop.f32.mrf.mxu0
      %v2117 = vadd.f32 0.0, %v2116
      %2118 = vdwg.mxu0
      %v2119 = vmul.f32 %v2050, %v1070
      %v2120 = vmul.f32 %v2079, %v1071
      %v2121 = vmul.f32 %v2108, %v1072
      %v2122 = vmul.f32 %v2053, %v1073
      %v2123 = vmul.f32 %v2082, %v1074
      %v2124 = vmul.f32 %v2111, %v1075
      %v2125 = vmul.f32 %v2056, %v1076
      %v2126 = vmul.f32 %v2085, %v1077
      %v2127 = vmul.f32 %v2114, %v1078
      %v2128 = vmul.f32 %v2059, %v1079
      %v2129 = vmul.f32 %v2088, %v1080
      %v2130 = vmul.f32 %v2117, %v1081
      %v2132 = vsel %vm1416, %v2121, 0
      %v2135 = vsel %vm1416, %v2124, 0
      %v2138 = vsel %vm1416, %v2127, 0
      %v2141 = vsel %vm1416, %v2130, 0
      %2143 = vmatpush.xpose.msra.mxu0 0.0
      %2144 = vmatpush.xpose.msra.mxu0 0.0
      %2145 = vmatpush.xpose.msra.mxu0 0.0
      %2146 = vmatpush.xpose.msra.mxu0 0.0
      %2147 = vmatpush.xpose.msra.mxu0 0.0
      %2148 = vmatpush.xpose.msra.mxu0 0.0
      %2149 = vmatpush.xpose.msra.mxu0 0.0
      %2150 = vmatpush.xpose.msra.mxu0 0.0
      %2151 = vmatpush.xpose.msra.mxu0 0.0
      %2152 = vmatpush.xpose.msra.mxu0 0.0
      %2153 = vmatpush.xpose.msra.mxu0 0.0
      %2154 = vmatpush.xpose.msra.mxu0 0.0
      %2155 = vmatpush.xpose.msra.mxu0 %v1091
      %2156 = vmatpush.xpose.msra.mxu0 %v1088
      %2157 = vmatpush.xpose.msra.mxu0 %v1085
      %2158 = vmatpush.xpose.msra.mxu0 %v1082
      %2159 = vmatmul.f32.gmra.mxu0 %v2119
      %v2160 = vpop.f32.mrf.mxu0
      %v2161 = vadd.f32 0.0, %v2160
      %2162 = vmatmul.f32.gmra.mxu0 %v2122
      %v2163 = vpop.f32.mrf.mxu0
      %v2164 = vadd.f32 0.0, %v2163
      %2165 = vmatmul.f32.gmra.mxu0 %v2125
      %v2166 = vpop.f32.mrf.mxu0
      %v2167 = vadd.f32 0.0, %v2166
      %2168 = vmatmul.f32.gmra.mxu0 %v2128
      %v2169 = vpop.f32.mrf.mxu0
      %v2170 = vadd.f32 0.0, %v2169
      %2171 = vdwg.mxu0
      %2172 = vmatpush.xpose.msra.mxu0 0.0
      %2173 = vmatpush.xpose.msra.mxu0 0.0
      %2174 = vmatpush.xpose.msra.mxu0 0.0
      %2175 = vmatpush.xpose.msra.mxu0 0.0
      %2176 = vmatpush.xpose.msra.mxu0 0.0
      %2177 = vmatpush.xpose.msra.mxu0 0.0
      %2178 = vmatpush.xpose.msra.mxu0 0.0
      %2179 = vmatpush.xpose.msra.mxu0 0.0
      %2180 = vmatpush.xpose.msra.mxu0 0.0
      %2181 = vmatpush.xpose.msra.mxu0 0.0
      %2182 = vmatpush.xpose.msra.mxu0 0.0
      %2183 = vmatpush.xpose.msra.mxu0 0.0
      %2184 = vmatpush.xpose.msra.mxu0 %v1092
      %2185 = vmatpush.xpose.msra.mxu0 %v1089
      %2186 = vmatpush.xpose.msra.mxu0 %v1086
      %2187 = vmatpush.xpose.msra.mxu0 %v1083
      %2188 = vmatmul.f32.gmra.mxu0 %v2120
      %v2189 = vpop.f32.mrf.mxu0
      %v2190 = vadd.f32 %v2161, %v2189
      %2191 = vmatmul.f32.gmra.mxu0 %v2123
      %v2192 = vpop.f32.mrf.mxu0
      %v2193 = vadd.f32 %v2164, %v2192
      %2194 = vmatmul.f32.gmra.mxu0 %v2126
      %v2195 = vpop.f32.mrf.mxu0
      %v2196 = vadd.f32 %v2167, %v2195
      %2197 = vmatmul.f32.gmra.mxu0 %v2129
      %v2198 = vpop.f32.mrf.mxu0
      %v2199 = vadd.f32 %v2170, %v2198
      %2200 = vdwg.mxu0
      %2201 = vmatpush.xpose.msra.mxu0 0.0
      %2202 = vmatpush.xpose.msra.mxu0 0.0
      %2203 = vmatpush.xpose.msra.mxu0 0.0
      %2204 = vmatpush.xpose.msra.mxu0 0.0
      %2205 = vmatpush.xpose.msra.mxu0 0.0
      %2206 = vmatpush.xpose.msra.mxu0 0.0
      %2207 = vmatpush.xpose.msra.mxu0 0.0
      %2208 = vmatpush.xpose.msra.mxu0 0.0
      %2209 = vmatpush.xpose.msra.mxu0 0.0
      %2210 = vmatpush.xpose.msra.mxu0 0.0
      %2211 = vmatpush.xpose.msra.mxu0 0.0
      %2212 = vmatpush.xpose.msra.mxu0 0.0
      %2213 = vmatpush.xpose.msra.mxu0 %v1550
      %2214 = vmatpush.xpose.msra.mxu0 %v1547
      %2215 = vmatpush.xpose.msra.mxu0 %v1544
      %2216 = vmatpush.xpose.msra.mxu0 %v1541
      %2217 = vmatmul.f32.gmra.mxu0 %v2132
      %v2218 = vpop.f32.mrf.mxu0
      %v2219 = vadd.f32 %v2190, %v2218
      %2220 = vmatmul.f32.gmra.mxu0 %v2135
      %v2221 = vpop.f32.mrf.mxu0
      %v2222 = vadd.f32 %v2193, %v2221
      %2223 = vmatmul.f32.gmra.mxu0 %v2138
      %v2224 = vpop.f32.mrf.mxu0
      %v2225 = vadd.f32 %v2196, %v2224
      %2226 = vmatmul.f32.gmra.mxu0 %v2141
      %v2227 = vpop.f32.mrf.mxu0
      %v2228 = vadd.f32 %v2199, %v2227
      %2229 = vdwg.mxu0
      %2230 = vrot.lane.b32.xlu0 %v1360, 96
      %v2231 = vpop.permute.xlu0 %2230
      %2232 = vrot.lane.b32.xlu0 %v1363, 96
      %v2233 = vpop.permute.xlu0 %2232
      %2234 = vrot.lane.b32.xlu0 %v1366, 96
      %v2235 = vpop.permute.xlu0 %2234
      %2236 = vrot.lane.b32.xlu0 %v1369, 96
      %v2237 = vpop.permute.xlu0 %2236
      %v2238 = vsel %vm1416, %v2231, 0
      %v2240 = vsel %vm1416, %v2233, 0
      %v2242 = vsel %vm1416, %v2235, 0
      %v2244 = vsel %vm1416, %v2237, 0
      %2246 = vmatpush.xpose.msra.mxu0 0.0
      %2247 = vmatpush.xpose.msra.mxu0 0.0
      %2248 = vmatpush.xpose.msra.mxu0 0.0
      %2249 = vmatpush.xpose.msra.mxu0 0.0
      %2250 = vmatpush.xpose.msra.mxu0 0.0
      %2251 = vmatpush.xpose.msra.mxu0 0.0
      %2252 = vmatpush.xpose.msra.mxu0 0.0
      %2253 = vmatpush.xpose.msra.mxu0 0.0
      %2254 = vmatpush.xpose.msra.mxu0 0.0
      %2255 = vmatpush.xpose.msra.mxu0 0.0
      %2256 = vmatpush.xpose.msra.mxu0 0.0
      %2257 = vmatpush.xpose.msra.mxu0 0.0
      %2258 = vmatpush.xpose.msra.mxu0 %v2244
      %2259 = vmatpush.xpose.msra.mxu0 %v2242
      %2260 = vmatpush.xpose.msra.mxu0 %v2240
      %2261 = vmatpush.xpose.msra.mxu0 %v2238
      %2262 = vmatmul.f32.gmra.mxu0 %v2024
      %v2263 = vpop.f32.mrf.mxu0
      %v2264 = vadd.f32 %v2219, %v2263
      %2265 = vmatmul.f32.gmra.mxu0 %v2026
      %v2266 = vpop.f32.mrf.mxu0
      %v2267 = vadd.f32 %v2222, %v2266
      %2268 = vmatmul.f32.gmra.mxu0 %v2028
      %v2269 = vpop.f32.mrf.mxu0
      %v2270 = vadd.f32 %v2225, %v2269
      %2271 = vmatmul.f32.gmra.mxu0 %v2030
      %v2272 = vpop.f32.mrf.mxu0
      %v2273 = vadd.f32 %v2228, %v2272
      %2274 = vdwg.mxu0
      %v2275 = vadd.f32 %v2264, %v1066
      %v2276 = vadd.f32 %v2267, %v1067
      %v2277 = vadd.f32 %v2270, %v1068
      %v2278 = vadd.f32 %v2273, %v1069
      %v2279 = vsel %vm1416, %v2275, -inf
      %2280 = vmax.xlane.f32.xlu0 %v2279
      %v2281 = vpop.xlane.xlu0 %2280
      %v2282 = vsel %vm1416, %v2276, -inf
      %2283 = vmax.xlane.f32.xlu0 %v2282
      %v2284 = vpop.xlane.xlu0 %2283
      %v2285 = vsel %vm1416, %v2277, -inf
      %2286 = vmax.xlane.f32.xlu0 %v2285
      %v2287 = vpop.xlane.xlu0 %2286
      %v2288 = vsel %vm1416, %v2278, -inf
      %2289 = vmax.xlane.f32.xlu0 %v2288
      %v2290 = vpop.xlane.xlu0 %2289
      %v2291 = vsub.f32 %v2275, %v2281
      %v2292 = vsub.f32 %v2276, %v2284
      %v2293 = vsub.f32 %v2277, %v2287
      %v2294 = vsub.f32 %v2278, %v2290
      %v2295 = vmul.f32 %v2291, 1.442695
      %v2296 = vpow.pop %v2295
      %v2297 = vmul.f32 %v2292, 1.442695
      %v2298 = vpow.pop %v2297
      %v2299 = vmul.f32 %v2293, 1.442695
      %v2300 = vpow.pop %v2299
      %v2301 = vmul.f32 %v2294, 1.442695
      %v2302 = vpow.pop %v2301
      %v2303 = vsel %vm1416, %v2296, 0.0
      %2304 = vadd.xlane.f32.xlu0 %v2303
      %v2305 = vpop.xlane.xlu0 %2304
      %v2306 = vsel %vm1416, %v2298, 0.0
      %2307 = vadd.xlane.f32.xlu0 %v2306
      %v2308 = vpop.xlane.xlu0 %2307
      %v2309 = vsel %vm1416, %v2300, 0.0
      %2310 = vadd.xlane.f32.xlu0 %v2309
      %v2311 = vpop.xlane.xlu0 %2310
      %v2312 = vsel %vm1416, %v2302, 0.0
      %2313 = vadd.xlane.f32.xlu0 %v2312
      %v2314 = vpop.xlane.xlu0 %2313
      %v2315 = vrcp.pop %v2305
      %v2316 = vrcp.pop %v2308
      %v2317 = vrcp.pop %v2311
      %v2318 = vrcp.pop %v2314
      %v2319 = vmul.f32 %v2296, %v2315
      %v2320 = vmul.f32 %v2298, %v2316
      %v2321 = vmul.f32 %v2300, %v2317
      %v2322 = vmul.f32 %v2302, %v2318
      %v2324 = vsel %vm1416, %v2319, 0
      %v2327 = vsel %vm1416, %v2320, 0
      %v2330 = vsel %vm1416, %v2321, 0
      %v2333 = vsel %vm1416, %v2322, 0
      %2335 = vmatpush.msra.mxu0 0.0
      %2336 = vmatpush.msra.mxu0 0.0
      %2337 = vmatpush.msra.mxu0 0.0
      %2338 = vmatpush.msra.mxu0 0.0
      %2339 = vmatpush.msra.mxu0 0.0
      %2340 = vmatpush.msra.mxu0 0.0
      %2341 = vmatpush.msra.mxu0 0.0
      %2342 = vmatpush.msra.mxu0 0.0
      %2343 = vmatpush.msra.mxu0 0.0
      %2344 = vmatpush.msra.mxu0 0.0
      %2345 = vmatpush.msra.mxu0 0.0
      %2346 = vmatpush.msra.mxu0 0.0
      %2347 = vmatpush.msra.mxu0 %v1091
      %2348 = vmatpush.msra.mxu0 %v1088
      %2349 = vmatpush.msra.mxu0 %v1085
      %2350 = vmatpush.msra.mxu0 %v1082
      %2351 = vmatmul.f32.gmra.mxu0 %v2324
      %v2352 = vpop.f32.mrf.mxu0
      %v2353 = vadd.f32 0.0, %v2352
      %2354 = vmatmul.f32.gmra.mxu0 %v2327
      %v2355 = vpop.f32.mrf.mxu0
      %v2356 = vadd.f32 0.0, %v2355
      %2357 = vmatmul.f32.gmra.mxu0 %v2330
      %v2358 = vpop.f32.mrf.mxu0
      %v2359 = vadd.f32 0.0, %v2358
      %2360 = vmatmul.f32.gmra.mxu0 %v2333
      %v2361 = vpop.f32.mrf.mxu0
      %v2362 = vadd.f32 0.0, %v2361
      %2363 = vdwg.mxu0
      %2364 = vmatpush.msra.mxu0 0.0
      %2365 = vmatpush.msra.mxu0 0.0
      %2366 = vmatpush.msra.mxu0 0.0
      %2367 = vmatpush.msra.mxu0 0.0
      %2368 = vmatpush.msra.mxu0 0.0
      %2369 = vmatpush.msra.mxu0 0.0
      %2370 = vmatpush.msra.mxu0 0.0
      %2371 = vmatpush.msra.mxu0 0.0
      %2372 = vmatpush.msra.mxu0 0.0
      %2373 = vmatpush.msra.mxu0 0.0
      %2374 = vmatpush.msra.mxu0 0.0
      %2375 = vmatpush.msra.mxu0 0.0
      %2376 = vmatpush.msra.mxu0 %v1092
      %2377 = vmatpush.msra.mxu0 %v1089
      %2378 = vmatpush.msra.mxu0 %v1086
      %2379 = vmatpush.msra.mxu0 %v1083
      %2380 = vmatmul.f32.gmra.mxu0 %v2324
      %v2381 = vpop.f32.mrf.mxu0
      %v2382 = vadd.f32 0.0, %v2381
      %2383 = vmatmul.f32.gmra.mxu0 %v2327
      %v2384 = vpop.f32.mrf.mxu0
      %v2385 = vadd.f32 0.0, %v2384
      %2386 = vmatmul.f32.gmra.mxu0 %v2330
      %v2387 = vpop.f32.mrf.mxu0
      %v2388 = vadd.f32 0.0, %v2387
      %2389 = vmatmul.f32.gmra.mxu0 %v2333
      %v2390 = vpop.f32.mrf.mxu0
      %v2391 = vadd.f32 0.0, %v2390
      %2392 = vdwg.mxu0
      %2393 = vmatpush.msra.mxu0 0.0
      %2394 = vmatpush.msra.mxu0 0.0
      %2395 = vmatpush.msra.mxu0 0.0
      %2396 = vmatpush.msra.mxu0 0.0
      %2397 = vmatpush.msra.mxu0 0.0
      %2398 = vmatpush.msra.mxu0 0.0
      %2399 = vmatpush.msra.mxu0 0.0
      %2400 = vmatpush.msra.mxu0 0.0
      %2401 = vmatpush.msra.mxu0 0.0
      %2402 = vmatpush.msra.mxu0 0.0
      %2403 = vmatpush.msra.mxu0 0.0
      %2404 = vmatpush.msra.mxu0 0.0
      %2405 = vmatpush.msra.mxu0 %v1093
      %2406 = vmatpush.msra.mxu0 %v1090
      %2407 = vmatpush.msra.mxu0 %v1087
      %2408 = vmatpush.msra.mxu0 %v1084
      %2409 = vmatmul.f32.gmra.mxu0 %v2324
      %v2410 = vpop.f32.mrf.mxu0
      %v2411 = vadd.f32 0.0, %v2410
      %2412 = vmatmul.f32.gmra.mxu0 %v2327
      %v2413 = vpop.f32.mrf.mxu0
      %v2414 = vadd.f32 0.0, %v2413
      %2415 = vmatmul.f32.gmra.mxu0 %v2330
      %v2416 = vpop.f32.mrf.mxu0
      %v2417 = vadd.f32 0.0, %v2416
      %2418 = vmatmul.f32.gmra.mxu0 %v2333
      %v2419 = vpop.f32.mrf.mxu0
      %v2420 = vadd.f32 0.0, %v2419
      %2421 = vdwg.mxu0
      %v2422 = vmul.f32 %v2353, %v1070
      %v2423 = vmul.f32 %v2382, %v1071
      %v2424 = vmul.f32 %v2411, %v1072
      %v2425 = vmul.f32 %v2356, %v1073
      %v2426 = vmul.f32 %v2385, %v1074
      %v2427 = vmul.f32 %v2414, %v1075
      %v2428 = vmul.f32 %v2359, %v1076
      %v2429 = vmul.f32 %v2388, %v1077
      %v2430 = vmul.f32 %v2417, %v1078
      %v2431 = vmul.f32 %v2362, %v1079
      %v2432 = vmul.f32 %v2391, %v1080
      %v2433 = vmul.f32 %v2420, %v1081
      %v2435 = vsel %vm1416, %v2424, 0
      %v2438 = vsel %vm1416, %v2427, 0
      %v2441 = vsel %vm1416, %v2430, 0
      %v2444 = vsel %vm1416, %v2433, 0
      %2446 = vmatpush.xpose.msra.mxu0 0.0
      %2447 = vmatpush.xpose.msra.mxu0 0.0
      %2448 = vmatpush.xpose.msra.mxu0 0.0
      %2449 = vmatpush.xpose.msra.mxu0 0.0
      %2450 = vmatpush.xpose.msra.mxu0 0.0
      %2451 = vmatpush.xpose.msra.mxu0 0.0
      %2452 = vmatpush.xpose.msra.mxu0 0.0
      %2453 = vmatpush.xpose.msra.mxu0 0.0
      %2454 = vmatpush.xpose.msra.mxu0 0.0
      %2455 = vmatpush.xpose.msra.mxu0 0.0
      %2456 = vmatpush.xpose.msra.mxu0 0.0
      %2457 = vmatpush.xpose.msra.mxu0 0.0
      %2458 = vmatpush.xpose.msra.mxu0 0.0
      %2459 = vmatpush.xpose.msra.mxu0 0.0
      %2460 = vmatpush.xpose.msra.mxu0 %v1097
      %2461 = vmatpush.xpose.msra.mxu0 %v1094
      %2462 = vmatmul.f32.gmra.mxu0 %v2422
      %v2463 = vpop.f32.mrf.mxu0
      %v2464 = vadd.f32 0.0, %v2463
      %2465 = vmatmul.f32.gmra.mxu0 %v2425
      %v2466 = vpop.f32.mrf.mxu0
      %v2467 = vadd.f32 0.0, %v2466
      %2468 = vmatmul.f32.gmra.mxu0 %v2428
      %v2469 = vpop.f32.mrf.mxu0
      %v2470 = vadd.f32 0.0, %v2469
      %2471 = vmatmul.f32.gmra.mxu0 %v2431
      %v2472 = vpop.f32.mrf.mxu0
      %v2473 = vadd.f32 0.0, %v2472
      %2474 = vdwg.mxu0
      %2475 = vmatpush.xpose.msra.mxu0 0.0
      %2476 = vmatpush.xpose.msra.mxu0 0.0
      %2477 = vmatpush.xpose.msra.mxu0 0.0
      %2478 = vmatpush.xpose.msra.mxu0 0.0
      %2479 = vmatpush.xpose.msra.mxu0 0.0
      %2480 = vmatpush.xpose.msra.mxu0 0.0
      %2481 = vmatpush.xpose.msra.mxu0 0.0
      %2482 = vmatpush.xpose.msra.mxu0 0.0
      %2483 = vmatpush.xpose.msra.mxu0 0.0
      %2484 = vmatpush.xpose.msra.mxu0 0.0
      %2485 = vmatpush.xpose.msra.mxu0 0.0
      %2486 = vmatpush.xpose.msra.mxu0 0.0
      %2487 = vmatpush.xpose.msra.mxu0 0.0
      %2488 = vmatpush.xpose.msra.mxu0 0.0
      %2489 = vmatpush.xpose.msra.mxu0 %v1098
      %2490 = vmatpush.xpose.msra.mxu0 %v1095
      %2491 = vmatmul.f32.gmra.mxu0 %v2423
      %v2492 = vpop.f32.mrf.mxu0
      %v2493 = vadd.f32 %v2464, %v2492
      %2494 = vmatmul.f32.gmra.mxu0 %v2426
      %v2495 = vpop.f32.mrf.mxu0
      %v2496 = vadd.f32 %v2467, %v2495
      %2497 = vmatmul.f32.gmra.mxu0 %v2429
      %v2498 = vpop.f32.mrf.mxu0
      %v2499 = vadd.f32 %v2470, %v2498
      %2500 = vmatmul.f32.gmra.mxu0 %v2432
      %v2501 = vpop.f32.mrf.mxu0
      %v2502 = vadd.f32 %v2473, %v2501
      %2503 = vdwg.mxu0
      %2504 = vmatpush.xpose.msra.mxu0 0.0
      %2505 = vmatpush.xpose.msra.mxu0 0.0
      %2506 = vmatpush.xpose.msra.mxu0 0.0
      %2507 = vmatpush.xpose.msra.mxu0 0.0
      %2508 = vmatpush.xpose.msra.mxu0 0.0
      %2509 = vmatpush.xpose.msra.mxu0 0.0
      %2510 = vmatpush.xpose.msra.mxu0 0.0
      %2511 = vmatpush.xpose.msra.mxu0 0.0
      %2512 = vmatpush.xpose.msra.mxu0 0.0
      %2513 = vmatpush.xpose.msra.mxu0 0.0
      %2514 = vmatpush.xpose.msra.mxu0 0.0
      %2515 = vmatpush.xpose.msra.mxu0 0.0
      %2516 = vmatpush.xpose.msra.mxu0 0.0
      %2517 = vmatpush.xpose.msra.mxu0 0.0
      %2518 = vmatpush.xpose.msra.mxu0 %v1854
      %2519 = vmatpush.xpose.msra.mxu0 %v1852
      %2520 = vmatmul.f32.gmra.mxu0 %v2435
      %v2521 = vpop.f32.mrf.mxu0
      %v2522 = vadd.f32 %v2493, %v2521
      %2523 = vmatmul.f32.gmra.mxu0 %v2438
      %v2524 = vpop.f32.mrf.mxu0
      %v2525 = vadd.f32 %v2496, %v2524
      %2526 = vmatmul.f32.gmra.mxu0 %v2441
      %v2527 = vpop.f32.mrf.mxu0
      %v2528 = vadd.f32 %v2499, %v2527
      %2529 = vmatmul.f32.gmra.mxu0 %v2444
      %v2530 = vpop.f32.mrf.mxu0
      %v2531 = vadd.f32 %v2502, %v2530
      %2532 = vdwg.mxu0
      %v2534 = vsel %vm1166, %v2522, 0
      %v2537 = vsel %vm1166, %v2525, 0
      %v2540 = vsel %vm1166, %v2528, 0
      %v2543 = vsel %vm1166, %v2531, 0
      %2545 = vmatpush.msra.mxu0 0.0
      %2546 = vmatpush.msra.mxu0 0.0
      %2547 = vmatpush.msra.mxu0 0.0
      %2548 = vmatpush.msra.mxu0 0.0
      %2549 = vmatpush.msra.mxu0 0.0
      %2550 = vmatpush.msra.mxu0 0.0
      %2551 = vmatpush.msra.mxu0 0.0
      %2552 = vmatpush.msra.mxu0 0.0
      %2553 = vmatpush.msra.mxu0 0.0
      %2554 = vmatpush.msra.mxu0 0.0
      %2555 = vmatpush.msra.mxu0 0.0
      %2556 = vmatpush.msra.mxu0 0.0
      %2557 = vmatpush.msra.mxu0 0.0
      %2558 = vmatpush.msra.mxu0 0.0
      %2559 = vmatpush.msra.mxu0 %v1956
      %2560 = vmatpush.msra.mxu0 %v1160
      %2561 = vmatmul.f32.gmra.mxu0 %v2534
      %v2562 = vpop.f32.mrf.mxu0
      %v2563 = vadd.f32 0.0, %v2562
      %2564 = vmatmul.f32.gmra.mxu0 %v2537
      %v2565 = vpop.f32.mrf.mxu0
      %v2566 = vadd.f32 0.0, %v2565
      %2567 = vmatmul.f32.gmra.mxu0 %v2540
      %v2568 = vpop.f32.mrf.mxu0
      %v2569 = vadd.f32 0.0, %v2568
      %2570 = vmatmul.f32.gmra.mxu0 %v2543
      %v2571 = vpop.f32.mrf.mxu0
      %v2572 = vadd.f32 0.0, %v2571
      %2573 = vdwg.mxu0
      %2578 = vrot.lane.b32.xlu0 %v1401, 96
      %v2579 = vpop.permute.xlu0 %2578
      %2580 = vrot.lane.b32.xlu0 %v1404, 96
      %v2581 = vpop.permute.xlu0 %2580
      %2582 = vrot.lane.b32.xlu0 %v1407, 96
      %v2583 = vpop.permute.xlu0 %2582
      %2584 = vrot.lane.b32.xlu0 %v1410, 96
      %v2585 = vpop.permute.xlu0 %2584
      %2590 = vmatpush.msra.mxu0 0.0
      %2591 = vmatpush.msra.mxu0 0.0
      %2592 = vmatpush.msra.mxu0 0.0
      %2593 = vmatpush.msra.mxu0 0.0
      %2594 = vmatpush.msra.mxu0 0.0
      %2595 = vmatpush.msra.mxu0 0.0
      %2596 = vmatpush.msra.mxu0 0.0
      %2597 = vmatpush.msra.mxu0 0.0
      %2598 = vmatpush.msra.mxu0 0.0
      %2599 = vmatpush.msra.mxu0 0.0
      %2600 = vmatpush.msra.mxu0 0.0
      %2601 = vmatpush.msra.mxu0 0.0
      %2602 = vmatpush.msra.mxu0 %v2585
      %2603 = vmatpush.msra.mxu0 %v2583
      %2604 = vmatpush.msra.mxu0 %v2581
      %2605 = vmatpush.msra.mxu0 %v2579
      %2606 = vmatmul.f32.gmra.mxu0 %v2324
      %v2607 = vpop.f32.mrf.mxu0
      %v2608 = vadd.f32 %v2563, %v2607
      %2609 = vmatmul.f32.gmra.mxu0 %v2327
      %v2610 = vpop.f32.mrf.mxu0
      %v2611 = vadd.f32 %v2566, %v2610
      %2612 = vmatmul.f32.gmra.mxu0 %v2330
      %v2613 = vpop.f32.mrf.mxu0
      %v2614 = vadd.f32 %v2569, %v2613
      %2615 = vmatmul.f32.gmra.mxu0 %v2333
      %v2616 = vpop.f32.mrf.mxu0
      %v2617 = vadd.f32 %v2572, %v2616
      %2618 = vdwg.mxu0
      %2623 = vrot.lane.b32.xlu0 %v2608, 32
      %v2624 = vpop.permute.xlu0 %2623
      %2625 = vrot.lane.b32.xlu0 %v2611, 32
      %v2626 = vpop.permute.xlu0 %2625
      %2627 = vrot.lane.b32.xlu0 %v2614, 32
      %v2628 = vpop.permute.xlu0 %2627
      %2629 = vrot.lane.b32.xlu0 %v2617, 32
      %v2630 = vpop.permute.xlu0 %2629
      %v2635 = vsel %vm1416, %v2005, %v2624
      %v2636 = vsel %vm1416, %v2008, %v2626
      %v2637 = vsel %vm1416, %v2011, %v2628
      %v2638 = vsel %vm1416, %v2014, %v2630
      %v2639 = vld [vmem:[%s33] sm:$0xff]
      %v2640 = vld [vmem:[%s33 + $0x8] sm:$0xff]
      %v2641 = vld [vmem:[%s33 + $0x10] sm:$0xff]
      %v2642 = vld [vmem:[%s33 + $0x18] sm:$0xff]
      %v2643 = vld [vmem:[%s33 + $0x20] sm:$0xff]
      %v2644 = vld [vmem:[%s33 + $0x28] sm:$0xff]
      %v2645 = vld [vmem:[%s33 + $0x30] sm:$0xff]
      %v2646 = vld [vmem:[%s33 + $0x38] sm:$0xff]
      %v2647 = vld [vmem:[%s35] sm:$0x1]
      %v2649 = vperm.slane %v2647, 0
      %v2652 = vsel %vm1288, %v2635, 0
      %v2655 = vsel %vm1288, %v2636, 0
      %v2658 = vsel %vm1288, %v2637, 0
      %v2661 = vsel %vm1288, %v2638, 0
      %2663 = vmatpush.msra.mxu0 0.0
      %2664 = vmatpush.msra.mxu0 0.0
      %2665 = vmatpush.msra.mxu0 0.0
      %2666 = vmatpush.msra.mxu0 0.0
      %2667 = vmatpush.msra.mxu0 0.0
      %2668 = vmatpush.msra.mxu0 0.0
      %2669 = vmatpush.msra.mxu0 0.0
      %2670 = vmatpush.msra.mxu0 0.0
      %2671 = vmatpush.msra.mxu0 %v2646
      %2672 = vmatpush.msra.mxu0 %v2645
      %2673 = vmatpush.msra.mxu0 %v2644
      %2674 = vmatpush.msra.mxu0 %v2643
      %2675 = vmatpush.msra.mxu0 %v2642
      %2676 = vmatpush.msra.mxu0 %v2641
      %2677 = vmatpush.msra.mxu0 %v2640
      %2678 = vmatpush.msra.mxu0 %v2639
      %2679 = vmatmul.f32.gmra.mxu0 %v2652
      %v2680 = vpop.f32.mrf.mxu0
      %v2681 = vadd.f32 %v2649, %v2680
      %2682 = vmatmul.f32.gmra.mxu0 %v2655
      %v2683 = vpop.f32.mrf.mxu0
      %v2684 = vadd.f32 %v2649, %v2683
      %2685 = vmatmul.f32.gmra.mxu0 %v2658
      %v2686 = vpop.f32.mrf.mxu0
      %v2687 = vadd.f32 %v2649, %v2686
      %2688 = vmatmul.f32.gmra.mxu0 %v2661
      %v2689 = vpop.f32.mrf.mxu0
      %v2690 = vadd.f32 %v2649, %v2689
      %2691 = vdwg.mxu0
      %v2692 = vadd.f32 %v1156, %v2681
      %v2693 = vadd.f32 %v1157, %v2684
      %v2694 = vadd.f32 %v1158, %v2687
      %v2695 = vadd.f32 %v1159, %v2690
      %v2696 = vld [vmem:[%s41] sm:$0x1]
      %v2697 = vld [vmem:[%s43] sm:$0x1]
      %v2698 = vsel %vm1288, %v2692, 0.0
      %2699 = vadd.xlane.f32.xlu0 %v2698
      %v2700 = vpop.xlane.xlu0 %2699
      %v2701 = vsel %vm1288, %v2693, 0.0
      %2702 = vadd.xlane.f32.xlu0 %v2701
      %v2703 = vpop.xlane.xlu0 %2702
      %v2704 = vsel %vm1288, %v2694, 0.0
      %2705 = vadd.xlane.f32.xlu0 %v2704
      %v2706 = vpop.xlane.xlu0 %2705
      %v2707 = vsel %vm1288, %v2695, 0.0
      %2708 = vadd.xlane.f32.xlu0 %v2707
      %v2709 = vpop.xlane.xlu0 %2708
      %v2710 = vrcp.pop 64.0
      %v2711 = vmul.f32 64.0, %v2710
      %v2712 = vsub.f32 1.0, %v2711
      %v2713 = vmul.f32 %v2710, %v2712
      %v2714 = vadd.f32 %v2710, %v2713
      %vm2715 = vweird.f32 %v2710
      %v2716 = vsel %vm2715, %v2710, %v2714
      %v2717 = vmul.f32 %v2700, %v2716
      %v2718 = vmul.f32 %v2703, %v2716
      %v2719 = vmul.f32 %v2706, %v2716
      %v2720 = vmul.f32 %v2709, %v2716
      %v2721 = vsub.f32 %v2692, %v2717
      %v2722 = vsub.f32 %v2693, %v2718
      %v2723 = vsub.f32 %v2694, %v2719
      %v2724 = vsub.f32 %v2695, %v2720
      %v2725 = vmul.f32 %v2721, %v2721
      %v2726 = vmul.f32 %v2722, %v2722
      %v2727 = vmul.f32 %v2723, %v2723
      %v2728 = vmul.f32 %v2724, %v2724
      %v2729 = vsel %vm1288, %v2725, 0.0
      %2730 = vadd.xlane.f32.xlu0 %v2729
      %v2731 = vpop.xlane.xlu0 %2730
      %v2732 = vsel %vm1288, %v2726, 0.0
      %2733 = vadd.xlane.f32.xlu0 %v2732
      %v2734 = vpop.xlane.xlu0 %2733
      %v2735 = vsel %vm1288, %v2727, 0.0
      %2736 = vadd.xlane.f32.xlu0 %v2735
      %v2737 = vpop.xlane.xlu0 %2736
      %v2738 = vsel %vm1288, %v2728, 0.0
      %2739 = vadd.xlane.f32.xlu0 %v2738
      %v2740 = vpop.xlane.xlu0 %2739
      %v2741 = vmul.f32 %v2731, %v2716
      %v2742 = vmul.f32 %v2734, %v2716
      %v2743 = vmul.f32 %v2737, %v2716
      %v2744 = vmul.f32 %v2740, %v2716
      %v2745 = vadd.f32 %v2741, 1e-05
      %v2746 = vadd.f32 %v2742, 1e-05
      %v2747 = vadd.f32 %v2743, 1e-05
      %v2748 = vadd.f32 %v2744, 1e-05
      %v2749 = vrsqrt.pop %v2745
      %v2750 = vmul.f32 %v2749, %v2745
      %v2751 = vmul.f32 %v2750, %v2749
      %v2752 = vmul.f32 0.5, %v2751
      %v2753 = vsub.f32 1.5, %v2752
      %v2754 = vmul.f32 %v2749, %v2753
      %vm2755 = vweird.f32 %v2745
      %vm2756 = vweird.f32 %v2749
      %vm2757 = vmor %vm2755, %vm2756
      %v2758 = vsel %vm2757, %v2749, %v2754
      %v2759 = vrsqrt.pop %v2746
      %v2760 = vmul.f32 %v2759, %v2746
      %v2761 = vmul.f32 %v2760, %v2759
      %v2762 = vmul.f32 0.5, %v2761
      %v2763 = vsub.f32 1.5, %v2762
      %v2764 = vmul.f32 %v2759, %v2763
      %vm2765 = vweird.f32 %v2746
      %vm2766 = vweird.f32 %v2759
      %vm2767 = vmor %vm2765, %vm2766
      %v2768 = vsel %vm2767, %v2759, %v2764
      %v2769 = vrsqrt.pop %v2747
      %v2770 = vmul.f32 %v2769, %v2747
      %v2771 = vmul.f32 %v2770, %v2769
      %v2772 = vmul.f32 0.5, %v2771
      %v2773 = vsub.f32 1.5, %v2772
      %v2774 = vmul.f32 %v2769, %v2773
      %vm2775 = vweird.f32 %v2747
      %vm2776 = vweird.f32 %v2769
      %vm2777 = vmor %vm2775, %vm2776
      %v2778 = vsel %vm2777, %v2769, %v2774
      %v2779 = vrsqrt.pop %v2748
      %v2780 = vmul.f32 %v2779, %v2748
      %v2781 = vmul.f32 %v2780, %v2779
      %v2782 = vmul.f32 0.5, %v2781
      %v2783 = vsub.f32 1.5, %v2782
      %v2784 = vmul.f32 %v2779, %v2783
      %vm2785 = vweird.f32 %v2748
      %vm2786 = vweird.f32 %v2779
      %vm2787 = vmor %vm2785, %vm2786
      %v2788 = vsel %vm2787, %v2779, %v2784
      %v2789 = vmul.f32 %v2721, %v2758
      %v2790 = vmul.f32 %v2722, %v2768
      %v2791 = vmul.f32 %v2723, %v2778
      %v2792 = vmul.f32 %v2724, %v2788
      %v2794 = vperm.slane %v2696, 0
      %v2796 = vmul.f32 %v2789, %v2794
      %v2797 = vmul.f32 %v2790, %v2794
      %v2798 = vmul.f32 %v2791, %v2794
      %v2799 = vmul.f32 %v2792, %v2794
      %v2801 = vperm.slane %v2697, 0
      %v2803 = vadd.f32 %v2796, %v2801
      %v2804 = vadd.f32 %v2797, %v2801
      %v2805 = vadd.f32 %v2798, %v2801
      %v2806 = vadd.f32 %v2799, %v2801
      %v2807 = vmul.f32 %v2803, %v1038
      %v2808 = vmul.f32 %v2804, %v1043
      %v2809 = vmul.f32 %v2805, %v1048
      %v2810 = vmul.f32 %v2806, %v1053
      %v2812 = vsel %vm1416, %v1100, 0
      %v2815 = vsel %vm1416, %v1101, 0
      %v2818 = vsel %vm1416, %v1102, 0
      %v2821 = vsel %vm1416, %v1103, 0
      %2823 = vmatpush.msra.mxu0 0.0
      %2824 = vmatpush.msra.mxu0 0.0
      %2825 = vmatpush.msra.mxu0 0.0
      %2826 = vmatpush.msra.mxu0 0.0
      %2827 = vmatpush.msra.mxu0 0.0
      %2828 = vmatpush.msra.mxu0 0.0
      %2829 = vmatpush.msra.mxu0 0.0
      %2830 = vmatpush.msra.mxu0 0.0
      %2831 = vmatpush.msra.mxu0 0.0
      %2832 = vmatpush.msra.mxu0 0.0
      %2833 = vmatpush.msra.mxu0 0.0
      %2834 = vmatpush.msra.mxu0 0.0
      %2835 = vmatpush.msra.mxu0 %v2810
      %2836 = vmatpush.msra.mxu0 %v2809
      %2837 = vmatpush.msra.mxu0 %v2808
      %2838 = vmatpush.msra.mxu0 %v2807
      %2839 = vmatmul.f32.gmra.mxu0 %v2812
      %v2840 = vpop.f32.mrf.mxu0
      %v2841 = vadd.f32 0.0, %v2840
      %2842 = vmatmul.f32.gmra.mxu0 %v2815
      %v2843 = vpop.f32.mrf.mxu0
      %v2844 = vadd.f32 0.0, %v2843
      %2845 = vmatmul.f32.gmra.mxu0 %v2818
      %v2846 = vpop.f32.mrf.mxu0
      %v2847 = vadd.f32 0.0, %v2846
      %2848 = vmatmul.f32.gmra.mxu0 %v2821
      %v2849 = vpop.f32.mrf.mxu0
      %v2850 = vadd.f32 0.0, %v2849
      %2851 = vdwg.mxu0
      %v2853 = vsel %vm1416, %v1105, 0
      %v2856 = vsel %vm1416, %v1106, 0
      %v2859 = vsel %vm1416, %v1107, 0
      %v2862 = vsel %vm1416, %v1108, 0
      %2864 = vmatpush.msra.mxu0 0.0
      %2865 = vmatpush.msra.mxu0 0.0
      %2866 = vmatpush.msra.mxu0 0.0
      %2867 = vmatpush.msra.mxu0 0.0
      %2868 = vmatpush.msra.mxu0 0.0
      %2869 = vmatpush.msra.mxu0 0.0
      %2870 = vmatpush.msra.mxu0 0.0
      %2871 = vmatpush.msra.mxu0 0.0
      %2872 = vmatpush.msra.mxu0 0.0
      %2873 = vmatpush.msra.mxu0 0.0
      %2874 = vmatpush.msra.mxu0 0.0
      %2875 = vmatpush.msra.mxu0 0.0
      %2876 = vmatpush.msra.mxu0 %v2810
      %2877 = vmatpush.msra.mxu0 %v2809
      %2878 = vmatpush.msra.mxu0 %v2808
      %2879 = vmatpush.msra.mxu0 %v2807
      %2880 = vmatmul.f32.gmra.mxu0 %v2853
      %v2881 = vpop.f32.mrf.mxu0
      %v2882 = vadd.f32 0.0, %v2881
      %2883 = vmatmul.f32.gmra.mxu0 %v2856
      %v2884 = vpop.f32.mrf.mxu0
      %v2885 = vadd.f32 0.0, %v2884
      %2886 = vmatmul.f32.gmra.mxu0 %v2859
      %v2887 = vpop.f32.mrf.mxu0
      %v2888 = vadd.f32 0.0, %v2887
      %2889 = vmatmul.f32.gmra.mxu0 %v2862
      %v2890 = vpop.f32.mrf.mxu0
      %v2891 = vadd.f32 0.0, %v2890
      %2892 = vdwg.mxu0
      %2897 = vrot.lane.b32.xlu0 %v2807, 64
      %v2898 = vpop.permute.xlu0 %2897
      %2899 = vrot.lane.b32.xlu0 %v2808, 64
      %v2900 = vpop.permute.xlu0 %2899
      %2901 = vrot.lane.b32.xlu0 %v2809, 64
      %v2902 = vpop.permute.xlu0 %2901
      %2903 = vrot.lane.b32.xlu0 %v2810, 64
      %v2904 = vpop.permute.xlu0 %2903
      %v2909 = vsel %vm1288, %v2841, %v2898
      %v2910 = vsel %vm1288, %v2844, %v2900
      %v2911 = vsel %vm1288, %v2847, %v2902
      %v2912 = vsel %vm1288, %v2850, %v2904
      %v2913 = vld [vmem:[%s45] sm:$0xff]
      %v2914 = vld [vmem:[%s45 + $0x8] sm:$0xff]
      %v2915 = vld [vmem:[%s45 + $0x10] sm:$0xff]
      %v2916 = vld [vmem:[%s45 + $0x18] sm:$0xff]
      %v2917 = vld [vmem:[%s45 + $0x20] sm:$0xff]
      %v2918 = vld [vmem:[%s45 + $0x28] sm:$0xff]
      %v2919 = vld [vmem:[%s45 + $0x30] sm:$0xff]
      %v2920 = vld [vmem:[%s45 + $0x38] sm:$0xff]
      %v2921 = vld [vmem:[%s45 + $0x40] sm:$0xff]
      %v2922 = vld [vmem:[%s45 + $0x48] sm:$0xff]
      %v2923 = vld [vmem:[%s45 + $0x50] sm:$0xff]
      %v2924 = vld [vmem:[%s45 + $0x58] sm:$0xff]
      %v2925 = vld [vmem:[%s45 + $0x60] sm:$0xff]
      %v2926 = vld [vmem:[%s45 + $0x68] sm:$0xff]
      %v2927 = vld [vmem:[%s45 + $0x70] sm:$0xff]
      %v2928 = vld [vmem:[%s45 + $0x78] sm:$0xff]
      %v2929 = vld [vmem:[%s45 + $0x80] sm:$0xff]
      %v2930 = vld [vmem:[%s45 + $0x88] sm:$0xff]
      %v2931 = vld [vmem:[%s45 + $0x90] sm:$0xff]
      %v2932 = vld [vmem:[%s45 + $0x98] sm:$0xff]
      %v2933 = vld [vmem:[%s45 + $0xa0] sm:$0xff]
      %v2934 = vld [vmem:[%s45 + $0xa8] sm:$0xff]
      %v2935 = vld [vmem:[%s45 + $0xb0] sm:$0xff]
      %v2936 = vld [vmem:[%s45 + $0xb8] sm:$0xff]
      %v2937 = vld [vmem:[%s47] sm:$0x1]
      %v2939 = vperm.slane %v2937, 0
      %v2942 = vsel %vm1288, %v2882, 0
      %v2945 = vsel %vm1288, %v2885, 0
      %v2948 = vsel %vm1288, %v2888, 0
      %v2951 = vsel %vm1288, %v2891, 0
      %2953 = vmatpush.msra.mxu0 %v2928
      %2954 = vmatpush.msra.mxu0 %v2927
      %2955 = vmatpush.msra.mxu0 %v2926
      %2956 = vmatpush.msra.mxu0 %v2925
      %2957 = vmatpush.msra.mxu0 %v2924
      %2958 = vmatpush.msra.mxu0 %v2923
      %2959 = vmatpush.msra.mxu0 %v2922
      %2960 = vmatpush.msra.mxu0 %v2921
      %2961 = vmatpush.msra.mxu0 %v2920
      %2962 = vmatpush.msra.mxu0 %v2919
      %2963 = vmatpush.msra.mxu0 %v2918
      %2964 = vmatpush.msra.mxu0 %v2917
      %2965 = vmatpush.msra.mxu0 %v2916
      %2966 = vmatpush.msra.mxu0 %v2915
      %2967 = vmatpush.msra.mxu0 %v2914
      %2968 = vmatpush.msra.mxu0 %v2913
      %2969 = vmatmul.f32.gmra.mxu0 %v2909
      %v2970 = vpop.f32.mrf.mxu0
      %v2971 = vadd.f32 %v2939, %v2970
      %2972 = vmatmul.f32.gmra.mxu0 %v2910
      %v2973 = vpop.f32.mrf.mxu0
      %v2974 = vadd.f32 %v2939, %v2973
      %2975 = vmatmul.f32.gmra.mxu0 %v2911
      %v2976 = vpop.f32.mrf.mxu0
      %v2977 = vadd.f32 %v2939, %v2976
      %2978 = vmatmul.f32.gmra.mxu0 %v2912
      %v2979 = vpop.f32.mrf.mxu0
      %v2980 = vadd.f32 %v2939, %v2979
      %2981 = vdwg.mxu0
      %2982 = vmatpush.msra.mxu0 0.0
      %2983 = vmatpush.msra.mxu0 0.0
      %2984 = vmatpush.msra.mxu0 0.0
      %2985 = vmatpush.msra.mxu0 0.0
      %2986 = vmatpush.msra.mxu0 0.0
      %2987 = vmatpush.msra.mxu0 0.0
      %2988 = vmatpush.msra.mxu0 0.0
      %2989 = vmatpush.msra.mxu0 0.0
      %2990 = vmatpush.msra.mxu0 %v2936
      %2991 = vmatpush.msra.mxu0 %v2935
      %2992 = vmatpush.msra.mxu0 %v2934
      %2993 = vmatpush.msra.mxu0 %v2933
      %2994 = vmatpush.msra.mxu0 %v2932
      %2995 = vmatpush.msra.mxu0 %v2931
      %2996 = vmatpush.msra.mxu0 %v2930
      %2997 = vmatpush.msra.mxu0 %v2929
      %2998 = vmatmul.f32.gmra.mxu0 %v2942
      %v2999 = vpop.f32.mrf.mxu0
      %v3000 = vadd.f32 %v2971, %v2999
      %3001 = vmatmul.f32.gmra.mxu0 %v2945
      %v3002 = vpop.f32.mrf.mxu0
      %v3003 = vadd.f32 %v2974, %v3002
      %3004 = vmatmul.f32.gmra.mxu0 %v2948
      %v3005 = vpop.f32.mrf.mxu0
      %v3006 = vadd.f32 %v2977, %v3005
      %3007 = vmatmul.f32.gmra.mxu0 %v2951
      %v3008 = vpop.f32.mrf.mxu0
      %v3009 = vadd.f32 %v2980, %v3008
      %3010 = vdwg.mxu0
      %v3011 = vmax.f32 %v3000, 0.0
      %v3012 = vmax.f32 %v3003, 0.0
      %v3013 = vmax.f32 %v3006, 0.0
      %v3014 = vmax.f32 %v3009, 0.0
      %v3015 = vmul.f32 %v3011, %v1038
      %v3016 = vmul.f32 %v3012, %v1043
      %v3017 = vmul.f32 %v3013, %v1048
      %v3018 = vmul.f32 %v3014, %v1053
      %3019 = vmatpush.msra.mxu0 0.0
      %3020 = vmatpush.msra.mxu0 0.0
      %3021 = vmatpush.msra.mxu0 0.0
      %3022 = vmatpush.msra.mxu0 0.0
      %3023 = vmatpush.msra.mxu0 0.0
      %3024 = vmatpush.msra.mxu0 0.0
      %3025 = vmatpush.msra.mxu0 0.0
      %3026 = vmatpush.msra.mxu0 0.0
      %3027 = vmatpush.msra.mxu0 0.0
      %3028 = vmatpush.msra.mxu0 0.0
      %3029 = vmatpush.msra.mxu0 0.0
      %3030 = vmatpush.msra.mxu0 0.0
      %3031 = vmatpush.msra.mxu0 %v3018
      %3032 = vmatpush.msra.mxu0 %v3017
      %3033 = vmatpush.msra.mxu0 %v3016
      %3034 = vmatpush.msra.mxu0 %v3015
      %3035 = vmatmul.f32.gmra.mxu0 %v2812
      %v3036 = vpop.f32.mrf.mxu0
      %v3037 = vadd.f32 0.0, %v3036
      %3038 = vmatmul.f32.gmra.mxu0 %v2815
      %v3039 = vpop.f32.mrf.mxu0
      %v3040 = vadd.f32 0.0, %v3039
      %3041 = vmatmul.f32.gmra.mxu0 %v2818
      %v3042 = vpop.f32.mrf.mxu0
      %v3043 = vadd.f32 0.0, %v3042
      %3044 = vmatmul.f32.gmra.mxu0 %v2821
      %v3045 = vpop.f32.mrf.mxu0
      %v3046 = vadd.f32 0.0, %v3045
      %3047 = vdwg.mxu0
      %3048 = vmatpush.msra.mxu0 0.0
      %3049 = vmatpush.msra.mxu0 0.0
      %3050 = vmatpush.msra.mxu0 0.0
      %3051 = vmatpush.msra.mxu0 0.0
      %3052 = vmatpush.msra.mxu0 0.0
      %3053 = vmatpush.msra.mxu0 0.0
      %3054 = vmatpush.msra.mxu0 0.0
      %3055 = vmatpush.msra.mxu0 0.0
      %3056 = vmatpush.msra.mxu0 0.0
      %3057 = vmatpush.msra.mxu0 0.0
      %3058 = vmatpush.msra.mxu0 0.0
      %3059 = vmatpush.msra.mxu0 0.0
      %3060 = vmatpush.msra.mxu0 %v3018
      %3061 = vmatpush.msra.mxu0 %v3017
      %3062 = vmatpush.msra.mxu0 %v3016
      %3063 = vmatpush.msra.mxu0 %v3015
      %3064 = vmatmul.f32.gmra.mxu0 %v2853
      %v3065 = vpop.f32.mrf.mxu0
      %v3066 = vadd.f32 0.0, %v3065
      %3067 = vmatmul.f32.gmra.mxu0 %v2856
      %v3068 = vpop.f32.mrf.mxu0
      %v3069 = vadd.f32 0.0, %v3068
      %3070 = vmatmul.f32.gmra.mxu0 %v2859
      %v3071 = vpop.f32.mrf.mxu0
      %v3072 = vadd.f32 0.0, %v3071
      %3073 = vmatmul.f32.gmra.mxu0 %v2862
      %v3074 = vpop.f32.mrf.mxu0
      %v3075 = vadd.f32 0.0, %v3074
      %3076 = vdwg.mxu0
      %v3077 = vld [vmem:[%s49] sm:$0xff]
      %v3078 = vld [vmem:[%s49 + $0x8] sm:$0xff]
      %v3079 = vld [vmem:[%s49 + $0x10] sm:$0xff]
      %v3080 = vld [vmem:[%s49 + $0x18] sm:$0xff]
      %v3081 = vld [vmem:[%s49 + $0x20] sm:$0xff]
      %v3082 = vld [vmem:[%s49 + $0x28] sm:$0xff]
      %v3083 = vld [vmem:[%s49 + $0x30] sm:$0xff]
      %v3084 = vld [vmem:[%s49 + $0x38] sm:$0xff]
      %v3085 = vld [vmem:[%s49 + $0x40] sm:$0xff]
      %v3086 = vld [vmem:[%s49 + $0x48] sm:$0xff]
      %v3087 = vld [vmem:[%s49 + $0x50] sm:$0xff]
      %v3088 = vld [vmem:[%s49 + $0x58] sm:$0xff]
      %v3089 = vld [vmem:[%s49 + $0x60] sm:$0xff]
      %v3090 = vld [vmem:[%s49 + $0x68] sm:$0xff]
      %v3091 = vld [vmem:[%s49 + $0x70] sm:$0xff]
      %v3092 = vld [vmem:[%s49 + $0x78] sm:$0xff]
      %v3093 = vld [vmem:[%s49 + $0x80] sm:$0xff]
      %v3094 = vld [vmem:[%s49 + $0x88] sm:$0xff]
      %v3095 = vld [vmem:[%s49 + $0x90] sm:$0xff]
      %v3096 = vld [vmem:[%s49 + $0x98] sm:$0xff]
      %v3097 = vld [vmem:[%s49 + $0xa0] sm:$0xff]
      %v3098 = vld [vmem:[%s49 + $0xa8] sm:$0xff]
      %v3099 = vld [vmem:[%s49 + $0xb0] sm:$0xff]
      %v3100 = vld [vmem:[%s49 + $0xb8] sm:$0xff]
      %v3101 = vld [vmem:[%s49 + $0xc0] sm:$0xff]
      %v3102 = vld [vmem:[%s49 + $0xc8] sm:$0xff]
      %v3103 = vld [vmem:[%s49 + $0xd0] sm:$0xff]
      %v3104 = vld [vmem:[%s49 + $0xd8] sm:$0xff]
      %v3105 = vld [vmem:[%s49 + $0xe0] sm:$0xff]
      %v3106 = vld [vmem:[%s49 + $0xe8] sm:$0xff]
      %v3107 = vld [vmem:[%s49 + $0xf0] sm:$0xff]
      %v3108 = vld [vmem:[%s49 + $0xf8] sm:$0xff]
      %v3109 = vld [vmem:[%s49 + $0x100] sm:$0xff]
      %v3110 = vld [vmem:[%s49 + $0x108] sm:$0xff]
      %v3111 = vld [vmem:[%s49 + $0x110] sm:$0xff]
      %v3112 = vld [vmem:[%s49 + $0x118] sm:$0xff]
      %v3113 = vld [vmem:[%s49 + $0x120] sm:$0xff]
      %v3114 = vld [vmem:[%s49 + $0x128] sm:$0xff]
      %v3115 = vld [vmem:[%s49 + $0x130] sm:$0xff]
      %v3116 = vld [vmem:[%s49 + $0x138] sm:$0xff]
      %v3117 = vld [vmem:[%s49 + $0x140] sm:$0xff]
      %v3118 = vld [vmem:[%s49 + $0x148] sm:$0xff]
      %v3119 = vld [vmem:[%s49 + $0x150] sm:$0xff]
      %v3120 = vld [vmem:[%s49 + $0x158] sm:$0xff]
      %v3121 = vld [vmem:[%s49 + $0x160] sm:$0xff]
      %v3122 = vld [vmem:[%s49 + $0x168] sm:$0xff]
      %v3123 = vld [vmem:[%s49 + $0x170] sm:$0xff]
      %v3124 = vld [vmem:[%s49 + $0x178] sm:$0xff]
      %v3125 = vld [vmem:[%s51] sm:$0x1]
      %v3127 = vperm.slane %v3125, 0
      %3129 = vmatpush.msra.mxu0 %v3092
      %3130 = vmatpush.msra.mxu0 %v3091
      %3131 = vmatpush.msra.mxu0 %v3090
      %3132 = vmatpush.msra.mxu0 %v3089
      %3133 = vmatpush.msra.mxu0 %v3088
      %3134 = vmatpush.msra.mxu0 %v3087
      %3135 = vmatpush.msra.mxu0 %v3086
      %3136 = vmatpush.msra.mxu0 %v3085
      %3137 = vmatpush.msra.mxu0 %v3084
      %3138 = vmatpush.msra.mxu0 %v3083
      %3139 = vmatpush.msra.mxu0 %v3082
      %3140 = vmatpush.msra.mxu0 %v3081
      %3141 = vmatpush.msra.mxu0 %v3080
      %3142 = vmatpush.msra.mxu0 %v3079
      %3143 = vmatpush.msra.mxu0 %v3078
      %3144 = vmatpush.msra.mxu0 %v3077
      %3145 = vmatmul.f32.gmra.mxu0 %v3037
      %v3146 = vpop.f32.mrf.mxu0
      %v3147 = vadd.f32 %v3127, %v3146
      %3148 = vmatmul.f32.gmra.mxu0 %v3040
      %v3149 = vpop.f32.mrf.mxu0
      %v3150 = vadd.f32 %v3127, %v3149
      %3151 = vmatmul.f32.gmra.mxu0 %v3043
      %v3152 = vpop.f32.mrf.mxu0
      %v3153 = vadd.f32 %v3127, %v3152
      %3154 = vmatmul.f32.gmra.mxu0 %v3046
      %v3155 = vpop.f32.mrf.mxu0
      %v3156 = vadd.f32 %v3127, %v3155
      %3157 = vdwg.mxu0
      %3158 = vmatpush.msra.mxu0 %v3108
      %3159 = vmatpush.msra.mxu0 %v3107
      %3160 = vmatpush.msra.mxu0 %v3106
      %3161 = vmatpush.msra.mxu0 %v3105
      %3162 = vmatpush.msra.mxu0 %v3104
      %3163 = vmatpush.msra.mxu0 %v3103
      %3164 = vmatpush.msra.mxu0 %v3102
      %3165 = vmatpush.msra.mxu0 %v3101
      %3166 = vmatpush.msra.mxu0 %v3100
      %3167 = vmatpush.msra.mxu0 %v3099
      %3168 = vmatpush.msra.mxu0 %v3098
      %3169 = vmatpush.msra.mxu0 %v3097
      %3170 = vmatpush.msra.mxu0 %v3096
      %3171 = vmatpush.msra.mxu0 %v3095
      %3172 = vmatpush.msra.mxu0 %v3094
      %3173 = vmatpush.msra.mxu0 %v3093
      %3174 = vmatmul.f32.gmra.mxu0 %v3015
      %v3175 = vpop.f32.mrf.mxu0
      %v3176 = vadd.f32 %v3147, %v3175
      %3177 = vmatmul.f32.gmra.mxu0 %v3016
      %v3178 = vpop.f32.mrf.mxu0
      %v3179 = vadd.f32 %v3150, %v3178
      %3180 = vmatmul.f32.gmra.mxu0 %v3017
      %v3181 = vpop.f32.mrf.mxu0
      %v3182 = vadd.f32 %v3153, %v3181
      %3183 = vmatmul.f32.gmra.mxu0 %v3018
      %v3184 = vpop.f32.mrf.mxu0
      %v3185 = vadd.f32 %v3156, %v3184
      %3186 = vdwg.mxu0
      %3187 = vmatpush.msra.mxu0 %v3124
      %3188 = vmatpush.msra.mxu0 %v3123
      %3189 = vmatpush.msra.mxu0 %v3122
      %3190 = vmatpush.msra.mxu0 %v3121
      %3191 = vmatpush.msra.mxu0 %v3120
      %3192 = vmatpush.msra.mxu0 %v3119
      %3193 = vmatpush.msra.mxu0 %v3118
      %3194 = vmatpush.msra.mxu0 %v3117
      %3195 = vmatpush.msra.mxu0 %v3116
      %3196 = vmatpush.msra.mxu0 %v3115
      %3197 = vmatpush.msra.mxu0 %v3114
      %3198 = vmatpush.msra.mxu0 %v3113
      %3199 = vmatpush.msra.mxu0 %v3112
      %3200 = vmatpush.msra.mxu0 %v3111
      %3201 = vmatpush.msra.mxu0 %v3110
      %3202 = vmatpush.msra.mxu0 %v3109
      %3203 = vmatmul.f32.gmra.mxu0 %v3066
      %v3204 = vpop.f32.mrf.mxu0
      %v3205 = vadd.f32 %v3176, %v3204
      %3206 = vmatmul.f32.gmra.mxu0 %v3069
      %v3207 = vpop.f32.mrf.mxu0
      %v3208 = vadd.f32 %v3179, %v3207
      %3209 = vmatmul.f32.gmra.mxu0 %v3072
      %v3210 = vpop.f32.mrf.mxu0
      %v3211 = vadd.f32 %v3182, %v3210
      %3212 = vmatmul.f32.gmra.mxu0 %v3075
      %v3213 = vpop.f32.mrf.mxu0
      %v3214 = vadd.f32 %v3185, %v3213
      %3215 = vdwg.mxu0
      %v3216 = vmul.f32 %v3205, %v1038
      %v3217 = vmul.f32 %v3208, %v1043
      %v3218 = vmul.f32 %v3211, %v1048
      %v3219 = vmul.f32 %v3214, %v1053
      %v3220 = vadd.f32 %v2803, %v3216
      %v3221 = vadd.f32 %v2804, %v3217
      %v3222 = vadd.f32 %v2805, %v3218
      %v3223 = vadd.f32 %v2806, %v3219
      %v3224 = vld [vmem:[%s53] sm:$0x1]
      %v3225 = vld [vmem:[%s55] sm:$0x1]
      %v3226 = vsel %vm1288, %v3220, 0.0
      %3227 = vadd.xlane.f32.xlu0 %v3226
      %v3228 = vpop.xlane.xlu0 %3227
      %v3229 = vsel %vm1288, %v3221, 0.0
      %3230 = vadd.xlane.f32.xlu0 %v3229
      %v3231 = vpop.xlane.xlu0 %3230
      %v3232 = vsel %vm1288, %v3222, 0.0
      %3233 = vadd.xlane.f32.xlu0 %v3232
      %v3234 = vpop.xlane.xlu0 %3233
      %v3235 = vsel %vm1288, %v3223, 0.0
      %3236 = vadd.xlane.f32.xlu0 %v3235
      %v3237 = vpop.xlane.xlu0 %3236
      %v3238 = vmul.f32 %v3228, %v2716
      %v3239 = vmul.f32 %v3231, %v2716
      %v3240 = vmul.f32 %v3234, %v2716
      %v3241 = vmul.f32 %v3237, %v2716
      %v3242 = vsub.f32 %v3220, %v3238
      %v3243 = vsub.f32 %v3221, %v3239
      %v3244 = vsub.f32 %v3222, %v3240
      %v3245 = vsub.f32 %v3223, %v3241
      %v3246 = vmul.f32 %v3242, %v3242
      %v3247 = vmul.f32 %v3243, %v3243
      %v3248 = vmul.f32 %v3244, %v3244
      %v3249 = vmul.f32 %v3245, %v3245
      %v3250 = vsel %vm1288, %v3246, 0.0
      %3251 = vadd.xlane.f32.xlu0 %v3250
      %v3252 = vpop.xlane.xlu0 %3251
      %v3253 = vsel %vm1288, %v3247, 0.0
      %3254 = vadd.xlane.f32.xlu0 %v3253
      %v3255 = vpop.xlane.xlu0 %3254
      %v3256 = vsel %vm1288, %v3248, 0.0
      %3257 = vadd.xlane.f32.xlu0 %v3256
      %v3258 = vpop.xlane.xlu0 %3257
      %v3259 = vsel %vm1288, %v3249, 0.0
      %3260 = vadd.xlane.f32.xlu0 %v3259
      %v3261 = vpop.xlane.xlu0 %3260
      %v3262 = vmul.f32 %v3252, %v2716
      %v3263 = vmul.f32 %v3255, %v2716
      %v3264 = vmul.f32 %v3258, %v2716
      %v3265 = vmul.f32 %v3261, %v2716
      %v3266 = vadd.f32 %v3262, 1e-05
      %v3267 = vadd.f32 %v3263, 1e-05
      %v3268 = vadd.f32 %v3264, 1e-05
      %v3269 = vadd.f32 %v3265, 1e-05
      %v3270 = vrsqrt.pop %v3266
      %v3271 = vmul.f32 %v3270, %v3266
      %v3272 = vmul.f32 %v3271, %v3270
      %v3273 = vmul.f32 0.5, %v3272
      %v3274 = vsub.f32 1.5, %v3273
      %v3275 = vmul.f32 %v3270, %v3274
      %vm3276 = vweird.f32 %v3266
      %vm3277 = vweird.f32 %v3270
      %vm3278 = vmor %vm3276, %vm3277
      %v3279 = vsel %vm3278, %v3270, %v3275
      %v3280 = vrsqrt.pop %v3267
      %v3281 = vmul.f32 %v3280, %v3267
      %v3282 = vmul.f32 %v3281, %v3280
      %v3283 = vmul.f32 0.5, %v3282
      %v3284 = vsub.f32 1.5, %v3283
      %v3285 = vmul.f32 %v3280, %v3284
      %vm3286 = vweird.f32 %v3267
      %vm3287 = vweird.f32 %v3280
      %vm3288 = vmor %vm3286, %vm3287
      %v3289 = vsel %vm3288, %v3280, %v3285
      %v3290 = vrsqrt.pop %v3268
      %v3291 = vmul.f32 %v3290, %v3268
      %v3292 = vmul.f32 %v3291, %v3290
      %v3293 = vmul.f32 0.5, %v3292
      %v3294 = vsub.f32 1.5, %v3293
      %v3295 = vmul.f32 %v3290, %v3294
      %vm3296 = vweird.f32 %v3268
      %vm3297 = vweird.f32 %v3290
      %vm3298 = vmor %vm3296, %vm3297
      %v3299 = vsel %vm3298, %v3290, %v3295
      %v3300 = vrsqrt.pop %v3269
      %v3301 = vmul.f32 %v3300, %v3269
      %v3302 = vmul.f32 %v3301, %v3300
      %v3303 = vmul.f32 0.5, %v3302
      %v3304 = vsub.f32 1.5, %v3303
      %v3305 = vmul.f32 %v3300, %v3304
      %vm3306 = vweird.f32 %v3269
      %vm3307 = vweird.f32 %v3300
      %vm3308 = vmor %vm3306, %vm3307
      %v3309 = vsel %vm3308, %v3300, %v3305
      %v3310 = vmul.f32 %v3242, %v3279
      %v3311 = vmul.f32 %v3243, %v3289
      %v3312 = vmul.f32 %v3244, %v3299
      %v3313 = vmul.f32 %v3245, %v3309
      %v3315 = vperm.slane %v3224, 0
      %v3317 = vmul.f32 %v3310, %v3315
      %v3318 = vmul.f32 %v3311, %v3315
      %v3319 = vmul.f32 %v3312, %v3315
      %v3320 = vmul.f32 %v3313, %v3315
      %v3322 = vperm.slane %v3225, 0
      %v3324 = vadd.f32 %v3317, %v3322
      %v3325 = vadd.f32 %v3318, %v3322
      %v3326 = vadd.f32 %v3319, %v3322
      %v3327 = vadd.f32 %v3320, %v3322
      %s3328 = scalar_lea.vmem %s39, 16
      %v3329 = vld [vmem:[%s3328] sm:$0xff]
      %v3330 = vld [vmem:[%s3328 + $0x8] sm:$0x1]
      %s3331 = scalar_lea.vmem %s37, 32
      %v3332 = vld [vmem:[%s3331] sm:$0xff]
      %v3333 = vld [vmem:[%s3331 + $0x8] sm:$0xff]
      %v3334 = vld [vmem:[%s3331 + $0x10] sm:$0xff]
      %v3335 = vld [vmem:[%s3331 + $0x18] sm:$0xff]
      %v3337 = vsel %vm1166, %v3332, 0
      %v3340 = vsel %vm1166, %v3333, 0
      %v3343 = vsel %vm1166, %v3334, 0
      %v3346 = vsel %vm1166, %v3335, 0
      %3348 = vmatpush.msra.mxu0 0.0
      %3349 = vmatpush.msra.mxu0 0.0
      %3350 = vmatpush.msra.mxu0 0.0
      %3351 = vmatpush.msra.mxu0 0.0
      %3352 = vmatpush.msra.mxu0 0.0
      %3353 = vmatpush.msra.mxu0 0.0
      %3354 = vmatpush.msra.mxu0 0.0
      %3355 = vmatpush.msra.mxu0 0.0
      %3356 = vmatpush.msra.mxu0 0.0
      %3357 = vmatpush.msra.mxu0 0.0
      %3358 = vmatpush.msra.mxu0 0.0
      %3359 = vmatpush.msra.mxu0 0.0
      %3360 = vmatpush.msra.mxu0 0.0
      %3361 = vmatpush.msra.mxu0 0.0
      %3362 = vmatpush.msra.mxu0 %v1181
      %3363 = vmatpush.msra.mxu0 %v1094
      %3364 = vmatmul.f32.gmra.mxu0 %v3337
      %v3365 = vpop.f32.mrf.mxu0
      %v3366 = vadd.f32 0.0, %v3365
      %3367 = vmatmul.f32.gmra.mxu0 %v3340
      %v3368 = vpop.f32.mrf.mxu0
      %v3369 = vadd.f32 0.0, %v3368
      %3370 = vmatmul.f32.gmra.mxu0 %v3343
      %v3371 = vpop.f32.mrf.mxu0
      %v3372 = vadd.f32 0.0, %v3371
      %3373 = vmatmul.f32.gmra.mxu0 %v3346
      %v3374 = vpop.f32.mrf.mxu0
      %v3375 = vadd.f32 0.0, %v3374
      %3376 = vdwg.mxu0
      %3377 = vmatpush.msra.mxu0 0.0
      %3378 = vmatpush.msra.mxu0 0.0
      %3379 = vmatpush.msra.mxu0 0.0
      %3380 = vmatpush.msra.mxu0 0.0
      %3381 = vmatpush.msra.mxu0 0.0
      %3382 = vmatpush.msra.mxu0 0.0
      %3383 = vmatpush.msra.mxu0 0.0
      %3384 = vmatpush.msra.mxu0 0.0
      %3385 = vmatpush.msra.mxu0 0.0
      %3386 = vmatpush.msra.mxu0 0.0
      %3387 = vmatpush.msra.mxu0 0.0
      %3388 = vmatpush.msra.mxu0 0.0
      %3389 = vmatpush.msra.mxu0 0.0
      %3390 = vmatpush.msra.mxu0 0.0
      %3391 = vmatpush.msra.mxu0 %v1184
      %3392 = vmatpush.msra.mxu0 %v1095
      %3393 = vmatmul.f32.gmra.mxu0 %v3337
      %v3394 = vpop.f32.mrf.mxu0
      %v3395 = vadd.f32 0.0, %v3394
      %3396 = vmatmul.f32.gmra.mxu0 %v3340
      %v3397 = vpop.f32.mrf.mxu0
      %v3398 = vadd.f32 0.0, %v3397
      %3399 = vmatmul.f32.gmra.mxu0 %v3343
      %v3400 = vpop.f32.mrf.mxu0
      %v3401 = vadd.f32 0.0, %v3400
      %3402 = vmatmul.f32.gmra.mxu0 %v3346
      %v3403 = vpop.f32.mrf.mxu0
      %v3404 = vadd.f32 0.0, %v3403
      %3405 = vdwg.mxu0
      %3406 = vmatpush.msra.mxu0 0.0
      %3407 = vmatpush.msra.mxu0 0.0
      %3408 = vmatpush.msra.mxu0 0.0
      %3409 = vmatpush.msra.mxu0 0.0
      %3410 = vmatpush.msra.mxu0 0.0
      %3411 = vmatpush.msra.mxu0 0.0
      %3412 = vmatpush.msra.mxu0 0.0
      %3413 = vmatpush.msra.mxu0 0.0
      %3414 = vmatpush.msra.mxu0 0.0
      %3415 = vmatpush.msra.mxu0 0.0
      %3416 = vmatpush.msra.mxu0 0.0
      %3417 = vmatpush.msra.mxu0 0.0
      %3418 = vmatpush.msra.mxu0 0.0
      %3419 = vmatpush.msra.mxu0 0.0
      %3420 = vmatpush.msra.mxu0 %v1187
      %3421 = vmatpush.msra.mxu0 %v1096
      %3422 = vmatmul.f32.gmra.mxu0 %v3337
      %v3423 = vpop.f32.mrf.mxu0
      %v3424 = vadd.f32 0.0, %v3423
      %3425 = vmatmul.f32.gmra.mxu0 %v3340
      %v3426 = vpop.f32.mrf.mxu0
      %v3427 = vadd.f32 0.0, %v3426
      %3428 = vmatmul.f32.gmra.mxu0 %v3343
      %v3429 = vpop.f32.mrf.mxu0
      %v3430 = vadd.f32 0.0, %v3429
      %3431 = vmatmul.f32.gmra.mxu0 %v3346
      %v3432 = vpop.f32.mrf.mxu0
      %v3433 = vadd.f32 0.0, %v3432
      %3434 = vdwg.mxu0
      %s3435 = scalar_lea.vmem %s21, 64
      %v3436 = vld [vmem:[%s3435] sm:$0xff]
      %v3437 = vld [vmem:[%s3435 + $0x8] sm:$0xff]
      %v3438 = vld [vmem:[%s3435 + $0x10] sm:$0xff]
      %v3439 = vld [vmem:[%s3435 + $0x18] sm:$0xff]
      %v3440 = vld [vmem:[%s3435 + $0x20] sm:$0xff]
      %v3441 = vld [vmem:[%s3435 + $0x28] sm:$0xff]
      %v3442 = vld [vmem:[%s3435 + $0x30] sm:$0xff]
      %v3443 = vld [vmem:[%s3435 + $0x38] sm:$0xff]
      %s3444 = scalar_lea.vmem %s23, 1
      %v3445 = vld [vmem:[%s3444] sm:$0x1]
      %v3447 = vperm.slane %v3445, 0
      %v3450 = vsel %vm1288, %v3324, 0
      %v3453 = vsel %vm1288, %v3325, 0
      %v3456 = vsel %vm1288, %v3326, 0
      %v3459 = vsel %vm1288, %v3327, 0
      %3461 = vmatpush.msra.mxu0 0.0
      %3462 = vmatpush.msra.mxu0 0.0
      %3463 = vmatpush.msra.mxu0 0.0
      %3464 = vmatpush.msra.mxu0 0.0
      %3465 = vmatpush.msra.mxu0 0.0
      %3466 = vmatpush.msra.mxu0 0.0
      %3467 = vmatpush.msra.mxu0 0.0
      %3468 = vmatpush.msra.mxu0 0.0
      %3469 = vmatpush.msra.mxu0 %v3443
      %3470 = vmatpush.msra.mxu0 %v3442
      %3471 = vmatpush.msra.mxu0 %v3441
      %3472 = vmatpush.msra.mxu0 %v3440
      %3473 = vmatpush.msra.mxu0 %v3439
      %3474 = vmatpush.msra.mxu0 %v3438
      %3475 = vmatpush.msra.mxu0 %v3437
      %3476 = vmatpush.msra.mxu0 %v3436
      %3477 = vmatmul.f32.gmra.mxu0 %v3450
      %v3478 = vpop.f32.mrf.mxu0
      %v3479 = vadd.f32 %v3447, %v3478
      %3480 = vmatmul.f32.gmra.mxu0 %v3453
      %v3481 = vpop.f32.mrf.mxu0
      %v3482 = vadd.f32 %v3447, %v3481
      %3483 = vmatmul.f32.gmra.mxu0 %v3456
      %v3484 = vpop.f32.mrf.mxu0
      %v3485 = vadd.f32 %v3447, %v3484
      %3486 = vmatmul.f32.gmra.mxu0 %v3459
      %v3487 = vpop.f32.mrf.mxu0
      %v3488 = vadd.f32 %v3447, %v3487
      %3489 = vdwg.mxu0
      %s3490 = scalar_lea.vmem %s25, 64
      %v3491 = vld [vmem:[%s3490] sm:$0xff]
      %v3492 = vld [vmem:[%s3490 + $0x8] sm:$0xff]
      %v3493 = vld [vmem:[%s3490 + $0x10] sm:$0xff]
      %v3494 = vld [vmem:[%s3490 + $0x18] sm:$0xff]
      %v3495 = vld [vmem:[%s3490 + $0x20] sm:$0xff]
      %v3496 = vld [vmem:[%s3490 + $0x28] sm:$0xff]
      %v3497 = vld [vmem:[%s3490 + $0x30] sm:$0xff]
      %v3498 = vld [vmem:[%s3490 + $0x38] sm:$0xff]
      %s3499 = scalar_lea.vmem %s27, 1
      %v3500 = vld [vmem:[%s3499] sm:$0x1]
      %v3502 = vperm.slane %v3500, 0
      %3504 = vmatpush.msra.mxu0 0.0
      %3505 = vmatpush.msra.mxu0 0.0
      %3506 = vmatpush.msra.mxu0 0.0
      %3507 = vmatpush.msra.mxu0 0.0
      %3508 = vmatpush.msra.mxu0 0.0
      %3509 = vmatpush.msra.mxu0 0.0
      %3510 = vmatpush.msra.mxu0 0.0
      %3511 = vmatpush.msra.mxu0 0.0
      %3512 = vmatpush.msra.mxu0 %v3498
      %3513 = vmatpush.msra.mxu0 %v3497
      %3514 = vmatpush.msra.mxu0 %v3496
      %3515 = vmatpush.msra.mxu0 %v3495
      %3516 = vmatpush.msra.mxu0 %v3494
      %3517 = vmatpush.msra.mxu0 %v3493
      %3518 = vmatpush.msra.mxu0 %v3492
      %3519 = vmatpush.msra.mxu0 %v3491
      %3520 = vmatmul.f32.gmra.mxu0 %v3450
      %v3521 = vpop.f32.mrf.mxu0
      %v3522 = vadd.f32 %v3502, %v3521
      %3523 = vmatmul.f32.gmra.mxu0 %v3453
      %v3524 = vpop.f32.mrf.mxu0
      %v3525 = vadd.f32 %v3502, %v3524
      %3526 = vmatmul.f32.gmra.mxu0 %v3456
      %v3527 = vpop.f32.mrf.mxu0
      %v3528 = vadd.f32 %v3502, %v3527
      %3529 = vmatmul.f32.gmra.mxu0 %v3459
      %v3530 = vpop.f32.mrf.mxu0
      %v3531 = vadd.f32 %v3502, %v3530
      %3532 = vdwg.mxu0
      %s3533 = scalar_lea.vmem %s29, 64
      %v3534 = vld [vmem:[%s3533] sm:$0xff]
      %v3535 = vld [vmem:[%s3533 + $0x8] sm:$0xff]
      %v3536 = vld [vmem:[%s3533 + $0x10] sm:$0xff]
      %v3537 = vld [vmem:[%s3533 + $0x18] sm:$0xff]
      %v3538 = vld [vmem:[%s3533 + $0x20] sm:$0xff]
      %v3539 = vld [vmem:[%s3533 + $0x28] sm:$0xff]
      %v3540 = vld [vmem:[%s3533 + $0x30] sm:$0xff]
      %v3541 = vld [vmem:[%s3533 + $0x38] sm:$0xff]
      %s3542 = scalar_lea.vmem %s31, 1
      %v3543 = vld [vmem:[%s3542] sm:$0x1]
      %v3545 = vperm.slane %v3543, 0
      %3547 = vmatpush.msra.mxu0 0.0
      %3548 = vmatpush.msra.mxu0 0.0
      %3549 = vmatpush.msra.mxu0 0.0
      %3550 = vmatpush.msra.mxu0 0.0
      %3551 = vmatpush.msra.mxu0 0.0
      %3552 = vmatpush.msra.mxu0 0.0
      %3553 = vmatpush.msra.mxu0 0.0
      %3554 = vmatpush.msra.mxu0 0.0
      %3555 = vmatpush.msra.mxu0 %v3541
      %3556 = vmatpush.msra.mxu0 %v3540
      %3557 = vmatpush.msra.mxu0 %v3539
      %3558 = vmatpush.msra.mxu0 %v3538
      %3559 = vmatpush.msra.mxu0 %v3537
      %3560 = vmatpush.msra.mxu0 %v3536
      %3561 = vmatpush.msra.mxu0 %v3535
      %3562 = vmatpush.msra.mxu0 %v3534
      %3563 = vmatmul.f32.gmra.mxu0 %v3450
      %v3564 = vpop.f32.mrf.mxu0
      %v3565 = vadd.f32 %v3545, %v3564
      %3566 = vmatmul.f32.gmra.mxu0 %v3453
      %v3567 = vpop.f32.mrf.mxu0
      %v3568 = vadd.f32 %v3545, %v3567
      %3569 = vmatmul.f32.gmra.mxu0 %v3456
      %v3570 = vpop.f32.mrf.mxu0
      %v3571 = vadd.f32 %v3545, %v3570
      %3572 = vmatmul.f32.gmra.mxu0 %v3459
      %v3573 = vpop.f32.mrf.mxu0
      %v3574 = vadd.f32 %v3545, %v3573
      %3575 = vdwg.mxu0
      %v3576 = vmul.f32 %v3479, 0.17677669
      %v3577 = vmul.f32 %v3482, 0.17677669
      %v3578 = vmul.f32 %v3485, 0.17677669
      %v3579 = vmul.f32 %v3488, 0.17677669
      %v3581 = vsel %vm1416, %v3576, 0
      %v3584 = vsel %vm1416, %v3577, 0
      %v3587 = vsel %vm1416, %v3578, 0
      %v3590 = vsel %vm1416, %v3579, 0
      %3592 = vmatpush.msra.mxu0 0.0
      %3593 = vmatpush.msra.mxu0 0.0
      %3594 = vmatpush.msra.mxu0 0.0
      %3595 = vmatpush.msra.mxu0 0.0
      %3596 = vmatpush.msra.mxu0 0.0
      %3597 = vmatpush.msra.mxu0 0.0
      %3598 = vmatpush.msra.mxu0 0.0
      %3599 = vmatpush.msra.mxu0 0.0
      %3600 = vmatpush.msra.mxu0 0.0
      %3601 = vmatpush.msra.mxu0 0.0
      %3602 = vmatpush.msra.mxu0 0.0
      %3603 = vmatpush.msra.mxu0 0.0
      %3604 = vmatpush.msra.mxu0 %v3375
      %3605 = vmatpush.msra.mxu0 %v3372
      %3606 = vmatpush.msra.mxu0 %v3369
      %3607 = vmatpush.msra.mxu0 %v3366
      %3608 = vmatmul.f32.gmra.mxu0 %v3581
      %v3609 = vpop.f32.mrf.mxu0
      %v3610 = vadd.f32 0.0, %v3609
      %3611 = vmatmul.f32.gmra.mxu0 %v3584
      %v3612 = vpop.f32.mrf.mxu0
      %v3613 = vadd.f32 0.0, %v3612
      %3614 = vmatmul.f32.gmra.mxu0 %v3587
      %v3615 = vpop.f32.mrf.mxu0
      %v3616 = vadd.f32 0.0, %v3615
      %3617 = vmatmul.f32.gmra.mxu0 %v3590
      %v3618 = vpop.f32.mrf.mxu0
      %v3619 = vadd.f32 0.0, %v3618
      %3620 = vdwg.mxu0
      %3621 = vmatpush.msra.mxu0 0.0
      %3622 = vmatpush.msra.mxu0 0.0
      %3623 = vmatpush.msra.mxu0 0.0
      %3624 = vmatpush.msra.mxu0 0.0
      %3625 = vmatpush.msra.mxu0 0.0
      %3626 = vmatpush.msra.mxu0 0.0
      %3627 = vmatpush.msra.mxu0 0.0
      %3628 = vmatpush.msra.mxu0 0.0
      %3629 = vmatpush.msra.mxu0 0.0
      %3630 = vmatpush.msra.mxu0 0.0
      %3631 = vmatpush.msra.mxu0 0.0
      %3632 = vmatpush.msra.mxu0 0.0
      %3633 = vmatpush.msra.mxu0 %v3404
      %3634 = vmatpush.msra.mxu0 %v3401
      %3635 = vmatpush.msra.mxu0 %v3398
      %3636 = vmatpush.msra.mxu0 %v3395
      %3637 = vmatmul.f32.gmra.mxu0 %v3581
      %v3638 = vpop.f32.mrf.mxu0
      %v3639 = vadd.f32 0.0, %v3638
      %3640 = vmatmul.f32.gmra.mxu0 %v3584
      %v3641 = vpop.f32.mrf.mxu0
      %v3642 = vadd.f32 0.0, %v3641
      %3643 = vmatmul.f32.gmra.mxu0 %v3587
      %v3644 = vpop.f32.mrf.mxu0
      %v3645 = vadd.f32 0.0, %v3644
      %3646 = vmatmul.f32.gmra.mxu0 %v3590
      %v3647 = vpop.f32.mrf.mxu0
      %v3648 = vadd.f32 0.0, %v3647
      %3649 = vdwg.mxu0
      %3650 = vmatpush.msra.mxu0 0.0
      %3651 = vmatpush.msra.mxu0 0.0
      %3652 = vmatpush.msra.mxu0 0.0
      %3653 = vmatpush.msra.mxu0 0.0
      %3654 = vmatpush.msra.mxu0 0.0
      %3655 = vmatpush.msra.mxu0 0.0
      %3656 = vmatpush.msra.mxu0 0.0
      %3657 = vmatpush.msra.mxu0 0.0
      %3658 = vmatpush.msra.mxu0 0.0
      %3659 = vmatpush.msra.mxu0 0.0
      %3660 = vmatpush.msra.mxu0 0.0
      %3661 = vmatpush.msra.mxu0 0.0
      %3662 = vmatpush.msra.mxu0 %v3433
      %3663 = vmatpush.msra.mxu0 %v3430
      %3664 = vmatpush.msra.mxu0 %v3427
      %3665 = vmatpush.msra.mxu0 %v3424
      %3666 = vmatmul.f32.gmra.mxu0 %v3581
      %v3667 = vpop.f32.mrf.mxu0
      %v3668 = vadd.f32 0.0, %v3667
      %3669 = vmatmul.f32.gmra.mxu0 %v3584
      %v3670 = vpop.f32.mrf.mxu0
      %v3671 = vadd.f32 0.0, %v3670
      %3672 = vmatmul.f32.gmra.mxu0 %v3587
      %v3673 = vpop.f32.mrf.mxu0
      %v3674 = vadd.f32 0.0, %v3673
      %3675 = vmatmul.f32.gmra.mxu0 %v3590
      %v3676 = vpop.f32.mrf.mxu0
      %v3677 = vadd.f32 0.0, %v3676
      %3678 = vdwg.mxu0
      %v3679 = vmul.f32 %v3610, %v1070
      %v3680 = vmul.f32 %v3639, %v1071
      %v3681 = vmul.f32 %v3668, %v1072
      %v3682 = vmul.f32 %v3613, %v1073
      %v3683 = vmul.f32 %v3642, %v1074
      %v3684 = vmul.f32 %v3671, %v1075
      %v3685 = vmul.f32 %v3616, %v1076
      %v3686 = vmul.f32 %v3645, %v1077
      %v3687 = vmul.f32 %v3674, %v1078
      %v3688 = vmul.f32 %v3619, %v1079
      %v3689 = vmul.f32 %v3648, %v1080
      %v3690 = vmul.f32 %v3677, %v1081
      %v3692 = vsel %vm1416, %v3681, 0
      %v3695 = vsel %vm1416, %v3684, 0
      %v3698 = vsel %vm1416, %v3687, 0
      %v3701 = vsel %vm1416, %v3690, 0
      %3703 = vmatpush.xpose.msra.mxu0 0.0
      %3704 = vmatpush.xpose.msra.mxu0 0.0
      %3705 = vmatpush.xpose.msra.mxu0 0.0
      %3706 = vmatpush.xpose.msra.mxu0 0.0
      %3707 = vmatpush.xpose.msra.mxu0 0.0
      %3708 = vmatpush.xpose.msra.mxu0 0.0
      %3709 = vmatpush.xpose.msra.mxu0 0.0
      %3710 = vmatpush.xpose.msra.mxu0 0.0
      %3711 = vmatpush.xpose.msra.mxu0 0.0
      %3712 = vmatpush.xpose.msra.mxu0 0.0
      %3713 = vmatpush.xpose.msra.mxu0 0.0
      %3714 = vmatpush.xpose.msra.mxu0 0.0
      %3715 = vmatpush.xpose.msra.mxu0 %v1091
      %3716 = vmatpush.xpose.msra.mxu0 %v1088
      %3717 = vmatpush.xpose.msra.mxu0 %v1085
      %3718 = vmatpush.xpose.msra.mxu0 %v1082
      %3719 = vmatmul.f32.gmra.mxu0 %v3679
      %v3720 = vpop.f32.mrf.mxu0
      %v3721 = vadd.f32 0.0, %v3720
      %3722 = vmatmul.f32.gmra.mxu0 %v3682
      %v3723 = vpop.f32.mrf.mxu0
      %v3724 = vadd.f32 0.0, %v3723
      %3725 = vmatmul.f32.gmra.mxu0 %v3685
      %v3726 = vpop.f32.mrf.mxu0
      %v3727 = vadd.f32 0.0, %v3726
      %3728 = vmatmul.f32.gmra.mxu0 %v3688
      %v3729 = vpop.f32.mrf.mxu0
      %v3730 = vadd.f32 0.0, %v3729
      %3731 = vdwg.mxu0
      %3732 = vmatpush.xpose.msra.mxu0 0.0
      %3733 = vmatpush.xpose.msra.mxu0 0.0
      %3734 = vmatpush.xpose.msra.mxu0 0.0
      %3735 = vmatpush.xpose.msra.mxu0 0.0
      %3736 = vmatpush.xpose.msra.mxu0 0.0
      %3737 = vmatpush.xpose.msra.mxu0 0.0
      %3738 = vmatpush.xpose.msra.mxu0 0.0
      %3739 = vmatpush.xpose.msra.mxu0 0.0
      %3740 = vmatpush.xpose.msra.mxu0 0.0
      %3741 = vmatpush.xpose.msra.mxu0 0.0
      %3742 = vmatpush.xpose.msra.mxu0 0.0
      %3743 = vmatpush.xpose.msra.mxu0 0.0
      %3744 = vmatpush.xpose.msra.mxu0 %v1092
      %3745 = vmatpush.xpose.msra.mxu0 %v1089
      %3746 = vmatpush.xpose.msra.mxu0 %v1086
      %3747 = vmatpush.xpose.msra.mxu0 %v1083
      %3748 = vmatmul.f32.gmra.mxu0 %v3680
      %v3749 = vpop.f32.mrf.mxu0
      %v3750 = vadd.f32 %v3721, %v3749
      %3751 = vmatmul.f32.gmra.mxu0 %v3683
      %v3752 = vpop.f32.mrf.mxu0
      %v3753 = vadd.f32 %v3724, %v3752
      %3754 = vmatmul.f32.gmra.mxu0 %v3686
      %v3755 = vpop.f32.mrf.mxu0
      %v3756 = vadd.f32 %v3727, %v3755
      %3757 = vmatmul.f32.gmra.mxu0 %v3689
      %v3758 = vpop.f32.mrf.mxu0
      %v3759 = vadd.f32 %v3730, %v3758
      %3760 = vdwg.mxu0
      %3761 = vmatpush.xpose.msra.mxu0 0.0
      %3762 = vmatpush.xpose.msra.mxu0 0.0
      %3763 = vmatpush.xpose.msra.mxu0 0.0
      %3764 = vmatpush.xpose.msra.mxu0 0.0
      %3765 = vmatpush.xpose.msra.mxu0 0.0
      %3766 = vmatpush.xpose.msra.mxu0 0.0
      %3767 = vmatpush.xpose.msra.mxu0 0.0
      %3768 = vmatpush.xpose.msra.mxu0 0.0
      %3769 = vmatpush.xpose.msra.mxu0 0.0
      %3770 = vmatpush.xpose.msra.mxu0 0.0
      %3771 = vmatpush.xpose.msra.mxu0 0.0
      %3772 = vmatpush.xpose.msra.mxu0 0.0
      %3773 = vmatpush.xpose.msra.mxu0 %v1550
      %3774 = vmatpush.xpose.msra.mxu0 %v1547
      %3775 = vmatpush.xpose.msra.mxu0 %v1544
      %3776 = vmatpush.xpose.msra.mxu0 %v1541
      %3777 = vmatmul.f32.gmra.mxu0 %v3692
      %v3778 = vpop.f32.mrf.mxu0
      %v3779 = vadd.f32 %v3750, %v3778
      %3780 = vmatmul.f32.gmra.mxu0 %v3695
      %v3781 = vpop.f32.mrf.mxu0
      %v3782 = vadd.f32 %v3753, %v3781
      %3783 = vmatmul.f32.gmra.mxu0 %v3698
      %v3784 = vpop.f32.mrf.mxu0
      %v3785 = vadd.f32 %v3756, %v3784
      %3786 = vmatmul.f32.gmra.mxu0 %v3701
      %v3787 = vpop.f32.mrf.mxu0
      %v3788 = vadd.f32 %v3759, %v3787
      %3789 = vdwg.mxu0
      %v3791 = vsel %vm1416, %v3522, 0
      %v3794 = vsel %vm1416, %v3525, 0
      %v3797 = vsel %vm1416, %v3528, 0
      %v3800 = vsel %vm1416, %v3531, 0
      %3802 = vmatpush.xpose.msra.mxu0 0.0
      %3803 = vmatpush.xpose.msra.mxu0 0.0
      %3804 = vmatpush.xpose.msra.mxu0 0.0
      %3805 = vmatpush.xpose.msra.mxu0 0.0
      %3806 = vmatpush.xpose.msra.mxu0 0.0
      %3807 = vmatpush.xpose.msra.mxu0 0.0
      %3808 = vmatpush.xpose.msra.mxu0 0.0
      %3809 = vmatpush.xpose.msra.mxu0 0.0
      %3810 = vmatpush.xpose.msra.mxu0 0.0
      %3811 = vmatpush.xpose.msra.mxu0 0.0
      %3812 = vmatpush.xpose.msra.mxu0 0.0
      %3813 = vmatpush.xpose.msra.mxu0 0.0
      %3814 = vmatpush.xpose.msra.mxu0 %v3800
      %3815 = vmatpush.xpose.msra.mxu0 %v3797
      %3816 = vmatpush.xpose.msra.mxu0 %v3794
      %3817 = vmatpush.xpose.msra.mxu0 %v3791
      %3818 = vmatmul.f32.gmra.mxu0 %v3581
      %v3819 = vpop.f32.mrf.mxu0
      %v3820 = vadd.f32 %v3779, %v3819
      %3821 = vmatmul.f32.gmra.mxu0 %v3584
      %v3822 = vpop.f32.mrf.mxu0
      %v3823 = vadd.f32 %v3782, %v3822
      %3824 = vmatmul.f32.gmra.mxu0 %v3587
      %v3825 = vpop.f32.mrf.mxu0
      %v3826 = vadd.f32 %v3785, %v3825
      %3827 = vmatmul.f32.gmra.mxu0 %v3590
      %v3828 = vpop.f32.mrf.mxu0
      %v3829 = vadd.f32 %v3788, %v3828
      %3830 = vdwg.mxu0
      %v3831 = vadd.f32 %v3820, %v1066
      %v3832 = vadd.f32 %v3823, %v1067
      %v3833 = vadd.f32 %v3826, %v1068
      %v3834 = vadd.f32 %v3829, %v1069
      %v3835 = vsel %vm1416, %v3831, -inf
      %3836 = vmax.xlane.f32.xlu0 %v3835
      %v3837 = vpop.xlane.xlu0 %3836
      %v3838 = vsel %vm1416, %v3832, -inf
      %3839 = vmax.xlane.f32.xlu0 %v3838
      %v3840 = vpop.xlane.xlu0 %3839
      %v3841 = vsel %vm1416, %v3833, -inf
      %3842 = vmax.xlane.f32.xlu0 %v3841
      %v3843 = vpop.xlane.xlu0 %3842
      %v3844 = vsel %vm1416, %v3834, -inf
      %3845 = vmax.xlane.f32.xlu0 %v3844
      %v3846 = vpop.xlane.xlu0 %3845
      %v3847 = vsub.f32 %v3831, %v3837
      %v3848 = vsub.f32 %v3832, %v3840
      %v3849 = vsub.f32 %v3833, %v3843
      %v3850 = vsub.f32 %v3834, %v3846
      %v3851 = vmul.f32 %v3847, 1.442695
      %v3852 = vpow.pop %v3851
      %v3853 = vmul.f32 %v3848, 1.442695
      %v3854 = vpow.pop %v3853
      %v3855 = vmul.f32 %v3849, 1.442695
      %v3856 = vpow.pop %v3855
      %v3857 = vmul.f32 %v3850, 1.442695
      %v3858 = vpow.pop %v3857
      %v3859 = vsel %vm1416, %v3852, 0.0
      %3860 = vadd.xlane.f32.xlu0 %v3859
      %v3861 = vpop.xlane.xlu0 %3860
      %v3862 = vsel %vm1416, %v3854, 0.0
      %3863 = vadd.xlane.f32.xlu0 %v3862
      %v3864 = vpop.xlane.xlu0 %3863
      %v3865 = vsel %vm1416, %v3856, 0.0
      %3866 = vadd.xlane.f32.xlu0 %v3865
      %v3867 = vpop.xlane.xlu0 %3866
      %v3868 = vsel %vm1416, %v3858, 0.0
      %3869 = vadd.xlane.f32.xlu0 %v3868
      %v3870 = vpop.xlane.xlu0 %3869
      %v3871 = vrcp.pop %v3861
      %v3872 = vrcp.pop %v3864
      %v3873 = vrcp.pop %v3867
      %v3874 = vrcp.pop %v3870
      %v3875 = vmul.f32 %v3852, %v3871
      %v3876 = vmul.f32 %v3854, %v3872
      %v3877 = vmul.f32 %v3856, %v3873
      %v3878 = vmul.f32 %v3858, %v3874
      %v3880 = vsel %vm1416, %v3875, 0
      %v3883 = vsel %vm1416, %v3876, 0
      %v3886 = vsel %vm1416, %v3877, 0
      %v3889 = vsel %vm1416, %v3878, 0
      %3891 = vmatpush.msra.mxu0 0.0
      %3892 = vmatpush.msra.mxu0 0.0
      %3893 = vmatpush.msra.mxu0 0.0
      %3894 = vmatpush.msra.mxu0 0.0
      %3895 = vmatpush.msra.mxu0 0.0
      %3896 = vmatpush.msra.mxu0 0.0
      %3897 = vmatpush.msra.mxu0 0.0
      %3898 = vmatpush.msra.mxu0 0.0
      %3899 = vmatpush.msra.mxu0 0.0
      %3900 = vmatpush.msra.mxu0 0.0
      %3901 = vmatpush.msra.mxu0 0.0
      %3902 = vmatpush.msra.mxu0 0.0
      %3903 = vmatpush.msra.mxu0 %v1091
      %3904 = vmatpush.msra.mxu0 %v1088
      %3905 = vmatpush.msra.mxu0 %v1085
      %3906 = vmatpush.msra.mxu0 %v1082
      %3907 = vmatmul.f32.gmra.mxu0 %v3880
      %v3908 = vpop.f32.mrf.mxu0
      %v3909 = vadd.f32 0.0, %v3908
      %3910 = vmatmul.f32.gmra.mxu0 %v3883
      %v3911 = vpop.f32.mrf.mxu0
      %v3912 = vadd.f32 0.0, %v3911
      %3913 = vmatmul.f32.gmra.mxu0 %v3886
      %v3914 = vpop.f32.mrf.mxu0
      %v3915 = vadd.f32 0.0, %v3914
      %3916 = vmatmul.f32.gmra.mxu0 %v3889
      %v3917 = vpop.f32.mrf.mxu0
      %v3918 = vadd.f32 0.0, %v3917
      %3919 = vdwg.mxu0
      %3920 = vmatpush.msra.mxu0 0.0
      %3921 = vmatpush.msra.mxu0 0.0
      %3922 = vmatpush.msra.mxu0 0.0
      %3923 = vmatpush.msra.mxu0 0.0
      %3924 = vmatpush.msra.mxu0 0.0
      %3925 = vmatpush.msra.mxu0 0.0
      %3926 = vmatpush.msra.mxu0 0.0
      %3927 = vmatpush.msra.mxu0 0.0
      %3928 = vmatpush.msra.mxu0 0.0
      %3929 = vmatpush.msra.mxu0 0.0
      %3930 = vmatpush.msra.mxu0 0.0
      %3931 = vmatpush.msra.mxu0 0.0
      %3932 = vmatpush.msra.mxu0 %v1092
      %3933 = vmatpush.msra.mxu0 %v1089
      %3934 = vmatpush.msra.mxu0 %v1086
      %3935 = vmatpush.msra.mxu0 %v1083
      %3936 = vmatmul.f32.gmra.mxu0 %v3880
      %v3937 = vpop.f32.mrf.mxu0
      %v3938 = vadd.f32 0.0, %v3937
      %3939 = vmatmul.f32.gmra.mxu0 %v3883
      %v3940 = vpop.f32.mrf.mxu0
      %v3941 = vadd.f32 0.0, %v3940
      %3942 = vmatmul.f32.gmra.mxu0 %v3886
      %v3943 = vpop.f32.mrf.mxu0
      %v3944 = vadd.f32 0.0, %v3943
      %3945 = vmatmul.f32.gmra.mxu0 %v3889
      %v3946 = vpop.f32.mrf.mxu0
      %v3947 = vadd.f32 0.0, %v3946
      %3948 = vdwg.mxu0
      %3949 = vmatpush.msra.mxu0 0.0
      %3950 = vmatpush.msra.mxu0 0.0
      %3951 = vmatpush.msra.mxu0 0.0
      %3952 = vmatpush.msra.mxu0 0.0
      %3953 = vmatpush.msra.mxu0 0.0
      %3954 = vmatpush.msra.mxu0 0.0
      %3955 = vmatpush.msra.mxu0 0.0
      %3956 = vmatpush.msra.mxu0 0.0
      %3957 = vmatpush.msra.mxu0 0.0
      %3958 = vmatpush.msra.mxu0 0.0
      %3959 = vmatpush.msra.mxu0 0.0
      %3960 = vmatpush.msra.mxu0 0.0
      %3961 = vmatpush.msra.mxu0 %v1093
      %3962 = vmatpush.msra.mxu0 %v1090
      %3963 = vmatpush.msra.mxu0 %v1087
      %3964 = vmatpush.msra.mxu0 %v1084
      %3965 = vmatmul.f32.gmra.mxu0 %v3880
      %v3966 = vpop.f32.mrf.mxu0
      %v3967 = vadd.f32 0.0, %v3966
      %3968 = vmatmul.f32.gmra.mxu0 %v3883
      %v3969 = vpop.f32.mrf.mxu0
      %v3970 = vadd.f32 0.0, %v3969
      %3971 = vmatmul.f32.gmra.mxu0 %v3886
      %v3972 = vpop.f32.mrf.mxu0
      %v3973 = vadd.f32 0.0, %v3972
      %3974 = vmatmul.f32.gmra.mxu0 %v3889
      %v3975 = vpop.f32.mrf.mxu0
      %v3976 = vadd.f32 0.0, %v3975
      %3977 = vdwg.mxu0
      %v3978 = vmul.f32 %v3909, %v1070
      %v3979 = vmul.f32 %v3938, %v1071
      %v3980 = vmul.f32 %v3967, %v1072
      %v3981 = vmul.f32 %v3912, %v1073
      %v3982 = vmul.f32 %v3941, %v1074
      %v3983 = vmul.f32 %v3970, %v1075
      %v3984 = vmul.f32 %v3915, %v1076
      %v3985 = vmul.f32 %v3944, %v1077
      %v3986 = vmul.f32 %v3973, %v1078
      %v3987 = vmul.f32 %v3918, %v1079
      %v3988 = vmul.f32 %v3947, %v1080
      %v3989 = vmul.f32 %v3976, %v1081
      %v3991 = vsel %vm1416, %v3980, 0
      %v3994 = vsel %vm1416, %v3983, 0
      %v3997 = vsel %vm1416, %v3986, 0
      %v4000 = vsel %vm1416, %v3989, 0
      %4002 = vmatpush.xpose.msra.mxu0 0.0
      %4003 = vmatpush.xpose.msra.mxu0 0.0
      %4004 = vmatpush.xpose.msra.mxu0 0.0
      %4005 = vmatpush.xpose.msra.mxu0 0.0
      %4006 = vmatpush.xpose.msra.mxu0 0.0
      %4007 = vmatpush.xpose.msra.mxu0 0.0
      %4008 = vmatpush.xpose.msra.mxu0 0.0
      %4009 = vmatpush.xpose.msra.mxu0 0.0
      %4010 = vmatpush.xpose.msra.mxu0 0.0
      %4011 = vmatpush.xpose.msra.mxu0 0.0
      %4012 = vmatpush.xpose.msra.mxu0 0.0
      %4013 = vmatpush.xpose.msra.mxu0 0.0
      %4014 = vmatpush.xpose.msra.mxu0 0.0
      %4015 = vmatpush.xpose.msra.mxu0 0.0
      %4016 = vmatpush.xpose.msra.mxu0 %v1097
      %4017 = vmatpush.xpose.msra.mxu0 %v1094
      %4018 = vmatmul.f32.gmra.mxu0 %v3978
      %v4019 = vpop.f32.mrf.mxu0
      %v4020 = vadd.f32 0.0, %v4019
      %4021 = vmatmul.f32.gmra.mxu0 %v3981
      %v4022 = vpop.f32.mrf.mxu0
      %v4023 = vadd.f32 0.0, %v4022
      %4024 = vmatmul.f32.gmra.mxu0 %v3984
      %v4025 = vpop.f32.mrf.mxu0
      %v4026 = vadd.f32 0.0, %v4025
      %4027 = vmatmul.f32.gmra.mxu0 %v3987
      %v4028 = vpop.f32.mrf.mxu0
      %v4029 = vadd.f32 0.0, %v4028
      %4030 = vdwg.mxu0
      %4031 = vmatpush.xpose.msra.mxu0 0.0
      %4032 = vmatpush.xpose.msra.mxu0 0.0
      %4033 = vmatpush.xpose.msra.mxu0 0.0
      %4034 = vmatpush.xpose.msra.mxu0 0.0
      %4035 = vmatpush.xpose.msra.mxu0 0.0
      %4036 = vmatpush.xpose.msra.mxu0 0.0
      %4037 = vmatpush.xpose.msra.mxu0 0.0
      %4038 = vmatpush.xpose.msra.mxu0 0.0
      %4039 = vmatpush.xpose.msra.mxu0 0.0
      %4040 = vmatpush.xpose.msra.mxu0 0.0
      %4041 = vmatpush.xpose.msra.mxu0 0.0
      %4042 = vmatpush.xpose.msra.mxu0 0.0
      %4043 = vmatpush.xpose.msra.mxu0 0.0
      %4044 = vmatpush.xpose.msra.mxu0 0.0
      %4045 = vmatpush.xpose.msra.mxu0 %v1098
      %4046 = vmatpush.xpose.msra.mxu0 %v1095
      %4047 = vmatmul.f32.gmra.mxu0 %v3979
      %v4048 = vpop.f32.mrf.mxu0
      %v4049 = vadd.f32 %v4020, %v4048
      %4050 = vmatmul.f32.gmra.mxu0 %v3982
      %v4051 = vpop.f32.mrf.mxu0
      %v4052 = vadd.f32 %v4023, %v4051
      %4053 = vmatmul.f32.gmra.mxu0 %v3985
      %v4054 = vpop.f32.mrf.mxu0
      %v4055 = vadd.f32 %v4026, %v4054
      %4056 = vmatmul.f32.gmra.mxu0 %v3988
      %v4057 = vpop.f32.mrf.mxu0
      %v4058 = vadd.f32 %v4029, %v4057
      %4059 = vdwg.mxu0
      %4060 = vmatpush.xpose.msra.mxu0 0.0
      %4061 = vmatpush.xpose.msra.mxu0 0.0
      %4062 = vmatpush.xpose.msra.mxu0 0.0
      %4063 = vmatpush.xpose.msra.mxu0 0.0
      %4064 = vmatpush.xpose.msra.mxu0 0.0
      %4065 = vmatpush.xpose.msra.mxu0 0.0
      %4066 = vmatpush.xpose.msra.mxu0 0.0
      %4067 = vmatpush.xpose.msra.mxu0 0.0
      %4068 = vmatpush.xpose.msra.mxu0 0.0
      %4069 = vmatpush.xpose.msra.mxu0 0.0
      %4070 = vmatpush.xpose.msra.mxu0 0.0
      %4071 = vmatpush.xpose.msra.mxu0 0.0
      %4072 = vmatpush.xpose.msra.mxu0 0.0
      %4073 = vmatpush.xpose.msra.mxu0 0.0
      %4074 = vmatpush.xpose.msra.mxu0 %v1854
      %4075 = vmatpush.xpose.msra.mxu0 %v1852
      %4076 = vmatmul.f32.gmra.mxu0 %v3991
      %v4077 = vpop.f32.mrf.mxu0
      %v4078 = vadd.f32 %v4049, %v4077
      %4079 = vmatmul.f32.gmra.mxu0 %v3994
      %v4080 = vpop.f32.mrf.mxu0
      %v4081 = vadd.f32 %v4052, %v4080
      %4082 = vmatmul.f32.gmra.mxu0 %v3997
      %v4083 = vpop.f32.mrf.mxu0
      %v4084 = vadd.f32 %v4055, %v4083
      %4085 = vmatmul.f32.gmra.mxu0 %v4000
      %v4086 = vpop.f32.mrf.mxu0
      %v4087 = vadd.f32 %v4058, %v4086
      %4088 = vdwg.mxu0
      %v4090 = vsel %vm1166, %v4078, 0
      %v4093 = vsel %vm1166, %v4081, 0
      %v4096 = vsel %vm1166, %v4084, 0
      %v4099 = vsel %vm1166, %v4087, 0
      %v4102 = vsel %vm1179, %v3330, 0
      %4104 = vmatpush.msra.mxu0 0.0
      %4105 = vmatpush.msra.mxu0 0.0
      %4106 = vmatpush.msra.mxu0 0.0
      %4107 = vmatpush.msra.mxu0 0.0
      %4108 = vmatpush.msra.mxu0 0.0
      %4109 = vmatpush.msra.mxu0 0.0
      %4110 = vmatpush.msra.mxu0 0.0
      %4111 = vmatpush.msra.mxu0 0.0
      %4112 = vmatpush.msra.mxu0 0.0
      %4113 = vmatpush.msra.mxu0 0.0
      %4114 = vmatpush.msra.mxu0 0.0
      %4115 = vmatpush.msra.mxu0 0.0
      %4116 = vmatpush.msra.mxu0 0.0
      %4117 = vmatpush.msra.mxu0 0.0
      %4118 = vmatpush.msra.mxu0 %v4102
      %4119 = vmatpush.msra.mxu0 %v3329
      %4120 = vmatmul.f32.gmra.mxu0 %v4090
      %v4121 = vpop.f32.mrf.mxu0
      %v4122 = vadd.f32 0.0, %v4121
      %4123 = vmatmul.f32.gmra.mxu0 %v4093
      %v4124 = vpop.f32.mrf.mxu0
      %v4125 = vadd.f32 0.0, %v4124
      %4126 = vmatmul.f32.gmra.mxu0 %v4096
      %v4127 = vpop.f32.mrf.mxu0
      %v4128 = vadd.f32 0.0, %v4127
      %4129 = vmatmul.f32.gmra.mxu0 %v4099
      %v4130 = vpop.f32.mrf.mxu0
      %v4131 = vadd.f32 0.0, %v4130
      %4132 = vdwg.mxu0
      %4133 = vmatpush.msra.mxu0 0.0
      %4134 = vmatpush.msra.mxu0 0.0
      %4135 = vmatpush.msra.mxu0 0.0
      %4136 = vmatpush.msra.mxu0 0.0
      %4137 = vmatpush.msra.mxu0 0.0
      %4138 = vmatpush.msra.mxu0 0.0
      %4139 = vmatpush.msra.mxu0 0.0
      %4140 = vmatpush.msra.mxu0 0.0
      %4141 = vmatpush.msra.mxu0 0.0
      %4142 = vmatpush.msra.mxu0 0.0
      %4143 = vmatpush.msra.mxu0 0.0
      %4144 = vmatpush.msra.mxu0 0.0
      %4145 = vmatpush.msra.mxu0 %v3574
      %4146 = vmatpush.msra.mxu0 %v3571
      %4147 = vmatpush.msra.mxu0 %v3568
      %4148 = vmatpush.msra.mxu0 %v3565
      %4149 = vmatmul.f32.gmra.mxu0 %v3880
      %v4150 = vpop.f32.mrf.mxu0
      %v4151 = vadd.f32 %v4122, %v4150
      %4152 = vmatmul.f32.gmra.mxu0 %v3883
      %v4153 = vpop.f32.mrf.mxu0
      %v4154 = vadd.f32 %v4125, %v4153
      %4155 = vmatmul.f32.gmra.mxu0 %v3886
      %v4156 = vpop.f32.mrf.mxu0
      %v4157 = vadd.f32 %v4128, %v4156
      %4158 = vmatmul.f32.gmra.mxu0 %v3889
      %v4159 = vpop.f32.mrf.mxu0
      %v4160 = vadd.f32 %v4131, %v4159
      %4161 = vdwg.mxu0
      %4162 = vrot.lane.b32.xlu0 %v3576, 96
      %v4163 = vpop.permute.xlu0 %4162
      %4164 = vrot.lane.b32.xlu0 %v3577, 96
      %v4165 = vpop.permute.xlu0 %4164
      %4166 = vrot.lane.b32.xlu0 %v3578, 96
      %v4167 = vpop.permute.xlu0 %4166
      %4168 = vrot.lane.b32.xlu0 %v3579, 96
      %v4169 = vpop.permute.xlu0 %4168
      %v4170 = vsel %vm1416, %v4163, 0
      %v4172 = vsel %vm1416, %v4165, 0
      %v4174 = vsel %vm1416, %v4167, 0
      %v4176 = vsel %vm1416, %v4169, 0
      %4178 = vmatpush.msra.mxu0 0.0
      %4179 = vmatpush.msra.mxu0 0.0
      %4180 = vmatpush.msra.mxu0 0.0
      %4181 = vmatpush.msra.mxu0 0.0
      %4182 = vmatpush.msra.mxu0 0.0
      %4183 = vmatpush.msra.mxu0 0.0
      %4184 = vmatpush.msra.mxu0 0.0
      %4185 = vmatpush.msra.mxu0 0.0
      %4186 = vmatpush.msra.mxu0 0.0
      %4187 = vmatpush.msra.mxu0 0.0
      %4188 = vmatpush.msra.mxu0 0.0
      %4189 = vmatpush.msra.mxu0 0.0
      %4190 = vmatpush.msra.mxu0 %v3375
      %4191 = vmatpush.msra.mxu0 %v3372
      %4192 = vmatpush.msra.mxu0 %v3369
      %4193 = vmatpush.msra.mxu0 %v3366
      %4194 = vmatmul.f32.gmra.mxu0 %v4170
      %v4195 = vpop.f32.mrf.mxu0
      %v4196 = vadd.f32 0.0, %v4195
      %4197 = vmatmul.f32.gmra.mxu0 %v4172
      %v4198 = vpop.f32.mrf.mxu0
      %v4199 = vadd.f32 0.0, %v4198
      %4200 = vmatmul.f32.gmra.mxu0 %v4174
      %v4201 = vpop.f32.mrf.mxu0
      %v4202 = vadd.f32 0.0, %v4201
      %4203 = vmatmul.f32.gmra.mxu0 %v4176
      %v4204 = vpop.f32.mrf.mxu0
      %v4205 = vadd.f32 0.0, %v4204
      %4206 = vdwg.mxu0
      %4207 = vmatpush.msra.mxu0 0.0
      %4208 = vmatpush.msra.mxu0 0.0
      %4209 = vmatpush.msra.mxu0 0.0
      %4210 = vmatpush.msra.mxu0 0.0
      %4211 = vmatpush.msra.mxu0 0.0
      %4212 = vmatpush.msra.mxu0 0.0
      %4213 = vmatpush.msra.mxu0 0.0
      %4214 = vmatpush.msra.mxu0 0.0
      %4215 = vmatpush.msra.mxu0 0.0
      %4216 = vmatpush.msra.mxu0 0.0
      %4217 = vmatpush.msra.mxu0 0.0
      %4218 = vmatpush.msra.mxu0 0.0
      %4219 = vmatpush.msra.mxu0 %v3404
      %4220 = vmatpush.msra.mxu0 %v3401
      %4221 = vmatpush.msra.mxu0 %v3398
      %4222 = vmatpush.msra.mxu0 %v3395
      %4223 = vmatmul.f32.gmra.mxu0 %v4170
      %v4224 = vpop.f32.mrf.mxu0
      %v4225 = vadd.f32 0.0, %v4224
      %4226 = vmatmul.f32.gmra.mxu0 %v4172
      %v4227 = vpop.f32.mrf.mxu0
      %v4228 = vadd.f32 0.0, %v4227
      %4229 = vmatmul.f32.gmra.mxu0 %v4174
      %v4230 = vpop.f32.mrf.mxu0
      %v4231 = vadd.f32 0.0, %v4230
      %4232 = vmatmul.f32.gmra.mxu0 %v4176
      %v4233 = vpop.f32.mrf.mxu0
      %v4234 = vadd.f32 0.0, %v4233
      %4235 = vdwg.mxu0
      %4236 = vmatpush.msra.mxu0 0.0
      %4237 = vmatpush.msra.mxu0 0.0
      %4238 = vmatpush.msra.mxu0 0.0
      %4239 = vmatpush.msra.mxu0 0.0
      %4240 = vmatpush.msra.mxu0 0.0
      %4241 = vmatpush.msra.mxu0 0.0
      %4242 = vmatpush.msra.mxu0 0.0
      %4243 = vmatpush.msra.mxu0 0.0
      %4244 = vmatpush.msra.mxu0 0.0
      %4245 = vmatpush.msra.mxu0 0.0
      %4246 = vmatpush.msra.mxu0 0.0
      %4247 = vmatpush.msra.mxu0 0.0
      %4248 = vmatpush.msra.mxu0 %v3433
      %4249 = vmatpush.msra.mxu0 %v3430
      %4250 = vmatpush.msra.mxu0 %v3427
      %4251 = vmatpush.msra.mxu0 %v3424
      %4252 = vmatmul.f32.gmra.mxu0 %v4170
      %v4253 = vpop.f32.mrf.mxu0
      %v4254 = vadd.f32 0.0, %v4253
      %4255 = vmatmul.f32.gmra.mxu0 %v4172
      %v4256 = vpop.f32.mrf.mxu0
      %v4257 = vadd.f32 0.0, %v4256
      %4258 = vmatmul.f32.gmra.mxu0 %v4174
      %v4259 = vpop.f32.mrf.mxu0
      %v4260 = vadd.f32 0.0, %v4259
      %4261 = vmatmul.f32.gmra.mxu0 %v4176
      %v4262 = vpop.f32.mrf.mxu0
      %v4263 = vadd.f32 0.0, %v4262
      %4264 = vdwg.mxu0
      %v4265 = vmul.f32 %v4196, %v1070
      %v4266 = vmul.f32 %v4225, %v1071
      %v4267 = vmul.f32 %v4254, %v1072
      %v4268 = vmul.f32 %v4199, %v1073
      %v4269 = vmul.f32 %v4228, %v1074
      %v4270 = vmul.f32 %v4257, %v1075
      %v4271 = vmul.f32 %v4202, %v1076
      %v4272 = vmul.f32 %v4231, %v1077
      %v4273 = vmul.f32 %v4260, %v1078
      %v4274 = vmul.f32 %v4205, %v1079
      %v4275 = vmul.f32 %v4234, %v1080
      %v4276 = vmul.f32 %v4263, %v1081
      %v4278 = vsel %vm1416, %v4267, 0
      %v4281 = vsel %vm1416, %v4270, 0
      %v4284 = vsel %vm1416, %v4273, 0
      %v4287 = vsel %vm1416, %v4276, 0
      %4289 = vmatpush.xpose.msra.mxu0 0.0
      %4290 = vmatpush.xpose.msra.mxu0 0.0
      %4291 = vmatpush.xpose.msra.mxu0 0.0
      %4292 = vmatpush.xpose.msra.mxu0 0.0
      %4293 = vmatpush.xpose.msra.mxu0 0.0
      %4294 = vmatpush.xpose.msra.mxu0 0.0
      %4295 = vmatpush.xpose.msra.mxu0 0.0
      %4296 = vmatpush.xpose.msra.mxu0 0.0
      %4297 = vmatpush.xpose.msra.mxu0 0.0
      %4298 = vmatpush.xpose.msra.mxu0 0.0
      %4299 = vmatpush.xpose.msra.mxu0 0.0
      %4300 = vmatpush.xpose.msra.mxu0 0.0
      %4301 = vmatpush.xpose.msra.mxu0 %v1091
      %4302 = vmatpush.xpose.msra.mxu0 %v1088
      %4303 = vmatpush.xpose.msra.mxu0 %v1085
      %4304 = vmatpush.xpose.msra.mxu0 %v1082
      %4305 = vmatmul.f32.gmra.mxu0 %v4265
      %v4306 = vpop.f32.mrf.mxu0
      %v4307 = vadd.f32 0.0, %v4306
      %4308 = vmatmul.f32.gmra.mxu0 %v4268
      %v4309 = vpop.f32.mrf.mxu0
      %v4310 = vadd.f32 0.0, %v4309
      %4311 = vmatmul.f32.gmra.mxu0 %v4271
      %v4312 = vpop.f32.mrf.mxu0
      %v4313 = vadd.f32 0.0, %v4312
      %4314 = vmatmul.f32.gmra.mxu0 %v4274
      %v4315 = vpop.f32.mrf.mxu0
      %v4316 = vadd.f32 0.0, %v4315
      %4317 = vdwg.mxu0
      %4318 = vmatpush.xpose.msra.mxu0 0.0
      %4319 = vmatpush.xpose.msra.mxu0 0.0
      %4320 = vmatpush.xpose.msra.mxu0 0.0
      %4321 = vmatpush.xpose.msra.mxu0 0.0
      %4322 = vmatpush.xpose.msra.mxu0 0.0
      %4323 = vmatpush.xpose.msra.mxu0 0.0
      %4324 = vmatpush.xpose.msra.mxu0 0.0
      %4325 = vmatpush.xpose.msra.mxu0 0.0
      %4326 = vmatpush.xpose.msra.mxu0 0.0
      %4327 = vmatpush.xpose.msra.mxu0 0.0
      %4328 = vmatpush.xpose.msra.mxu0 0.0
      %4329 = vmatpush.xpose.msra.mxu0 0.0
      %4330 = vmatpush.xpose.msra.mxu0 %v1092
      %4331 = vmatpush.xpose.msra.mxu0 %v1089
      %4332 = vmatpush.xpose.msra.mxu0 %v1086
      %4333 = vmatpush.xpose.msra.mxu0 %v1083
      %4334 = vmatmul.f32.gmra.mxu0 %v4266
      %v4335 = vpop.f32.mrf.mxu0
      %v4336 = vadd.f32 %v4307, %v4335
      %4337 = vmatmul.f32.gmra.mxu0 %v4269
      %v4338 = vpop.f32.mrf.mxu0
      %v4339 = vadd.f32 %v4310, %v4338
      %4340 = vmatmul.f32.gmra.mxu0 %v4272
      %v4341 = vpop.f32.mrf.mxu0
      %v4342 = vadd.f32 %v4313, %v4341
      %4343 = vmatmul.f32.gmra.mxu0 %v4275
      %v4344 = vpop.f32.mrf.mxu0
      %v4345 = vadd.f32 %v4316, %v4344
      %4346 = vdwg.mxu0
      %4347 = vmatpush.xpose.msra.mxu0 0.0
      %4348 = vmatpush.xpose.msra.mxu0 0.0
      %4349 = vmatpush.xpose.msra.mxu0 0.0
      %4350 = vmatpush.xpose.msra.mxu0 0.0
      %4351 = vmatpush.xpose.msra.mxu0 0.0
      %4352 = vmatpush.xpose.msra.mxu0 0.0
      %4353 = vmatpush.xpose.msra.mxu0 0.0
      %4354 = vmatpush.xpose.msra.mxu0 0.0
      %4355 = vmatpush.xpose.msra.mxu0 0.0
      %4356 = vmatpush.xpose.msra.mxu0 0.0
      %4357 = vmatpush.xpose.msra.mxu0 0.0
      %4358 = vmatpush.xpose.msra.mxu0 0.0
      %4359 = vmatpush.xpose.msra.mxu0 %v1550
      %4360 = vmatpush.xpose.msra.mxu0 %v1547
      %4361 = vmatpush.xpose.msra.mxu0 %v1544
      %4362 = vmatpush.xpose.msra.mxu0 %v1541
      %4363 = vmatmul.f32.gmra.mxu0 %v4278
      %v4364 = vpop.f32.mrf.mxu0
      %v4365 = vadd.f32 %v4336, %v4364
      %4366 = vmatmul.f32.gmra.mxu0 %v4281
      %v4367 = vpop.f32.mrf.mxu0
      %v4368 = vadd.f32 %v4339, %v4367
      %4369 = vmatmul.f32.gmra.mxu0 %v4284
      %v4370 = vpop.f32.mrf.mxu0
      %v4371 = vadd.f32 %v4342, %v4370
      %4372 = vmatmul.f32.gmra.mxu0 %v4287
      %v4373 = vpop.f32.mrf.mxu0
      %v4374 = vadd.f32 %v4345, %v4373
      %4375 = vdwg.mxu0
      %4376 = vrot.lane.b32.xlu0 %v3522, 96
      %v4377 = vpop.permute.xlu0 %4376
      %4378 = vrot.lane.b32.xlu0 %v3525, 96
      %v4379 = vpop.permute.xlu0 %4378
      %4380 = vrot.lane.b32.xlu0 %v3528, 96
      %v4381 = vpop.permute.xlu0 %4380
      %4382 = vrot.lane.b32.xlu0 %v3531, 96
      %v4383 = vpop.permute.xlu0 %4382
      %v4384 = vsel %vm1416, %v4377, 0
      %v4386 = vsel %vm1416, %v4379, 0
      %v4388 = vsel %vm1416, %v4381, 0
      %v4390 = vsel %vm1416, %v4383, 0
      %4392 = vmatpush.xpose.msra.mxu0 0.0
      %4393 = vmatpush.xpose.msra.mxu0 0.0
      %4394 = vmatpush.xpose.msra.mxu0 0.0
      %4395 = vmatpush.xpose.msra.mxu0 0.0
      %4396 = vmatpush.xpose.msra.mxu0 0.0
      %4397 = vmatpush.xpose.msra.mxu0 0.0
      %4398 = vmatpush.xpose.msra.mxu0 0.0
      %4399 = vmatpush.xpose.msra.mxu0 0.0
      %4400 = vmatpush.xpose.msra.mxu0 0.0
      %4401 = vmatpush.xpose.msra.mxu0 0.0
      %4402 = vmatpush.xpose.msra.mxu0 0.0
      %4403 = vmatpush.xpose.msra.mxu0 0.0
      %4404 = vmatpush.xpose.msra.mxu0 %v4390
      %4405 = vmatpush.xpose.msra.mxu0 %v4388
      %4406 = vmatpush.xpose.msra.mxu0 %v4386
      %4407 = vmatpush.xpose.msra.mxu0 %v4384
      %4408 = vmatmul.f32.gmra.mxu0 %v4170
      %v4409 = vpop.f32.mrf.mxu0
      %v4410 = vadd.f32 %v4365, %v4409
      %4411 = vmatmul.f32.gmra.mxu0 %v4172
      %v4412 = vpop.f32.mrf.mxu0
      %v4413 = vadd.f32 %v4368, %v4412
      %4414 = vmatmul.f32.gmra.mxu0 %v4174
      %v4415 = vpop.f32.mrf.mxu0
      %v4416 = vadd.f32 %v4371, %v4415
      %4417 = vmatmul.f32.gmra.mxu0 %v4176
      %v4418 = vpop.f32.mrf.mxu0
      %v4419 = vadd.f32 %v4374, %v4418
      %4420 = vdwg.mxu0
      %v4421 = vadd.f32 %v4410, %v1066
      %v4422 = vadd.f32 %v4413, %v1067
      %v4423 = vadd.f32 %v4416, %v1068
      %v4424 = vadd.f32 %v4419, %v1069
      %v4425 = vsel %vm1416, %v4421, -inf
      %4426 = vmax.xlane.f32.xlu0 %v4425
      %v4427 = vpop.xlane.xlu0 %4426
      %v4428 = vsel %vm1416, %v4422, -inf
      %4429 = vmax.xlane.f32.xlu0 %v4428
      %v4430 = vpop.xlane.xlu0 %4429
      %v4431 = vsel %vm1416, %v4423, -inf
      %4432 = vmax.xlane.f32.xlu0 %v4431
      %v4433 = vpop.xlane.xlu0 %4432
      %v4434 = vsel %vm1416, %v4424, -inf
      %4435 = vmax.xlane.f32.xlu0 %v4434
      %v4436 = vpop.xlane.xlu0 %4435
      %v4437 = vsub.f32 %v4421, %v4427
      %v4438 = vsub.f32 %v4422, %v4430
      %v4439 = vsub.f32 %v4423, %v4433
      %v4440 = vsub.f32 %v4424, %v4436
      %v4441 = vmul.f32 %v4437, 1.442695
      %v4442 = vpow.pop %v4441
      %v4443 = vmul.f32 %v4438, 1.442695
      %v4444 = vpow.pop %v4443
      %v4445 = vmul.f32 %v4439, 1.442695
      %v4446 = vpow.pop %v4445
      %v4447 = vmul.f32 %v4440, 1.442695
      %v4448 = vpow.pop %v4447
      %v4449 = vsel %vm1416, %v4442, 0.0
      %4450 = vadd.xlane.f32.xlu0 %v4449
      %v4451 = vpop.xlane.xlu0 %4450
      %v4452 = vsel %vm1416, %v4444, 0.0
      %4453 = vadd.xlane.f32.xlu0 %v4452
      %v4454 = vpop.xlane.xlu0 %4453
      %v4455 = vsel %vm1416, %v4446, 0.0
      %4456 = vadd.xlane.f32.xlu0 %v4455
      %v4457 = vpop.xlane.xlu0 %4456
      %v4458 = vsel %vm1416, %v4448, 0.0
      %4459 = vadd.xlane.f32.xlu0 %v4458
      %v4460 = vpop.xlane.xlu0 %4459
      %v4461 = vrcp.pop %v4451
      %v4462 = vrcp.pop %v4454
      %v4463 = vrcp.pop %v4457
      %v4464 = vrcp.pop %v4460
      %v4465 = vmul.f32 %v4442, %v4461
      %v4466 = vmul.f32 %v4444, %v4462
      %v4467 = vmul.f32 %v4446, %v4463
      %v4468 = vmul.f32 %v4448, %v4464
      %v4470 = vsel %vm1416, %v4465, 0
      %v4473 = vsel %vm1416, %v4466, 0
      %v4476 = vsel %vm1416, %v4467, 0
      %v4479 = vsel %vm1416, %v4468, 0
      %4481 = vmatpush.msra.mxu0 0.0
      %4482 = vmatpush.msra.mxu0 0.0
      %4483 = vmatpush.msra.mxu0 0.0
      %4484 = vmatpush.msra.mxu0 0.0
      %4485 = vmatpush.msra.mxu0 0.0
      %4486 = vmatpush.msra.mxu0 0.0
      %4487 = vmatpush.msra.mxu0 0.0
      %4488 = vmatpush.msra.mxu0 0.0
      %4489 = vmatpush.msra.mxu0 0.0
      %4490 = vmatpush.msra.mxu0 0.0
      %4491 = vmatpush.msra.mxu0 0.0
      %4492 = vmatpush.msra.mxu0 0.0
      %4493 = vmatpush.msra.mxu0 %v1091
      %4494 = vmatpush.msra.mxu0 %v1088
      %4495 = vmatpush.msra.mxu0 %v1085
      %4496 = vmatpush.msra.mxu0 %v1082
      %4497 = vmatmul.f32.gmra.mxu0 %v4470
      %v4498 = vpop.f32.mrf.mxu0
      %v4499 = vadd.f32 0.0, %v4498
      %4500 = vmatmul.f32.gmra.mxu0 %v4473
      %v4501 = vpop.f32.mrf.mxu0
      %v4502 = vadd.f32 0.0, %v4501
      %4503 = vmatmul.f32.gmra.mxu0 %v4476
      %v4504 = vpop.f32.mrf.mxu0
      %v4505 = vadd.f32 0.0, %v4504
      %4506 = vmatmul.f32.gmra.mxu0 %v4479
      %v4507 = vpop.f32.mrf.mxu0
      %v4508 = vadd.f32 0.0, %v4507
      %4509 = vdwg.mxu0
      %4510 = vmatpush.msra.mxu0 0.0
      %4511 = vmatpush.msra.mxu0 0.0
      %4512 = vmatpush.msra.mxu0 0.0
      %4513 = vmatpush.msra.mxu0 0.0
      %4514 = vmatpush.msra.mxu0 0.0
      %4515 = vmatpush.msra.mxu0 0.0
      %4516 = vmatpush.msra.mxu0 0.0
      %4517 = vmatpush.msra.mxu0 0.0
      %4518 = vmatpush.msra.mxu0 0.0
      %4519 = vmatpush.msra.mxu0 0.0
      %4520 = vmatpush.msra.mxu0 0.0
      %4521 = vmatpush.msra.mxu0 0.0
      %4522 = vmatpush.msra.mxu0 %v1092
      %4523 = vmatpush.msra.mxu0 %v1089
      %4524 = vmatpush.msra.mxu0 %v1086
      %4525 = vmatpush.msra.mxu0 %v1083
      %4526 = vmatmul.f32.gmra.mxu0 %v4470
      %v4527 = vpop.f32.mrf.mxu0
      %v4528 = vadd.f32 0.0, %v4527
      %4529 = vmatmul.f32.gmra.mxu0 %v4473
      %v4530 = vpop.f32.mrf.mxu0
      %v4531 = vadd.f32 0.0, %v4530
      %4532 = vmatmul.f32.gmra.mxu0 %v4476
      %v4533 = vpop.f32.mrf.mxu0
      %v4534 = vadd.f32 0.0, %v4533
      %4535 = vmatmul.f32.gmra.mxu0 %v4479
      %v4536 = vpop.f32.mrf.mxu0
      %v4537 = vadd.f32 0.0, %v4536
      %4538 = vdwg.mxu0
      %4539 = vmatpush.msra.mxu0 0.0
      %4540 = vmatpush.msra.mxu0 0.0
      %4541 = vmatpush.msra.mxu0 0.0
      %4542 = vmatpush.msra.mxu0 0.0
      %4543 = vmatpush.msra.mxu0 0.0
      %4544 = vmatpush.msra.mxu0 0.0
      %4545 = vmatpush.msra.mxu0 0.0
      %4546 = vmatpush.msra.mxu0 0.0
      %4547 = vmatpush.msra.mxu0 0.0
      %4548 = vmatpush.msra.mxu0 0.0
      %4549 = vmatpush.msra.mxu0 0.0
      %4550 = vmatpush.msra.mxu0 0.0
      %4551 = vmatpush.msra.mxu0 %v1093
      %4552 = vmatpush.msra.mxu0 %v1090
      %4553 = vmatpush.msra.mxu0 %v1087
      %4554 = vmatpush.msra.mxu0 %v1084
      %4555 = vmatmul.f32.gmra.mxu0 %v4470
      %v4556 = vpop.f32.mrf.mxu0
      %v4557 = vadd.f32 0.0, %v4556
      %4558 = vmatmul.f32.gmra.mxu0 %v4473
      %v4559 = vpop.f32.mrf.mxu0
      %v4560 = vadd.f32 0.0, %v4559
      %4561 = vmatmul.f32.gmra.mxu0 %v4476
      %v4562 = vpop.f32.mrf.mxu0
      %v4563 = vadd.f32 0.0, %v4562
      %4564 = vmatmul.f32.gmra.mxu0 %v4479
      %v4565 = vpop.f32.mrf.mxu0
      %v4566 = vadd.f32 0.0, %v4565
      %4567 = vdwg.mxu0
      %v4568 = vmul.f32 %v4499, %v1070
      %v4569 = vmul.f32 %v4528, %v1071
      %v4570 = vmul.f32 %v4557, %v1072
      %v4571 = vmul.f32 %v4502, %v1073
      %v4572 = vmul.f32 %v4531, %v1074
      %v4573 = vmul.f32 %v4560, %v1075
      %v4574 = vmul.f32 %v4505, %v1076
      %v4575 = vmul.f32 %v4534, %v1077
      %v4576 = vmul.f32 %v4563, %v1078
      %v4577 = vmul.f32 %v4508, %v1079
      %v4578 = vmul.f32 %v4537, %v1080
      %v4579 = vmul.f32 %v4566, %v1081
      %v4581 = vsel %vm1416, %v4570, 0
      %v4584 = vsel %vm1416, %v4573, 0
      %v4587 = vsel %vm1416, %v4576, 0
      %v4590 = vsel %vm1416, %v4579, 0
      %4592 = vmatpush.xpose.msra.mxu0 0.0
      %4593 = vmatpush.xpose.msra.mxu0 0.0
      %4594 = vmatpush.xpose.msra.mxu0 0.0
      %4595 = vmatpush.xpose.msra.mxu0 0.0
      %4596 = vmatpush.xpose.msra.mxu0 0.0
      %4597 = vmatpush.xpose.msra.mxu0 0.0
      %4598 = vmatpush.xpose.msra.mxu0 0.0
      %4599 = vmatpush.xpose.msra.mxu0 0.0
      %4600 = vmatpush.xpose.msra.mxu0 0.0
      %4601 = vmatpush.xpose.msra.mxu0 0.0
      %4602 = vmatpush.xpose.msra.mxu0 0.0
      %4603 = vmatpush.xpose.msra.mxu0 0.0
      %4604 = vmatpush.xpose.msra.mxu0 0.0
      %4605 = vmatpush.xpose.msra.mxu0 0.0
      %4606 = vmatpush.xpose.msra.mxu0 %v1097
      %4607 = vmatpush.xpose.msra.mxu0 %v1094
      %4608 = vmatmul.f32.gmra.mxu0 %v4568
      %v4609 = vpop.f32.mrf.mxu0
      %v4610 = vadd.f32 0.0, %v4609
      %4611 = vmatmul.f32.gmra.mxu0 %v4571
      %v4612 = vpop.f32.mrf.mxu0
      %v4613 = vadd.f32 0.0, %v4612
      %4614 = vmatmul.f32.gmra.mxu0 %v4574
      %v4615 = vpop.f32.mrf.mxu0
      %v4616 = vadd.f32 0.0, %v4615
      %4617 = vmatmul.f32.gmra.mxu0 %v4577
      %v4618 = vpop.f32.mrf.mxu0
      %v4619 = vadd.f32 0.0, %v4618
      %4620 = vdwg.mxu0
      %4621 = vmatpush.xpose.msra.mxu0 0.0
      %4622 = vmatpush.xpose.msra.mxu0 0.0
      %4623 = vmatpush.xpose.msra.mxu0 0.0
      %4624 = vmatpush.xpose.msra.mxu0 0.0
      %4625 = vmatpush.xpose.msra.mxu0 0.0
      %4626 = vmatpush.xpose.msra.mxu0 0.0
      %4627 = vmatpush.xpose.msra.mxu0 0.0
      %4628 = vmatpush.xpose.msra.mxu0 0.0
      %4629 = vmatpush.xpose.msra.mxu0 0.0
      %4630 = vmatpush.xpose.msra.mxu0 0.0
      %4631 = vmatpush.xpose.msra.mxu0 0.0
      %4632 = vmatpush.xpose.msra.mxu0 0.0
      %4633 = vmatpush.xpose.msra.mxu0 0.0
      %4634 = vmatpush.xpose.msra.mxu0 0.0
      %4635 = vmatpush.xpose.msra.mxu0 %v1098
      %4636 = vmatpush.xpose.msra.mxu0 %v1095
      %4637 = vmatmul.f32.gmra.mxu0 %v4569
      %v4638 = vpop.f32.mrf.mxu0
      %v4639 = vadd.f32 %v4610, %v4638
      %4640 = vmatmul.f32.gmra.mxu0 %v4572
      %v4641 = vpop.f32.mrf.mxu0
      %v4642 = vadd.f32 %v4613, %v4641
      %4643 = vmatmul.f32.gmra.mxu0 %v4575
      %v4644 = vpop.f32.mrf.mxu0
      %v4645 = vadd.f32 %v4616, %v4644
      %4646 = vmatmul.f32.gmra.mxu0 %v4578
      %v4647 = vpop.f32.mrf.mxu0
      %v4648 = vadd.f32 %v4619, %v4647
      %4649 = vdwg.mxu0
      %4650 = vmatpush.xpose.msra.mxu0 0.0
      %4651 = vmatpush.xpose.msra.mxu0 0.0
      %4652 = vmatpush.xpose.msra.mxu0 0.0
      %4653 = vmatpush.xpose.msra.mxu0 0.0
      %4654 = vmatpush.xpose.msra.mxu0 0.0
      %4655 = vmatpush.xpose.msra.mxu0 0.0
      %4656 = vmatpush.xpose.msra.mxu0 0.0
      %4657 = vmatpush.xpose.msra.mxu0 0.0
      %4658 = vmatpush.xpose.msra.mxu0 0.0
      %4659 = vmatpush.xpose.msra.mxu0 0.0
      %4660 = vmatpush.xpose.msra.mxu0 0.0
      %4661 = vmatpush.xpose.msra.mxu0 0.0
      %4662 = vmatpush.xpose.msra.mxu0 0.0
      %4663 = vmatpush.xpose.msra.mxu0 0.0
      %4664 = vmatpush.xpose.msra.mxu0 %v1854
      %4665 = vmatpush.xpose.msra.mxu0 %v1852
      %4666 = vmatmul.f32.gmra.mxu0 %v4581
      %v4667 = vpop.f32.mrf.mxu0
      %v4668 = vadd.f32 %v4639, %v4667
      %4669 = vmatmul.f32.gmra.mxu0 %v4584
      %v4670 = vpop.f32.mrf.mxu0
      %v4671 = vadd.f32 %v4642, %v4670
      %4672 = vmatmul.f32.gmra.mxu0 %v4587
      %v4673 = vpop.f32.mrf.mxu0
      %v4674 = vadd.f32 %v4645, %v4673
      %4675 = vmatmul.f32.gmra.mxu0 %v4590
      %v4676 = vpop.f32.mrf.mxu0
      %v4677 = vadd.f32 %v4648, %v4676
      %4678 = vdwg.mxu0
      %v4680 = vsel %vm1166, %v4668, 0
      %v4683 = vsel %vm1166, %v4671, 0
      %v4686 = vsel %vm1166, %v4674, 0
      %v4689 = vsel %vm1166, %v4677, 0
      %4691 = vmatpush.msra.mxu0 0.0
      %4692 = vmatpush.msra.mxu0 0.0
      %4693 = vmatpush.msra.mxu0 0.0
      %4694 = vmatpush.msra.mxu0 0.0
      %4695 = vmatpush.msra.mxu0 0.0
      %4696 = vmatpush.msra.mxu0 0.0
      %4697 = vmatpush.msra.mxu0 0.0
      %4698 = vmatpush.msra.mxu0 0.0
      %4699 = vmatpush.msra.mxu0 0.0
      %4700 = vmatpush.msra.mxu0 0.0
      %4701 = vmatpush.msra.mxu0 0.0
      %4702 = vmatpush.msra.mxu0 0.0
      %4703 = vmatpush.msra.mxu0 0.0
      %4704 = vmatpush.msra.mxu0 0.0
      %4705 = vmatpush.msra.mxu0 %v4102
      %4706 = vmatpush.msra.mxu0 %v3329
      %4707 = vmatmul.f32.gmra.mxu0 %v4680
      %v4708 = vpop.f32.mrf.mxu0
      %v4709 = vadd.f32 0.0, %v4708
      %4710 = vmatmul.f32.gmra.mxu0 %v4683
      %v4711 = vpop.f32.mrf.mxu0
      %v4712 = vadd.f32 0.0, %v4711
      %4713 = vmatmul.f32.gmra.mxu0 %v4686
      %v4714 = vpop.f32.mrf.mxu0
      %v4715 = vadd.f32 0.0, %v4714
      %4716 = vmatmul.f32.gmra.mxu0 %v4689
      %v4717 = vpop.f32.mrf.mxu0
      %v4718 = vadd.f32 0.0, %v4717
      %4719 = vdwg.mxu0
      %4724 = vrot.lane.b32.xlu0 %v3565, 96
      %v4725 = vpop.permute.xlu0 %4724
      %4726 = vrot.lane.b32.xlu0 %v3568, 96
      %v4727 = vpop.permute.xlu0 %4726
      %4728 = vrot.lane.b32.xlu0 %v3571, 96
      %v4729 = vpop.permute.xlu0 %4728
      %4730 = vrot.lane.b32.xlu0 %v3574, 96
      %v4731 = vpop.permute.xlu0 %4730
      %4736 = vmatpush.msra.mxu0 0.0
      %4737 = vmatpush.msra.mxu0 0.0
      %4738 = vmatpush.msra.mxu0 0.0
      %4739 = vmatpush.msra.mxu0 0.0
      %4740 = vmatpush.msra.mxu0 0.0
      %4741 = vmatpush.msra.mxu0 0.0
      %4742 = vmatpush.msra.mxu0 0.0
      %4743 = vmatpush.msra.mxu0 0.0
      %4744 = vmatpush.msra.mxu0 0.0
      %4745 = vmatpush.msra.mxu0 0.0
      %4746 = vmatpush.msra.mxu0 0.0
      %4747 = vmatpush.msra.mxu0 0.0
      %4748 = vmatpush.msra.mxu0 %v4731
      %4749 = vmatpush.msra.mxu0 %v4729
      %4750 = vmatpush.msra.mxu0 %v4727
      %4751 = vmatpush.msra.mxu0 %v4725
      %4752 = vmatmul.f32.gmra.mxu0 %v4470
      %v4753 = vpop.f32.mrf.mxu0
      %v4754 = vadd.f32 %v4709, %v4753
      %4755 = vmatmul.f32.gmra.mxu0 %v4473
      %v4756 = vpop.f32.mrf.mxu0
      %v4757 = vadd.f32 %v4712, %v4756
      %4758 = vmatmul.f32.gmra.mxu0 %v4476
      %v4759 = vpop.f32.mrf.mxu0
      %v4760 = vadd.f32 %v4715, %v4759
      %4761 = vmatmul.f32.gmra.mxu0 %v4479
      %v4762 = vpop.f32.mrf.mxu0
      %v4763 = vadd.f32 %v4718, %v4762
      %4764 = vdwg.mxu0
      %4769 = vrot.lane.b32.xlu0 %v4754, 32
      %v4770 = vpop.permute.xlu0 %4769
      %4771 = vrot.lane.b32.xlu0 %v4757, 32
      %v4772 = vpop.permute.xlu0 %4771
      %4773 = vrot.lane.b32.xlu0 %v4760, 32
      %v4774 = vpop.permute.xlu0 %4773
      %4775 = vrot.lane.b32.xlu0 %v4763, 32
      %v4776 = vpop.permute.xlu0 %4775
      %v4781 = vsel %vm1416, %v4151, %v4770
      %v4782 = vsel %vm1416, %v4154, %v4772
      %v4783 = vsel %vm1416, %v4157, %v4774
      %v4784 = vsel %vm1416, %v4160, %v4776
      %s4785 = scalar_lea.vmem %s33, 64
      %v4786 = vld [vmem:[%s4785] sm:$0xff]
      %v4787 = vld [vmem:[%s4785 + $0x8] sm:$0xff]
      %v4788 = vld [vmem:[%s4785 + $0x10] sm:$0xff]
      %v4789 = vld [vmem:[%s4785 + $0x18] sm:$0xff]
      %v4790 = vld [vmem:[%s4785 + $0x20] sm:$0xff]
      %v4791 = vld [vmem:[%s4785 + $0x28] sm:$0xff]
      %v4792 = vld [vmem:[%s4785 + $0x30] sm:$0xff]
      %v4793 = vld [vmem:[%s4785 + $0x38] sm:$0xff]
      %s4794 = scalar_lea.vmem %s35, 1
      %v4795 = vld [vmem:[%s4794] sm:$0x1]
      %v4797 = vperm.slane %v4795, 0
      %v4800 = vsel %vm1288, %v4781, 0
      %v4803 = vsel %vm1288, %v4782, 0
      %v4806 = vsel %vm1288, %v4783, 0
      %v4809 = vsel %vm1288, %v4784, 0
      %4811 = vmatpush.msra.mxu0 0.0
      %4812 = vmatpush.msra.mxu0 0.0
      %4813 = vmatpush.msra.mxu0 0.0
      %4814 = vmatpush.msra.mxu0 0.0
      %4815 = vmatpush.msra.mxu0 0.0
      %4816 = vmatpush.msra.mxu0 0.0
      %4817 = vmatpush.msra.mxu0 0.0
      %4818 = vmatpush.msra.mxu0 0.0
      %4819 = vmatpush.msra.mxu0 %v4793
      %4820 = vmatpush.msra.mxu0 %v4792
      %4821 = vmatpush.msra.mxu0 %v4791
      %4822 = vmatpush.msra.mxu0 %v4790
      %4823 = vmatpush.msra.mxu0 %v4789
      %4824 = vmatpush.msra.mxu0 %v4788
      %4825 = vmatpush.msra.mxu0 %v4787
      %4826 = vmatpush.msra.mxu0 %v4786
      %4827 = vmatmul.f32.gmra.mxu0 %v4800
      %v4828 = vpop.f32.mrf.mxu0
      %v4829 = vadd.f32 %v4797, %v4828
      %4830 = vmatmul.f32.gmra.mxu0 %v4803
      %v4831 = vpop.f32.mrf.mxu0
      %v4832 = vadd.f32 %v4797, %v4831
      %4833 = vmatmul.f32.gmra.mxu0 %v4806
      %v4834 = vpop.f32.mrf.mxu0
      %v4835 = vadd.f32 %v4797, %v4834
      %4836 = vmatmul.f32.gmra.mxu0 %v4809
      %v4837 = vpop.f32.mrf.mxu0
      %v4838 = vadd.f32 %v4797, %v4837
      %4839 = vdwg.mxu0
      %v4840 = vadd.f32 %v3324, %v4829
      %v4841 = vadd.f32 %v3325, %v4832
      %v4842 = vadd.f32 %v3326, %v4835
      %v4843 = vadd.f32 %v3327, %v4838
      %s4844 = scalar_lea.vmem %s41, 1
      %v4845 = vld [vmem:[%s4844] sm:$0x1]
      %s4846 = scalar_lea.vmem %s43, 1
      %v4847 = vld [vmem:[%s4846] sm:$0x1]
      %v4848 = vsel %vm1288, %v4840, 0.0
      %4849 = vadd.xlane.f32.xlu0 %v4848
      %v4850 = vpop.xlane.xlu0 %4849
      %v4851 = vsel %vm1288, %v4841, 0.0
      %4852 = vadd.xlane.f32.xlu0 %v4851
      %v4853 = vpop.xlane.xlu0 %4852
      %v4854 = vsel %vm1288, %v4842, 0.0
      %4855 = vadd.xlane.f32.xlu0 %v4854
      %v4856 = vpop.xlane.xlu0 %4855
      %v4857 = vsel %vm1288, %v4843, 0.0
      %4858 = vadd.xlane.f32.xlu0 %v4857
      %v4859 = vpop.xlane.xlu0 %4858
      %v4860 = vmul.f32 %v4850, %v2716
      %v4861 = vmul.f32 %v4853, %v2716
      %v4862 = vmul.f32 %v4856, %v2716
      %v4863 = vmul.f32 %v4859, %v2716
      %v4864 = vsub.f32 %v4840, %v4860
      %v4865 = vsub.f32 %v4841, %v4861
      %v4866 = vsub.f32 %v4842, %v4862
      %v4867 = vsub.f32 %v4843, %v4863
      %v4868 = vmul.f32 %v4864, %v4864
      %v4869 = vmul.f32 %v4865, %v4865
      %v4870 = vmul.f32 %v4866, %v4866
      %v4871 = vmul.f32 %v4867, %v4867
      %v4872 = vsel %vm1288, %v4868, 0.0
      %4873 = vadd.xlane.f32.xlu0 %v4872
      %v4874 = vpop.xlane.xlu0 %4873
      %v4875 = vsel %vm1288, %v4869, 0.0
      %4876 = vadd.xlane.f32.xlu0 %v4875
      %v4877 = vpop.xlane.xlu0 %4876
      %v4878 = vsel %vm1288, %v4870, 0.0
      %4879 = vadd.xlane.f32.xlu0 %v4878
      %v4880 = vpop.xlane.xlu0 %4879
      %v4881 = vsel %vm1288, %v4871, 0.0
      %4882 = vadd.xlane.f32.xlu0 %v4881
      %v4883 = vpop.xlane.xlu0 %4882
      %v4884 = vmul.f32 %v4874, %v2716
      %v4885 = vmul.f32 %v4877, %v2716
      %v4886 = vmul.f32 %v4880, %v2716
      %v4887 = vmul.f32 %v4883, %v2716
      %v4888 = vadd.f32 %v4884, 1e-05
      %v4889 = vadd.f32 %v4885, 1e-05
      %v4890 = vadd.f32 %v4886, 1e-05
      %v4891 = vadd.f32 %v4887, 1e-05
      %v4892 = vrsqrt.pop %v4888
      %v4893 = vmul.f32 %v4892, %v4888
      %v4894 = vmul.f32 %v4893, %v4892
      %v4895 = vmul.f32 0.5, %v4894
      %v4896 = vsub.f32 1.5, %v4895
      %v4897 = vmul.f32 %v4892, %v4896
      %vm4898 = vweird.f32 %v4888
      %vm4899 = vweird.f32 %v4892
      %vm4900 = vmor %vm4898, %vm4899
      %v4901 = vsel %vm4900, %v4892, %v4897
      %v4902 = vrsqrt.pop %v4889
      %v4903 = vmul.f32 %v4902, %v4889
      %v4904 = vmul.f32 %v4903, %v4902
      %v4905 = vmul.f32 0.5, %v4904
      %v4906 = vsub.f32 1.5, %v4905
      %v4907 = vmul.f32 %v4902, %v4906
      %vm4908 = vweird.f32 %v4889
      %vm4909 = vweird.f32 %v4902
      %vm4910 = vmor %vm4908, %vm4909
      %v4911 = vsel %vm4910, %v4902, %v4907
      %v4912 = vrsqrt.pop %v4890
      %v4913 = vmul.f32 %v4912, %v4890
      %v4914 = vmul.f32 %v4913, %v4912
      %v4915 = vmul.f32 0.5, %v4914
      %v4916 = vsub.f32 1.5, %v4915
      %v4917 = vmul.f32 %v4912, %v4916
      %vm4918 = vweird.f32 %v4890
      %vm4919 = vweird.f32 %v4912
      %vm4920 = vmor %vm4918, %vm4919
      %v4921 = vsel %vm4920, %v4912, %v4917
      %v4922 = vrsqrt.pop %v4891
      %v4923 = vmul.f32 %v4922, %v4891
      %v4924 = vmul.f32 %v4923, %v4922
      %v4925 = vmul.f32 0.5, %v4924
      %v4926 = vsub.f32 1.5, %v4925
      %v4927 = vmul.f32 %v4922, %v4926
      %vm4928 = vweird.f32 %v4891
      %vm4929 = vweird.f32 %v4922
      %vm4930 = vmor %vm4928, %vm4929
      %v4931 = vsel %vm4930, %v4922, %v4927
      %v4932 = vmul.f32 %v4864, %v4901
      %v4933 = vmul.f32 %v4865, %v4911
      %v4934 = vmul.f32 %v4866, %v4921
      %v4935 = vmul.f32 %v4867, %v4931
      %v4937 = vperm.slane %v4845, 0
      %v4939 = vmul.f32 %v4932, %v4937
      %v4940 = vmul.f32 %v4933, %v4937
      %v4941 = vmul.f32 %v4934, %v4937
      %v4942 = vmul.f32 %v4935, %v4937
      %v4944 = vperm.slane %v4847, 0
      %v4946 = vadd.f32 %v4939, %v4944
      %v4947 = vadd.f32 %v4940, %v4944
      %v4948 = vadd.f32 %v4941, %v4944
      %v4949 = vadd.f32 %v4942, %v4944
      %v4950 = vmul.f32 %v4946, %v1038
      %v4951 = vmul.f32 %v4947, %v1043
      %v4952 = vmul.f32 %v4948, %v1048
      %v4953 = vmul.f32 %v4949, %v1053
      %4954 = vmatpush.msra.mxu0 0.0
      %4955 = vmatpush.msra.mxu0 0.0
      %4956 = vmatpush.msra.mxu0 0.0
      %4957 = vmatpush.msra.mxu0 0.0
      %4958 = vmatpush.msra.mxu0 0.0
      %4959 = vmatpush.msra.mxu0 0.0
      %4960 = vmatpush.msra.mxu0 0.0
      %4961 = vmatpush.msra.mxu0 0.0
      %4962 = vmatpush.msra.mxu0 0.0
      %4963 = vmatpush.msra.mxu0 0.0
      %4964 = vmatpush.msra.mxu0 0.0
      %4965 = vmatpush.msra.mxu0 0.0
      %4966 = vmatpush.msra.mxu0 %v4953
      %4967 = vmatpush.msra.mxu0 %v4952
      %4968 = vmatpush.msra.mxu0 %v4951
      %4969 = vmatpush.msra.mxu0 %v4950
      %4970 = vmatmul.f32.gmra.mxu0 %v2812
      %v4971 = vpop.f32.mrf.mxu0
      %v4972 = vadd.f32 0.0, %v4971
      %4973 = vmatmul.f32.gmra.mxu0 %v2815
      %v4974 = vpop.f32.mrf.mxu0
      %v4975 = vadd.f32 0.0, %v4974
      %4976 = vmatmul.f32.gmra.mxu0 %v2818
      %v4977 = vpop.f32.mrf.mxu0
      %v4978 = vadd.f32 0.0, %v4977
      %4979 = vmatmul.f32.gmra.mxu0 %v2821
      %v4980 = vpop.f32.mrf.mxu0
      %v4981 = vadd.f32 0.0, %v4980
      %4982 = vdwg.mxu0
      %4983 = vmatpush.msra.mxu0 0.0
      %4984 = vmatpush.msra.mxu0 0.0
      %4985 = vmatpush.msra.mxu0 0.0
      %4986 = vmatpush.msra.mxu0 0.0
      %4987 = vmatpush.msra.mxu0 0.0
      %4988 = vmatpush.msra.mxu0 0.0
      %4989 = vmatpush.msra.mxu0 0.0
      %4990 = vmatpush.msra.mxu0 0.0
      %4991 = vmatpush.msra.mxu0 0.0
      %4992 = vmatpush.msra.mxu0 0.0
      %4993 = vmatpush.msra.mxu0 0.0
      %4994 = vmatpush.msra.mxu0 0.0
      %4995 = vmatpush.msra.mxu0 %v4953
      %4996 = vmatpush.msra.mxu0 %v4952
      %4997 = vmatpush.msra.mxu0 %v4951
      %4998 = vmatpush.msra.mxu0 %v4950
      %4999 = vmatmul.f32.gmra.mxu0 %v2853
      %v5000 = vpop.f32.mrf.mxu0
      %v5001 = vadd.f32 0.0, %v5000
      %5002 = vmatmul.f32.gmra.mxu0 %v2856
      %v5003 = vpop.f32.mrf.mxu0
      %v5004 = vadd.f32 0.0, %v5003
      %5005 = vmatmul.f32.gmra.mxu0 %v2859
      %v5006 = vpop.f32.mrf.mxu0
      %v5007 = vadd.f32 0.0, %v5006
      %5008 = vmatmul.f32.gmra.mxu0 %v2862
      %v5009 = vpop.f32.mrf.mxu0
      %v5010 = vadd.f32 0.0, %v5009
      %5011 = vdwg.mxu0
      %5016 = vrot.lane.b32.xlu0 %v4950, 64
      %v5017 = vpop.permute.xlu0 %5016
      %5018 = vrot.lane.b32.xlu0 %v4951, 64
      %v5019 = vpop.permute.xlu0 %5018
      %5020 = vrot.lane.b32.xlu0 %v4952, 64
      %v5021 = vpop.permute.xlu0 %5020
      %5022 = vrot.lane.b32.xlu0 %v4953, 64
      %v5023 = vpop.permute.xlu0 %5022
      %v5028 = vsel %vm1288, %v4972, %v5017
      %v5029 = vsel %vm1288, %v4975, %v5019
      %v5030 = vsel %vm1288, %v4978, %v5021
      %v5031 = vsel %vm1288, %v4981, %v5023
      %s5032 = scalar_lea.vmem %s45, 192
      %v5033 = vld [vmem:[%s5032] sm:$0xff]
      %v5034 = vld [vmem:[%s5032 + $0x8] sm:$0xff]
      %v5035 = vld [vmem:[%s5032 + $0x10] sm:$0xff]
      %v5036 = vld [vmem:[%s5032 + $0x18] sm:$0xff]
      %v5037 = vld [vmem:[%s5032 + $0x20] sm:$0xff]
      %v5038 = vld [vmem:[%s5032 + $0x28] sm:$0xff]
      %v5039 = vld [vmem:[%s5032 + $0x30] sm:$0xff]
      %v5040 = vld [vmem:[%s5032 + $0x38] sm:$0xff]
      %v5041 = vld [vmem:[%s5032 + $0x40] sm:$0xff]
      %v5042 = vld [vmem:[%s5032 + $0x48] sm:$0xff]
      %v5043 = vld [vmem:[%s5032 + $0x50] sm:$0xff]
      %v5044 = vld [vmem:[%s5032 + $0x58] sm:$0xff]
      %v5045 = vld [vmem:[%s5032 + $0x60] sm:$0xff]
      %v5046 = vld [vmem:[%s5032 + $0x68] sm:$0xff]
      %v5047 = vld [vmem:[%s5032 + $0x70] sm:$0xff]
      %v5048 = vld [vmem:[%s5032 + $0x78] sm:$0xff]
      %v5049 = vld [vmem:[%s5032 + $0x80] sm:$0xff]
      %v5050 = vld [vmem:[%s5032 + $0x88] sm:$0xff]
      %v5051 = vld [vmem:[%s5032 + $0x90] sm:$0xff]
      %v5052 = vld [vmem:[%s5032 + $0x98] sm:$0xff]
      %v5053 = vld [vmem:[%s5032 + $0xa0] sm:$0xff]
      %v5054 = vld [vmem:[%s5032 + $0xa8] sm:$0xff]
      %v5055 = vld [vmem:[%s5032 + $0xb0] sm:$0xff]
      %v5056 = vld [vmem:[%s5032 + $0xb8] sm:$0xff]
      %s5057 = scalar_lea.vmem %s47, 1
      %v5058 = vld [vmem:[%s5057] sm:$0x1]
      %v5060 = vperm.slane %v5058, 0
      %v5063 = vsel %vm1288, %v5001, 0
      %v5066 = vsel %vm1288, %v5004, 0
      %v5069 = vsel %vm1288, %v5007, 0
      %v5072 = vsel %vm1288, %v5010, 0
      %5074 = vmatpush.msra.mxu0 %v5048
      %5075 = vmatpush.msra.mxu0 %v5047
      %5076 = vmatpush.msra.mxu0 %v5046
      %5077 = vmatpush.msra.mxu0 %v5045
      %5078 = vmatpush.msra.mxu0 %v5044
      %5079 = vmatpush.msra.mxu0 %v5043
      %5080 = vmatpush.msra.mxu0 %v5042
      %5081 = vmatpush.msra.mxu0 %v5041
      %5082 = vmatpush.msra.mxu0 %v5040
      %5083 = vmatpush.msra.mxu0 %v5039
      %5084 = vmatpush.msra.mxu0 %v5038
      %5085 = vmatpush.msra.mxu0 %v5037
      %5086 = vmatpush.msra.mxu0 %v5036
      %5087 = vmatpush.msra.mxu0 %v5035
      %5088 = vmatpush.msra.mxu0 %v5034
      %5089 = vmatpush.msra.mxu0 %v5033
      %5090 = vmatmul.f32.gmra.mxu0 %v5028
      %v5091 = vpop.f32.mrf.mxu0
      %v5092 = vadd.f32 %v5060, %v5091
      %5093 = vmatmul.f32.gmra.mxu0 %v5029
      %v5094 = vpop.f32.mrf.mxu0
      %v5095 = vadd.f32 %v5060, %v5094
      %5096 = vmatmul.f32.gmra.mxu0 %v5030
      %v5097 = vpop.f32.mrf.mxu0
      %v5098 = vadd.f32 %v5060, %v5097
      %5099 = vmatmul.f32.gmra.mxu0 %v5031
      %v5100 = vpop.f32.mrf.mxu0
      %v5101 = vadd.f32 %v5060, %v5100
      %5102 = vdwg.mxu0
      %5103 = vmatpush.msra.mxu0 0.0
      %5104 = vmatpush.msra.mxu0 0.0
      %5105 = vmatpush.msra.mxu0 0.0
      %5106 = vmatpush.msra.mxu0 0.0
      %5107 = vmatpush.msra.mxu0 0.0
      %5108 = vmatpush.msra.mxu0 0.0
      %5109 = vmatpush.msra.mxu0 0.0
      %5110 = vmatpush.msra.mxu0 0.0
      %5111 = vmatpush.msra.mxu0 %v5056
      %5112 = vmatpush.msra.mxu0 %v5055
      %5113 = vmatpush.msra.mxu0 %v5054
      %5114 = vmatpush.msra.mxu0 %v5053
      %5115 = vmatpush.msra.mxu0 %v5052
      %5116 = vmatpush.msra.mxu0 %v5051
      %5117 = vmatpush.msra.mxu0 %v5050
      %5118 = vmatpush.msra.mxu0 %v5049
      %5119 = vmatmul.f32.gmra.mxu0 %v5063
      %v5120 = vpop.f32.mrf.mxu0
      %v5121 = vadd.f32 %v5092, %v5120
      %5122 = vmatmul.f32.gmra.mxu0 %v5066
      %v5123 = vpop.f32.mrf.mxu0
      %v5124 = vadd.f32 %v5095, %v5123
      %5125 = vmatmul.f32.gmra.mxu0 %v5069
      %v5126 = vpop.f32.mrf.mxu0
      %v5127 = vadd.f32 %v5098, %v5126
      %5128 = vmatmul.f32.gmra.mxu0 %v5072
      %v5129 = vpop.f32.mrf.mxu0
      %v5130 = vadd.f32 %v5101, %v5129
      %5131 = vdwg.mxu0
      %v5132 = vmax.f32 %v5121, 0.0
      %v5133 = vmax.f32 %v5124, 0.0
      %v5134 = vmax.f32 %v5127, 0.0
      %v5135 = vmax.f32 %v5130, 0.0
      %v5136 = vmul.f32 %v5132, %v1038
      %v5137 = vmul.f32 %v5133, %v1043
      %v5138 = vmul.f32 %v5134, %v1048
      %v5139 = vmul.f32 %v5135, %v1053
      %5140 = vmatpush.msra.mxu0 0.0
      %5141 = vmatpush.msra.mxu0 0.0
      %5142 = vmatpush.msra.mxu0 0.0
      %5143 = vmatpush.msra.mxu0 0.0
      %5144 = vmatpush.msra.mxu0 0.0
      %5145 = vmatpush.msra.mxu0 0.0
      %5146 = vmatpush.msra.mxu0 0.0
      %5147 = vmatpush.msra.mxu0 0.0
      %5148 = vmatpush.msra.mxu0 0.0
      %5149 = vmatpush.msra.mxu0 0.0
      %5150 = vmatpush.msra.mxu0 0.0
      %5151 = vmatpush.msra.mxu0 0.0
      %5152 = vmatpush.msra.mxu0 %v5139
      %5153 = vmatpush.msra.mxu0 %v5138
      %5154 = vmatpush.msra.mxu0 %v5137
      %5155 = vmatpush.msra.mxu0 %v5136
      %5156 = vmatmul.f32.gmra.mxu0 %v2812
      %v5157 = vpop.f32.mrf.mxu0
      %v5158 = vadd.f32 0.0, %v5157
      %5159 = vmatmul.f32.gmra.mxu0 %v2815
      %v5160 = vpop.f32.mrf.mxu0
      %v5161 = vadd.f32 0.0, %v5160
      %5162 = vmatmul.f32.gmra.mxu0 %v2818
      %v5163 = vpop.f32.mrf.mxu0
      %v5164 = vadd.f32 0.0, %v5163
      %5165 = vmatmul.f32.gmra.mxu0 %v2821
      %v5166 = vpop.f32.mrf.mxu0
      %v5167 = vadd.f32 0.0, %v5166
      %5168 = vdwg.mxu0
      %5169 = vmatpush.msra.mxu0 0.0
      %5170 = vmatpush.msra.mxu0 0.0
      %5171 = vmatpush.msra.mxu0 0.0
      %5172 = vmatpush.msra.mxu0 0.0
      %5173 = vmatpush.msra.mxu0 0.0
      %5174 = vmatpush.msra.mxu0 0.0
      %5175 = vmatpush.msra.mxu0 0.0
      %5176 = vmatpush.msra.mxu0 0.0
      %5177 = vmatpush.msra.mxu0 0.0
      %5178 = vmatpush.msra.mxu0 0.0
      %5179 = vmatpush.msra.mxu0 0.0
      %5180 = vmatpush.msra.mxu0 0.0
      %5181 = vmatpush.msra.mxu0 %v5139
      %5182 = vmatpush.msra.mxu0 %v5138
      %5183 = vmatpush.msra.mxu0 %v5137
      %5184 = vmatpush.msra.mxu0 %v5136
      %5185 = vmatmul.f32.gmra.mxu0 %v2853
      %v5186 = vpop.f32.mrf.mxu0
      %v5187 = vadd.f32 0.0, %v5186
      %5188 = vmatmul.f32.gmra.mxu0 %v2856
      %v5189 = vpop.f32.mrf.mxu0
      %v5190 = vadd.f32 0.0, %v5189
      %5191 = vmatmul.f32.gmra.mxu0 %v2859
      %v5192 = vpop.f32.mrf.mxu0
      %v5193 = vadd.f32 0.0, %v5192
      %5194 = vmatmul.f32.gmra.mxu0 %v2862
      %v5195 = vpop.f32.mrf.mxu0
      %v5196 = vadd.f32 0.0, %v5195
      %5197 = vdwg.mxu0
      %s5198 = scalar_lea.vmem %s49, 384
      %v5199 = vld [vmem:[%s5198] sm:$0xff]
      %v5200 = vld [vmem:[%s5198 + $0x8] sm:$0xff]
      %v5201 = vld [vmem:[%s5198 + $0x10] sm:$0xff]
      %v5202 = vld [vmem:[%s5198 + $0x18] sm:$0xff]
      %v5203 = vld [vmem:[%s5198 + $0x20] sm:$0xff]
      %v5204 = vld [vmem:[%s5198 + $0x28] sm:$0xff]
      %v5205 = vld [vmem:[%s5198 + $0x30] sm:$0xff]
      %v5206 = vld [vmem:[%s5198 + $0x38] sm:$0xff]
      %v5207 = vld [vmem:[%s5198 + $0x40] sm:$0xff]
      %v5208 = vld [vmem:[%s5198 + $0x48] sm:$0xff]
      %v5209 = vld [vmem:[%s5198 + $0x50] sm:$0xff]
      %v5210 = vld [vmem:[%s5198 + $0x58] sm:$0xff]
      %v5211 = vld [vmem:[%s5198 + $0x60] sm:$0xff]
      %v5212 = vld [vmem:[%s5198 + $0x68] sm:$0xff]
      %v5213 = vld [vmem:[%s5198 + $0x70] sm:$0xff]
      %v5214 = vld [vmem:[%s5198 + $0x78] sm:$0xff]
      %v5215 = vld [vmem:[%s5198 + $0x80] sm:$0xff]
      %v5216 = vld [vmem:[%s5198 + $0x88] sm:$0xff]
      %v5217 = vld [vmem:[%s5198 + $0x90] sm:$0xff]
      %v5218 = vld [vmem:[%s5198 + $0x98] sm:$0xff]
      %v5219 = vld [vmem:[%s5198 + $0xa0] sm:$0xff]
      %v5220 = vld [vmem:[%s5198 + $0xa8] sm:$0xff]
      %v5221 = vld [vmem:[%s5198 + $0xb0] sm:$0xff]
      %v5222 = vld [vmem:[%s5198 + $0xb8] sm:$0xff]
      %v5223 = vld [vmem:[%s5198 + $0xc0] sm:$0xff]
      %v5224 = vld [vmem:[%s5198 + $0xc8] sm:$0xff]
      %v5225 = vld [vmem:[%s5198 + $0xd0] sm:$0xff]
      %v5226 = vld [vmem:[%s5198 + $0xd8] sm:$0xff]
      %v5227 = vld [vmem:[%s5198 + $0xe0] sm:$0xff]
      %v5228 = vld [vmem:[%s5198 + $0xe8] sm:$0xff]
      %v5229 = vld [vmem:[%s5198 + $0xf0] sm:$0xff]
      %v5230 = vld [vmem:[%s5198 + $0xf8] sm:$0xff]
      %v5231 = vld [vmem:[%s5198 + $0x100] sm:$0xff]
      %v5232 = vld [vmem:[%s5198 + $0x108] sm:$0xff]
      %v5233 = vld [vmem:[%s5198 + $0x110] sm:$0xff]
      %v5234 = vld [vmem:[%s5198 + $0x118] sm:$0xff]
      %v5235 = vld [vmem:[%s5198 + $0x120] sm:$0xff]
      %v5236 = vld [vmem:[%s5198 + $0x128] sm:$0xff]
      %v5237 = vld [vmem:[%s5198 + $0x130] sm:$0xff]
      %v5238 = vld [vmem:[%s5198 + $0x138] sm:$0xff]
      %v5239 = vld [vmem:[%s5198 + $0x140] sm:$0xff]
      %v5240 = vld [vmem:[%s5198 + $0x148] sm:$0xff]
      %v5241 = vld [vmem:[%s5198 + $0x150] sm:$0xff]
      %v5242 = vld [vmem:[%s5198 + $0x158] sm:$0xff]
      %v5243 = vld [vmem:[%s5198 + $0x160] sm:$0xff]
      %v5244 = vld [vmem:[%s5198 + $0x168] sm:$0xff]
      %v5245 = vld [vmem:[%s5198 + $0x170] sm:$0xff]
      %v5246 = vld [vmem:[%s5198 + $0x178] sm:$0xff]
      %s5247 = scalar_lea.vmem %s51, 1
      %v5248 = vld [vmem:[%s5247] sm:$0x1]
      %v5250 = vperm.slane %v5248, 0
      %5252 = vmatpush.msra.mxu0 %v5214
      %5253 = vmatpush.msra.mxu0 %v5213
      %5254 = vmatpush.msra.mxu0 %v5212
      %5255 = vmatpush.msra.mxu0 %v5211
      %5256 = vmatpush.msra.mxu0 %v5210
      %5257 = vmatpush.msra.mxu0 %v5209
      %5258 = vmatpush.msra.mxu0 %v5208
      %5259 = vmatpush.msra.mxu0 %v5207
      %5260 = vmatpush.msra.mxu0 %v5206
      %5261 = vmatpush.msra.mxu0 %v5205
      %5262 = vmatpush.msra.mxu0 %v5204
      %5263 = vmatpush.msra.mxu0 %v5203
      %5264 = vmatpush.msra.mxu0 %v5202
      %5265 = vmatpush.msra.mxu0 %v5201
      %5266 = vmatpush.msra.mxu0 %v5200
      %5267 = vmatpush.msra.mxu0 %v5199
      %5268 = vmatmul.f32.gmra.mxu0 %v5158
      %v5269 = vpop.f32.mrf.mxu0
      %v5270 = vadd.f32 %v5250, %v5269
      %5271 = vmatmul.f32.gmra.mxu0 %v5161
      %v5272 = vpop.f32.mrf.mxu0
      %v5273 = vadd.f32 %v5250, %v5272
      %5274 = vmatmul.f32.gmra.mxu0 %v5164
      %v5275 = vpop.f32.mrf.mxu0
      %v5276 = vadd.f32 %v5250, %v5275
      %5277 = vmatmul.f32.gmra.mxu0 %v5167
      %v5278 = vpop.f32.mrf.mxu0
      %v5279 = vadd.f32 %v5250, %v5278
      %5280 = vdwg.mxu0
      %5281 = vmatpush.msra.mxu0 %v5230
      %5282 = vmatpush.msra.mxu0 %v5229
      %5283 = vmatpush.msra.mxu0 %v5228
      %5284 = vmatpush.msra.mxu0 %v5227
      %5285 = vmatpush.msra.mxu0 %v5226
      %5286 = vmatpush.msra.mxu0 %v5225
      %5287 = vmatpush.msra.mxu0 %v5224
      %5288 = vmatpush.msra.mxu0 %v5223
      %5289 = vmatpush.msra.mxu0 %v5222
      %5290 = vmatpush.msra.mxu0 %v5221
      %5291 = vmatpush.msra.mxu0 %v5220
      %5292 = vmatpush.msra.mxu0 %v5219
      %5293 = vmatpush.msra.mxu0 %v5218
      %5294 = vmatpush.msra.mxu0 %v5217
      %5295 = vmatpush.msra.mxu0 %v5216
      %5296 = vmatpush.msra.mxu0 %v5215
      %5297 = vmatmul.f32.gmra.mxu0 %v5136
      %v5298 = vpop.f32.mrf.mxu0
      %v5299 = vadd.f32 %v5270, %v5298
      %5300 = vmatmul.f32.gmra.mxu0 %v5137
      %v5301 = vpop.f32.mrf.mxu0
      %v5302 = vadd.f32 %v5273, %v5301
      %5303 = vmatmul.f32.gmra.mxu0 %v5138
      %v5304 = vpop.f32.mrf.mxu0
      %v5305 = vadd.f32 %v5276, %v5304
      %5306 = vmatmul.f32.gmra.mxu0 %v5139
      %v5307 = vpop.f32.mrf.mxu0
      %v5308 = vadd.f32 %v5279, %v5307
      %5309 = vdwg.mxu0
      %5310 = vmatpush.msra.mxu0 %v5246
      %5311 = vmatpush.msra.mxu0 %v5245
      %5312 = vmatpush.msra.mxu0 %v5244
      %5313 = vmatpush.msra.mxu0 %v5243
      %5314 = vmatpush.msra.mxu0 %v5242
      %5315 = vmatpush.msra.mxu0 %v5241
      %5316 = vmatpush.msra.mxu0 %v5240
      %5317 = vmatpush.msra.mxu0 %v5239
      %5318 = vmatpush.msra.mxu0 %v5238
      %5319 = vmatpush.msra.mxu0 %v5237
      %5320 = vmatpush.msra.mxu0 %v5236
      %5321 = vmatpush.msra.mxu0 %v5235
      %5322 = vmatpush.msra.mxu0 %v5234
      %5323 = vmatpush.msra.mxu0 %v5233
      %5324 = vmatpush.msra.mxu0 %v5232
      %5325 = vmatpush.msra.mxu0 %v5231
      %5326 = vmatmul.f32.gmra.mxu0 %v5187
      %v5327 = vpop.f32.mrf.mxu0
      %v5328 = vadd.f32 %v5299, %v5327
      %5329 = vmatmul.f32.gmra.mxu0 %v5190
      %v5330 = vpop.f32.mrf.mxu0
      %v5331 = vadd.f32 %v5302, %v5330
      %5332 = vmatmul.f32.gmra.mxu0 %v5193
      %v5333 = vpop.f32.mrf.mxu0
      %v5334 = vadd.f32 %v5305, %v5333
      %5335 = vmatmul.f32.gmra.mxu0 %v5196
      %v5336 = vpop.f32.mrf.mxu0
      %v5337 = vadd.f32 %v5308, %v5336
      %5338 = vdwg.mxu0
      %v5339 = vmul.f32 %v5328, %v1038
      %v5340 = vmul.f32 %v5331, %v1043
      %v5341 = vmul.f32 %v5334, %v1048
      %v5342 = vmul.f32 %v5337, %v1053
      %v5343 = vadd.f32 %v4946, %v5339
      %v5344 = vadd.f32 %v4947, %v5340
      %v5345 = vadd.f32 %v4948, %v5341
      %v5346 = vadd.f32 %v4949, %v5342
      %s5347 = scalar_lea.vmem %s53, 1
      %v5348 = vld [vmem:[%s5347] sm:$0x1]
      %s5349 = scalar_lea.vmem %s55, 1
      %v5350 = vld [vmem:[%s5349] sm:$0x1]
      %v5351 = vsel %vm1288, %v5343, 0.0
      %5352 = vadd.xlane.f32.xlu0 %v5351
      %v5353 = vpop.xlane.xlu0 %5352
      %v5354 = vsel %vm1288, %v5344, 0.0
      %5355 = vadd.xlane.f32.xlu0 %v5354
      %v5356 = vpop.xlane.xlu0 %5355
      %v5357 = vsel %vm1288, %v5345, 0.0
      %5358 = vadd.xlane.f32.xlu0 %v5357
      %v5359 = vpop.xlane.xlu0 %5358
      %v5360 = vsel %vm1288, %v5346, 0.0
      %5361 = vadd.xlane.f32.xlu0 %v5360
      %v5362 = vpop.xlane.xlu0 %5361
      %v5363 = vmul.f32 %v5353, %v2716
      %v5364 = vmul.f32 %v5356, %v2716
      %v5365 = vmul.f32 %v5359, %v2716
      %v5366 = vmul.f32 %v5362, %v2716
      %v5367 = vsub.f32 %v5343, %v5363
      %v5368 = vsub.f32 %v5344, %v5364
      %v5369 = vsub.f32 %v5345, %v5365
      %v5370 = vsub.f32 %v5346, %v5366
      %v5371 = vmul.f32 %v5367, %v5367
      %v5372 = vmul.f32 %v5368, %v5368
      %v5373 = vmul.f32 %v5369, %v5369
      %v5374 = vmul.f32 %v5370, %v5370
      %v5375 = vsel %vm1288, %v5371, 0.0
      %5376 = vadd.xlane.f32.xlu0 %v5375
      %v5377 = vpop.xlane.xlu0 %5376
      %v5378 = vsel %vm1288, %v5372, 0.0
      %5379 = vadd.xlane.f32.xlu0 %v5378
      %v5380 = vpop.xlane.xlu0 %5379
      %v5381 = vsel %vm1288, %v5373, 0.0
      %5382 = vadd.xlane.f32.xlu0 %v5381
      %v5383 = vpop.xlane.xlu0 %5382
      %v5384 = vsel %vm1288, %v5374, 0.0
      %5385 = vadd.xlane.f32.xlu0 %v5384
      %v5386 = vpop.xlane.xlu0 %5385
      %v5387 = vmul.f32 %v5377, %v2716
      %v5388 = vmul.f32 %v5380, %v2716
      %v5389 = vmul.f32 %v5383, %v2716
      %v5390 = vmul.f32 %v5386, %v2716
      %v5391 = vadd.f32 %v5387, 1e-05
      %v5392 = vadd.f32 %v5388, 1e-05
      %v5393 = vadd.f32 %v5389, 1e-05
      %v5394 = vadd.f32 %v5390, 1e-05
      %v5395 = vrsqrt.pop %v5391
      %v5396 = vmul.f32 %v5395, %v5391
      %v5397 = vmul.f32 %v5396, %v5395
      %v5398 = vmul.f32 0.5, %v5397
      %v5399 = vsub.f32 1.5, %v5398
      %v5400 = vmul.f32 %v5395, %v5399
      %vm5401 = vweird.f32 %v5391
      %vm5402 = vweird.f32 %v5395
      %vm5403 = vmor %vm5401, %vm5402
      %v5404 = vsel %vm5403, %v5395, %v5400
      %v5405 = vrsqrt.pop %v5392
      %v5406 = vmul.f32 %v5405, %v5392
      %v5407 = vmul.f32 %v5406, %v5405
      %v5408 = vmul.f32 0.5, %v5407
      %v5409 = vsub.f32 1.5, %v5408
      %v5410 = vmul.f32 %v5405, %v5409
      %vm5411 = vweird.f32 %v5392
      %vm5412 = vweird.f32 %v5405
      %vm5413 = vmor %vm5411, %vm5412
      %v5414 = vsel %vm5413, %v5405, %v5410
      %v5415 = vrsqrt.pop %v5393
      %v5416 = vmul.f32 %v5415, %v5393
      %v5417 = vmul.f32 %v5416, %v5415
      %v5418 = vmul.f32 0.5, %v5417
      %v5419 = vsub.f32 1.5, %v5418
      %v5420 = vmul.f32 %v5415, %v5419
      %vm5421 = vweird.f32 %v5393
      %vm5422 = vweird.f32 %v5415
      %vm5423 = vmor %vm5421, %vm5422
      %v5424 = vsel %vm5423, %v5415, %v5420
      %v5425 = vrsqrt.pop %v5394
      %v5426 = vmul.f32 %v5425, %v5394
      %v5427 = vmul.f32 %v5426, %v5425
      %v5428 = vmul.f32 0.5, %v5427
      %v5429 = vsub.f32 1.5, %v5428
      %v5430 = vmul.f32 %v5425, %v5429
      %vm5431 = vweird.f32 %v5394
      %vm5432 = vweird.f32 %v5425
      %vm5433 = vmor %vm5431, %vm5432
      %v5434 = vsel %vm5433, %v5425, %v5430
      %v5435 = vmul.f32 %v5367, %v5404
      %v5436 = vmul.f32 %v5368, %v5414
      %v5437 = vmul.f32 %v5369, %v5424
      %v5438 = vmul.f32 %v5370, %v5434
      %v5440 = vperm.slane %v5348, 0
      %v5442 = vmul.f32 %v5435, %v5440
      %v5443 = vmul.f32 %v5436, %v5440
      %v5444 = vmul.f32 %v5437, %v5440
      %v5445 = vmul.f32 %v5438, %v5440
      %v5447 = vperm.slane %v5350, 0
      %v5449 = vadd.f32 %v5442, %v5447
      %v5450 = vadd.f32 %v5443, %v5447
      %v5451 = vadd.f32 %v5444, %v5447
      %v5452 = vadd.f32 %v5445, %v5447
      %v5453 = vmul.f32 %v5449, %v1038
      %v5454 = vmul.f32 %v5450, %v1043
      %v5455 = vmul.f32 %v5451, %v1048
      %v5456 = vmul.f32 %v5452, %v1053
      %v5457 = vld [vmem:[%s57] sm:$0xff]
      %v5458 = vld [vmem:[%s57 + $0x8] sm:$0xff]
      %v5459 = vld [vmem:[%s57 + $0x10] sm:$0xff]
      %v5460 = vld [vmem:[%s57 + $0x18] sm:$0xff]
      %v5461 = vld [vmem:[%s57 + $0x20] sm:$0xff]
      %v5462 = vld [vmem:[%s57 + $0x28] sm:$0xff]
      %v5463 = vld [vmem:[%s57 + $0x30] sm:$0xff]
      %v5464 = vld [vmem:[%s57 + $0x38] sm:$0xff]
      %v5465 = vld [vmem:[%s59] sm:$0x1]
      %v5467 = vperm.slane %v5465, 0
      %v5470 = vsel %vm1288, %v5453, 0
      %v5473 = vsel %vm1288, %v5454, 0
      %v5476 = vsel %vm1288, %v5455, 0
      %v5479 = vsel %vm1288, %v5456, 0
      %5481 = vmatpush.msra.mxu0 0.0
      %5482 = vmatpush.msra.mxu0 0.0
      %5483 = vmatpush.msra.mxu0 0.0
      %5484 = vmatpush.msra.mxu0 0.0
      %5485 = vmatpush.msra.mxu0 0.0
      %5486 = vmatpush.msra.mxu0 0.0
      %5487 = vmatpush.msra.mxu0 0.0
      %5488 = vmatpush.msra.mxu0 0.0
      %5489 = vmatpush.msra.mxu0 %v5464
      %5490 = vmatpush.msra.mxu0 %v5463
      %5491 = vmatpush.msra.mxu0 %v5462
      %5492 = vmatpush.msra.mxu0 %v5461
      %5493 = vmatpush.msra.mxu0 %v5460
      %5494 = vmatpush.msra.mxu0 %v5459
      %5495 = vmatpush.msra.mxu0 %v5458
      %5496 = vmatpush.msra.mxu0 %v5457
      %5497 = vmatmul.f32.gmra.mxu0 %v5470
      %v5498 = vpop.f32.mrf.mxu0
      %v5499 = vadd.f32 %v5467, %v5498
      %5500 = vmatmul.f32.gmra.mxu0 %v5473
      %v5501 = vpop.f32.mrf.mxu0
      %v5502 = vadd.f32 %v5467, %v5501
      %5503 = vmatmul.f32.gmra.mxu0 %v5476
      %v5504 = vpop.f32.mrf.mxu0
      %v5505 = vadd.f32 %v5467, %v5504
      %5506 = vmatmul.f32.gmra.mxu0 %v5479
      %v5507 = vpop.f32.mrf.mxu0
      %v5508 = vadd.f32 %v5467, %v5507
      %5509 = vdwg.mxu0
      %v5510 = vmul.f32 %v5499, %v1038
      %v5511 = vmul.f32 %v5502, %v1043
      %v5512 = vmul.f32 %v5505, %v1048
      %v5513 = vmul.f32 %v5508, %v1053
      %v5514 = vmul.f32 %v5510, 1.442695
      %v5515 = vpow.pop %v5514
      %v5516 = vmul.f32 %v5511, 1.442695
      %v5517 = vpow.pop %v5516
      %v5518 = vmul.f32 %v5512, 1.442695
      %v5519 = vpow.pop %v5518
      %v5520 = vmul.f32 %v5513, 1.442695
      %v5521 = vpow.pop %v5520
      %5526 = vrot.lane.b32.xlu0 %v5515, 120
      %v5527 = vpop.permute.xlu0 %5526
      %5528 = vrot.lane.b32.xlu0 %v5517, 120
      %v5529 = vpop.permute.xlu0 %5528
      %5530 = vrot.lane.b32.xlu0 %v5519, 120
      %v5531 = vpop.permute.xlu0 %5530
      %5532 = vrot.lane.b32.xlu0 %v5521, 120
      %v5533 = vpop.permute.xlu0 %5532
      %v5538 = vmul.f32 %v1026, %v5527
      %v5539 = vmul.f32 %v1027, %v5529
      %v5540 = vmul.f32 %v1028, %v5531
      %v5541 = vmul.f32 %v1029, %v5533
      %v5542 = vmul.f32 %v5538, %v1038
      %v5543 = vmul.f32 %v5539, %v1043
      %v5544 = vmul.f32 %v5540, %v1048
      %v5545 = vmul.f32 %v5541, %v1053
      %v5546 = vadd.f32 %v5510, %v5542
      %v5547 = vadd.f32 %v5511, %v5543
      %v5548 = vadd.f32 %v5512, %v5544
      %v5549 = vadd.f32 %v5513, %v5545
      %5554 = vrot.lane.b32.xlu0 %v5546, 8
      %v5555 = vpop.permute.xlu0 %5554
      %5556 = vrot.lane.b32.xlu0 %v5547, 8
      %v5557 = vpop.permute.xlu0 %5556
      %5558 = vrot.lane.b32.xlu0 %v5548, 8
      %v5559 = vpop.permute.xlu0 %5558
      %5560 = vrot.lane.b32.xlu0 %v5549, 8
      %v5561 = vpop.permute.xlu0 %5560
      %v5566 = vsel %vm1114, %v1022, %v5555
      %v5567 = vsel %vm1114, %v1023, %v5557
      %v5568 = vsel %vm1114, %v1024, %v5559
      %v5569 = vsel %vm1114, %v1025, %v5561
      %5574 = vrot.lane.b32.xlu0 %v5510, 120
      %v5575 = vpop.permute.xlu0 %5574
      %5576 = vrot.lane.b32.xlu0 %v5511, 120
      %v5577 = vpop.permute.xlu0 %5576
      %5578 = vrot.lane.b32.xlu0 %v5512, 120
      %v5579 = vpop.permute.xlu0 %5578
      %5580 = vrot.lane.b32.xlu0 %v5513, 120
      %v5581 = vpop.permute.xlu0 %5580
      %v5586 = vsel %vm1114, %v5575, 0.0
      %v5587 = vsel %vm1114, %v5577, 0.0
      %v5588 = vadd.f32 %v5586, %v5587
      %v5589 = vsel %vm1114, %v5579, 0.0
      %v5590 = vadd.f32 %v5588, %v5589
      %v5591 = vsel %vm1114, %v5581, 0.0
      %v5592 = vadd.f32 %v5590, %v5591
      %5593 = vadd.xlane.f32.xlu0 %v5592
      %v5594 = vpop.xlane.xlu0 %5593
      %v5595 = vrot.slane %v5594, 4
      %v5596 = vadd.f32 %v5594, %v5595
      %v5597 = vrot.slane %v5596, 2
      %v5598 = vadd.f32 %v5596, %v5597
      %v5599 = vrot.slane %v5598, 1
      %v5600 = vadd.f32 %v5598, %v5599
      %s5601 = vtos %v5600
      %vm5602 = vcmask 130048
      %5603 = vst.msk [vmem:[%s1018] sm:$0xff] %vm5602, %v5566
      %5604 = vst.msk [vmem:[%s1018 + $0x8] sm:$0xff] %vm5602, %v5567
      %5605 = vst.msk [vmem:[%s1018 + $0x10] sm:$0xff] %vm5602, %v5568
      %5606 = vst.msk [vmem:[%s1018 + $0x18] sm:$0xff] %vm5602, %v5569
      %v5607 = vstv %s5601
      %vm5608 = vcmask 0
      %5609 = vst.msk [vmem:[%s1021] sm:$0x1] %vm5608, %v5607
      %p5610 = scmp.lt.s32.totalorder %s75, 1
      %s5611 = scalar_select %p5610, %s75, 1
      %s5612 = smul.addr %s5611, 4
      %s5613 = smul.addr %s5612, 8
      %s5614 = scalar_lea.vmem %s61, %s5613
      %p5615 = scmp.lt.s32.totalorder %s75, 1
      %s5616 = scalar_select %p5615, %s75, 1
      %s5617 = scalar_lea.vmem %s63, %s5616
      // Predicated region
      $region141: #{transformer_coupling_forward.1} parent=139 // pred_check
        %p5618 = pneg %p743
      $region142: #{transformer_coupling_forward.1} parent=139 // pred_check_branch
        %5620 = sbr.rel (%p5618) target = $region144
      $region143: #{transformer_coupling_forward.1} parent=139 // pred_region
        _
      $region144: #{transformer_coupling_forward.1} parent=139 // pred_fallthru
        _
      // Predicated region
      $region145: #{transformer_coupling_forward.1} parent=139 // pred_check
        %p5621 = pneg %p769
      $region146: #{transformer_coupling_forward.1} parent=139 // pred_check_branch
        %5623 = sbr.rel (%p5621) target = $region148
      $region147: #{transformer_coupling_forward.1} parent=139 // pred_region
        _
      $region148: #{transformer_coupling_forward.1} parent=139 // pred_fallthru
        _
    $region140: #{transformer_coupling_forward.1} parent=5 // pred_fallthru
      _
    %p5624 = scmp.le.s32.totalorder 2, %s70
    // Predicated region
    $region149: #{transformer_coupling_forward.1} parent=5 // pred_check
      %p5625 = pneg %p5624
    $region150: #{transformer_coupling_forward.1} parent=5 // pred_check_branch
      %5627 = sbr.rel (%p5625) target = $region152
    $region151: #{transformer_coupling_forward.1} parent=5 // pred_region
      %s5628 = ssub.s32 %s70, 2
      // Predicated region
      $region153: #{transformer_coupling_forward.1} parent=151 // pred_check
        %p5629 = pneg %p749
      $region154: #{transformer_coupling_forward.1} parent=151 // pred_check_branch
        %5631 = sbr.rel (%p5629) target = $region156
      $region155: #{transformer_coupling_forward.1} parent=151 // pred_region
        %p5632 = scmp.lt.s32.totalorder %s76, 1
        %s5633 = scalar_select %p5632, %s76, 1
        %s5634 = smul.addr %s5633, 4
        %s5635 = smul.addr %s5634, 8
        %s5636 = scalar_lea.vmem %s61, %s5635
      $region156: #{transformer_coupling_forward.1} parent=151 // pred_fallthru
        _
      // Predicated region
      $region157: #{transformer_coupling_forward.1} parent=151 // pred_check
        %p5637 = pneg %p775
      $region158: #{transformer_coupling_forward.1} parent=151 // pred_check_branch
        %5639 = sbr.rel (%p5637) target = $region160
      $region159: #{transformer_coupling_forward.1} parent=151 // pred_region
        %p5640 = scmp.lt.s32.totalorder %s76, 1
        %s5641 = scalar_select %p5640, %s76, 1
        %s5642 = scalar_lea.vmem %s63, %s5641
      $region160: #{transformer_coupling_forward.1} parent=151 // pred_fallthru
        _
    $region152: #{transformer_coupling_forward.1} parent=5 // pred_fallthru
      _
  $region6: #{transformer_coupling_forward.1} parent=0 // loop_footer
    %s74 = sadd.s32 1, %s70
  $region7: #{transformer_coupling_forward.1} parent=0 // loop_footer_branch
    %69 = sbr.rel target = $region3
  $region8: #{transformer_coupling_forward.1} parent=0 // loop_exit
    _

</llo_original>
